<compile_context>
chip_gen: v7x
topology: tpu7x:2x2x1
jax: 0.10.0
libtpu: 0.0.40
codegen_flags: <defaults>
</compile_context>

<pallas_src>
import functools

import jax
import jax.numpy as jnp
from jax.experimental import pallas as pl
from jax.experimental.pallas import tpu as pltpu


# ----------------------------------------------------------------------------- utilities
def _ru(x, m):
    return ((x + m - 1) // m) * m


def _pick_tile(total, cap, step=128):
    """Largest multiple of `step` <= cap dividing `total` (total is a multiple of step)."""
    t = max(step, min(cap, total))
    t = (t // step) * step
    while total % t:
        t -= step
    return t


TM_CAP, TN_CAP, TK_CAP = 512, 256, 512


# ------------------------------------------------------------------- Pallas kernel bodies
def _mm_kernel(x_ref, w_ref, b_ref, o_ref, acc_ref, *, act):
    """Tiled matmul, f32 accumulator; epilogue = + BN shift, ELU / none, bf16 store."""
    @pl.when(pl.program_id(2) == 0)
    def _init():
        acc_ref[...] = jnp.zeros_like(acc_ref)

    acc_ref[...] += jnp.dot(x_ref[...], w_ref[...], preferred_element_type=jnp.float32)

    @pl.when(pl.program_id(2) == pl.num_programs(2) - 1)
    def _finalize():
        r = acc_ref[...] + b_ref[...]
        if act == "elu":
            r = jnp.where(r > 0.0, r, jnp.exp(jnp.minimum(r, 0.0)) - 1.0)
        o_ref[...] = r.astype(o_ref.dtype)


def _conv_row_kernel(x_ref, w_ref, b_ref, o_ref, acc_ref, *, kh_taps, kw_taps, dil, wout, act):
    """Fused stride-1 conv: one output row per block, kh tap = innermost grid reduction,
    kw taps = static slices of the full-width padded input row (no im2col in HBM)."""
    kh = pl.program_id(3)

    @pl.when(kh == 0)
    def _init():
        acc_ref[...] = jnp.zeros_like(acc_ref)

    for kw in range(kw_taps):
        xs = x_ref[0, 0, kw * dil: kw * dil + wout, :]              # (Wout, Cinp) bf16
        acc_ref[...] += jnp.dot(xs, w_ref[0, kw],
                                preferred_element_type=jnp.float32)

    @pl.when(kh == kh_taps - 1)
    def _finalize():
        r = acc_ref[...] + b_ref[...]
        if act == "elu":
            r = jnp.where(r > 0.0, r, jnp.exp(jnp.minimum(r, 0.0)) - 1.0)
        o_ref[0, 0] = r.astype(o_ref.dtype)


def _proj1_kernel(x_ref, w_ref, b_ref, o_ref):
    """out[g, r] = sum_k x[g, r, k] * w[k] + b  -- VPU multiply + lane reduction,
    lane-dense (tg, 128) output (no 1-wide masked stores)."""
    x = x_ref[...].astype(jnp.float32)                               # (tg, 128, Kp)
    o_ref[...] = jnp.sum(x * w_ref[...], axis=-1) + b_ref[...]


# --------------------------------------------------------------------- Pallas call wrappers
def fused_matmul(x, layer, act="none"):
    """x:(M,K) @ prepadded bf16 weight (Kp,Np) + shift -> (M, Np) bf16 (padded N kept)."""
    wp, bp = layer["w"], layer["b"]
    Kp, Np = wp.shape
    M, Kx = x.shape

    tm = min(TM_CAP, _ru(M, 128))
    Mp = _ru(M, tm)
    tk = _pick_tile(Kp, TK_CAP)
    tn = _pick_tile(Np, TN_CAP)
    # v7x: keep both TensorCores busy -- ensure >=2 blocks on a parallel axis when cheap.
    if Mp // tm == 1 and Np // tn == 1 and Np >= 256 and (Np // 2) % 128 == 0:
        tn = Np // 2

    if (M, Kx) == (Mp, Kp) and x.dtype == jnp.bfloat16:
        xp = x                                   # already padded/cast by the producer
    else:
        xp = jnp.zeros((Mp, Kp), jnp.bfloat16).at[:M, :Kx].set(x.astype(jnp.bfloat16))

    out = pl.pallas_call(
        functools.partial(_mm_kernel, act=act),
        out_shape=jax.ShapeDtypeStruct((Mp, Np), jnp.bfloat16),
        grid=(Mp // tm, Np // tn, Kp // tk),
        in_specs=[
            pl.BlockSpec((tm, tk), lambda i, j, k: (i, k)),
            pl.BlockSpec((tk, tn), lambda i, j, k: (k, j)),
            pl.BlockSpec((1, tn), lambda i, j, k: (0, j)),
        ],
        out_specs=pl.BlockSpec((tm, tn), lambda i, j, k: (i, j)),
        scratch_shapes=[pltpu.VMEM((tm, tn), jnp.float32)],
        compiler_params=pltpu.CompilerParams(
            dimension_semantics=("parallel", "parallel", "arbitrary")),
    )(xp, wp, bp)
    return out[:M]                                # keep padded-N bf16 columns for chaining


def conv3_fused(x, layer, padding, dilation, act="elu"):
    """Stride-1 KHxKW conv on NHWC bf16 (channels padded to 128).  No im2col buffer."""
    N, H, W, Cp = x.shape
    KH, KW = layer["kh"], layer["kw"]
    Cinp, Coutp = layer["w"].shape[2], layer["w"].shape[3]
    assert Cp == Cinp, (Cp, Cinp)
    Hp, Wp = H + 2 * padding, W + 2 * padding
    Hout = Hp - dilation * (KH - 1)
    Wout = Wp - dilation * (KW - 1)
    xp = jnp.pad(x.astype(jnp.bfloat16),
                 ((0, 0), (padding, padding), (padding, padding), (0, 0)))
    tn = _pick_tile(Coutp, TN_CAP)

    kern = functools.partial(_conv_row_kernel, kh_taps=KH, kw_taps=KW,
                             dil=dilation, wout=Wout, act=act)
    out = pl.pallas_call(
        kern,
        out_shape=jax.ShapeDtypeStruct((N, Hout, Wout, Coutp), jnp.bfloat16),
        grid=(N, Hout, Coutp // tn, KH),
        in_specs=[
            # H-block size 1 => index_map offsets are element-granular (h + kh*dilation)
            pl.BlockSpec((1, 1, Wp, Cinp), lambda n, h, j, kh: (n, h + kh * dilation, 0, 0)),
            pl.BlockSpec((1, KW, Cinp, tn), lambda n, h, j, kh: (kh, 0, 0, j)),
            pl.BlockSpec((1, tn), lambda n, h, j, kh: (0, j)),
        ],
        out_specs=pl.BlockSpec((1, 1, Wout, tn), lambda n, h, j, kh: (n, h, 0, j)),
        scratch_shapes=[pltpu.VMEM((Wout, tn), jnp.float32)],
        compiler_params=pltpu.CompilerParams(
            dimension_semantics=("parallel", "parallel", "parallel", "arbitrary")),
    )(xp, layer["w"], layer["b"])
    return out


def pallas_proj1(x, w, b):
    """(M,K) @ (K,) + b -> (M,)  -- bf16 input, lane-dense (G,128) output."""
    M, K = x.shape
    Kp = _ru(K, 128)
    G = -(-M // 128)
    if G >= 8:
        tg, Gp = 8, _ru(G, 8)
    else:
        tg, Gp = G, G
    Mp = Gp * 128
    if (M, K) == (Mp, Kp) and x.dtype == jnp.bfloat16:
        xp = x
    else:
        xp = jnp.zeros((Mp, Kp), jnp.bfloat16).at[:M, :K].set(x.astype(jnp.bfloat16))
    x3 = xp.reshape(Gp, 128, Kp)
    wp = jnp.zeros((1, 1, Kp), jnp.float32).at[0, 0, :K].set(w.astype(jnp.float32))
    bp = jnp.asarray(b, jnp.float32).reshape(1, 1)

    out = pl.pallas_call(
        _proj1_kernel,
        out_shape=jax.ShapeDtypeStruct((Gp, 128), jnp.float32),
        grid=(Gp // tg,),
        in_specs=[
            pl.BlockSpec((tg, 128, Kp), lambda i: (i, 0, 0)),
            pl.BlockSpec((1, 1, Kp), lambda i: (0, 0, 0)),
            pl.BlockSpec((1, 1), lambda i: (0, 0)),
        ],
        out_specs=pl.BlockSpec((tg, 128), lambda i: (i, 0)),
        compiler_params=pltpu.CompilerParams(dimension_semantics=("parallel",)),
    )(x3, wp, bp)
    return out.reshape(Mp)[:M]


# --------------------------------------------------------------------------- conv / resize glue
def conv2d_im2col(x, layer, stride, padding, act="elu"):
    """Stride-2 synthetic convs only (tiny Cin): small bf16 im2col + tiled Pallas matmul."""
    N, H, W, Cin = x.shape
    KH, KW = layer["kh"], layer["kw"]
    xp = jnp.pad(x.astype(jnp.bfloat16),
                 ((0, 0), (padding, padding), (padding, padding), (0, 0)))
    Hout = (H + 2 * padding - (KH - 1) - 1) // stride + 1
    Wout = (W + 2 * padding - (KW - 1) - 1) // stride + 1
    patches = []
    for kh in range(KH):
        for kw in range(KW):
            patches.append(xp[:, kh:kh + (Hout - 1) * stride + 1:stride,
                                 kw:kw + (Wout - 1) * stride + 1:stride, :])
    cols = jnp.concatenate(patches, axis=-1).reshape(N * Hout * Wout, KH * KW * Cin)
    out = fused_matmul(cols, layer, act=act)
    return out.reshape(N, Hout, Wout, out.shape[-1])


def bilinear_resize(x, out_h, out_w):
    """F.interpolate(mode='bilinear', align_corners=False) on NHWC (reads in input dtype)."""
    N, H, W, C = x.shape
    if (H, W) == (out_h, out_w):
        return x

    def src_idx(out_size, in_size):
        scale = in_size / out_size
        s = jnp.maximum((jnp.arange(out_size, dtype=jnp.float32) + 0.5) * scale - 0.5, 0.0)
        i0 = jnp.minimum(jnp.floor(s).astype(jnp.int32), in_size - 1)
        i1 = jnp.minimum(i0 + 1, in_size - 1)
        return i0, i1, s - i0.astype(jnp.float32)

    h0, h1, hf = src_idx(out_h, H)
    w0, w1, wf = src_idx(out_w, W)
    rows = x[:, h0] * (1.0 - hf)[None, :, None, None] + x[:, h1] * hf[None, :, None, None]
    out = rows[:, :, w0] * (1.0 - wf)[None, None, :, None] + rows[:, :, w1] * wf[None, None, :, None]
    return out


# ------------------------------------------------------------------------------- parameters
C_IN, LOW_C, HIGH_C = 3, 16, 64          # synthetic encoder: channels = (64, ..., 16, ...)
ASPP_P, DEC_IN = 256, 64                 # hard-coded in the module
NUM_OUT = 1                              # num_outputs (segmentation channels)
DIM_FEATS, NUM_CLASSES = 32, 3           # synthetic backbone feature dim; fc classes


def _conv_w(key, kh, kw, cin, cout):
    return jax.random.normal(key, (kh, kw, cin, cout), jnp.float32) / jnp.sqrt(kh * kw * cin)


def _bn_p(key, c):
    k1, k2, k3, k4 = jax.random.split(key, 4)
    gamma = 1.0 + 0.1 * jax.random.normal(k1, (c,), jnp.float32)
    beta = 0.1 * jax.random.normal(k2, (c,), jnp.float32)
    mean = 0.1 * jax.random.normal(k3, (c,), jnp.float32)
    var = 1.0 + 0.1 * jax.random.uniform(k4, (c,), jnp.float32)
    return gamma, beta, mean, var


def init_params(key):
    ks = iter(jax.random.split(key, 64))
    p = {}
    # synthetic encoder
    p["enc_w1"], p["enc_bn1"] = _conv_w(next(ks), 3, 3, C_IN, LOW_C), _bn_p(next(ks), LOW_C)
    p["enc_w2"], p["enc_bn2"] = _conv_w(next(ks), 3, 3, LOW_C, HIGH_C), _bn_p(next(ks), HIGH_C)
    # ASPP
    p["aspp1_w"], p["aspp1_bn"] = _conv_w(next(ks), 1, 1, HIGH_C, ASPP_P), _bn_p(next(ks), ASPP_P)
    for i in (2, 3, 4):
        p[f"aspp{i}_w"], p[f"aspp{i}_bn"] = _conv_w(next(ks), 3, 3, HIGH_C, ASPP_P), _bn_p(next(ks), ASPP_P)
    p["aspp_gap_w"], p["aspp_gap_bn"] = _conv_w(next(ks), 1, 1, HIGH_C, ASPP_P), _bn_p(next(ks), ASPP_P)
    p["aspp_out_w"], p["aspp_out_bn"] = _conv_w(next(ks), 1, 1, 5 * ASPP_P, ASPP_P), _bn_p(next(ks), ASPP_P)
    # Decoder
    p["dec_low_w"], p["dec_low_bn"] = _conv_w(next(ks), 1, 1, LOW_C, DEC_IN), _bn_p(next(ks), DEC_IN)
    p["dec_w1"], p["dec_bn1"] = _conv_w(next(ks), 3, 3, ASPP_P + DEC_IN, ASPP_P), _bn_p(next(ks), ASPP_P)
    p["dec_w2"], p["dec_bn2"] = _conv_w(next(ks), 3, 3, ASPP_P, ASPP_P), _bn_p(next(ks), ASPP_P)
    p["dec_w3"] = _conv_w(next(ks), 1, 1, ASPP_P, NUM_OUT)
    p["dec_b3"] = 0.01 * jax.random.normal(next(ks), (NUM_OUT,), jnp.float32)
    # synthetic backbone + fc
    p["bb_w"], p["bb_bn"] = _conv_w(next(ks), 3, 3, 3 * NUM_OUT, DIM_FEATS), _bn_p(next(ks), DIM_FEATS)
    p["fc_w"] = jax.random.normal(next(ks), (DIM_FEATS, NUM_CLASSES), jnp.float32) / jnp.sqrt(DIM_FEATS)
    p["fc_b"] = 0.01 * jax.random.normal(next(ks), (NUM_CLASSES,), jnp.float32)
    return p


# ------------------------------------------------------------ parameter preparation (one-time)
def _bn_fold(bn):
    gamma, beta, mean, var = bn
    scale = gamma / jnp.sqrt(var + 1e-5)
    shift = beta - mean * scale
    return scale, shift


def _prep_mat(wmat, shift, kh=1, kw=1):
    """Pad K/N to multiples of 128, cast weights to bf16, keep shift in f32."""
    K, N = wmat.shape
    Kp, Np = _ru(K, 128), _ru(N, 128)
    wp = jnp.zeros((Kp, Np), jnp.bfloat16).at[:K, :N].set(wmat.astype(jnp.bfloat16))
    bp = jnp.zeros((1, Np), jnp.float32).at[0, :N].set(shift.astype(jnp.float32))
    return dict(w=wp, b=bp, k=K, n=N, kh=kh, kw=kw)


def _prep_conv_mat(w, bn):
    """Matmul path (1x1 / im2col): fold eval BN scale into weight, reshape to (K, N)."""
    KH, KW, Cin, Cout = w.shape
    scale, shift = _bn_fold(bn)
    wmat = (w * scale).reshape(KH * KW * Cin, Cout)
    return _prep_mat(wmat, shift, KH, KW)


def _prep_conv_fused(w, bn):
    """Fused stride-1 conv path: (KH, KW, Cin_pad128, Cout_pad128) bf16 weight + f32 shift."""
    KH, KW, Cin, Cout = w.shape
    scale, shift = _bn_fold(bn)
    Cinp, Coutp = _ru(Cin, 128), _ru(Cout, 128)
    wp = jnp.zeros((KH, KW, Cinp, Coutp), jnp.bfloat16)
    wp = wp.at[:, :, :Cin, :Cout].set((w * scale).astype(jnp.bfloat16))
    bp = jnp.zeros((1, Coutp), jnp.float32).at[0, :Cout].set(shift.astype(jnp.float32))
    return dict(w=wp, b=bp, kh=KH, kw=KW, cin=Cin, cout=Cout)


def prepare_params(p):
    prep = {}
    prep["enc1"] = _prep_conv_mat(p["enc_w1"], p["enc_bn1"])
    prep["enc2"] = _prep_conv_mat(p["enc_w2"], p["enc_bn2"])
    prep["aspp1"] = _prep_conv_mat(p["aspp1_w"], p["aspp1_bn"])         # 1x1
    for i in (2, 3, 4):
        prep[f"aspp{i}"] = _prep_conv_fused(p[f"aspp{i}_w"], p[f"aspp{i}_bn"])
    # GAP branch conv is (N,1,1,C) -> plain jnp (pallas_call overhead dominates there)
    gscale, gshift = _bn_fold(p["aspp_gap_bn"])
    prep["gap_w"] = p["aspp_gap_w"].reshape(HIGH_C, ASPP_P) * gscale[None, :]
    prep["gap_b"] = gshift
    prep["aspp_out"] = _prep_conv_mat(p["aspp_out_w"], p["aspp_out_bn"])  # 1x1, K=1280
    prep["dec_low"] = _prep_conv_mat(p["dec_low_w"], p["dec_low_bn"])     # 1x1
    prep["dec1"] = _prep_conv_fused(p["dec_w1"], p["dec_bn1"])
    prep["dec2"] = _prep_conv_fused(p["dec_w2"], p["dec_bn2"])
    prep["dec3_w"] = p["dec_w3"].reshape(ASPP_P)
    prep["dec3_b"] = p["dec_b3"].reshape(())
    # backbone: fold cat([seg]*3) replication into the weight (sum the Cin groups)
    bb_w_eff = jnp.sum(p["bb_w"], axis=2, keepdims=True)                  # (3,3,1,DIM_FEATS)
    prep["bb"] = _prep_conv_mat(bb_w_eff, p["bb_bn"])
    prep["fc_w"] = p["fc_w"]
    prep["fc_b"] = p["fc_b"]
    return prep


# --------------------------------------------------------------------------------- forward
def deeplab_cls_forward_test(prep, x_nchw):
    """Eval-mode forward (DeepLabCls.forward_test). Returns sigmoid(fc(feat)[:, 0])."""
    x = jnp.transpose(x_nchw.astype(jnp.float32), (0, 2, 3, 1))           # NHWC
    N, H, W, _ = x.shape

    # ---- encoder (synthetic stand-in; stride-2 -> small im2col fallback) ----------------
    x1 = conv2d_im2col(x, prep["enc1"], stride=2, padding=1, act="elu")   # (N,H/2,W/2,128) logical 16
    x4 = conv2d_im2col(x1[..., :LOW_C], prep["enc2"], stride=2, padding=1, act="elu")  # logical 64

    Nn, H4, W4, _ = x4.shape
    M4 = Nn * H4 * W4

    # ---- ASPP (center) -------------------------------------------------------------------
    b1 = fused_matmul(x4.reshape(M4, -1), prep["aspp1"], act="elu").reshape(Nn, H4, W4, ASPP_P)
    branches = [b1]
    for i, d in zip((2, 3, 4), (6, 12, 18)):
        branches.append(conv3_fused(x4, prep[f"aspp{i}"], padding=d, dilation=d, act="elu"))
    # GAP branch: AdaptiveAvgPool2d((1,1)) + 1x1 conv + BN + ELU  (tiny -> plain jnp)
    gap = jnp.mean(x4[..., :HIGH_C].astype(jnp.float32), axis=(1, 2))     # (N, 64)
    x5 = jax.nn.elu(gap @ prep["gap_w"] + prep["gap_b"][None, :])         # (N, 256)
    x5 = jnp.broadcast_to(x5[:, None, None, :].astype(jnp.bfloat16), (Nn, H4, W4, ASPP_P))
    cat = jnp.concatenate(branches + [x5], axis=-1)                       # (N,H4,W4,1280) bf16, aligned
    aspp_out = fused_matmul(cat.reshape(M4, 5 * ASPP_P), prep["aspp_out"], act="elu")
    aspp_out = aspp_out.reshape(Nn, H4, W4, ASPP_P)                       # Dropout2d: eval identity

    # ---- Decoder ----------------------------------------------------------------------------
    N1, H1, W1 = x1.shape[0], x1.shape[1], x1.shape[2]
    low = fused_matmul(x1.reshape(N1 * H1 * W1, -1), prep["dec_low"], act="elu")
    low = low.reshape(N1, H1, W1, -1)                                     # (N,H1,W1,128) logical 64
    up = bilinear_resize(aspp_out, H1, W1).astype(jnp.bfloat16)           # bf16 reads
    dcat = jnp.concatenate([up, low], axis=-1)                            # (N,H1,W1,384) aligned
    d = conv3_fused(dcat, prep["dec1"], padding=1, dilation=1, act="elu")
    d = conv3_fused(d, prep["dec2"], padding=1, dilation=1, act="elu")
    Md = N1 * H1 * W1
    seg = pallas_proj1(d.reshape(Md, ASPP_P), prep["dec3_w"], prep["dec3_b"])
    seg = seg.reshape(N1, H1, W1, NUM_OUT)

    # ---- final upsample + sigmoid (XLA fuses the elementwise into the resize) --------------
    seg = bilinear_resize(seg.astype(jnp.float32), H, W)
    seg = jax.nn.sigmoid(seg)                                             # apply_sigmoid=True

    # ---- backbone (synthetic stand-in) + fc --------------------------------------------------
    # cat([seg]*3) folded into the backbone weight at prep time (Cin 3 -> 1).
    fmap = conv2d_im2col(seg, prep["bb"], stride=2, padding=1, act="elu")
    feat = jnp.mean(fmap[..., :DIM_FEATS].astype(jnp.float32), axis=(1, 2))  # (N, dim_feats); Dropout: id
    logits = feat @ prep["fc_w"] + prep["fc_b"][None, :]                  # tiny -> plain jnp
    return jax.nn.sigmoid(logits[:, 0])


# ------------------------------------------------------------------------------------- main
if __name__ == "__main__":
    key = jax.random.PRNGKey(0)
    k_params, k_input = jax.random.split(key)
    params = init_params(k_params)
    prep = prepare_params(params)   # one-time: BN fold, reshape, pad, bf16 cast
    x = jax.random.normal(k_input, (2, C_IN, 16, 16), jnp.float32)        # NCHW, as in PyTorch

    fwd = jax.jit(functools.partial(deeplab_cls_forward_test, prep))
    out = fwd(x)
    jax.block_until_ready(out)
    assert out.shape == (2,)
    print("KERNEL_OK")
</pallas_src>

<mosaic_0001>
module attributes {stable_mosaic.version = 11 : i64} {
  func.func @_mm_kernel(%arg0: i32, %arg1: i32, %arg2: i32, %arg3: memref<128x128xbf16, #tpu.memory_space<vmem>>, %arg4: memref<128x128xbf16, #tpu.memory_space<vmem>>, %arg5: memref<1x128xf32, #tpu.memory_space<vmem>>, %arg6: memref<128x128xbf16, #tpu.memory_space<vmem>>, %arg7: memref<128x128xf32, #tpu.memory_space<vmem>>) attributes {dimension_semantics = [#tpu.dimension_semantics<parallel>, #tpu.dimension_semantics<parallel>, #tpu.dimension_semantics<arbitrary>], iteration_bounds = array<i64: 1, 1, 1>, scalar_prefetch = 0 : i64, scratch_operands = 1 : i64, tpu.core_type = #tpu.core_type<tc>, window_params = [{transform_indices = @transform_0, window_bounds = array<i64: 128, 128>}, {transform_indices = @transform_1, window_bounds = array<i64: 128, 128>}, {transform_indices = @transform_2, window_bounds = array<i64: 1, 128>}, {transform_indices = @transform_3, window_bounds = array<i64: 128, 128>}]} {
    %c0_i32 = arith.constant 0 : i32
    %0 = arith.cmpi eq, %arg2, %c0_i32 : i32
    %1 = arith.extui %0 : i1 to i32
    %c0_i32_0 = arith.constant 0 : i32
    %2 = arith.cmpi ne, %1, %c0_i32_0 : i32
    scf.if %2 {
      %cst_10 = arith.constant 0.000000e+00 : f32
      %12 = vector.broadcast %cst_10 : f32 to vector<128x128xf32>
      %c0_11 = arith.constant 0 : index
      %c0_12 = arith.constant 0 : index
      %13 = vector.load %arg7[%c0_11, %c0_12] : memref<128x128xf32, #tpu.memory_space<vmem>>, vector<128x128xf32>
      tpu.vector_store %arg7[%c0_11, %c0_12], %12 {strides = array<i32>} : memref<128x128xf32, #tpu.memory_space<vmem>>, vector<128x128xf32>,
    } else {
    }
    %c0 = arith.constant 0 : index
    %c0_1 = arith.constant 0 : index
    %3 = vector.load %arg7[%c0, %c0_1] : memref<128x128xf32, #tpu.memory_space<vmem>>, vector<128x128xf32>
    %c0_2 = arith.constant 0 : index
    %c0_3 = arith.constant 0 : index
    %4 = vector.load %arg3[%c0_2, %c0_3] : memref<128x128xbf16, #tpu.memory_space<vmem>>, vector<128x128xbf16>
    %c0_4 = arith.constant 0 : index
    %c0_5 = arith.constant 0 : index
    %5 = vector.load %arg4[%c0_4, %c0_5] : memref<128x128xbf16, #tpu.memory_space<vmem>>, vector<128x128xbf16>
    %cst = arith.constant dense<0.000000e+00> : vector<128x128xf32>
    %6 = tpu.matmul %4, %5, %cst {dimension_numbers = #tpu.dot_dimension_numbers<[1], [0], [0], [1], [0, 0, 1, 1], [], []>} : vector<128x128xbf16>, vector<128x128xbf16>, vector<128x128xf32> -> vector<128x128xf32>
    %7 = arith.addf %3, %6 : vector<128x128xf32>
    %c0_6 = arith.constant 0 : index
    %c0_7 = arith.constant 0 : index
    %8 = vector.load %arg7[%c0_6, %c0_7] : memref<128x128xf32, #tpu.memory_space<vmem>>, vector<128x128xf32>
    tpu.vector_store %arg7[%c0_6, %c0_7], %7 {strides = array<i32>} : memref<128x128xf32, #tpu.memory_space<vmem>>, vector<128x128xf32>,
    %c0_i32_8 = arith.constant 0 : i32
    %9 = arith.cmpi eq, %arg2, %c0_i32_8 : i32
    %10 = arith.extui %9 : i1 to i32
    %c0_i32_9 = arith.constant 0 : i32
    %11 = arith.cmpi ne, %10, %c0_i32_9 : i32
    scf.if %11 {
      %c0_10 = arith.constant 0 : index
      %c0_11 = arith.constant 0 : index
      %12 = vector.load %arg7[%c0_10, %c0_11] : memref<128x128xf32, #tpu.memory_space<vmem>>, vector<128x128xf32>
      %c0_12 = arith.constant 0 : index
      %c0_13 = arith.constant 0 : index
      %13 = vector.load %arg5[%c0_12, %c0_13] : memref<1x128xf32, #tpu.memory_space<vmem>>, vector<1x128xf32>
      %14 = vector.broadcast %13 : vector<1x128xf32> to vector<128x128xf32>
      %15 = arith.addf %12, %14 : vector<128x128xf32>
      %cst_14 = arith.constant 0.000000e+00 : f32
      %16 = vector.broadcast %cst_14 : f32 to vector<128x128xf32>
      %17 = arith.cmpf ogt, %15, %16 : vector<128x128xf32>
      %cst_15 = arith.constant 0.000000e+00 : f32
      %18 = vector.broadcast %cst_15 : f32 to vector<128x128xf32>
      %19 = arith.minimumf %15, %18 : vector<128x128xf32>
      %20 = math.exp %19 : vector<128x128xf32>
      %cst_16 = arith.constant 1.000000e+00 : f32
      %21 = vector.broadcast %cst_16 : f32 to vector<128x128xf32>
      %22 = arith.subf %20, %21 : vector<128x128xf32>
      %23 = arith.select %17, %15, %22 : vector<128x128xi1>, vector<128x128xf32>
      %24 = arith.truncf %23 : vector<128x128xf32> to vector<128x128xbf16>
      %c0_17 = arith.constant 0 : index
      %c0_18 = arith.constant 0 : index
      %25 = vector.load %arg6[%c0_17, %c0_18] : memref<128x128xbf16, #tpu.memory_space<vmem>>, vector<128x128xbf16>
      tpu.vector_store %arg6[%c0_17, %c0_18], %24 {strides = array<i32>} : memref<128x128xbf16, #tpu.memory_space<vmem>>, vector<128x128xbf16>,
    } else {
    }
    return
  }
  func.func @transform_0(%arg0: i32, %arg1: i32, %arg2: i32) -> (i32, i32) {
    %c0_i32 = arith.constant 0 : i32
    return %arg0, %arg2 : i32, i32
  }
  func.func @transform_1(%arg0: i32, %arg1: i32, %arg2: i32) -> (i32, i32) {
    %c0_i32 = arith.constant 0 : i32
    return %arg2, %arg1 : i32, i32
  }
  func.func @transform_2(%arg0: i32, %arg1: i32, %arg2: i32) -> (i32, i32) {
    %c0_i32 = arith.constant 0 : i32
    %c0_i32_0 = arith.constant 0 : i32
    return %c0_i32, %arg1 : i32, i32
  }
  func.func @transform_3(%arg0: i32, %arg1: i32, %arg2: i32) -> (i32, i32) {
    %c0_i32 = arith.constant 0 : i32
    return %arg0, %arg1 : i32, i32
  }
}

module attributes {stable_mosaic.version = 11 : i64} {
  func.func @_mm_kernel(%arg0: i32, %arg1: i32, %arg2: i32, %arg3: memref<128x256xbf16, #tpu.memory_space<vmem>>, %arg4: memref<256x128xbf16, #tpu.memory_space<vmem>>, %arg5: memref<1x128xf32, #tpu.memory_space<vmem>>, %arg6: memref<128x128xbf16, #tpu.memory_space<vmem>>, %arg7: memref<128x128xf32, #tpu.memory_space<vmem>>) attributes {dimension_semantics = [#tpu.dimension_semantics<parallel>, #tpu.dimension_semantics<parallel>, #tpu.dimension_semantics<arbitrary>], iteration_bounds = array<i64: 1, 1, 1>, scalar_prefetch = 0 : i64, scratch_operands = 1 : i64, tpu.core_type = #tpu.core_type<tc>, window_params = [{transform_indices = @transform_0, window_bounds = array<i64: 128, 256>}, {transform_indices = @transform_1, window_bounds = array<i64: 256, 128>}, {transform_indices = @transform_2, window_bounds = array<i64: 1, 128>}, {transform_indices = @transform_3, window_bounds = array<i64: 128, 128>}]} {
    %c0_i32 = arith.constant 0 : i32
    %0 = arith.cmpi eq, %arg2, %c0_i32 : i32
    %1 = arith.extui %0 : i1 to i32
    %c0_i32_0 = arith.constant 0 : i32
    %2 = arith.cmpi ne, %1, %c0_i32_0 : i32
    scf.if %2 {
      %cst_10 = arith.constant 0.000000e+00 : f32
      %12 = vector.broadcast %cst_10 : f32 to vector<128x128xf32>
      %c0_11 = arith.constant 0 : index
      %c0_12 = arith.constant 0 : index
      %13 = vector.load %arg7[%c0_11, %c0_12] : memref<128x128xf32, #tpu.memory_space<vmem>>, vector<128x128xf32>
      tpu.vector_store %arg7[%c0_11, %c0_12], %12 {strides = array<i32>} : memref<128x128xf32, #tpu.memory_space<vmem>>, vector<128x128xf32>,
    } else {
    }
    %c0 = arith.constant 0 : index
    %c0_1 = arith.constant 0 : index
    %3 = vector.load %arg7[%c0, %c0_1] : memref<128x128xf32, #tpu.memory_space<vmem>>, vector<128x128xf32>
    %c0_2 = arith.constant 0 : index
    %c0_3 = arith.constant 0 : index
    %4 = vector.load %arg3[%c0_2, %c0_3] : memref<128x256xbf16, #tpu.memory_space<vmem>>, vector<128x256xbf16>
    %c0_4 = arith.constant 0 : index
    %c0_5 = arith.constant 0 : index
    %5 = vector.load %arg4[%c0_4, %c0_5] : memref<256x128xbf16, #tpu.memory_space<vmem>>, vector<256x128xbf16>
    %cst = arith.constant dense<0.000000e+00> : vector<128x128xf32>
    %6 = tpu.matmul %4, %5, %cst {dimension_numbers = #tpu.dot_dimension_numbers<[1], [0], [0], [1], [0, 0, 1, 1], [], []>} : vector<128x256xbf16>, vector<256x128xbf16>, vector<128x128xf32> -> vector<128x128xf32>
    %7 = arith.addf %3, %6 : vector<128x128xf32>
    %c0_6 = arith.constant 0 : index
    %c0_7 = arith.constant 0 : index
    %8 = vector.load %arg7[%c0_6, %c0_7] : memref<128x128xf32, #tpu.memory_space<vmem>>, vector<128x128xf32>
    tpu.vector_store %arg7[%c0_6, %c0_7], %7 {strides = array<i32>} : memref<128x128xf32, #tpu.memory_space<vmem>>, vector<128x128xf32>,
    %c0_i32_8 = arith.constant 0 : i32
    %9 = arith.cmpi eq, %arg2, %c0_i32_8 : i32
    %10 = arith.extui %9 : i1 to i32
    %c0_i32_9 = arith.constant 0 : i32
    %11 = arith.cmpi ne, %10, %c0_i32_9 : i32
    scf.if %11 {
      %c0_10 = arith.constant 0 : index
      %c0_11 = arith.constant 0 : index
      %12 = vector.load %arg7[%c0_10, %c0_11] : memref<128x128xf32, #tpu.memory_space<vmem>>, vector<128x128xf32>
      %c0_12 = arith.constant 0 : index
      %c0_13 = arith.constant 0 : index
      %13 = vector.load %arg5[%c0_12, %c0_13] : memref<1x128xf32, #tpu.memory_space<vmem>>, vector<1x128xf32>
      %14 = vector.broadcast %13 : vector<1x128xf32> to vector<128x128xf32>
      %15 = arith.addf %12, %14 : vector<128x128xf32>
      %cst_14 = arith.constant 0.000000e+00 : f32
      %16 = vector.broadcast %cst_14 : f32 to vector<128x128xf32>
      %17 = arith.cmpf ogt, %15, %16 : vector<128x128xf32>
      %cst_15 = arith.constant 0.000000e+00 : f32
      %18 = vector.broadcast %cst_15 : f32 to vector<128x128xf32>
      %19 = arith.minimumf %15, %18 : vector<128x128xf32>
      %20 = math.exp %19 : vector<128x128xf32>
      %cst_16 = arith.constant 1.000000e+00 : f32
      %21 = vector.broadcast %cst_16 : f32 to vector<128x128xf32>
      %22 = arith.subf %20, %21 : vector<128x128xf32>
      %23 = arith.select %17, %15, %22 : vector<128x128xi1>, vector<128x128xf32>
      %24 = arith.truncf %23 : vector<128x128xf32> to vector<128x128xbf16>
      %c0_17 = arith.constant 0 : index
      %c0_18 = arith.constant 0 : index
      %25 = vector.load %arg6[%c0_17, %c0_18] : memref<128x128xbf16, #tpu.memory_space<vmem>>, vector<128x128xbf16>
      tpu.vector_store %arg6[%c0_17, %c0_18], %24 {strides = array<i32>} : memref<128x128xbf16, #tpu.memory_space<vmem>>, vector<128x128xbf16>,
    } else {
    }
    return
  }
  func.func @transform_0(%arg0: i32, %arg1: i32, %arg2: i32) -> (i32, i32) {
    %c0_i32 = arith.constant 0 : i32
    return %arg0, %arg2 : i32, i32
  }
  func.func @transform_1(%arg0: i32, %arg1: i32, %arg2: i32) -> (i32, i32) {
    %c0_i32 = arith.constant 0 : i32
    return %arg2, %arg1 : i32, i32
  }
  func.func @transform_2(%arg0: i32, %arg1: i32, %arg2: i32) -> (i32, i32) {
    %c0_i32 = arith.constant 0 : i32
    %c0_i32_0 = arith.constant 0 : i32
    return %c0_i32, %arg1 : i32, i32
  }
  func.func @transform_3(%arg0: i32, %arg1: i32, %arg2: i32) -> (i32, i32) {
    %c0_i32 = arith.constant 0 : i32
    return %arg0, %arg1 : i32, i32
  }
}

module attributes {stable_mosaic.version = 11 : i64} {
  func.func @_conv_row_kernel(%arg0: i32, %arg1: i32, %arg2: i32, %arg3: i32, %arg4: memref<1x1x16x128xbf16, #tpu.memory_space<vmem>>, %arg5: memref<1x3x128x256xbf16, #tpu.memory_space<vmem>>, %arg6: memref<1x256xf32, #tpu.memory_space<vmem>>, %arg7: memref<1x1x4x256xbf16, #tpu.memory_space<vmem>>, %arg8: memref<4x256xf32, #tpu.memory_space<vmem>>) attributes {dimension_semantics = [#tpu.dimension_semantics<parallel>, #tpu.dimension_semantics<parallel>, #tpu.dimension_semantics<parallel>, #tpu.dimension_semantics<arbitrary>], iteration_bounds = array<i64: 2, 4, 1, 3>, scalar_prefetch = 0 : i64, scratch_operands = 1 : i64, tpu.core_type = #tpu.core_type<tc>, window_params = [{transform_indices = @transform_0, window_bounds = array<i64: 1, 1, 16, 128>}, {transform_indices = @transform_1, window_bounds = array<i64: 1, 3, 128, 256>}, {transform_indices = @transform_2, window_bounds = array<i64: 1, 256>}, {transform_indices = @transform_3, window_bounds = array<i64: 1, 1, 4, 256>}]} {
    %c0_i32 = arith.constant 0 : i32
    %0 = arith.cmpi eq, %arg3, %c0_i32 : i32
    %1 = arith.extui %0 : i1 to i32
    %c0_i32_0 = arith.constant 0 : i32
    %2 = arith.cmpi ne, %1, %c0_i32_0 : i32
    scf.if %2 {
      %cst_35 = arith.constant 0.000000e+00 : f32
      %30 = vector.broadcast %cst_35 : f32 to vector<4x256xf32>
      %c0_36 = arith.constant 0 : index
      %c0_37 = arith.constant 0 : index
      %31 = vector.load %arg8[%c0_36, %c0_37] : memref<4x256xf32, #tpu.memory_space<vmem>>, vector<4x256xf32>
      tpu.vector_store %arg8[%c0_36, %c0_37], %30 {strides = array<i32>} : memref<4x256xf32, #tpu.memory_space<vmem>>, vector<4x256xf32>,
    } else {
    }
    %c0 = arith.constant 0 : index
    %c0_1 = arith.constant 0 : index
    %c0_2 = arith.constant 0 : index
    %c0_3 = arith.constant 0 : index
    %3 = vector.load %arg4[%c0, %c0_1, %c0_2, %c0_3] : memref<1x1x16x128xbf16, #tpu.memory_space<vmem>>, vector<1x1x4x128xbf16>
    %4 = vector.shape_cast %3 : vector<1x1x4x128xbf16> to vector<4x128xbf16>
    %c0_4 = arith.constant 0 : index
    %c0_5 = arith.constant 0 : index
    %5 = vector.load %arg8[%c0_4, %c0_5] : memref<4x256xf32, #tpu.memory_space<vmem>>, vector<4x256xf32>
    %c0_6 = arith.constant 0 : index
    %c0_7 = arith.constant 0 : index
    %c0_8 = arith.constant 0 : index
    %c0_9 = arith.constant 0 : index
    %6 = vector.load %arg5[%c0_6, %c0_7, %c0_8, %c0_9] : memref<1x3x128x256xbf16, #tpu.memory_space<vmem>>, vector<1x1x128x256xbf16>
    %7 = vector.shape_cast %6 : vector<1x1x128x256xbf16> to vector<128x256xbf16>
    %cst = arith.constant dense<0.000000e+00> : vector<4x256xf32>
    %8 = tpu.matmul %4, %7, %cst {dimension_numbers = #tpu.dot_dimension_numbers<[1], [0], [0], [1], [0, 0, 1, 1], [], []>} : vector<4x128xbf16>, vector<128x256xbf16>, vector<4x256xf32> -> vector<4x256xf32>
    %9 = arith.addf %5, %8 : vector<4x256xf32>
    %c0_10 = arith.constant 0 : index
    %c0_11 = arith.constant 0 : index
    %10 = vector.load %arg8[%c0_10, %c0_11] : memref<4x256xf32, #tpu.memory_space<vmem>>, vector<4x256xf32>
    tpu.vector_store %arg8[%c0_10, %c0_11], %9 {strides = array<i32>} : memref<4x256xf32, #tpu.memory_space<vmem>>, vector<4x256xf32>,
    %c0_12 = arith.constant 0 : index
    %c0_13 = arith.constant 0 : index
    %c6 = arith.constant 6 : index
    %c0_14 = arith.constant 0 : index
    %11 = vector.load %arg4[%c0_12, %c0_13, %c6, %c0_14] : memref<1x1x16x128xbf16, #tpu.memory_space<vmem>>, vector<1x1x4x128xbf16>
    %12 = vector.shape_cast %11 : vector<1x1x4x128xbf16> to vector<4x128xbf16>
    %c0_15 = arith.constant 0 : index
    %c0_16 = arith.constant 0 : index
    %13 = vector.load %arg8[%c0_15, %c0_16] : memref<4x256xf32, #tpu.memory_space<vmem>>, vector<4x256xf32>
    %c0_17 = arith.constant 0 : index
    %c1 = arith.constant 1 : index
    %c0_18 = arith.constant 0 : index
    %c0_19 = arith.constant 0 : index
    %14 = vector.load %arg5[%c0_17, %c1, %c0_18, %c0_19] : memref<1x3x128x256xbf16, #tpu.memory_space<vmem>>, vector<1x1x128x256xbf16>
    %15 = vector.shape_cast %14 : vector<1x1x128x256xbf16> to vector<128x256xbf16>
    %cst_20 = arith.constant dense<0.000000e+00> : vector<4x256xf32>
    %16 = tpu.matmul %12, %15, %cst_20 {dimension_numbers = #tpu.dot_dimension_numbers<[1], [0], [0], [1], [0, 0, 1, 1], [], []>} : vector<4x128xbf16>, vector<128x256xbf16>, vector<4x256xf32> -> vector<4x256xf32>
    %17 = arith.addf %13, %16 : vector<4x256xf32>
    %c0_21 = arith.constant 0 : index
    %c0_22 = arith.constant 0 : index
    %18 = vector.load %arg8[%c0_21, %c0_22] : memref<4x256xf32, #tpu.memory_space<vmem>>, vector<4x256xf32>
    tpu.vector_store %arg8[%c0_21, %c0_22], %17 {strides = array<i32>} : memref<4x256xf32, #tpu.memory_space<vmem>>, vector<4x256xf32>,
    %c0_23 = arith.constant 0 : index
    %c0_24 = arith.constant 0 : index
    %c12 = arith.constant 12 : index
    %c0_25 = arith.constant 0 : index
    %19 = vector.load %arg4[%c0_23, %c0_24, %c12, %c0_25] : memref<1x1x16x128xbf16, #tpu.memory_space<vmem>>, vector<1x1x4x128xbf16>
    %20 = vector.shape_cast %19 : vector<1x1x4x128xbf16> to vector<4x128xbf16>
    %c0_26 = arith.constant 0 : index
    %c0_27 = arith.constant 0 : index
    %21 = vector.load %arg8[%c0_26, %c0_27] : memref<4x256xf32, #tpu.memory_space<vmem>>, vector<4x256xf32>
    %c0_28 = arith.constant 0 : index
    %c2 = arith.constant 2 : index
    %c0_29 = arith.constant 0 : index
    %c0_30 = arith.constant 0 : index
    %22 = vector.load %arg5[%c0_28, %c2, %c0_29, %c0_30] : memref<1x3x128x256xbf16, #tpu.memory_space<vmem>>, vector<1x1x128x256xbf16>
    %23 = vector.shape_cast %22 : vector<1x1x128x256xbf16> to vector<128x256xbf16>
    %cst_31 = arith.constant dense<0.000000e+00> : vector<4x256xf32>
    %24 = tpu.matmul %20, %23, %cst_31 {dimension_numbers = #tpu.dot_dimension_numbers<[1], [0], [0], [1], [0, 0, 1, 1], [], []>} : vector<4x128xbf16>, vector<128x256xbf16>, vector<4x256xf32> -> vector<4x256xf32>
    %25 = arith.addf %21, %24 : vector<4x256xf32>
    %c0_32 = arith.constant 0 : index
    %c0_33 = arith.constant 0 : index
    %26 = vector.load %arg8[%c0_32, %c0_33] : memref<4x256xf32, #tpu.memory_space<vmem>>, vector<4x256xf32>
    tpu.vector_store %arg8[%c0_32, %c0_33], %25 {strides = array<i32>} : memref<4x256xf32, #tpu.memory_space<vmem>>, vector<4x256xf32>,
    %c2_i32 = arith.constant 2 : i32
    %27 = arith.cmpi eq, %arg3, %c2_i32 : i32
    %28 = arith.extui %27 : i1 to i32
    %c0_i32_34 = arith.constant 0 : i32
    %29 = arith.cmpi ne, %28, %c0_i32_34 : i32
    scf.if %29 {
      %c0_35 = arith.constant 0 : index
      %c0_36 = arith.constant 0 : index
      %30 = vector.load %arg8[%c0_35, %c0_36] : memref<4x256xf32, #tpu.memory_space<vmem>>, vector<4x256xf32>
      %c0_37 = arith.constant 0 : index
      %c0_38 = arith.constant 0 : index
      %31 = vector.load %arg6[%c0_37, %c0_38] : memref<1x256xf32, #tpu.memory_space<vmem>>, vector<1x256xf32>
      %32 = vector.broadcast %31 : vector<1x256xf32> to vector<4x256xf32>
      %33 = arith.addf %30, %32 : vector<4x256xf32>
      %cst_39 = arith.constant 0.000000e+00 : f32
      %34 = vector.broadcast %cst_39 : f32 to vector<4x256xf32>
      %35 = arith.cmpf ogt, %33, %34 : vector<4x256xf32>
      %cst_40 = arith.constant 0.000000e+00 : f32
      %36 = vector.broadcast %cst_40 : f32 to vector<4x256xf32>
      %37 = arith.minimumf %33, %36 : vector<4x256xf32>
      %38 = math.exp %37 : vector<4x256xf32>
      %cst_41 = arith.constant 1.000000e+00 : f32
      %39 = vector.broadcast %cst_41 : f32 to vector<4x256xf32>
      %40 = arith.subf %38, %39 : vector<4x256xf32>
      %41 = arith.select %35, %33, %40 : vector<4x256xi1>, vector<4x256xf32>
      %42 = arith.truncf %41 : vector<4x256xf32> to vector<4x256xbf16>
      %c0_42 = arith.constant 0 : index
      %c0_43 = arith.constant 0 : index
      %c0_44 = arith.constant 0 : index
      %c0_45 = arith.constant 0 : index
      %43 = vector.load %arg7[%c0_42, %c0_43, %c0_44, %c0_45] : memref<1x1x4x256xbf16, #tpu.memory_space<vmem>>, vector<1x1x4x256xbf16>
      %44 = vector.shape_cast %43 : vector<1x1x4x256xbf16> to vector<4x256xbf16>
      %45 = vector.shape_cast %42 : vector<4x256xbf16> to vector<1x1x4x256xbf16>
      tpu.vector_store %arg7[%c0_42, %c0_43, %c0_44, %c0_45], %45 {strides = array<i32>} : memref<1x1x4x256xbf16, #tpu.memory_space<vmem>>, vector<1x1x4x256xbf16>,
    } else {
    }
    return
  }
  func.func @transform_0(%arg0: i32, %arg1: i32, %arg2: i32, %arg3: i32) -> (i32, i32, i32, i32) {
    %c6_i32 = arith.constant 6 : i32
    %0 = arith.muli %arg3, %c6_i32 : i32
    %1 = arith.addi %arg1, %0 : i32
    %c0_i32 = arith.constant 0 : i32
    %c0_i32_0 = arith.constant 0 : i32
    %c0_i32_1 = arith.constant 0 : i32
    return %arg0, %1, %c0_i32, %c0_i32_0 : i32, i32, i32, i32
  }
  func.func @transform_1(%arg0: i32, %arg1: i32, %arg2: i32, %arg3: i32) -> (i32, i32, i32, i32) {
    %c0_i32 = arith.constant 0 : i32
    %c0_i32_0 = arith.constant 0 : i32
    %c0_i32_1 = arith.constant 0 : i32
    return %arg3, %c0_i32, %c0_i32_0, %arg2 : i32, i32, i32, i32
  }
  func.func @transform_2(%arg0: i32, %arg1: i32, %arg2: i32, %arg3: i32) -> (i32, i32) {
    %c0_i32 = arith.constant 0 : i32
    %c0_i32_0 = arith.constant 0 : i32
    return %c0_i32, %arg2 : i32, i32
  }
  func.func @transform_3(%arg0: i32, %arg1: i32, %arg2: i32, %arg3: i32) -> (i32, i32, i32, i32) {
    %c0_i32 = arith.constant 0 : i32
    %c0_i32_0 = arith.constant 0 : i32
    return %arg0, %arg1, %c0_i32, %arg2 : i32, i32, i32, i32
  }
}

module attributes {stable_mosaic.version = 11 : i64} {
  func.func @_mm_kernel(%arg0: i32, %arg1: i32, %arg2: i32, %arg3: memref<128x128xbf16, #tpu.memory_space<vmem>>, %arg4: memref<128x128xbf16, #tpu.memory_space<vmem>>, %arg5: memref<1x128xf32, #tpu.memory_space<vmem>>, %arg6: memref<128x128xbf16, #tpu.memory_space<vmem>>, %arg7: memref<128x128xf32, #tpu.memory_space<vmem>>) attributes {dimension_semantics = [#tpu.dimension_semantics<parallel>, #tpu.dimension_semantics<parallel>, #tpu.dimension_semantics<arbitrary>], iteration_bounds = array<i64: 1, 2, 1>, scalar_prefetch = 0 : i64, scratch_operands = 1 : i64, tpu.core_type = #tpu.core_type<tc>, window_params = [{transform_indices = @transform_0, window_bounds = array<i64: 128, 128>}, {transform_indices = @transform_1, window_bounds = array<i64: 128, 128>}, {transform_indices = @transform_2, window_bounds = array<i64: 1, 128>}, {transform_indices = @transform_3, window_bounds = array<i64: 128, 128>}]} {
    %c0_i32 = arith.constant 0 : i32
    %0 = arith.cmpi eq, %arg2, %c0_i32 : i32
    %1 = arith.extui %0 : i1 to i32
    %c0_i32_0 = arith.constant 0 : i32
    %2 = arith.cmpi ne, %1, %c0_i32_0 : i32
    scf.if %2 {
      %cst_10 = arith.constant 0.000000e+00 : f32
      %12 = vector.broadcast %cst_10 : f32 to vector<128x128xf32>
      %c0_11 = arith.constant 0 : index
      %c0_12 = arith.constant 0 : index
      %13 = vector.load %arg7[%c0_11, %c0_12] : memref<128x128xf32, #tpu.memory_space<vmem>>, vector<128x128xf32>
      tpu.vector_store %arg7[%c0_11, %c0_12], %12 {strides = array<i32>} : memref<128x128xf32, #tpu.memory_space<vmem>>, vector<128x128xf32>,
    } else {
    }
    %c0 = arith.constant 0 : index
    %c0_1 = arith.constant 0 : index
    %3 = vector.load %arg7[%c0, %c0_1] : memref<128x128xf32, #tpu.memory_space<vmem>>, vector<128x128xf32>
    %c0_2 = arith.constant 0 : index
    %c0_3 = arith.constant 0 : index
    %4 = vector.load %arg3[%c0_2, %c0_3] : memref<128x128xbf16, #tpu.memory_space<vmem>>, vector<128x128xbf16>
    %c0_4 = arith.constant 0 : index
    %c0_5 = arith.constant 0 : index
    %5 = vector.load %arg4[%c0_4, %c0_5] : memref<128x128xbf16, #tpu.memory_space<vmem>>, vector<128x128xbf16>
    %cst = arith.constant dense<0.000000e+00> : vector<128x128xf32>
    %6 = tpu.matmul %4, %5, %cst {dimension_numbers = #tpu.dot_dimension_numbers<[1], [0], [0], [1], [0, 0, 1, 1], [], []>} : vector<128x128xbf16>, vector<128x128xbf16>, vector<128x128xf32> -> vector<128x128xf32>
    %7 = arith.addf %3, %6 : vector<128x128xf32>
    %c0_6 = arith.constant 0 : index
    %c0_7 = arith.constant 0 : index
    %8 = vector.load %arg7[%c0_6, %c0_7] : memref<128x128xf32, #tpu.memory_space<vmem>>, vector<128x128xf32>
    tpu.vector_store %arg7[%c0_6, %c0_7], %7 {strides = array<i32>} : memref<128x128xf32, #tpu.memory_space<vmem>>, vector<128x128xf32>,
    %c0_i32_8 = arith.constant 0 : i32
    %9 = arith.cmpi eq, %arg2, %c0_i32_8 : i32
    %10 = arith.extui %9 : i1 to i32
    %c0_i32_9 = arith.constant 0 : i32
    %11 = arith.cmpi ne, %10, %c0_i32_9 : i32
    scf.if %11 {
      %c0_10 = arith.constant 0 : index
      %c0_11 = arith.constant 0 : index
      %12 = vector.load %arg7[%c0_10, %c0_11] : memref<128x128xf32, #tpu.memory_space<vmem>>, vector<128x128xf32>
      %c0_12 = arith.constant 0 : index
      %c0_13 = arith.constant 0 : index
      %13 = vector.load %arg5[%c0_12, %c0_13] : memref<1x128xf32, #tpu.memory_space<vmem>>, vector<1x128xf32>
      %14 = vector.broadcast %13 : vector<1x128xf32> to vector<128x128xf32>
      %15 = arith.addf %12, %14 : vector<128x128xf32>
      %cst_14 = arith.constant 0.000000e+00 : f32
      %16 = vector.broadcast %cst_14 : f32 to vector<128x128xf32>
      %17 = arith.cmpf ogt, %15, %16 : vector<128x128xf32>
      %cst_15 = arith.constant 0.000000e+00 : f32
      %18 = vector.broadcast %cst_15 : f32 to vector<128x128xf32>
      %19 = arith.minimumf %15, %18 : vector<128x128xf32>
      %20 = math.exp %19 : vector<128x128xf32>
      %cst_16 = arith.constant 1.000000e+00 : f32
      %21 = vector.broadcast %cst_16 : f32 to vector<128x128xf32>
      %22 = arith.subf %20, %21 : vector<128x128xf32>
      %23 = arith.select %17, %15, %22 : vector<128x128xi1>, vector<128x128xf32>
      %24 = arith.truncf %23 : vector<128x128xf32> to vector<128x128xbf16>
      %c0_17 = arith.constant 0 : index
      %c0_18 = arith.constant 0 : index
      %25 = vector.load %arg6[%c0_17, %c0_18] : memref<128x128xbf16, #tpu.memory_space<vmem>>, vector<128x128xbf16>
      tpu.vector_store %arg6[%c0_17, %c0_18], %24 {strides = array<i32>} : memref<128x128xbf16, #tpu.memory_space<vmem>>, vector<128x128xbf16>,
    } else {
    }
    return
  }
  func.func @transform_0(%arg0: i32, %arg1: i32, %arg2: i32) -> (i32, i32) {
    %c0_i32 = arith.constant 0 : i32
    return %arg0, %arg2 : i32, i32
  }
  func.func @transform_1(%arg0: i32, %arg1: i32, %arg2: i32) -> (i32, i32) {
    %c0_i32 = arith.constant 0 : i32
    return %arg2, %arg1 : i32, i32
  }
  func.func @transform_2(%arg0: i32, %arg1: i32, %arg2: i32) -> (i32, i32) {
    %c0_i32 = arith.constant 0 : i32
    %c0_i32_0 = arith.constant 0 : i32
    return %c0_i32, %arg1 : i32, i32
  }
  func.func @transform_3(%arg0: i32, %arg1: i32, %arg2: i32) -> (i32, i32) {
    %c0_i32 = arith.constant 0 : i32
    return %arg0, %arg1 : i32, i32
  }
}

module attributes {stable_mosaic.version = 11 : i64} {
  func.func @_conv_row_kernel(%arg0: i32, %arg1: i32, %arg2: i32, %arg3: i32, %arg4: memref<1x1x28x128xbf16, #tpu.memory_space<vmem>>, %arg5: memref<1x3x128x256xbf16, #tpu.memory_space<vmem>>, %arg6: memref<1x256xf32, #tpu.memory_space<vmem>>, %arg7: memref<1x1x4x256xbf16, #tpu.memory_space<vmem>>, %arg8: memref<4x256xf32, #tpu.memory_space<vmem>>) attributes {dimension_semantics = [#tpu.dimension_semantics<parallel>, #tpu.dimension_semantics<parallel>, #tpu.dimension_semantics<parallel>, #tpu.dimension_semantics<arbitrary>], iteration_bounds = array<i64: 2, 4, 1, 3>, scalar_prefetch = 0 : i64, scratch_operands = 1 : i64, tpu.core_type = #tpu.core_type<tc>, window_params = [{transform_indices = @transform_0, window_bounds = array<i64: 1, 1, 28, 128>}, {transform_indices = @transform_1, window_bounds = array<i64: 1, 3, 128, 256>}, {transform_indices = @transform_2, window_bounds = array<i64: 1, 256>}, {transform_indices = @transform_3, window_bounds = array<i64: 1, 1, 4, 256>}]} {
    %c0_i32 = arith.constant 0 : i32
    %0 = arith.cmpi eq, %arg3, %c0_i32 : i32
    %1 = arith.extui %0 : i1 to i32
    %c0_i32_0 = arith.constant 0 : i32
    %2 = arith.cmpi ne, %1, %c0_i32_0 : i32
    scf.if %2 {
      %cst_35 = arith.constant 0.000000e+00 : f32
      %30 = vector.broadcast %cst_35 : f32 to vector<4x256xf32>
      %c0_36 = arith.constant 0 : index
      %c0_37 = arith.constant 0 : index
      %31 = vector.load %arg8[%c0_36, %c0_37] : memref<4x256xf32, #tpu.memory_space<vmem>>, vector<4x256xf32>
      tpu.vector_store %arg8[%c0_36, %c0_37], %30 {strides = array<i32>} : memref<4x256xf32, #tpu.memory_space<vmem>>, vector<4x256xf32>,
    } else {
    }
    %c0 = arith.constant 0 : index
    %c0_1 = arith.constant 0 : index
    %c0_2 = arith.constant 0 : index
    %c0_3 = arith.constant 0 : index
    %3 = vector.load %arg4[%c0, %c0_1, %c0_2, %c0_3] : memref<1x1x28x128xbf16, #tpu.memory_space<vmem>>, vector<1x1x4x128xbf16>
    %4 = vector.shape_cast %3 : vector<1x1x4x128xbf16> to vector<4x128xbf16>
    %c0_4 = arith.constant 0 : index
    %c0_5 = arith.constant 0 : index
    %5 = vector.load %arg8[%c0_4, %c0_5] : memref<4x256xf32, #tpu.memory_space<vmem>>, vector<4x256xf32>
    %c0_6 = arith.constant 0 : index
    %c0_7 = arith.constant 0 : index
    %c0_8 = arith.constant 0 : index
    %c0_9 = arith.constant 0 : index
    %6 = vector.load %arg5[%c0_6, %c0_7, %c0_8, %c0_9] : memref<1x3x128x256xbf16, #tpu.memory_space<vmem>>, vector<1x1x128x256xbf16>
    %7 = vector.shape_cast %6 : vector<1x1x128x256xbf16> to vector<128x256xbf16>
    %cst = arith.constant dense<0.000000e+00> : vector<4x256xf32>
    %8 = tpu.matmul %4, %7, %cst {dimension_numbers = #tpu.dot_dimension_numbers<[1], [0], [0], [1], [0, 0, 1, 1], [], []>} : vector<4x128xbf16>, vector<128x256xbf16>, vector<4x256xf32> -> vector<4x256xf32>
    %9 = arith.addf %5, %8 : vector<4x256xf32>
    %c0_10 = arith.constant 0 : index
    %c0_11 = arith.constant 0 : index
    %10 = vector.load %arg8[%c0_10, %c0_11] : memref<4x256xf32, #tpu.memory_space<vmem>>, vector<4x256xf32>
    tpu.vector_store %arg8[%c0_10, %c0_11], %9 {strides = array<i32>} : memref<4x256xf32, #tpu.memory_space<vmem>>, vector<4x256xf32>,
    %c0_12 = arith.constant 0 : index
    %c0_13 = arith.constant 0 : index
    %c12 = arith.constant 12 : index
    %c0_14 = arith.constant 0 : index
    %11 = vector.load %arg4[%c0_12, %c0_13, %c12, %c0_14] : memref<1x1x28x128xbf16, #tpu.memory_space<vmem>>, vector<1x1x4x128xbf16>
    %12 = vector.shape_cast %11 : vector<1x1x4x128xbf16> to vector<4x128xbf16>
    %c0_15 = arith.constant 0 : index
    %c0_16 = arith.constant 0 : index
    %13 = vector.load %arg8[%c0_15, %c0_16] : memref<4x256xf32, #tpu.memory_space<vmem>>, vector<4x256xf32>
    %c0_17 = arith.constant 0 : index
    %c1 = arith.constant 1 : index
    %c0_18 = arith.constant 0 : index
    %c0_19 = arith.constant 0 : index
    %14 = vector.load %arg5[%c0_17, %c1, %c0_18, %c0_19] : memref<1x3x128x256xbf16, #tpu.memory_space<vmem>>, vector<1x1x128x256xbf16>
    %15 = vector.shape_cast %14 : vector<1x1x128x256xbf16> to vector<128x256xbf16>
    %cst_20 = arith.constant dense<0.000000e+00> : vector<4x256xf32>
    %16 = tpu.matmul %12, %15, %cst_20 {dimension_numbers = #tpu.dot_dimension_numbers<[1], [0], [0], [1], [0, 0, 1, 1], [], []>} : vector<4x128xbf16>, vector<128x256xbf16>, vector<4x256xf32> -> vector<4x256xf32>
    %17 = arith.addf %13, %16 : vector<4x256xf32>
    %c0_21 = arith.constant 0 : index
    %c0_22 = arith.constant 0 : index
    %18 = vector.load %arg8[%c0_21, %c0_22] : memref<4x256xf32, #tpu.memory_space<vmem>>, vector<4x256xf32>
    tpu.vector_store %arg8[%c0_21, %c0_22], %17 {strides = array<i32>} : memref<4x256xf32, #tpu.memory_space<vmem>>, vector<4x256xf32>,
    %c0_23 = arith.constant 0 : index
    %c0_24 = arith.constant 0 : index
    %c24 = arith.constant 24 : index
    %c0_25 = arith.constant 0 : index
    %19 = vector.load %arg4[%c0_23, %c0_24, %c24, %c0_25] : memref<1x1x28x128xbf16, #tpu.memory_space<vmem>>, vector<1x1x4x128xbf16>
    %20 = vector.shape_cast %19 : vector<1x1x4x128xbf16> to vector<4x128xbf16>
    %c0_26 = arith.constant 0 : index
    %c0_27 = arith.constant 0 : index
    %21 = vector.load %arg8[%c0_26, %c0_27] : memref<4x256xf32, #tpu.memory_space<vmem>>, vector<4x256xf32>
    %c0_28 = arith.constant 0 : index
    %c2 = arith.constant 2 : index
    %c0_29 = arith.constant 0 : index
    %c0_30 = arith.constant 0 : index
    %22 = vector.load %arg5[%c0_28, %c2, %c0_29, %c0_30] : memref<1x3x128x256xbf16, #tpu.memory_space<vmem>>, vector<1x1x128x256xbf16>
    %23 = vector.shape_cast %22 : vector<1x1x128x256xbf16> to vector<128x256xbf16>
    %cst_31 = arith.constant dense<0.000000e+00> : vector<4x256xf32>
    %24 = tpu.matmul %20, %23, %cst_31 {dimension_numbers = #tpu.dot_dimension_numbers<[1], [0], [0], [1], [0, 0, 1, 1], [], []>} : vector<4x128xbf16>, vector<128x256xbf16>, vector<4x256xf32> -> vector<4x256xf32>
    %25 = arith.addf %21, %24 : vector<4x256xf32>
    %c0_32 = arith.constant 0 : index
    %c0_33 = arith.constant 0 : index
    %26 = vector.load %arg8[%c0_32, %c0_33] : memref<4x256xf32, #tpu.memory_space<vmem>>, vector<4x256xf32>
    tpu.vector_store %arg8[%c0_32, %c0_33], %25 {strides = array<i32>} : memref<4x256xf32, #tpu.memory_space<vmem>>, vector<4x256xf32>,
    %c2_i32 = arith.constant 2 : i32
    %27 = arith.cmpi eq, %arg3, %c2_i32 : i32
    %28 = arith.extui %27 : i1 to i32
    %c0_i32_34 = arith.constant 0 : i32
    %29 = arith.cmpi ne, %28, %c0_i32_34 : i32
    scf.if %29 {
      %c0_35 = arith.constant 0 : index
      %c0_36 = arith.constant 0 : index
      %30 = vector.load %arg8[%c0_35, %c0_36] : memref<4x256xf32, #tpu.memory_space<vmem>>, vector<4x256xf32>
      %c0_37 = arith.constant 0 : index
      %c0_38 = arith.constant 0 : index
      %31 = vector.load %arg6[%c0_37, %c0_38] : memref<1x256xf32, #tpu.memory_space<vmem>>, vector<1x256xf32>
      %32 = vector.broadcast %31 : vector<1x256xf32> to vector<4x256xf32>
      %33 = arith.addf %30, %32 : vector<4x256xf32>
      %cst_39 = arith.constant 0.000000e+00 : f32
      %34 = vector.broadcast %cst_39 : f32 to vector<4x256xf32>
      %35 = arith.cmpf ogt, %33, %34 : vector<4x256xf32>
      %cst_40 = arith.constant 0.000000e+00 : f32
      %36 = vector.broadcast %cst_40 : f32 to vector<4x256xf32>
      %37 = arith.minimumf %33, %36 : vector<4x256xf32>
      %38 = math.exp %37 : vector<4x256xf32>
      %cst_41 = arith.constant 1.000000e+00 : f32
      %39 = vector.broadcast %cst_41 : f32 to vector<4x256xf32>
      %40 = arith.subf %38, %39 : vector<4x256xf32>
      %41 = arith.select %35, %33, %40 : vector<4x256xi1>, vector<4x256xf32>
      %42 = arith.truncf %41 : vector<4x256xf32> to vector<4x256xbf16>
      %c0_42 = arith.constant 0 : index
      %c0_43 = arith.constant 0 : index
      %c0_44 = arith.constant 0 : index
      %c0_45 = arith.constant 0 : index
      %43 = vector.load %arg7[%c0_42, %c0_43, %c0_44, %c0_45] : memref<1x1x4x256xbf16, #tpu.memory_space<vmem>>, vector<1x1x4x256xbf16>
      %44 = vector.shape_cast %43 : vector<1x1x4x256xbf16> to vector<4x256xbf16>
      %45 = vector.shape_cast %42 : vector<4x256xbf16> to vector<1x1x4x256xbf16>
      tpu.vector_store %arg7[%c0_42, %c0_43, %c0_44, %c0_45], %45 {strides = array<i32>} : memref<1x1x4x256xbf16, #tpu.memory_space<vmem>>, vector<1x1x4x256xbf16>,
    } else {
    }
    return
  }
  func.func @transform_0(%arg0: i32, %arg1: i32, %arg2: i32, %arg3: i32) -> (i32, i32, i32, i32) {
    %c12_i32 = arith.constant 12 : i32
    %0 = arith.muli %arg3, %c12_i32 : i32
    %1 = arith.addi %arg1, %0 : i32
    %c0_i32 = arith.constant 0 : i32
    %c0_i32_0 = arith.constant 0 : i32
    %c0_i32_1 = arith.constant 0 : i32
    return %arg0, %1, %c0_i32, %c0_i32_0 : i32, i32, i32, i32
  }
  func.func @transform_1(%arg0: i32, %arg1: i32, %arg2: i32, %arg3: i32) -> (i32, i32, i32, i32) {
    %c0_i32 = arith.constant 0 : i32
    %c0_i32_0 = arith.constant 0 : i32
    %c0_i32_1 = arith.constant 0 : i32
    return %arg3, %c0_i32, %c0_i32_0, %arg2 : i32, i32, i32, i32
  }
  func.func @transform_2(%arg0: i32, %arg1: i32, %arg2: i32, %arg3: i32) -> (i32, i32) {
    %c0_i32 = arith.constant 0 : i32
    %c0_i32_0 = arith.constant 0 : i32
    return %c0_i32, %arg2 : i32, i32
  }
  func.func @transform_3(%arg0: i32, %arg1: i32, %arg2: i32, %arg3: i32) -> (i32, i32, i32, i32) {
    %c0_i32 = arith.constant 0 : i32
    %c0_i32_0 = arith.constant 0 : i32
    return %arg0, %arg1, %c0_i32, %arg2 : i32, i32, i32, i32
  }
}

module attributes {stable_mosaic.version = 11 : i64} {
  func.func @_conv_row_kernel(%arg0: i32, %arg1: i32, %arg2: i32, %arg3: i32, %arg4: memref<1x1x40x128xbf16, #tpu.memory_space<vmem>>, %arg5: memref<1x3x128x256xbf16, #tpu.memory_space<vmem>>, %arg6: memref<1x256xf32, #tpu.memory_space<vmem>>, %arg7: memref<1x1x4x256xbf16, #tpu.memory_space<vmem>>, %arg8: memref<4x256xf32, #tpu.memory_space<vmem>>) attributes {dimension_semantics = [#tpu.dimension_semantics<parallel>, #tpu.dimension_semantics<parallel>, #tpu.dimension_semantics<parallel>, #tpu.dimension_semantics<arbitrary>], iteration_bounds = array<i64: 2, 4, 1, 3>, scalar_prefetch = 0 : i64, scratch_operands = 1 : i64, tpu.core_type = #tpu.core_type<tc>, window_params = [{transform_indices = @transform_0, window_bounds = array<i64: 1, 1, 40, 128>}, {transform_indices = @transform_1, window_bounds = array<i64: 1, 3, 128, 256>}, {transform_indices = @transform_2, window_bounds = array<i64: 1, 256>}, {transform_indices = @transform_3, window_bounds = array<i64: 1, 1, 4, 256>}]} {
    %c0_i32 = arith.constant 0 : i32
    %0 = arith.cmpi eq, %arg3, %c0_i32 : i32
    %1 = arith.extui %0 : i1 to i32
    %c0_i32_0 = arith.constant 0 : i32
    %2 = arith.cmpi ne, %1, %c0_i32_0 : i32
    scf.if %2 {
      %cst_35 = arith.constant 0.000000e+00 : f32
      %30 = vector.broadcast %cst_35 : f32 to vector<4x256xf32>
      %c0_36 = arith.constant 0 : index
      %c0_37 = arith.constant 0 : index
      %31 = vector.load %arg8[%c0_36, %c0_37] : memref<4x256xf32, #tpu.memory_space<vmem>>, vector<4x256xf32>
      tpu.vector_store %arg8[%c0_36, %c0_37], %30 {strides = array<i32>} : memref<4x256xf32, #tpu.memory_space<vmem>>, vector<4x256xf32>,
    } else {
    }
    %c0 = arith.constant 0 : index
    %c0_1 = arith.constant 0 : index
    %c0_2 = arith.constant 0 : index
    %c0_3 = arith.constant 0 : index
    %3 = vector.load %arg4[%c0, %c0_1, %c0_2, %c0_3] : memref<1x1x40x128xbf16, #tpu.memory_space<vmem>>, vector<1x1x4x128xbf16>
    %4 = vector.shape_cast %3 : vector<1x1x4x128xbf16> to vector<4x128xbf16>
    %c0_4 = arith.constant 0 : index
    %c0_5 = arith.constant 0 : index
    %5 = vector.load %arg8[%c0_4, %c0_5] : memref<4x256xf32, #tpu.memory_space<vmem>>, vector<4x256xf32>
    %c0_6 = arith.constant 0 : index
    %c0_7 = arith.constant 0 : index
    %c0_8 = arith.constant 0 : index
    %c0_9 = arith.constant 0 : index
    %6 = vector.load %arg5[%c0_6, %c0_7, %c0_8, %c0_9] : memref<1x3x128x256xbf16, #tpu.memory_space<vmem>>, vector<1x1x128x256xbf16>
    %7 = vector.shape_cast %6 : vector<1x1x128x256xbf16> to vector<128x256xbf16>
    %cst = arith.constant dense<0.000000e+00> : vector<4x256xf32>
    %8 = tpu.matmul %4, %7, %cst {dimension_numbers = #tpu.dot_dimension_numbers<[1], [0], [0], [1], [0, 0, 1, 1], [], []>} : vector<4x128xbf16>, vector<128x256xbf16>, vector<4x256xf32> -> vector<4x256xf32>
    %9 = arith.addf %5, %8 : vector<4x256xf32>
    %c0_10 = arith.constant 0 : index
    %c0_11 = arith.constant 0 : index
    %10 = vector.load %arg8[%c0_10, %c0_11] : memref<4x256xf32, #tpu.memory_space<vmem>>, vector<4x256xf32>
    tpu.vector_store %arg8[%c0_10, %c0_11], %9 {strides = array<i32>} : memref<4x256xf32, #tpu.memory_space<vmem>>, vector<4x256xf32>,
    %c0_12 = arith.constant 0 : index
    %c0_13 = arith.constant 0 : index
    %c18 = arith.constant 18 : index
    %c0_14 = arith.constant 0 : index
    %11 = vector.load %arg4[%c0_12, %c0_13, %c18, %c0_14] : memref<1x1x40x128xbf16, #tpu.memory_space<vmem>>, vector<1x1x4x128xbf16>
    %12 = vector.shape_cast %11 : vector<1x1x4x128xbf16> to vector<4x128xbf16>
    %c0_15 = arith.constant 0 : index
    %c0_16 = arith.constant 0 : index
    %13 = vector.load %arg8[%c0_15, %c0_16] : memref<4x256xf32, #tpu.memory_space<vmem>>, vector<4x256xf32>
    %c0_17 = arith.constant 0 : index
    %c1 = arith.constant 1 : index
    %c0_18 = arith.constant 0 : index
    %c0_19 = arith.constant 0 : index
    %14 = vector.load %arg5[%c0_17, %c1, %c0_18, %c0_19] : memref<1x3x128x256xbf16, #tpu.memory_space<vmem>>, vector<1x1x128x256xbf16>
    %15 = vector.shape_cast %14 : vector<1x1x128x256xbf16> to vector<128x256xbf16>
    %cst_20 = arith.constant dense<0.000000e+00> : vector<4x256xf32>
    %16 = tpu.matmul %12, %15, %cst_20 {dimension_numbers = #tpu.dot_dimension_numbers<[1], [0], [0], [1], [0, 0, 1, 1], [], []>} : vector<4x128xbf16>, vector<128x256xbf16>, vector<4x256xf32> -> vector<4x256xf32>
    %17 = arith.addf %13, %16 : vector<4x256xf32>
    %c0_21 = arith.constant 0 : index
    %c0_22 = arith.constant 0 : index
    %18 = vector.load %arg8[%c0_21, %c0_22] : memref<4x256xf32, #tpu.memory_space<vmem>>, vector<4x256xf32>
    tpu.vector_store %arg8[%c0_21, %c0_22], %17 {strides = array<i32>} : memref<4x256xf32, #tpu.memory_space<vmem>>, vector<4x256xf32>,
    %c0_23 = arith.constant 0 : index
    %c0_24 = arith.constant 0 : index
    %c36 = arith.constant 36 : index
    %c0_25 = arith.constant 0 : index
    %19 = vector.load %arg4[%c0_23, %c0_24, %c36, %c0_25] : memref<1x1x40x128xbf16, #tpu.memory_space<vmem>>, vector<1x1x4x128xbf16>
    %20 = vector.shape_cast %19 : vector<1x1x4x128xbf16> to vector<4x128xbf16>
    %c0_26 = arith.constant 0 : index
    %c0_27 = arith.constant 0 : index
    %21 = vector.load %arg8[%c0_26, %c0_27] : memref<4x256xf32, #tpu.memory_space<vmem>>, vector<4x256xf32>
    %c0_28 = arith.constant 0 : index
    %c2 = arith.constant 2 : index
    %c0_29 = arith.constant 0 : index
    %c0_30 = arith.constant 0 : index
    %22 = vector.load %arg5[%c0_28, %c2, %c0_29, %c0_30] : memref<1x3x128x256xbf16, #tpu.memory_space<vmem>>, vector<1x1x128x256xbf16>
    %23 = vector.shape_cast %22 : vector<1x1x128x256xbf16> to vector<128x256xbf16>
    %cst_31 = arith.constant dense<0.000000e+00> : vector<4x256xf32>
    %24 = tpu.matmul %20, %23, %cst_31 {dimension_numbers = #tpu.dot_dimension_numbers<[1], [0], [0], [1], [0, 0, 1, 1], [], []>} : vector<4x128xbf16>, vector<128x256xbf16>, vector<4x256xf32> -> vector<4x256xf32>
    %25 = arith.addf %21, %24 : vector<4x256xf32>
    %c0_32 = arith.constant 0 : index
    %c0_33 = arith.constant 0 : index
    %26 = vector.load %arg8[%c0_32, %c0_33] : memref<4x256xf32, #tpu.memory_space<vmem>>, vector<4x256xf32>
    tpu.vector_store %arg8[%c0_32, %c0_33], %25 {strides = array<i32>} : memref<4x256xf32, #tpu.memory_space<vmem>>, vector<4x256xf32>,
    %c2_i32 = arith.constant 2 : i32
    %27 = arith.cmpi eq, %arg3, %c2_i32 : i32
    %28 = arith.extui %27 : i1 to i32
    %c0_i32_34 = arith.constant 0 : i32
    %29 = arith.cmpi ne, %28, %c0_i32_34 : i32
    scf.if %29 {
      %c0_35 = arith.constant 0 : index
      %c0_36 = arith.constant 0 : index
      %30 = vector.load %arg8[%c0_35, %c0_36] : memref<4x256xf32, #tpu.memory_space<vmem>>, vector<4x256xf32>
      %c0_37 = arith.constant 0 : index
      %c0_38 = arith.constant 0 : index
      %31 = vector.load %arg6[%c0_37, %c0_38] : memref<1x256xf32, #tpu.memory_space<vmem>>, vector<1x256xf32>
      %32 = vector.broadcast %31 : vector<1x256xf32> to vector<4x256xf32>
      %33 = arith.addf %30, %32 : vector<4x256xf32>
      %cst_39 = arith.constant 0.000000e+00 : f32
      %34 = vector.broadcast %cst_39 : f32 to vector<4x256xf32>
      %35 = arith.cmpf ogt, %33, %34 : vector<4x256xf32>
      %cst_40 = arith.constant 0.000000e+00 : f32
      %36 = vector.broadcast %cst_40 : f32 to vector<4x256xf32>
      %37 = arith.minimumf %33, %36 : vector<4x256xf32>
      %38 = math.exp %37 : vector<4x256xf32>
      %cst_41 = arith.constant 1.000000e+00 : f32
      %39 = vector.broadcast %cst_41 : f32 to vector<4x256xf32>
      %40 = arith.subf %38, %39 : vector<4x256xf32>
      %41 = arith.select %35, %33, %40 : vector<4x256xi1>, vector<4x256xf32>
      %42 = arith.truncf %41 : vector<4x256xf32> to vector<4x256xbf16>
      %c0_42 = arith.constant 0 : index
      %c0_43 = arith.constant 0 : index
      %c0_44 = arith.constant 0 : index
      %c0_45 = arith.constant 0 : index
      %43 = vector.load %arg7[%c0_42, %c0_43, %c0_44, %c0_45] : memref<1x1x4x256xbf16, #tpu.memory_space<vmem>>, vector<1x1x4x256xbf16>
      %44 = vector.shape_cast %43 : vector<1x1x4x256xbf16> to vector<4x256xbf16>
      %45 = vector.shape_cast %42 : vector<4x256xbf16> to vector<1x1x4x256xbf16>
      tpu.vector_store %arg7[%c0_42, %c0_43, %c0_44, %c0_45], %45 {strides = array<i32>} : memref<1x1x4x256xbf16, #tpu.memory_space<vmem>>, vector<1x1x4x256xbf16>,
    } else {
    }
    return
  }
  func.func @transform_0(%arg0: i32, %arg1: i32, %arg2: i32, %arg3: i32) -> (i32, i32, i32, i32) {
    %c18_i32 = arith.constant 18 : i32
    %0 = arith.muli %arg3, %c18_i32 : i32
    %1 = arith.addi %arg1, %0 : i32
    %c0_i32 = arith.constant 0 : i32
    %c0_i32_0 = arith.constant 0 : i32
    %c0_i32_1 = arith.constant 0 : i32
    return %arg0, %1, %c0_i32, %c0_i32_0 : i32, i32, i32, i32
  }
  func.func @transform_1(%arg0: i32, %arg1: i32, %arg2: i32, %arg3: i32) -> (i32, i32, i32, i32) {
    %c0_i32 = arith.constant 0 : i32
    %c0_i32_0 = arith.constant 0 : i32
    %c0_i32_1 = arith.constant 0 : i32
    return %arg3, %c0_i32, %c0_i32_0, %arg2 : i32, i32, i32, i32
  }
  func.func @transform_2(%arg0: i32, %arg1: i32, %arg2: i32, %arg3: i32) -> (i32, i32) {
    %c0_i32 = arith.constant 0 : i32
    %c0_i32_0 = arith.constant 0 : i32
    return %c0_i32, %arg2 : i32, i32
  }
  func.func @transform_3(%arg0: i32, %arg1: i32, %arg2: i32, %arg3: i32) -> (i32, i32, i32, i32) {
    %c0_i32 = arith.constant 0 : i32
    %c0_i32_0 = arith.constant 0 : i32
    return %arg0, %arg1, %c0_i32, %arg2 : i32, i32, i32, i32
  }
}

module attributes {stable_mosaic.version = 11 : i64} {
  func.func @_mm_kernel(%arg0: i32, %arg1: i32, %arg2: i32, %arg3: memref<128x256xbf16, #tpu.memory_space<vmem>>, %arg4: memref<256x128xbf16, #tpu.memory_space<vmem>>, %arg5: memref<1x128xf32, #tpu.memory_space<vmem>>, %arg6: memref<128x128xbf16, #tpu.memory_space<vmem>>, %arg7: memref<128x128xf32, #tpu.memory_space<vmem>>) attributes {dimension_semantics = [#tpu.dimension_semantics<parallel>, #tpu.dimension_semantics<parallel>, #tpu.dimension_semantics<arbitrary>], iteration_bounds = array<i64: 1, 2, 5>, scalar_prefetch = 0 : i64, scratch_operands = 1 : i64, tpu.core_type = #tpu.core_type<tc>, window_params = [{transform_indices = @transform_0, window_bounds = array<i64: 128, 256>}, {transform_indices = @transform_1, window_bounds = array<i64: 256, 128>}, {transform_indices = @transform_2, window_bounds = array<i64: 1, 128>}, {transform_indices = @transform_3, window_bounds = array<i64: 128, 128>}]} {
    %c0_i32 = arith.constant 0 : i32
    %0 = arith.cmpi eq, %arg2, %c0_i32 : i32
    %1 = arith.extui %0 : i1 to i32
    %c0_i32_0 = arith.constant 0 : i32
    %2 = arith.cmpi ne, %1, %c0_i32_0 : i32
    scf.if %2 {
      %cst_9 = arith.constant 0.000000e+00 : f32
      %12 = vector.broadcast %cst_9 : f32 to vector<128x128xf32>
      %c0_10 = arith.constant 0 : index
      %c0_11 = arith.constant 0 : index
      %13 = vector.load %arg7[%c0_10, %c0_11] : memref<128x128xf32, #tpu.memory_space<vmem>>, vector<128x128xf32>
      tpu.vector_store %arg7[%c0_10, %c0_11], %12 {strides = array<i32>} : memref<128x128xf32, #tpu.memory_space<vmem>>, vector<128x128xf32>,
    } else {
    }
    %c0 = arith.constant 0 : index
    %c0_1 = arith.constant 0 : index
    %3 = vector.load %arg7[%c0, %c0_1] : memref<128x128xf32, #tpu.memory_space<vmem>>, vector<128x128xf32>
    %c0_2 = arith.constant 0 : index
    %c0_3 = arith.constant 0 : index
    %4 = vector.load %arg3[%c0_2, %c0_3] : memref<128x256xbf16, #tpu.memory_space<vmem>>, vector<128x256xbf16>
    %c0_4 = arith.constant 0 : index
    %c0_5 = arith.constant 0 : index
    %5 = vector.load %arg4[%c0_4, %c0_5] : memref<256x128xbf16, #tpu.memory_space<vmem>>, vector<256x128xbf16>
    %cst = arith.constant dense<0.000000e+00> : vector<128x128xf32>
    %6 = tpu.matmul %4, %5, %cst {dimension_numbers = #tpu.dot_dimension_numbers<[1], [0], [0], [1], [0, 0, 1, 1], [], []>} : vector<128x256xbf16>, vector<256x128xbf16>, vector<128x128xf32> -> vector<128x128xf32>
    %7 = arith.addf %3, %6 : vector<128x128xf32>
    %c0_6 = arith.constant 0 : index
    %c0_7 = arith.constant 0 : index
    %8 = vector.load %arg7[%c0_6, %c0_7] : memref<128x128xf32, #tpu.memory_space<vmem>>, vector<128x128xf32>
    tpu.vector_store %arg7[%c0_6, %c0_7], %7 {strides = array<i32>} : memref<128x128xf32, #tpu.memory_space<vmem>>, vector<128x128xf32>,
    %c4_i32 = arith.constant 4 : i32
    %9 = arith.cmpi eq, %arg2, %c4_i32 : i32
    %10 = arith.extui %9 : i1 to i32
    %c0_i32_8 = arith.constant 0 : i32
    %11 = arith.cmpi ne, %10, %c0_i32_8 : i32
    scf.if %11 {
      %c0_9 = arith.constant 0 : index
      %c0_10 = arith.constant 0 : index
      %12 = vector.load %arg7[%c0_9, %c0_10] : memref<128x128xf32, #tpu.memory_space<vmem>>, vector<128x128xf32>
      %c0_11 = arith.constant 0 : index
      %c0_12 = arith.constant 0 : index
      %13 = vector.load %arg5[%c0_11, %c0_12] : memref<1x128xf32, #tpu.memory_space<vmem>>, vector<1x128xf32>
      %14 = vector.broadcast %13 : vector<1x128xf32> to vector<128x128xf32>
      %15 = arith.addf %12, %14 : vector<128x128xf32>
      %cst_13 = arith.constant 0.000000e+00 : f32
      %16 = vector.broadcast %cst_13 : f32 to vector<128x128xf32>
      %17 = arith.cmpf ogt, %15, %16 : vector<128x128xf32>
      %cst_14 = arith.constant 0.000000e+00 : f32
      %18 = vector.broadcast %cst_14 : f32 to vector<128x128xf32>
      %19 = arith.minimumf %15, %18 : vector<128x128xf32>
      %20 = math.exp %19 : vector<128x128xf32>
      %cst_15 = arith.constant 1.000000e+00 : f32
      %21 = vector.broadcast %cst_15 : f32 to vector<128x128xf32>
      %22 = arith.subf %20, %21 : vector<128x128xf32>
      %23 = arith.select %17, %15, %22 : vector<128x128xi1>, vector<128x128xf32>
      %24 = arith.truncf %23 : vector<128x128xf32> to vector<128x128xbf16>
      %c0_16 = arith.constant 0 : index
      %c0_17 = arith.constant 0 : index
      %25 = vector.load %arg6[%c0_16, %c0_17] : memref<128x128xbf16, #tpu.memory_space<vmem>>, vector<128x128xbf16>
      tpu.vector_store %arg6[%c0_16, %c0_17], %24 {strides = array<i32>} : memref<128x128xbf16, #tpu.memory_space<vmem>>, vector<128x128xbf16>,
    } else {
    }
    return
  }
  func.func @transform_0(%arg0: i32, %arg1: i32, %arg2: i32) -> (i32, i32) {
    %c0_i32 = arith.constant 0 : i32
    return %arg0, %arg2 : i32, i32
  }
  func.func @transform_1(%arg0: i32, %arg1: i32, %arg2: i32) -> (i32, i32) {
    %c0_i32 = arith.constant 0 : i32
    return %arg2, %arg1 : i32, i32
  }
  func.func @transform_2(%arg0: i32, %arg1: i32, %arg2: i32) -> (i32, i32) {
    %c0_i32 = arith.constant 0 : i32
    %c0_i32_0 = arith.constant 0 : i32
    return %c0_i32, %arg1 : i32, i32
  }
  func.func @transform_3(%arg0: i32, %arg1: i32, %arg2: i32) -> (i32, i32) {
    %c0_i32 = arith.constant 0 : i32
    return %arg0, %arg1 : i32, i32
  }
}

module attributes {stable_mosaic.version = 11 : i64} {
  func.func @_mm_kernel(%arg0: i32, %arg1: i32, %arg2: i32, %arg3: memref<128x128xbf16, #tpu.memory_space<vmem>>, %arg4: memref<128x128xbf16, #tpu.memory_space<vmem>>, %arg5: memref<1x128xf32, #tpu.memory_space<vmem>>, %arg6: memref<128x128xbf16, #tpu.memory_space<vmem>>, %arg7: memref<128x128xf32, #tpu.memory_space<vmem>>) attributes {dimension_semantics = [#tpu.dimension_semantics<parallel>, #tpu.dimension_semantics<parallel>, #tpu.dimension_semantics<arbitrary>], iteration_bounds = array<i64: 1, 1, 1>, scalar_prefetch = 0 : i64, scratch_operands = 1 : i64, tpu.core_type = #tpu.core_type<tc>, window_params = [{transform_indices = @transform_0, window_bounds = array<i64: 128, 128>}, {transform_indices = @transform_1, window_bounds = array<i64: 128, 128>}, {transform_indices = @transform_2, window_bounds = array<i64: 1, 128>}, {transform_indices = @transform_3, window_bounds = array<i64: 128, 128>}]} {
    %c0_i32 = arith.constant 0 : i32
    %0 = arith.cmpi eq, %arg2, %c0_i32 : i32
    %1 = arith.extui %0 : i1 to i32
    %c0_i32_0 = arith.constant 0 : i32
    %2 = arith.cmpi ne, %1, %c0_i32_0 : i32
    scf.if %2 {
      %cst_10 = arith.constant 0.000000e+00 : f32
      %12 = vector.broadcast %cst_10 : f32 to vector<128x128xf32>
      %c0_11 = arith.constant 0 : index
      %c0_12 = arith.constant 0 : index
      %13 = vector.load %arg7[%c0_11, %c0_12] : memref<128x128xf32, #tpu.memory_space<vmem>>, vector<128x128xf32>
      tpu.vector_store %arg7[%c0_11, %c0_12], %12 {strides = array<i32>} : memref<128x128xf32, #tpu.memory_space<vmem>>, vector<128x128xf32>,
    } else {
    }
    %c0 = arith.constant 0 : index
    %c0_1 = arith.constant 0 : index
    %3 = vector.load %arg7[%c0, %c0_1] : memref<128x128xf32, #tpu.memory_space<vmem>>, vector<128x128xf32>
    %c0_2 = arith.constant 0 : index
    %c0_3 = arith.constant 0 : index
    %4 = vector.load %arg3[%c0_2, %c0_3] : memref<128x128xbf16, #tpu.memory_space<vmem>>, vector<128x128xbf16>
    %c0_4 = arith.constant 0 : index
    %c0_5 = arith.constant 0 : index
    %5 = vector.load %arg4[%c0_4, %c0_5] : memref<128x128xbf16, #tpu.memory_space<vmem>>, vector<128x128xbf16>
    %cst = arith.constant dense<0.000000e+00> : vector<128x128xf32>
    %6 = tpu.matmul %4, %5, %cst {dimension_numbers = #tpu.dot_dimension_numbers<[1], [0], [0], [1], [0, 0, 1, 1], [], []>} : vector<128x128xbf16>, vector<128x128xbf16>, vector<128x128xf32> -> vector<128x128xf32>
    %7 = arith.addf %3, %6 : vector<128x128xf32>
    %c0_6 = arith.constant 0 : index
    %c0_7 = arith.constant 0 : index
    %8 = vector.load %arg7[%c0_6, %c0_7] : memref<128x128xf32, #tpu.memory_space<vmem>>, vector<128x128xf32>
    tpu.vector_store %arg7[%c0_6, %c0_7], %7 {strides = array<i32>} : memref<128x128xf32, #tpu.memory_space<vmem>>, vector<128x128xf32>,
    %c0_i32_8 = arith.constant 0 : i32
    %9 = arith.cmpi eq, %arg2, %c0_i32_8 : i32
    %10 = arith.extui %9 : i1 to i32
    %c0_i32_9 = arith.constant 0 : i32
    %11 = arith.cmpi ne, %10, %c0_i32_9 : i32
    scf.if %11 {
      %c0_10 = arith.constant 0 : index
      %c0_11 = arith.constant 0 : index
      %12 = vector.load %arg7[%c0_10, %c0_11] : memref<128x128xf32, #tpu.memory_space<vmem>>, vector<128x128xf32>
      %c0_12 = arith.constant 0 : index
      %c0_13 = arith.constant 0 : index
      %13 = vector.load %arg5[%c0_12, %c0_13] : memref<1x128xf32, #tpu.memory_space<vmem>>, vector<1x128xf32>
      %14 = vector.broadcast %13 : vector<1x128xf32> to vector<128x128xf32>
      %15 = arith.addf %12, %14 : vector<128x128xf32>
      %cst_14 = arith.constant 0.000000e+00 : f32
      %16 = vector.broadcast %cst_14 : f32 to vector<128x128xf32>
      %17 = arith.cmpf ogt, %15, %16 : vector<128x128xf32>
      %cst_15 = arith.constant 0.000000e+00 : f32
      %18 = vector.broadcast %cst_15 : f32 to vector<128x128xf32>
      %19 = arith.minimumf %15, %18 : vector<128x128xf32>
      %20 = math.exp %19 : vector<128x128xf32>
      %cst_16 = arith.constant 1.000000e+00 : f32
      %21 = vector.broadcast %cst_16 : f32 to vector<128x128xf32>
      %22 = arith.subf %20, %21 : vector<128x128xf32>
      %23 = arith.select %17, %15, %22 : vector<128x128xi1>, vector<128x128xf32>
      %24 = arith.truncf %23 : vector<128x128xf32> to vector<128x128xbf16>
      %c0_17 = arith.constant 0 : index
      %c0_18 = arith.constant 0 : index
      %25 = vector.load %arg6[%c0_17, %c0_18] : memref<128x128xbf16, #tpu.memory_space<vmem>>, vector<128x128xbf16>
      tpu.vector_store %arg6[%c0_17, %c0_18], %24 {strides = array<i32>} : memref<128x128xbf16, #tpu.memory_space<vmem>>, vector<128x128xbf16>,
    } else {
    }
    return
  }
  func.func @transform_0(%arg0: i32, %arg1: i32, %arg2: i32) -> (i32, i32) {
    %c0_i32 = arith.constant 0 : i32
    return %arg0, %arg2 : i32, i32
  }
  func.func @transform_1(%arg0: i32, %arg1: i32, %arg2: i32) -> (i32, i32) {
    %c0_i32 = arith.constant 0 : i32
    return %arg2, %arg1 : i32, i32
  }
  func.func @transform_2(%arg0: i32, %arg1: i32, %arg2: i32) -> (i32, i32) {
    %c0_i32 = arith.constant 0 : i32
    %c0_i32_0 = arith.constant 0 : i32
    return %c0_i32, %arg1 : i32, i32
  }
  func.func @transform_3(%arg0: i32, %arg1: i32, %arg2: i32) -> (i32, i32) {
    %c0_i32 = arith.constant 0 : i32
    return %arg0, %arg1 : i32, i32
  }
}

module attributes {stable_mosaic.version = 11 : i64} {
  func.func @_conv_row_kernel(%arg0: i32, %arg1: i32, %arg2: i32, %arg3: i32, %arg4: memref<1x1x10x384xbf16, #tpu.memory_space<vmem>>, %arg5: memref<1x3x384x256xbf16, #tpu.memory_space<vmem>>, %arg6: memref<1x256xf32, #tpu.memory_space<vmem>>, %arg7: memref<1x1x8x256xbf16, #tpu.memory_space<vmem>>, %arg8: memref<8x256xf32, #tpu.memory_space<vmem>>) attributes {dimension_semantics = [#tpu.dimension_semantics<parallel>, #tpu.dimension_semantics<parallel>, #tpu.dimension_semantics<parallel>, #tpu.dimension_semantics<arbitrary>], iteration_bounds = array<i64: 2, 8, 1, 3>, scalar_prefetch = 0 : i64, scratch_operands = 1 : i64, tpu.core_type = #tpu.core_type<tc>, window_params = [{transform_indices = @transform_0, window_bounds = array<i64: 1, 1, 10, 384>}, {transform_indices = @transform_1, window_bounds = array<i64: 1, 3, 384, 256>}, {transform_indices = @transform_2, window_bounds = array<i64: 1, 256>}, {transform_indices = @transform_3, window_bounds = array<i64: 1, 1, 8, 256>}]} {
    %c0_i32 = arith.constant 0 : i32
    %0 = arith.cmpi eq, %arg3, %c0_i32 : i32
    %1 = arith.extui %0 : i1 to i32
    %c0_i32_0 = arith.constant 0 : i32
    %2 = arith.cmpi ne, %1, %c0_i32_0 : i32
    scf.if %2 {
      %cst_37 = arith.constant 0.000000e+00 : f32
      %30 = vector.broadcast %cst_37 : f32 to vector<8x256xf32>
      %c0_38 = arith.constant 0 : index
      %c0_39 = arith.constant 0 : index
      %31 = vector.load %arg8[%c0_38, %c0_39] : memref<8x256xf32, #tpu.memory_space<vmem>>, vector<8x256xf32>
      tpu.vector_store %arg8[%c0_38, %c0_39], %30 {strides = array<i32>} : memref<8x256xf32, #tpu.memory_space<vmem>>, vector<8x256xf32>,
    } else {
    }
    %c0 = arith.constant 0 : index
    %c0_1 = arith.constant 0 : index
    %c0_2 = arith.constant 0 : index
    %c0_3 = arith.constant 0 : index
    %3 = vector.load %arg4[%c0, %c0_1, %c0_2, %c0_3] : memref<1x1x10x384xbf16, #tpu.memory_space<vmem>>, vector<1x1x8x384xbf16>
    %4 = vector.shape_cast %3 : vector<1x1x8x384xbf16> to vector<8x384xbf16>
    %c0_4 = arith.constant 0 : index
    %c0_5 = arith.constant 0 : index
    %5 = vector.load %arg8[%c0_4, %c0_5] : memref<8x256xf32, #tpu.memory_space<vmem>>, vector<8x256xf32>
    %c0_6 = arith.constant 0 : index
    %c0_7 = arith.constant 0 : index
    %c0_8 = arith.constant 0 : index
    %c0_9 = arith.constant 0 : index
    %6 = vector.load %arg5[%c0_6, %c0_7, %c0_8, %c0_9] : memref<1x3x384x256xbf16, #tpu.memory_space<vmem>>, vector<1x1x384x256xbf16>
    %7 = vector.shape_cast %6 : vector<1x1x384x256xbf16> to vector<384x256xbf16>
    %cst = arith.constant dense<0.000000e+00> : vector<8x256xf32>
    %8 = tpu.matmul %4, %7, %cst {dimension_numbers = #tpu.dot_dimension_numbers<[1], [0], [0], [1], [0, 0, 1, 1], [], []>} : vector<8x384xbf16>, vector<384x256xbf16>, vector<8x256xf32> -> vector<8x256xf32>
    %9 = arith.addf %5, %8 : vector<8x256xf32>
    %c0_10 = arith.constant 0 : index
    %c0_11 = arith.constant 0 : index
    %10 = vector.load %arg8[%c0_10, %c0_11] : memref<8x256xf32, #tpu.memory_space<vmem>>, vector<8x256xf32>
    tpu.vector_store %arg8[%c0_10, %c0_11], %9 {strides = array<i32>} : memref<8x256xf32, #tpu.memory_space<vmem>>, vector<8x256xf32>,
    %c0_12 = arith.constant 0 : index
    %c0_13 = arith.constant 0 : index
    %c1 = arith.constant 1 : index
    %c0_14 = arith.constant 0 : index
    %11 = vector.load %arg4[%c0_12, %c0_13, %c1, %c0_14] : memref<1x1x10x384xbf16, #tpu.memory_space<vmem>>, vector<1x1x8x384xbf16>
    %12 = vector.shape_cast %11 : vector<1x1x8x384xbf16> to vector<8x384xbf16>
    %c0_15 = arith.constant 0 : index
    %c0_16 = arith.constant 0 : index
    %13 = vector.load %arg8[%c0_15, %c0_16] : memref<8x256xf32, #tpu.memory_space<vmem>>, vector<8x256xf32>
    %c0_17 = arith.constant 0 : index
    %c1_18 = arith.constant 1 : index
    %c0_19 = arith.constant 0 : index
    %c0_20 = arith.constant 0 : index
    %14 = vector.load %arg5[%c0_17, %c1_18, %c0_19, %c0_20] : memref<1x3x384x256xbf16, #tpu.memory_space<vmem>>, vector<1x1x384x256xbf16>
    %15 = vector.shape_cast %14 : vector<1x1x384x256xbf16> to vector<384x256xbf16>
    %cst_21 = arith.constant dense<0.000000e+00> : vector<8x256xf32>
    %16 = tpu.matmul %12, %15, %cst_21 {dimension_numbers = #tpu.dot_dimension_numbers<[1], [0], [0], [1], [0, 0, 1, 1], [], []>} : vector<8x384xbf16>, vector<384x256xbf16>, vector<8x256xf32> -> vector<8x256xf32>
    %17 = arith.addf %13, %16 : vector<8x256xf32>
    %c0_22 = arith.constant 0 : index
    %c0_23 = arith.constant 0 : index
    %18 = vector.load %arg8[%c0_22, %c0_23] : memref<8x256xf32, #tpu.memory_space<vmem>>, vector<8x256xf32>
    tpu.vector_store %arg8[%c0_22, %c0_23], %17 {strides = array<i32>} : memref<8x256xf32, #tpu.memory_space<vmem>>, vector<8x256xf32>,
    %c0_24 = arith.constant 0 : index
    %c0_25 = arith.constant 0 : index
    %c2 = arith.constant 2 : index
    %c0_26 = arith.constant 0 : index
    %19 = vector.load %arg4[%c0_24, %c0_25, %c2, %c0_26] : memref<1x1x10x384xbf16, #tpu.memory_space<vmem>>, vector<1x1x8x384xbf16>
    %20 = vector.shape_cast %19 : vector<1x1x8x384xbf16> to vector<8x384xbf16>
    %c0_27 = arith.constant 0 : index
    %c0_28 = arith.constant 0 : index
    %21 = vector.load %arg8[%c0_27, %c0_28] : memref<8x256xf32, #tpu.memory_space<vmem>>, vector<8x256xf32>
    %c0_29 = arith.constant 0 : index
    %c2_30 = arith.constant 2 : index
    %c0_31 = arith.constant 0 : index
    %c0_32 = arith.constant 0 : index
    %22 = vector.load %arg5[%c0_29, %c2_30, %c0_31, %c0_32] : memref<1x3x384x256xbf16, #tpu.memory_space<vmem>>, vector<1x1x384x256xbf16>
    %23 = vector.shape_cast %22 : vector<1x1x384x256xbf16> to vector<384x256xbf16>
    %cst_33 = arith.constant dense<0.000000e+00> : vector<8x256xf32>
    %24 = tpu.matmul %20, %23, %cst_33 {dimension_numbers = #tpu.dot_dimension_numbers<[1], [0], [0], [1], [0, 0, 1, 1], [], []>} : vector<8x384xbf16>, vector<384x256xbf16>, vector<8x256xf32> -> vector<8x256xf32>
    %25 = arith.addf %21, %24 : vector<8x256xf32>
    %c0_34 = arith.constant 0 : index
    %c0_35 = arith.constant 0 : index
    %26 = vector.load %arg8[%c0_34, %c0_35] : memref<8x256xf32, #tpu.memory_space<vmem>>, vector<8x256xf32>
    tpu.vector_store %arg8[%c0_34, %c0_35], %25 {strides = array<i32>} : memref<8x256xf32, #tpu.memory_space<vmem>>, vector<8x256xf32>,
    %c2_i32 = arith.constant 2 : i32
    %27 = arith.cmpi eq, %arg3, %c2_i32 : i32
    %28 = arith.extui %27 : i1 to i32
    %c0_i32_36 = arith.constant 0 : i32
    %29 = arith.cmpi ne, %28, %c0_i32_36 : i32
    scf.if %29 {
      %c0_37 = arith.constant 0 : index
      %c0_38 = arith.constant 0 : index
      %30 = vector.load %arg8[%c0_37, %c0_38] : memref<8x256xf32, #tpu.memory_space<vmem>>, vector<8x256xf32>
      %c0_39 = arith.constant 0 : index
      %c0_40 = arith.constant 0 : index
      %31 = vector.load %arg6[%c0_39, %c0_40] : memref<1x256xf32, #tpu.memory_space<vmem>>, vector<1x256xf32>
      %32 = vector.broadcast %31 : vector<1x256xf32> to vector<8x256xf32>
      %33 = arith.addf %30, %32 : vector<8x256xf32>
      %cst_41 = arith.constant 0.000000e+00 : f32
      %34 = vector.broadcast %cst_41 : f32 to vector<8x256xf32>
      %35 = arith.cmpf ogt, %33, %34 : vector<8x256xf32>
      %cst_42 = arith.constant 0.000000e+00 : f32
      %36 = vector.broadcast %cst_42 : f32 to vector<8x256xf32>
      %37 = arith.minimumf %33, %36 : vector<8x256xf32>
      %38 = math.exp %37 : vector<8x256xf32>
      %cst_43 = arith.constant 1.000000e+00 : f32
      %39 = vector.broadcast %cst_43 : f32 to vector<8x256xf32>
      %40 = arith.subf %38, %39 : vector<8x256xf32>
      %41 = arith.select %35, %33, %40 : vector<8x256xi1>, vector<8x256xf32>
      %42 = arith.truncf %41 : vector<8x256xf32> to vector<8x256xbf16>
      %c0_44 = arith.constant 0 : index
      %c0_45 = arith.constant 0 : index
      %c0_46 = arith.constant 0 : index
      %c0_47 = arith.constant 0 : index
      %43 = vector.load %arg7[%c0_44, %c0_45, %c0_46, %c0_47] : memref<1x1x8x256xbf16, #tpu.memory_space<vmem>>, vector<1x1x8x256xbf16>
      %44 = vector.shape_cast %43 : vector<1x1x8x256xbf16> to vector<8x256xbf16>
      %45 = vector.shape_cast %42 : vector<8x256xbf16> to vector<1x1x8x256xbf16>
      tpu.vector_store %arg7[%c0_44, %c0_45, %c0_46, %c0_47], %45 {strides = array<i32>} : memref<1x1x8x256xbf16, #tpu.memory_space<vmem>>, vector<1x1x8x256xbf16>,
    } else {
    }
    return
  }
  func.func @transform_0(%arg0: i32, %arg1: i32, %arg2: i32, %arg3: i32) -> (i32, i32, i32, i32) {
    %c1_i32 = arith.constant 1 : i32
    %0 = arith.muli %arg3, %c1_i32 : i32
    %1 = arith.addi %arg1, %0 : i32
    %c0_i32 = arith.constant 0 : i32
    %c0_i32_0 = arith.constant 0 : i32
    %c0_i32_1 = arith.constant 0 : i32
    return %arg0, %1, %c0_i32, %c0_i32_0 : i32, i32, i32, i32
  }
  func.func @transform_1(%arg0: i32, %arg1: i32, %arg2: i32, %arg3: i32) -> (i32, i32, i32, i32) {
    %c0_i32 = arith.constant 0 : i32
    %c0_i32_0 = arith.constant 0 : i32
    %c0_i32_1 = arith.constant 0 : i32
    return %arg3, %c0_i32, %c0_i32_0, %arg2 : i32, i32, i32, i32
  }
  func.func @transform_2(%arg0: i32, %arg1: i32, %arg2: i32, %arg3: i32) -> (i32, i32) {
    %c0_i32 = arith.constant 0 : i32
    %c0_i32_0 = arith.constant 0 : i32
    return %c0_i32, %arg2 : i32, i32
  }
  func.func @transform_3(%arg0: i32, %arg1: i32, %arg2: i32, %arg3: i32) -> (i32, i32, i32, i32) {
    %c0_i32 = arith.constant 0 : i32
    %c0_i32_0 = arith.constant 0 : i32
    return %arg0, %arg1, %c0_i32, %arg2 : i32, i32, i32, i32
  }
}

module attributes {stable_mosaic.version = 11 : i64} {
  func.func @_conv_row_kernel(%arg0: i32, %arg1: i32, %arg2: i32, %arg3: i32, %arg4: memref<1x1x10x256xbf16, #tpu.memory_space<vmem>>, %arg5: memref<1x3x256x256xbf16, #tpu.memory_space<vmem>>, %arg6: memref<1x256xf32, #tpu.memory_space<vmem>>, %arg7: memref<1x1x8x256xbf16, #tpu.memory_space<vmem>>, %arg8: memref<8x256xf32, #tpu.memory_space<vmem>>) attributes {dimension_semantics = [#tpu.dimension_semantics<parallel>, #tpu.dimension_semantics<parallel>, #tpu.dimension_semantics<parallel>, #tpu.dimension_semantics<arbitrary>], iteration_bounds = array<i64: 2, 8, 1, 3>, scalar_prefetch = 0 : i64, scratch_operands = 1 : i64, tpu.core_type = #tpu.core_type<tc>, window_params = [{transform_indices = @transform_0, window_bounds = array<i64: 1, 1, 10, 256>}, {transform_indices = @transform_1, window_bounds = array<i64: 1, 3, 256, 256>}, {transform_indices = @transform_2, window_bounds = array<i64: 1, 256>}, {transform_indices = @transform_3, window_bounds = array<i64: 1, 1, 8, 256>}]} {
    %c0_i32 = arith.constant 0 : i32
    %0 = arith.cmpi eq, %arg3, %c0_i32 : i32
    %1 = arith.extui %0 : i1 to i32
    %c0_i32_0 = arith.constant 0 : i32
    %2 = arith.cmpi ne, %1, %c0_i32_0 : i32
    scf.if %2 {
      %cst_37 = arith.constant 0.000000e+00 : f32
      %30 = vector.broadcast %cst_37 : f32 to vector<8x256xf32>
      %c0_38 = arith.constant 0 : index
      %c0_39 = arith.constant 0 : index
      %31 = vector.load %arg8[%c0_38, %c0_39] : memref<8x256xf32, #tpu.memory_space<vmem>>, vector<8x256xf32>
      tpu.vector_store %arg8[%c0_38, %c0_39], %30 {strides = array<i32>} : memref<8x256xf32, #tpu.memory_space<vmem>>, vector<8x256xf32>,
    } else {
    }
    %c0 = arith.constant 0 : index
    %c0_1 = arith.constant 0 : index
    %c0_2 = arith.constant 0 : index
    %c0_3 = arith.constant 0 : index
    %3 = vector.load %arg4[%c0, %c0_1, %c0_2, %c0_3] : memref<1x1x10x256xbf16, #tpu.memory_space<vmem>>, vector<1x1x8x256xbf16>
    %4 = vector.shape_cast %3 : vector<1x1x8x256xbf16> to vector<8x256xbf16>
    %c0_4 = arith.constant 0 : index
    %c0_5 = arith.constant 0 : index
    %5 = vector.load %arg8[%c0_4, %c0_5] : memref<8x256xf32, #tpu.memory_space<vmem>>, vector<8x256xf32>
    %c0_6 = arith.constant 0 : index
    %c0_7 = arith.constant 0 : index
    %c0_8 = arith.constant 0 : index
    %c0_9 = arith.constant 0 : index
    %6 = vector.load %arg5[%c0_6, %c0_7, %c0_8, %c0_9] : memref<1x3x256x256xbf16, #tpu.memory_space<vmem>>, vector<1x1x256x256xbf16>
    %7 = vector.shape_cast %6 : vector<1x1x256x256xbf16> to vector<256x256xbf16>
    %cst = arith.constant dense<0.000000e+00> : vector<8x256xf32>
    %8 = tpu.matmul %4, %7, %cst {dimension_numbers = #tpu.dot_dimension_numbers<[1], [0], [0], [1], [0, 0, 1, 1], [], []>} : vector<8x256xbf16>, vector<256x256xbf16>, vector<8x256xf32> -> vector<8x256xf32>
    %9 = arith.addf %5, %8 : vector<8x256xf32>
    %c0_10 = arith.constant 0 : index
    %c0_11 = arith.constant 0 : index
    %10 = vector.load %arg8[%c0_10, %c0_11] : memref<8x256xf32, #tpu.memory_space<vmem>>, vector<8x256xf32>
    tpu.vector_store %arg8[%c0_10, %c0_11], %9 {strides = array<i32>} : memref<8x256xf32, #tpu.memory_space<vmem>>, vector<8x256xf32>,
    %c0_12 = arith.constant 0 : index
    %c0_13 = arith.constant 0 : index
    %c1 = arith.constant 1 : index
    %c0_14 = arith.constant 0 : index
    %11 = vector.load %arg4[%c0_12, %c0_13, %c1, %c0_14] : memref<1x1x10x256xbf16, #tpu.memory_space<vmem>>, vector<1x1x8x256xbf16>
    %12 = vector.shape_cast %11 : vector<1x1x8x256xbf16> to vector<8x256xbf16>
    %c0_15 = arith.constant 0 : index
    %c0_16 = arith.constant 0 : index
    %13 = vector.load %arg8[%c0_15, %c0_16] : memref<8x256xf32, #tpu.memory_space<vmem>>, vector<8x256xf32>
    %c0_17 = arith.constant 0 : index
    %c1_18 = arith.constant 1 : index
    %c0_19 = arith.constant 0 : index
    %c0_20 = arith.constant 0 : index
    %14 = vector.load %arg5[%c0_17, %c1_18, %c0_19, %c0_20] : memref<1x3x256x256xbf16, #tpu.memory_space<vmem>>, vector<1x1x256x256xbf16>
    %15 = vector.shape_cast %14 : vector<1x1x256x256xbf16> to vector<256x256xbf16>
    %cst_21 = arith.constant dense<0.000000e+00> : vector<8x256xf32>
    %16 = tpu.matmul %12, %15, %cst_21 {dimension_numbers = #tpu.dot_dimension_numbers<[1], [0], [0], [1], [0, 0, 1, 1], [], []>} : vector<8x256xbf16>, vector<256x256xbf16>, vector<8x256xf32> -> vector<8x256xf32>
    %17 = arith.addf %13, %16 : vector<8x256xf32>
    %c0_22 = arith.constant 0 : index
    %c0_23 = arith.constant 0 : index
    %18 = vector.load %arg8[%c0_22, %c0_23] : memref<8x256xf32, #tpu.memory_space<vmem>>, vector<8x256xf32>
    tpu.vector_store %arg8[%c0_22, %c0_23], %17 {strides = array<i32>} : memref<8x256xf32, #tpu.memory_space<vmem>>, vector<8x256xf32>,
    %c0_24 = arith.constant 0 : index
    %c0_25 = arith.constant 0 : index
    %c2 = arith.constant 2 : index
    %c0_26 = arith.constant 0 : index
    %19 = vector.load %arg4[%c0_24, %c0_25, %c2, %c0_26] : memref<1x1x10x256xbf16, #tpu.memory_space<vmem>>, vector<1x1x8x256xbf16>
    %20 = vector.shape_cast %19 : vector<1x1x8x256xbf16> to vector<8x256xbf16>
    %c0_27 = arith.constant 0 : index
    %c0_28 = arith.constant 0 : index
    %21 = vector.load %arg8[%c0_27, %c0_28] : memref<8x256xf32, #tpu.memory_space<vmem>>, vector<8x256xf32>
    %c0_29 = arith.constant 0 : index
    %c2_30 = arith.constant 2 : index
    %c0_31 = arith.constant 0 : index
    %c0_32 = arith.constant 0 : index
    %22 = vector.load %arg5[%c0_29, %c2_30, %c0_31, %c0_32] : memref<1x3x256x256xbf16, #tpu.memory_space<vmem>>, vector<1x1x256x256xbf16>
    %23 = vector.shape_cast %22 : vector<1x1x256x256xbf16> to vector<256x256xbf16>
    %cst_33 = arith.constant dense<0.000000e+00> : vector<8x256xf32>
    %24 = tpu.matmul %20, %23, %cst_33 {dimension_numbers = #tpu.dot_dimension_numbers<[1], [0], [0], [1], [0, 0, 1, 1], [], []>} : vector<8x256xbf16>, vector<256x256xbf16>, vector<8x256xf32> -> vector<8x256xf32>
    %25 = arith.addf %21, %24 : vector<8x256xf32>
    %c0_34 = arith.constant 0 : index
    %c0_35 = arith.constant 0 : index
    %26 = vector.load %arg8[%c0_34, %c0_35] : memref<8x256xf32, #tpu.memory_space<vmem>>, vector<8x256xf32>
    tpu.vector_store %arg8[%c0_34, %c0_35], %25 {strides = array<i32>} : memref<8x256xf32, #tpu.memory_space<vmem>>, vector<8x256xf32>,
    %c2_i32 = arith.constant 2 : i32
    %27 = arith.cmpi eq, %arg3, %c2_i32 : i32
    %28 = arith.extui %27 : i1 to i32
    %c0_i32_36 = arith.constant 0 : i32
    %29 = arith.cmpi ne, %28, %c0_i32_36 : i32
    scf.if %29 {
      %c0_37 = arith.constant 0 : index
      %c0_38 = arith.constant 0 : index
      %30 = vector.load %arg8[%c0_37, %c0_38] : memref<8x256xf32, #tpu.memory_space<vmem>>, vector<8x256xf32>
      %c0_39 = arith.constant 0 : index
      %c0_40 = arith.constant 0 : index
      %31 = vector.load %arg6[%c0_39, %c0_40] : memref<1x256xf32, #tpu.memory_space<vmem>>, vector<1x256xf32>
      %32 = vector.broadcast %31 : vector<1x256xf32> to vector<8x256xf32>
      %33 = arith.addf %30, %32 : vector<8x256xf32>
      %cst_41 = arith.constant 0.000000e+00 : f32
      %34 = vector.broadcast %cst_41 : f32 to vector<8x256xf32>
      %35 = arith.cmpf ogt, %33, %34 : vector<8x256xf32>
      %cst_42 = arith.constant 0.000000e+00 : f32
      %36 = vector.broadcast %cst_42 : f32 to vector<8x256xf32>
      %37 = arith.minimumf %33, %36 : vector<8x256xf32>
      %38 = math.exp %37 : vector<8x256xf32>
      %cst_43 = arith.constant 1.000000e+00 : f32
      %39 = vector.broadcast %cst_43 : f32 to vector<8x256xf32>
      %40 = arith.subf %38, %39 : vector<8x256xf32>
      %41 = arith.select %35, %33, %40 : vector<8x256xi1>, vector<8x256xf32>
      %42 = arith.truncf %41 : vector<8x256xf32> to vector<8x256xbf16>
      %c0_44 = arith.constant 0 : index
      %c0_45 = arith.constant 0 : index
      %c0_46 = arith.constant 0 : index
      %c0_47 = arith.constant 0 : index
      %43 = vector.load %arg7[%c0_44, %c0_45, %c0_46, %c0_47] : memref<1x1x8x256xbf16, #tpu.memory_space<vmem>>, vector<1x1x8x256xbf16>
      %44 = vector.shape_cast %43 : vector<1x1x8x256xbf16> to vector<8x256xbf16>
      %45 = vector.shape_cast %42 : vector<8x256xbf16> to vector<1x1x8x256xbf16>
      tpu.vector_store %arg7[%c0_44, %c0_45, %c0_46, %c0_47], %45 {strides = array<i32>} : memref<1x1x8x256xbf16, #tpu.memory_space<vmem>>, vector<1x1x8x256xbf16>,
    } else {
    }
    return
  }
  func.func @transform_0(%arg0: i32, %arg1: i32, %arg2: i32, %arg3: i32) -> (i32, i32, i32, i32) {
    %c1_i32 = arith.constant 1 : i32
    %0 = arith.muli %arg3, %c1_i32 : i32
    %1 = arith.addi %arg1, %0 : i32
    %c0_i32 = arith.constant 0 : i32
    %c0_i32_0 = arith.constant 0 : i32
    %c0_i32_1 = arith.constant 0 : i32
    return %arg0, %1, %c0_i32, %c0_i32_0 : i32, i32, i32, i32
  }
  func.func @transform_1(%arg0: i32, %arg1: i32, %arg2: i32, %arg3: i32) -> (i32, i32, i32, i32) {
    %c0_i32 = arith.constant 0 : i32
    %c0_i32_0 = arith.constant 0 : i32
    %c0_i32_1 = arith.constant 0 : i32
    return %arg3, %c0_i32, %c0_i32_0, %arg2 : i32, i32, i32, i32
  }
  func.func @transform_2(%arg0: i32, %arg1: i32, %arg2: i32, %arg3: i32) -> (i32, i32) {
    %c0_i32 = arith.constant 0 : i32
    %c0_i32_0 = arith.constant 0 : i32
    return %c0_i32, %arg2 : i32, i32
  }
  func.func @transform_3(%arg0: i32, %arg1: i32, %arg2: i32, %arg3: i32) -> (i32, i32, i32, i32) {
    %c0_i32 = arith.constant 0 : i32
    %c0_i32_0 = arith.constant 0 : i32
    return %arg0, %arg1, %c0_i32, %arg2 : i32, i32, i32, i32
  }
}

module attributes {stable_mosaic.version = 11 : i64} {
  func.func @_proj1_kernel(%arg0: i32, %arg1: memref<1x128x256xbf16, #tpu.memory_space<vmem>>, %arg2: memref<1x1x256xf32, #tpu.memory_space<vmem>>, %arg3: memref<1x1xf32, #tpu.memory_space<vmem>>, %arg4: memref<1x128xf32, #tpu.memory_space<vmem>>) attributes {dimension_semantics = [#tpu.dimension_semantics<parallel>], iteration_bounds = array<i64: 1>, scalar_prefetch = 0 : i64, scratch_operands = 0 : i64, tpu.core_type = #tpu.core_type<tc>, window_params = [{transform_indices = @transform_0, window_bounds = array<i64: 1, 128, 256>}, {pipeline_mode = #tpu.pipeline_mode<synchronous>, transform_indices = @transform_1, window_bounds = array<i64: 1, 1, 256>}, {pipeline_mode = #tpu.pipeline_mode<synchronous>, transform_indices = @transform_2, window_bounds = array<i64: 1, 1>}, {transform_indices = @transform_3, window_bounds = array<i64: 1, 128>}]} {
    %c0 = arith.constant 0 : index
    %c0_0 = arith.constant 0 : index
    %c0_1 = arith.constant 0 : index
    %0 = vector.load %arg1[%c0, %c0_0, %c0_1] : memref<1x128x256xbf16, #tpu.memory_space<vmem>>, vector<1x128x256xbf16>
    %1 = arith.extf %0 : vector<1x128x256xbf16> to vector<1x128x256xf32>
    %c0_2 = arith.constant 0 : index
    %c0_3 = arith.constant 0 : index
    %c0_4 = arith.constant 0 : index
    %2 = vector.load %arg2[%c0_2, %c0_3, %c0_4] : memref<1x1x256xf32, #tpu.memory_space<vmem>>, vector<1x1x256xf32>
    %3 = vector.broadcast %2 : vector<1x1x256xf32> to vector<1x128x256xf32>
    %4 = arith.mulf %1, %3 : vector<1x128x256xf32>
    %cst = arith.constant dense<0.000000e+00> : vector<1x128xf32>
    %5 = vector.multi_reduction <add>, %4, %cst [2] : vector<1x128x256xf32> to vector<1x128xf32>
    %c0_5 = arith.constant 0 : index
    %c0_6 = arith.constant 0 : index
    %6 = vector.load %arg3[%c0_5, %c0_6] : memref<1x1xf32, #tpu.memory_space<vmem>>, vector<1x1xf32>
    %7 = vector.broadcast %6 : vector<1x1xf32> to vector<1x128xf32>
    %8 = arith.addf %5, %7 : vector<1x128xf32>
    %c0_7 = arith.constant 0 : index
    %c0_8 = arith.constant 0 : index
    %9 = vector.load %arg4[%c0_7, %c0_8] : memref<1x128xf32, #tpu.memory_space<vmem>>, vector<1x128xf32>
    tpu.vector_store %arg4[%c0_7, %c0_8], %8 {strides = array<i32>} : memref<1x128xf32, #tpu.memory_space<vmem>>, vector<1x128xf32>,
    return
  }
  func.func @transform_0(%arg0: i32) -> (i32, i32, i32) {
    %c0_i32 = arith.constant 0 : i32
    %c0_i32_0 = arith.constant 0 : i32
    %c0_i32_1 = arith.constant 0 : i32
    return %arg0, %c0_i32, %c0_i32_0 : i32, i32, i32
  }
  func.func @transform_1(%arg0: i32) -> (i32, i32, i32) {
    %c0_i32 = arith.constant 0 : i32
    %c0_i32_0 = arith.constant 0 : i32
    %c0_i32_1 = arith.constant 0 : i32
    %c0_i32_2 = arith.constant 0 : i32
    return %c0_i32, %c0_i32_0, %c0_i32_1 : i32, i32, i32
  }
  func.func @transform_2(%arg0: i32) -> (i32, i32) {
    %c0_i32 = arith.constant 0 : i32
    %c0_i32_0 = arith.constant 0 : i32
    %c0_i32_1 = arith.constant 0 : i32
    return %c0_i32, %c0_i32_0 : i32, i32
  }
  func.func @transform_3(%arg0: i32) -> (i32, i32) {
    %c0_i32 = arith.constant 0 : i32
    %c0_i32_0 = arith.constant 0 : i32
    return %arg0, %c0_i32 : i32, i32
  }
}

</mosaic_0001>

<llo_original>
// kernel: deeplab_cls_forward_test.12
$region0: #{deeplab_cls_forward_test.12}
  #allocation0 [shape = 'u32[]', space=smem, size = 0x4, offset = 0x4, fixed_abs, tag = 'smem constant byte address 0x4 - core index']
  #allocation1 [shape = 'u32[144,128]{1,0:T(1,128)}', space=vmem, size = 0x12000, scoped, tag = 'internal scratch']
  #allocation2 [shape = 'f32[128,128]{1,0:T(8,128)}', space=vmem, size = 0x10000, scoped, tag = 'scratch operand']
  %s0 = inlined_call_operand.vmem [shape: bf16[128,128], index: 0, kind: input, shape index: {}]
  %s1 = inlined_call_operand.hbm [shape: bf16[128,128], index: 1, kind: input, shape index: {}]
  %s2 = inlined_call_operand.hbm [shape: f32[1,128], index: 2, kind: input, shape index: {}]
  %s3 = inlined_call_operand.vmem [shape: bf16[128,128], index: 3, kind: output, shape index: {}]
  %s4 = sld [smem:[#allocation0]]
  $region38: #{deeplab_cls_forward_test.12} parent=0
    _
  %s6 = ssub.s32 1, %s4
  %s7 = scalar_select 0, %s6, %s4
  $region1: #{deeplab_cls_forward_test.12} parent=0
    #allocation3 [shape = 'u8[32768]{0}', space=vmem, size = 0x8000, scoped, tag = 'input window, operand 1, single buffered']
    #allocation4 [shape = 's32[1]{0}', space=sflag, size = 0x4, scoped, tag = 'scoped memory for deeplab_cls_forward_test.12']
    #allocation5 [shape = 'u8[512]{0}', space=vmem, size = 0x400, scoped, tag = 'input window, operand 2, single buffered']
    #allocation6 [shape = 's32[1]{0}', space=sflag, size = 0x4, scoped, tag = 'scoped memory for deeplab_cls_forward_test.12']
    %8 = vsyncpa [#allocation4], 0
    %9 = vsyncpa [#allocation6], 0
    // Predicated region
    $region2: #{deeplab_cls_forward_test.12} parent=1 // pred_check
      _
    $region3: #{deeplab_cls_forward_test.12} parent=1 // pred_check_branch
      %11 = sbr.rel (0) target = $region5
    $region4: #{deeplab_cls_forward_test.12} parent=1 // pred_region
      _
    $region5: #{deeplab_cls_forward_test.12} parent=1 // pred_fallthru
      _
    // Predicated region
    $region6: #{deeplab_cls_forward_test.12} parent=1 // pred_check
      _
    $region7: #{deeplab_cls_forward_test.12} parent=1 // pred_check_branch
      %13 = sbr.rel (0) target = $region9
    $region8: #{deeplab_cls_forward_test.12} parent=1 // pred_region
      %s15 = ssub.s32 1024, 1024
      %16 = vsyncadd [#allocation4], %s15
      %s17 = sshll.u32 [#allocation3], 4
      %s18 = int_to_ptr.vmem [resolvable:$true] %s17
      %23 = dma.hbm_to_vmem [thread:$0]  %s1, 1024, %s18, [#allocation4], 64, 64, 4
    $region9: #{deeplab_cls_forward_test.12} parent=1 // pred_fallthru
      _
    // Predicated region
    $region10: #{deeplab_cls_forward_test.12} parent=1 // pred_check
      _
    $region11: #{deeplab_cls_forward_test.12} parent=1 // pred_check_branch
      %25 = sbr.rel (0) target = $region13
    $region12: #{deeplab_cls_forward_test.12} parent=1 // pred_region
      %s27 = ssub.s32 16, 16
      %28 = vsyncadd [#allocation6], %s27
      %s30 = sshll.u32 [#allocation5], 4
      %s31 = int_to_ptr.vmem [resolvable:$true] %s30
      %33 = dma.hbm_to_vmem [thread:$0]  %s2, 16, %s31, [#allocation6]
    $region13: #{deeplab_cls_forward_test.12} parent=1 // pred_fallthru
      _
    // Predicated region
    $region14: #{deeplab_cls_forward_test.12} parent=1 // pred_check
      _
    $region15: #{deeplab_cls_forward_test.12} parent=1 // pred_check_branch
      %35 = sbr.rel (0) target = $region17
    $region16: #{deeplab_cls_forward_test.12} parent=1 // pred_region
      %36 = dma.done [#allocation4], 1024
    $region17: #{deeplab_cls_forward_test.12} parent=1 // pred_fallthru
      _
    // Predicated region
    $region18: #{deeplab_cls_forward_test.12} parent=1 // pred_check
      _
    $region19: #{deeplab_cls_forward_test.12} parent=1 // pred_check_branch
      %38 = sbr.rel (0) target = $region21
    $region20: #{deeplab_cls_forward_test.12} parent=1 // pred_region
      %39 = dma.done [#allocation6], 16
    $region21: #{deeplab_cls_forward_test.12} parent=1 // pred_fallthru
      _
    %p41 = scmp.eq.s32.totalorder 0, 0
    // Predicated region
    $region22: #{deeplab_cls_forward_test.12} parent=1 // pred_check
      %p42 = pneg %p41
    $region23: #{deeplab_cls_forward_test.12} parent=1 // pred_check_branch
      %44 = sbr.rel (%p42) target = $region25
    $region24: #{deeplab_cls_forward_test.12} parent=1 // pred_region
      %45 = vst [vmem:[#allocation2] sm:$0xff] 0.0
      %46 = vst [vmem:[#allocation2 + $0x8] sm:$0xff] 0.0
      %47 = vst [vmem:[#allocation2 + $0x10] sm:$0xff] 0.0
      %48 = vst [vmem:[#allocation2 + $0x18] sm:$0xff] 0.0
      %49 = vst [vmem:[#allocation2 + $0x20] sm:$0xff] 0.0
      %50 = vst [vmem:[#allocation2 + $0x28] sm:$0xff] 0.0
      %51 = vst [vmem:[#allocation2 + $0x30] sm:$0xff] 0.0
      %52 = vst [vmem:[#allocation2 + $0x38] sm:$0xff] 0.0
      %53 = vst [vmem:[#allocation2 + $0x40] sm:$0xff] 0.0
      %54 = vst [vmem:[#allocation2 + $0x48] sm:$0xff] 0.0
      %55 = vst [vmem:[#allocation2 + $0x50] sm:$0xff] 0.0
      %56 = vst [vmem:[#allocation2 + $0x58] sm:$0xff] 0.0
      %57 = vst [vmem:[#allocation2 + $0x60] sm:$0xff] 0.0
      %58 = vst [vmem:[#allocation2 + $0x68] sm:$0xff] 0.0
      %59 = vst [vmem:[#allocation2 + $0x70] sm:$0xff] 0.0
      %60 = vst [vmem:[#allocation2 + $0x78] sm:$0xff] 0.0
    $region25: #{deeplab_cls_forward_test.12} parent=1 // pred_fallthru
      _
    %v61 = vld [vmem:[#allocation2] sm:$0xff]
    %v62 = vld [vmem:[#allocation2 + $0x8] sm:$0xff]
    %v63 = vld [vmem:[#allocation2 + $0x10] sm:$0xff]
    %v64 = vld [vmem:[#allocation2 + $0x18] sm:$0xff]
    %v65 = vld [vmem:[#allocation2 + $0x20] sm:$0xff]
    %v66 = vld [vmem:[#allocation2 + $0x28] sm:$0xff]
    %v67 = vld [vmem:[#allocation2 + $0x30] sm:$0xff]
    %v68 = vld [vmem:[#allocation2 + $0x38] sm:$0xff]
    %v69 = vld [vmem:[#allocation2 + $0x40] sm:$0xff]
    %v70 = vld [vmem:[#allocation2 + $0x48] sm:$0xff]
    %v71 = vld [vmem:[#allocation2 + $0x50] sm:$0xff]
    %v72 = vld [vmem:[#allocation2 + $0x58] sm:$0xff]
    %v73 = vld [vmem:[#allocation2 + $0x60] sm:$0xff]
    %v74 = vld [vmem:[#allocation2 + $0x68] sm:$0xff]
    %v75 = vld [vmem:[#allocation2 + $0x70] sm:$0xff]
    %v76 = vld [vmem:[#allocation2 + $0x78] sm:$0xff]
    %v77 = vld [vmem:[%s0] sm:$0xf]
    %v78 = vld [vmem:[%s0 + $0x4] sm:$0xf]
    %v79 = vld [vmem:[%s0 + $0x8] sm:$0xf]
    %v80 = vld [vmem:[%s0 + $0xc] sm:$0xf]
    %v81 = vld [vmem:[%s0 + $0x10] sm:$0xf]
    %v82 = vld [vmem:[%s0 + $0x14] sm:$0xf]
    %v83 = vld [vmem:[%s0 + $0x18] sm:$0xf]
    %v84 = vld [vmem:[%s0 + $0x1c] sm:$0xf]
    %v85 = vld [vmem:[%s0 + $0x20] sm:$0xf]
    %v86 = vld [vmem:[%s0 + $0x24] sm:$0xf]
    %v87 = vld [vmem:[%s0 + $0x28] sm:$0xf]
    %v88 = vld [vmem:[%s0 + $0x2c] sm:$0xf]
    %v89 = vld [vmem:[%s0 + $0x30] sm:$0xf]
    %v90 = vld [vmem:[%s0 + $0x34] sm:$0xf]
    %v91 = vld [vmem:[%s0 + $0x38] sm:$0xf]
    %v92 = vld [vmem:[%s0 + $0x3c] sm:$0xf]
    %v93 = vld [vmem:[#allocation3] sm:$0xf]
    %v94 = vld [vmem:[#allocation3 + $0x4] sm:$0xf]
    %v95 = vld [vmem:[#allocation3 + $0x8] sm:$0xf]
    %v96 = vld [vmem:[#allocation3 + $0xc] sm:$0xf]
    %v97 = vld [vmem:[#allocation3 + $0x10] sm:$0xf]
    %v98 = vld [vmem:[#allocation3 + $0x14] sm:$0xf]
    %v99 = vld [vmem:[#allocation3 + $0x18] sm:$0xf]
    %v100 = vld [vmem:[#allocation3 + $0x1c] sm:$0xf]
    %v101 = vld [vmem:[#allocation3 + $0x20] sm:$0xf]
    %v102 = vld [vmem:[#allocation3 + $0x24] sm:$0xf]
    %v103 = vld [vmem:[#allocation3 + $0x28] sm:$0xf]
    %v104 = vld [vmem:[#allocation3 + $0x2c] sm:$0xf]
    %v105 = vld [vmem:[#allocation3 + $0x30] sm:$0xf]
    %v106 = vld [vmem:[#allocation3 + $0x34] sm:$0xf]
    %v107 = vld [vmem:[#allocation3 + $0x38] sm:$0xf]
    %v108 = vld [vmem:[#allocation3 + $0x3c] sm:$0xf]
    %v125 = vunpack.c.l.b16 %v77
    %v126 = vunpack.c.l.b16 %v78
    %v127 = vunpack.c.l.b16 %v79
    %v128 = vunpack.c.l.b16 %v80
    %v129 = vunpack.c.l.b16 %v81
    %v130 = vunpack.c.l.b16 %v82
    %v131 = vunpack.c.l.b16 %v83
    %v132 = vunpack.c.l.b16 %v84
    %v133 = vunpack.c.l.b16 %v85
    %v134 = vunpack.c.l.b16 %v86
    %v135 = vunpack.c.l.b16 %v87
    %v136 = vunpack.c.l.b16 %v88
    %v137 = vunpack.c.l.b16 %v89
    %v138 = vunpack.c.l.b16 %v90
    %v139 = vunpack.c.l.b16 %v91
    %v140 = vunpack.c.l.b16 %v92
    %v141 = vpack.c.b16 %v126, %v125
    %v142 = vpack.c.b16 %v128, %v127
    %v143 = vpack.c.b16 %v130, %v129
    %v144 = vpack.c.b16 %v132, %v131
    %v145 = vpack.c.b16 %v134, %v133
    %v146 = vpack.c.b16 %v136, %v135
    %v147 = vpack.c.b16 %v138, %v137
    %v148 = vpack.c.b16 %v140, %v139
    %v173 = vunpack.c.l.b16 %v93
    %v174 = vunpack.c.l.b16 %v94
    %v175 = vunpack.c.l.b16 %v95
    %v176 = vunpack.c.l.b16 %v96
    %v177 = vunpack.c.l.b16 %v97
    %v178 = vunpack.c.l.b16 %v98
    %v179 = vunpack.c.l.b16 %v99
    %v180 = vunpack.c.l.b16 %v100
    %v181 = vunpack.c.l.b16 %v101
    %v182 = vunpack.c.l.b16 %v102
    %v183 = vunpack.c.l.b16 %v103
    %v184 = vunpack.c.l.b16 %v104
    %v185 = vunpack.c.l.b16 %v105
    %v186 = vunpack.c.l.b16 %v106
    %v187 = vunpack.c.l.b16 %v107
    %v188 = vunpack.c.l.b16 %v108
    %v189 = vpack.c.b16 %v174, %v173
    %v190 = vpack.c.b16 %v176, %v175
    %v191 = vpack.c.b16 %v178, %v177
    %v192 = vpack.c.b16 %v180, %v179
    %v193 = vpack.c.b16 %v182, %v181
    %v194 = vpack.c.b16 %v184, %v183
    %v195 = vpack.c.b16 %v186, %v185
    %v196 = vpack.c.b16 %v188, %v187
    %205 = vmatprep.subr.bf16.mxu0 0
    %206 = vmatpush1.bf16.msra.mxu0 %v189
    %207 = vmatprep.subr.bf16.mxu0 0
    %208 = vmatpush1.bf16.msra.mxu0 %v190
    %209 = vmatprep.subr.bf16.mxu0 0
    %210 = vmatpush1.bf16.msra.mxu0 %v191
    %211 = vmatprep.subr.bf16.mxu0 0
    %212 = vmatpush1.bf16.msra.mxu0 %v192
    %213 = vmatprep.subr.bf16.mxu0 0
    %214 = vmatpush1.bf16.msra.mxu0 %v193
    %215 = vmatprep.subr.bf16.mxu0 0
    %216 = vmatpush1.bf16.msra.mxu0 %v194
    %217 = vmatprep.subr.bf16.mxu0 0
    %218 = vmatpush1.bf16.msra.mxu0 %v195
    %219 = vmatprep.subr.bf16.mxu0 0
    %220 = vmatpush1.bf16.msra.mxu0 %v196
    %221 = vmatprep.subr.bf16.mxu0 0
    %222 = vmatpush1.bf16.msra.mxu0 0
    %223 = vmatprep.subr.bf16.mxu0 0
    %224 = vmatpush1.bf16.msra.mxu0 0
    %225 = vmatprep.subr.bf16.mxu0 0
    %226 = vmatpush1.bf16.msra.mxu0 0
    %227 = vmatprep.subr.bf16.mxu0 0
    %228 = vmatpush1.bf16.msra.mxu0 0
    %229 = vmatprep.subr.bf16.mxu0 0
    %230 = vmatpush1.bf16.msra.mxu0 0
    %231 = vmatprep.subr.bf16.mxu0 0
    %232 = vmatpush1.bf16.msra.mxu0 0
    %233 = vmatprep.subr.bf16.mxu0 0
    %234 = vmatpush1.bf16.msra.mxu0 0
    %235 = vmatprep.subr.bf16.mxu0 0
    %236 = vmatpush1.bf16.msra.mxu0 0
    %237 = vmatprep.mubr.bf16.mxu0 0
    %238 = vmatmul.mubr.bf16.gmra.mrb[0].mxu0 %v141
    %v239 = vpop.f32.mrb[0].mxu0
    %v240 = vadd.f32 0.0, %v239
    %v241 = vpop.f32.mrb[0].mxu0
    %v242 = vpop.f32.mrb[0].mxu0
    %v243 = vadd.f32 0.0, %v242
    %v244 = vpop.f32.mrb[0].mxu0
    %245 = vmatprep.mubr.bf16.mxu0 0
    %246 = vmatmul.mubr.bf16.gmra.mrb[0].mxu0 %v142
    %v247 = vpop.f32.mrb[0].mxu0
    %v248 = vadd.f32 0.0, %v247
    %v249 = vpop.f32.mrb[0].mxu0
    %v250 = vpop.f32.mrb[0].mxu0
    %v251 = vadd.f32 0.0, %v250
    %v252 = vpop.f32.mrb[0].mxu0
    %253 = vmatprep.mubr.bf16.mxu0 0
    %254 = vmatmul.mubr.bf16.gmra.mrb[0].mxu0 %v143
    %v255 = vpop.f32.mrb[0].mxu0
    %v256 = vadd.f32 0.0, %v255
    %v257 = vpop.f32.mrb[0].mxu0
    %v258 = vpop.f32.mrb[0].mxu0
    %v259 = vadd.f32 0.0, %v258
    %v260 = vpop.f32.mrb[0].mxu0
    %261 = vmatprep.mubr.bf16.mxu0 0
    %262 = vmatmul.mubr.bf16.gmra.mrb[0].mxu0 %v144
    %v263 = vpop.f32.mrb[0].mxu0
    %v264 = vadd.f32 0.0, %v263
    %v265 = vpop.f32.mrb[0].mxu0
    %v266 = vpop.f32.mrb[0].mxu0
    %v267 = vadd.f32 0.0, %v266
    %v268 = vpop.f32.mrb[0].mxu0
    %269 = vmatprep.mubr.bf16.mxu0 0
    %270 = vmatmul.mubr.bf16.gmra.mrb[0].mxu0 %v145
    %v271 = vpop.f32.mrb[0].mxu0
    %v272 = vadd.f32 0.0, %v271
    %v273 = vpop.f32.mrb[0].mxu0
    %v274 = vpop.f32.mrb[0].mxu0
    %v275 = vadd.f32 0.0, %v274
    %v276 = vpop.f32.mrb[0].mxu0
    %277 = vmatprep.mubr.bf16.mxu0 0
    %278 = vmatmul.mubr.bf16.gmra.mrb[0].mxu0 %v146
    %v279 = vpop.f32.mrb[0].mxu0
    %v280 = vadd.f32 0.0, %v279
    %v281 = vpop.f32.mrb[0].mxu0
    %v282 = vpop.f32.mrb[0].mxu0
    %v283 = vadd.f32 0.0, %v282
    %v284 = vpop.f32.mrb[0].mxu0
    %285 = vmatprep.mubr.bf16.mxu0 0
    %286 = vmatmul.mubr.bf16.gmra.mrb[0].mxu0 %v147
    %v287 = vpop.f32.mrb[0].mxu0
    %v288 = vadd.f32 0.0, %v287
    %v289 = vpop.f32.mrb[0].mxu0
    %v290 = vpop.f32.mrb[0].mxu0
    %v291 = vadd.f32 0.0, %v290
    %v292 = vpop.f32.mrb[0].mxu0
    %293 = vmatprep.mubr.bf16.mxu0 0
    %294 = vmatmul.mubr.bf16.gmra.mrb[0].mxu0 %v148
    %v295 = vpop.f32.mrb[0].mxu0
    %v296 = vadd.f32 0.0, %v295
    %v297 = vpop.f32.mrb[0].mxu0
    %v298 = vpop.f32.mrb[0].mxu0
    %v299 = vadd.f32 0.0, %v298
    %v300 = vpop.f32.mrb[0].mxu0
    %301 = vdwg.mxu0
    %v302 = vadd.f32 %v61, %v240
    %v303 = vadd.f32 %v62, %v243
    %v304 = vadd.f32 %v63, %v248
    %v305 = vadd.f32 %v64, %v251
    %v306 = vadd.f32 %v65, %v256
    %v307 = vadd.f32 %v66, %v259
    %v308 = vadd.f32 %v67, %v264
    %v309 = vadd.f32 %v68, %v267
    %v310 = vadd.f32 %v69, %v272
    %v311 = vadd.f32 %v70, %v275
    %v312 = vadd.f32 %v71, %v280
    %v313 = vadd.f32 %v72, %v283
    %v314 = vadd.f32 %v73, %v288
    %v315 = vadd.f32 %v74, %v291
    %v316 = vadd.f32 %v75, %v296
    %v317 = vadd.f32 %v76, %v299
    %318 = vst [vmem:[#allocation2] sm:$0xff] %v302
    %319 = vst [vmem:[#allocation2 + $0x8] sm:$0xff] %v303
    %320 = vst [vmem:[#allocation2 + $0x10] sm:$0xff] %v304
    %321 = vst [vmem:[#allocation2 + $0x18] sm:$0xff] %v305
    %322 = vst [vmem:[#allocation2 + $0x20] sm:$0xff] %v306
    %323 = vst [vmem:[#allocation2 + $0x28] sm:$0xff] %v307
    %324 = vst [vmem:[#allocation2 + $0x30] sm:$0xff] %v308
    %325 = vst [vmem:[#allocation2 + $0x38] sm:$0xff] %v309
    %326 = vst [vmem:[#allocation2 + $0x40] sm:$0xff] %v310
    %327 = vst [vmem:[#allocation2 + $0x48] sm:$0xff] %v311
    %328 = vst [vmem:[#allocation2 + $0x50] sm:$0xff] %v312
    %329 = vst [vmem:[#allocation2 + $0x58] sm:$0xff] %v313
    %330 = vst [vmem:[#allocation2 + $0x60] sm:$0xff] %v314
    %331 = vst [vmem:[#allocation2 + $0x68] sm:$0xff] %v315
    %332 = vst [vmem:[#allocation2 + $0x70] sm:$0xff] %v316
    %333 = vst [vmem:[#allocation2 + $0x78] sm:$0xff] %v317
    // Predicated region
    $region26: #{deeplab_cls_forward_test.12} parent=1 // pred_check
      %p334 = pneg %p41
    $region27: #{deeplab_cls_forward_test.12} parent=1 // pred_check_branch
      %336 = sbr.rel (%p334) target = $region29
    $region28: #{deeplab_cls_forward_test.12} parent=1 // pred_region
      %v337 = vld [vmem:[#allocation2] sm:$0xff]
      %v338 = vld [vmem:[#allocation2 + $0x8] sm:$0xff]
      %v339 = vld [vmem:[#allocation2 + $0x10] sm:$0xff]
      %v340 = vld [vmem:[#allocation2 + $0x18] sm:$0xff]
      %v341 = vld [vmem:[#allocation2 + $0x20] sm:$0xff]
      %v342 = vld [vmem:[#allocation2 + $0x28] sm:$0xff]
      %v343 = vld [vmem:[#allocation2 + $0x30] sm:$0xff]
      %v344 = vld [vmem:[#allocation2 + $0x38] sm:$0xff]
      %v345 = vld [vmem:[#allocation2 + $0x40] sm:$0xff]
      %v346 = vld [vmem:[#allocation2 + $0x48] sm:$0xff]
      %v347 = vld [vmem:[#allocation2 + $0x50] sm:$0xff]
      %v348 = vld [vmem:[#allocation2 + $0x58] sm:$0xff]
      %v349 = vld [vmem:[#allocation2 + $0x60] sm:$0xff]
      %v350 = vld [vmem:[#allocation2 + $0x68] sm:$0xff]
      %v351 = vld [vmem:[#allocation2 + $0x70] sm:$0xff]
      %v352 = vld [vmem:[#allocation2 + $0x78] sm:$0xff]
      %v353 = vld [vmem:[#allocation5] sm:$0x1]
      %v355 = vlaneseq
      %v356 = vshrl.u32 %v355, 7
      %v357 = vsub.s32 0, %v356
      %v358 = vrot.slane %v353, %v357
      %v360 = vadd.f32 %v337, %v358
      %v361 = vadd.f32 %v338, %v358
      %v362 = vadd.f32 %v339, %v358
      %v363 = vadd.f32 %v340, %v358
      %v364 = vadd.f32 %v341, %v358
      %v365 = vadd.f32 %v342, %v358
      %v366 = vadd.f32 %v343, %v358
      %v367 = vadd.f32 %v344, %v358
      %v368 = vadd.f32 %v345, %v358
      %v369 = vadd.f32 %v346, %v358
      %v370 = vadd.f32 %v347, %v358
      %v371 = vadd.f32 %v348, %v358
      %v372 = vadd.f32 %v349, %v358
      %v373 = vadd.f32 %v350, %v358
      %v374 = vadd.f32 %v351, %v358
      %v375 = vadd.f32 %v352, %v358
      %vm376 = vcmp.gt.f32.partialorder %v360, 0.0
      %vm377 = vcmp.gt.f32.partialorder %v361, 0.0
      %vm378 = vcmp.gt.f32.partialorder %v362, 0.0
      %vm379 = vcmp.gt.f32.partialorder %v363, 0.0
      %vm380 = vcmp.gt.f32.partialorder %v364, 0.0
      %vm381 = vcmp.gt.f32.partialorder %v365, 0.0
      %vm382 = vcmp.gt.f32.partialorder %v366, 0.0
      %vm383 = vcmp.gt.f32.partialorder %v367, 0.0
      %vm384 = vcmp.gt.f32.partialorder %v368, 0.0
      %vm385 = vcmp.gt.f32.partialorder %v369, 0.0
      %vm386 = vcmp.gt.f32.partialorder %v370, 0.0
      %vm387 = vcmp.gt.f32.partialorder %v371, 0.0
      %vm388 = vcmp.gt.f32.partialorder %v372, 0.0
      %vm389 = vcmp.gt.f32.partialorder %v373, 0.0
      %vm390 = vcmp.gt.f32.partialorder %v374, 0.0
      %vm391 = vcmp.gt.f32.partialorder %v375, 0.0
      %v392 = vmin.f32 %v360, 0.0
      %v393 = vmin.f32 %v361, 0.0
      %v394 = vmin.f32 %v362, 0.0
      %v395 = vmin.f32 %v363, 0.0
      %v396 = vmin.f32 %v364, 0.0
      %v397 = vmin.f32 %v365, 0.0
      %v398 = vmin.f32 %v366, 0.0
      %v399 = vmin.f32 %v367, 0.0
      %v400 = vmin.f32 %v368, 0.0
      %v401 = vmin.f32 %v369, 0.0
      %v402 = vmin.f32 %v370, 0.0
      %v403 = vmin.f32 %v371, 0.0
      %v404 = vmin.f32 %v372, 0.0
      %v405 = vmin.f32 %v373, 0.0
      %v406 = vmin.f32 %v374, 0.0
      %v407 = vmin.f32 %v375, 0.0
      %v408 = vmul.f32 %v392, 1.442695
      %v409 = vpow.pop %v408
      %v410 = vmul.f32 %v393, 1.442695
      %v411 = vpow.pop %v410
      %v412 = vmul.f32 %v394, 1.442695
      %v413 = vpow.pop %v412
      %v414 = vmul.f32 %v395, 1.442695
      %v415 = vpow.pop %v414
      %v416 = vmul.f32 %v396, 1.442695
      %v417 = vpow.pop %v416
      %v418 = vmul.f32 %v397, 1.442695
      %v419 = vpow.pop %v418
      %v420 = vmul.f32 %v398, 1.442695
      %v421 = vpow.pop %v420
      %v422 = vmul.f32 %v399, 1.442695
      %v423 = vpow.pop %v422
      %v424 = vmul.f32 %v400, 1.442695
      %v425 = vpow.pop %v424
      %v426 = vmul.f32 %v401, 1.442695
      %v427 = vpow.pop %v426
      %v428 = vmul.f32 %v402, 1.442695
      %v429 = vpow.pop %v428
      %v430 = vmul.f32 %v403, 1.442695
      %v431 = vpow.pop %v430
      %v432 = vmul.f32 %v404, 1.442695
      %v433 = vpow.pop %v432
      %v434 = vmul.f32 %v405, 1.442695
      %v435 = vpow.pop %v434
      %v436 = vmul.f32 %v406, 1.442695
      %v437 = vpow.pop %v436
      %v438 = vmul.f32 %v407, 1.442695
      %v439 = vpow.pop %v438
      %v440 = vsub.f32 %v409, 1.0
      %v441 = vsub.f32 %v411, 1.0
      %v442 = vsub.f32 %v413, 1.0
      %v443 = vsub.f32 %v415, 1.0
      %v444 = vsub.f32 %v417, 1.0
      %v445 = vsub.f32 %v419, 1.0
      %v446 = vsub.f32 %v421, 1.0
      %v447 = vsub.f32 %v423, 1.0
      %v448 = vsub.f32 %v425, 1.0
      %v449 = vsub.f32 %v427, 1.0
      %v450 = vsub.f32 %v429, 1.0
      %v451 = vsub.f32 %v431, 1.0
      %v452 = vsub.f32 %v433, 1.0
      %v453 = vsub.f32 %v435, 1.0
      %v454 = vsub.f32 %v437, 1.0
      %v455 = vsub.f32 %v439, 1.0
      %v456 = vsel %vm376, %v360, %v440
      %v457 = vsel %vm377, %v361, %v441
      %v458 = vsel %vm378, %v362, %v442
      %v459 = vsel %vm379, %v363, %v443
      %v460 = vsel %vm380, %v364, %v444
      %v461 = vsel %vm381, %v365, %v445
      %v462 = vsel %vm382, %v366, %v446
      %v463 = vsel %vm383, %v367, %v447
      %v464 = vsel %vm384, %v368, %v448
      %v465 = vsel %vm385, %v369, %v449
      %v466 = vsel %vm386, %v370, %v450
      %v467 = vsel %vm387, %v371, %v451
      %v468 = vsel %vm388, %v372, %v452
      %v469 = vsel %vm389, %v373, %v453
      %v470 = vsel %vm390, %v374, %v454
      %v471 = vsel %vm391, %v375, %v455
      %v472 = vpack.c.bf16 %v457, %v456
      %v473 = vpack.c.bf16 %v459, %v458
      %v474 = vpack.c.bf16 %v461, %v460
      %v475 = vpack.c.bf16 %v463, %v462
      %v476 = vpack.c.bf16 %v465, %v464
      %v477 = vpack.c.bf16 %v467, %v466
      %v478 = vpack.c.bf16 %v469, %v468
      %v479 = vpack.c.bf16 %v471, %v470
      %v488 = vunpack.c.l.b16 %v472
      %v489 = vunpack.c.h.b16 %v472
      %v490 = vunpack.c.l.b16 %v473
      %v491 = vunpack.c.h.b16 %v473
      %v492 = vunpack.c.l.b16 %v474
      %v493 = vunpack.c.h.b16 %v474
      %v494 = vunpack.c.l.b16 %v475
      %v495 = vunpack.c.h.b16 %v475
      %v496 = vunpack.c.l.b16 %v476
      %v497 = vunpack.c.h.b16 %v476
      %v498 = vunpack.c.l.b16 %v477
      %v499 = vunpack.c.h.b16 %v477
      %v500 = vunpack.c.l.b16 %v478
      %v501 = vunpack.c.h.b16 %v478
      %v502 = vunpack.c.l.b16 %v479
      %v503 = vunpack.c.h.b16 %v479
      %v504 = vpack.c.b16 %v488, %v488
      %v505 = vpack.c.b16 %v489, %v489
      %v506 = vpack.c.b16 %v490, %v490
      %v507 = vpack.c.b16 %v491, %v491
      %v508 = vpack.c.b16 %v492, %v492
      %v509 = vpack.c.b16 %v493, %v493
      %v510 = vpack.c.b16 %v494, %v494
      %v511 = vpack.c.b16 %v495, %v495
      %v512 = vpack.c.b16 %v496, %v496
      %v513 = vpack.c.b16 %v497, %v497
      %v514 = vpack.c.b16 %v498, %v498
      %v515 = vpack.c.b16 %v499, %v499
      %v516 = vpack.c.b16 %v500, %v500
      %v517 = vpack.c.b16 %v501, %v501
      %v518 = vpack.c.b16 %v502, %v502
      %v519 = vpack.c.b16 %v503, %v503
      %536 = vst [vmem:[%s3] sm:$0xf] %v504
      %537 = vst [vmem:[%s3 + $0x4] sm:$0xf] %v505
      %538 = vst [vmem:[%s3 + $0x8] sm:$0xf] %v506
      %539 = vst [vmem:[%s3 + $0xc] sm:$0xf] %v507
      %540 = vst [vmem:[%s3 + $0x10] sm:$0xf] %v508
      %541 = vst [vmem:[%s3 + $0x14] sm:$0xf] %v509
      %542 = vst [vmem:[%s3 + $0x18] sm:$0xf] %v510
      %543 = vst [vmem:[%s3 + $0x1c] sm:$0xf] %v511
      %544 = vst [vmem:[%s3 + $0x20] sm:$0xf] %v512
      %545 = vst [vmem:[%s3 + $0x24] sm:$0xf] %v513
      %546 = vst [vmem:[%s3 + $0x28] sm:$0xf] %v514
      %547 = vst [vmem:[%s3 + $0x2c] sm:$0xf] %v515
      %548 = vst [vmem:[%s3 + $0x30] sm:$0xf] %v516
      %549 = vst [vmem:[%s3 + $0x34] sm:$0xf] %v517
      %550 = vst [vmem:[%s3 + $0x38] sm:$0xf] %v518
      %551 = vst [vmem:[%s3 + $0x3c] sm:$0xf] %v519
    $region29: #{deeplab_cls_forward_test.12} parent=1 // pred_fallthru
      _
    // Predicated region
    $region30: #{deeplab_cls_forward_test.12} parent=1 // pred_check
      _
    $region31: #{deeplab_cls_forward_test.12} parent=1 // pred_check_branch
      %553 = sbr.rel (0) target = $region33
    $region32: #{deeplab_cls_forward_test.12} parent=1 // pred_region
      _
    $region33: #{deeplab_cls_forward_test.12} parent=1 // pred_fallthru
      _
    // Predicated region
    $region34: #{deeplab_cls_forward_test.12} parent=1 // pred_check
      _
    $region35: #{deeplab_cls_forward_test.12} parent=1 // pred_check_branch
      %555 = sbr.rel (0) target = $region37
    $region36: #{deeplab_cls_forward_test.12} parent=1 // pred_region
      _
    $region37: #{deeplab_cls_forward_test.12} parent=1 // pred_fallthru
      _
    %556 = vsyncpa [#allocation4], 1
    %557 = vsyncpa [#allocation6], 1

// kernel: deeplab_cls_forward_test.13
$region0: #{deeplab_cls_forward_test.13}
  #allocation0 [shape = 'u32[]', space=smem, size = 0x4, offset = 0x4, fixed_abs, tag = 'smem constant byte address 0x4 - core index']
  #allocation1 [shape = 'u32[144,128]{1,0:T(1,128)}', space=vmem, size = 0x12000, scoped, tag = 'internal scratch']
  #allocation2 [shape = 'f32[128,128]{1,0:T(8,128)}', space=vmem, size = 0x10000, scoped, tag = 'scratch operand']
  %s0 = inlined_call_operand.vmem [shape: bf16[128,256], index: 0, kind: input, shape index: {}]
  %s1 = inlined_call_operand.vmem [shape: bf16[256,128], index: 1, kind: input, shape index: {}]
  %s2 = inlined_call_operand.vmem [shape: f32[1,128], index: 2, kind: input, shape index: {}]
  %s3 = inlined_call_operand.vmem [shape: bf16[128,128], index: 3, kind: output, shape index: {}]
  %s4 = sld [smem:[#allocation0]]
  $region30: #{deeplab_cls_forward_test.13} parent=0
    _
  %s6 = ssub.s32 1, %s4
  %s7 = scalar_select 0, %s6, %s4
  // Predicated region
  $region2: #{deeplab_cls_forward_test.13} parent=0 // pred_check
    _
  $region3: #{deeplab_cls_forward_test.13} parent=0 // pred_check_branch
    %9 = sbr.rel (0) target = $region5
  $region4: #{deeplab_cls_forward_test.13} parent=0 // pred_region
    _
  $region5: #{deeplab_cls_forward_test.13} parent=0 // pred_fallthru
    _
  // Predicated region
  $region6: #{deeplab_cls_forward_test.13} parent=0 // pred_check
    _
  $region7: #{deeplab_cls_forward_test.13} parent=0 // pred_check_branch
    %11 = sbr.rel (0) target = $region9
  $region8: #{deeplab_cls_forward_test.13} parent=0 // pred_region
    _
  $region9: #{deeplab_cls_forward_test.13} parent=0 // pred_fallthru
    _
  // Predicated region
  $region10: #{deeplab_cls_forward_test.13} parent=0 // pred_check
    _
  $region11: #{deeplab_cls_forward_test.13} parent=0 // pred_check_branch
    %13 = sbr.rel (0) target = $region13
  $region12: #{deeplab_cls_forward_test.13} parent=0 // pred_region
    _
  $region13: #{deeplab_cls_forward_test.13} parent=0 // pred_fallthru
    _
  %p15 = scmp.eq.s32.totalorder 0, 0
  // Predicated region
  $region14: #{deeplab_cls_forward_test.13} parent=0 // pred_check
    %p16 = pneg %p15
  $region15: #{deeplab_cls_forward_test.13} parent=0 // pred_check_branch
    %18 = sbr.rel (%p16) target = $region17
  $region16: #{deeplab_cls_forward_test.13} parent=0 // pred_region
    %19 = vst [vmem:[#allocation2] sm:$0xff] 0.0
    %20 = vst [vmem:[#allocation2 + $0x8] sm:$0xff] 0.0
    %21 = vst [vmem:[#allocation2 + $0x10] sm:$0xff] 0.0
    %22 = vst [vmem:[#allocation2 + $0x18] sm:$0xff] 0.0
    %23 = vst [vmem:[#allocation2 + $0x20] sm:$0xff] 0.0
    %24 = vst [vmem:[#allocation2 + $0x28] sm:$0xff] 0.0
    %25 = vst [vmem:[#allocation2 + $0x30] sm:$0xff] 0.0
    %26 = vst [vmem:[#allocation2 + $0x38] sm:$0xff] 0.0
    %27 = vst [vmem:[#allocation2 + $0x40] sm:$0xff] 0.0
    %28 = vst [vmem:[#allocation2 + $0x48] sm:$0xff] 0.0
    %29 = vst [vmem:[#allocation2 + $0x50] sm:$0xff] 0.0
    %30 = vst [vmem:[#allocation2 + $0x58] sm:$0xff] 0.0
    %31 = vst [vmem:[#allocation2 + $0x60] sm:$0xff] 0.0
    %32 = vst [vmem:[#allocation2 + $0x68] sm:$0xff] 0.0
    %33 = vst [vmem:[#allocation2 + $0x70] sm:$0xff] 0.0
    %34 = vst [vmem:[#allocation2 + $0x78] sm:$0xff] 0.0
  $region17: #{deeplab_cls_forward_test.13} parent=0 // pred_fallthru
    _
  %v35 = vld [vmem:[#allocation2] sm:$0xff]
  %v36 = vld [vmem:[#allocation2 + $0x8] sm:$0xff]
  %v37 = vld [vmem:[#allocation2 + $0x10] sm:$0xff]
  %v38 = vld [vmem:[#allocation2 + $0x18] sm:$0xff]
  %v39 = vld [vmem:[#allocation2 + $0x20] sm:$0xff]
  %v40 = vld [vmem:[#allocation2 + $0x28] sm:$0xff]
  %v41 = vld [vmem:[#allocation2 + $0x30] sm:$0xff]
  %v42 = vld [vmem:[#allocation2 + $0x38] sm:$0xff]
  %v43 = vld [vmem:[#allocation2 + $0x40] sm:$0xff]
  %v44 = vld [vmem:[#allocation2 + $0x48] sm:$0xff]
  %v45 = vld [vmem:[#allocation2 + $0x50] sm:$0xff]
  %v46 = vld [vmem:[#allocation2 + $0x58] sm:$0xff]
  %v47 = vld [vmem:[#allocation2 + $0x60] sm:$0xff]
  %v48 = vld [vmem:[#allocation2 + $0x68] sm:$0xff]
  %v49 = vld [vmem:[#allocation2 + $0x70] sm:$0xff]
  %v50 = vld [vmem:[#allocation2 + $0x78] sm:$0xff]
  %v51 = vld [vmem:[%s0] sm:$0xff]
  %v52 = vld [vmem:[%s0 + $0x8] sm:$0xff]
  %v53 = vld [vmem:[%s0 + $0x10] sm:$0xff]
  %v54 = vld [vmem:[%s0 + $0x18] sm:$0xff]
  %v55 = vld [vmem:[%s0 + $0x20] sm:$0xff]
  %v56 = vld [vmem:[%s0 + $0x28] sm:$0xff]
  %v57 = vld [vmem:[%s0 + $0x30] sm:$0xff]
  %v58 = vld [vmem:[%s0 + $0x38] sm:$0xff]
  %v59 = vld [vmem:[%s0 + $0x40] sm:$0xff]
  %v60 = vld [vmem:[%s0 + $0x48] sm:$0xff]
  %v61 = vld [vmem:[%s0 + $0x50] sm:$0xff]
  %v62 = vld [vmem:[%s0 + $0x58] sm:$0xff]
  %v63 = vld [vmem:[%s0 + $0x60] sm:$0xff]
  %v64 = vld [vmem:[%s0 + $0x68] sm:$0xff]
  %v65 = vld [vmem:[%s0 + $0x70] sm:$0xff]
  %v66 = vld [vmem:[%s0 + $0x78] sm:$0xff]
  %v67 = vld [vmem:[%s1] sm:$0xf]
  %v68 = vld [vmem:[%s1 + $0x4] sm:$0xf]
  %v69 = vld [vmem:[%s1 + $0x8] sm:$0xf]
  %v70 = vld [vmem:[%s1 + $0xc] sm:$0xf]
  %v71 = vld [vmem:[%s1 + $0x10] sm:$0xf]
  %v72 = vld [vmem:[%s1 + $0x14] sm:$0xf]
  %v73 = vld [vmem:[%s1 + $0x18] sm:$0xf]
  %v74 = vld [vmem:[%s1 + $0x1c] sm:$0xf]
  %v75 = vld [vmem:[%s1 + $0x20] sm:$0xf]
  %v76 = vld [vmem:[%s1 + $0x24] sm:$0xf]
  %v77 = vld [vmem:[%s1 + $0x28] sm:$0xf]
  %v78 = vld [vmem:[%s1 + $0x2c] sm:$0xf]
  %v79 = vld [vmem:[%s1 + $0x30] sm:$0xf]
  %v80 = vld [vmem:[%s1 + $0x34] sm:$0xf]
  %v81 = vld [vmem:[%s1 + $0x38] sm:$0xf]
  %v82 = vld [vmem:[%s1 + $0x3c] sm:$0xf]
  %v83 = vld [vmem:[%s1 + $0x40] sm:$0xf]
  %v84 = vld [vmem:[%s1 + $0x44] sm:$0xf]
  %v85 = vld [vmem:[%s1 + $0x48] sm:$0xf]
  %v86 = vld [vmem:[%s1 + $0x4c] sm:$0xf]
  %v87 = vld [vmem:[%s1 + $0x50] sm:$0xf]
  %v88 = vld [vmem:[%s1 + $0x54] sm:$0xf]
  %v89 = vld [vmem:[%s1 + $0x58] sm:$0xf]
  %v90 = vld [vmem:[%s1 + $0x5c] sm:$0xf]
  %v91 = vld [vmem:[%s1 + $0x60] sm:$0xf]
  %v92 = vld [vmem:[%s1 + $0x64] sm:$0xf]
  %v93 = vld [vmem:[%s1 + $0x68] sm:$0xf]
  %v94 = vld [vmem:[%s1 + $0x6c] sm:$0xf]
  %v95 = vld [vmem:[%s1 + $0x70] sm:$0xf]
  %v96 = vld [vmem:[%s1 + $0x74] sm:$0xf]
  %v97 = vld [vmem:[%s1 + $0x78] sm:$0xf]
  %v98 = vld [vmem:[%s1 + $0x7c] sm:$0xf]
  %v115 = vunpack.c.l.b16 %v51
  %v116 = vunpack.c.h.b16 %v51
  %v117 = vunpack.c.l.b16 %v52
  %v118 = vunpack.c.h.b16 %v52
  %v119 = vunpack.c.l.b16 %v53
  %v120 = vunpack.c.h.b16 %v53
  %v121 = vunpack.c.l.b16 %v54
  %v122 = vunpack.c.h.b16 %v54
  %v123 = vunpack.c.l.b16 %v55
  %v124 = vunpack.c.h.b16 %v55
  %v125 = vunpack.c.l.b16 %v56
  %v126 = vunpack.c.h.b16 %v56
  %v127 = vunpack.c.l.b16 %v57
  %v128 = vunpack.c.h.b16 %v57
  %v129 = vunpack.c.l.b16 %v58
  %v130 = vunpack.c.h.b16 %v58
  %v131 = vunpack.c.l.b16 %v59
  %v132 = vunpack.c.h.b16 %v59
  %v133 = vunpack.c.l.b16 %v60
  %v134 = vunpack.c.h.b16 %v60
  %v135 = vunpack.c.l.b16 %v61
  %v136 = vunpack.c.h.b16 %v61
  %v137 = vunpack.c.l.b16 %v62
  %v138 = vunpack.c.h.b16 %v62
  %v139 = vunpack.c.l.b16 %v63
  %v140 = vunpack.c.h.b16 %v63
  %v141 = vunpack.c.l.b16 %v64
  %v142 = vunpack.c.h.b16 %v64
  %v143 = vunpack.c.l.b16 %v65
  %v144 = vunpack.c.h.b16 %v65
  %v145 = vunpack.c.l.b16 %v66
  %v146 = vunpack.c.h.b16 %v66
  %v147 = vpack.c.b16 %v117, %v115
  %v148 = vpack.c.b16 %v118, %v116
  %v149 = vpack.c.b16 %v121, %v119
  %v150 = vpack.c.b16 %v122, %v120
  %v151 = vpack.c.b16 %v125, %v123
  %v152 = vpack.c.b16 %v126, %v124
  %v153 = vpack.c.b16 %v129, %v127
  %v154 = vpack.c.b16 %v130, %v128
  %v155 = vpack.c.b16 %v133, %v131
  %v156 = vpack.c.b16 %v134, %v132
  %v157 = vpack.c.b16 %v137, %v135
  %v158 = vpack.c.b16 %v138, %v136
  %v159 = vpack.c.b16 %v141, %v139
  %v160 = vpack.c.b16 %v142, %v140
  %v161 = vpack.c.b16 %v145, %v143
  %v162 = vpack.c.b16 %v146, %v144
  %v211 = vunpack.c.l.b16 %v67
  %v212 = vunpack.c.l.b16 %v68
  %v213 = vunpack.c.l.b16 %v69
  %v214 = vunpack.c.l.b16 %v70
  %v215 = vunpack.c.l.b16 %v71
  %v216 = vunpack.c.l.b16 %v72
  %v217 = vunpack.c.l.b16 %v73
  %v218 = vunpack.c.l.b16 %v74
  %v219 = vunpack.c.l.b16 %v75
  %v220 = vunpack.c.l.b16 %v76
  %v221 = vunpack.c.l.b16 %v77
  %v222 = vunpack.c.l.b16 %v78
  %v223 = vunpack.c.l.b16 %v79
  %v224 = vunpack.c.l.b16 %v80
  %v225 = vunpack.c.l.b16 %v81
  %v226 = vunpack.c.l.b16 %v82
  %v227 = vunpack.c.l.b16 %v83
  %v228 = vunpack.c.l.b16 %v84
  %v229 = vunpack.c.l.b16 %v85
  %v230 = vunpack.c.l.b16 %v86
  %v231 = vunpack.c.l.b16 %v87
  %v232 = vunpack.c.l.b16 %v88
  %v233 = vunpack.c.l.b16 %v89
  %v234 = vunpack.c.l.b16 %v90
  %v235 = vunpack.c.l.b16 %v91
  %v236 = vunpack.c.l.b16 %v92
  %v237 = vunpack.c.l.b16 %v93
  %v238 = vunpack.c.l.b16 %v94
  %v239 = vunpack.c.l.b16 %v95
  %v240 = vunpack.c.l.b16 %v96
  %v241 = vunpack.c.l.b16 %v97
  %v242 = vunpack.c.l.b16 %v98
  %v243 = vpack.c.b16 %v212, %v211
  %v244 = vpack.c.b16 %v214, %v213
  %v245 = vpack.c.b16 %v216, %v215
  %v246 = vpack.c.b16 %v218, %v217
  %v247 = vpack.c.b16 %v220, %v219
  %v248 = vpack.c.b16 %v222, %v221
  %v249 = vpack.c.b16 %v224, %v223
  %v250 = vpack.c.b16 %v226, %v225
  %v251 = vpack.c.b16 %v228, %v227
  %v252 = vpack.c.b16 %v230, %v229
  %v253 = vpack.c.b16 %v232, %v231
  %v254 = vpack.c.b16 %v234, %v233
  %v255 = vpack.c.b16 %v236, %v235
  %v256 = vpack.c.b16 %v238, %v237
  %v257 = vpack.c.b16 %v240, %v239
  %v258 = vpack.c.b16 %v242, %v241
  %275 = vmatprep.subr.bf16.mxu0 0
  %276 = vmatpush1.bf16.msra.mxu0 %v243
  %277 = vmatprep.subr.bf16.mxu0 0
  %278 = vmatpush1.bf16.msra.mxu0 %v244
  %279 = vmatprep.subr.bf16.mxu0 0
  %280 = vmatpush1.bf16.msra.mxu0 %v245
  %281 = vmatprep.subr.bf16.mxu0 0
  %282 = vmatpush1.bf16.msra.mxu0 %v246
  %283 = vmatprep.subr.bf16.mxu0 0
  %284 = vmatpush1.bf16.msra.mxu0 %v247
  %285 = vmatprep.subr.bf16.mxu0 0
  %286 = vmatpush1.bf16.msra.mxu0 %v248
  %287 = vmatprep.subr.bf16.mxu0 0
  %288 = vmatpush1.bf16.msra.mxu0 %v249
  %289 = vmatprep.subr.bf16.mxu0 0
  %290 = vmatpush1.bf16.msra.mxu0 %v250
  %291 = vmatprep.subr.bf16.mxu0 0
  %292 = vmatpush1.bf16.msra.mxu0 %v251
  %293 = vmatprep.subr.bf16.mxu0 0
  %294 = vmatpush1.bf16.msra.mxu0 %v252
  %295 = vmatprep.subr.bf16.mxu0 0
  %296 = vmatpush1.bf16.msra.mxu0 %v253
  %297 = vmatprep.subr.bf16.mxu0 0
  %298 = vmatpush1.bf16.msra.mxu0 %v254
  %299 = vmatprep.subr.bf16.mxu0 0
  %300 = vmatpush1.bf16.msra.mxu0 %v255
  %301 = vmatprep.subr.bf16.mxu0 0
  %302 = vmatpush1.bf16.msra.mxu0 %v256
  %303 = vmatprep.subr.bf16.mxu0 0
  %304 = vmatpush1.bf16.msra.mxu0 %v257
  %305 = vmatprep.subr.bf16.mxu0 0
  %306 = vmatpush1.bf16.msra.mxu0 %v258
  %307 = vmatprep.mubr.bf16.mxu0 %v148
  %308 = vmatmul.mubr.bf16.gmra.mrb[0].mxu0 %v147
  %v309 = vpop.f32.mrb[0].mxu0
  %v310 = vadd.f32 0.0, %v309
  %v311 = vpop.f32.mrb[0].mxu0
  %v312 = vpop.f32.mrb[0].mxu0
  %v313 = vadd.f32 0.0, %v312
  %v314 = vpop.f32.mrb[0].mxu0
  %315 = vmatprep.mubr.bf16.mxu0 %v150
  %316 = vmatmul.mubr.bf16.gmra.mrb[0].mxu0 %v149
  %v317 = vpop.f32.mrb[0].mxu0
  %v318 = vadd.f32 0.0, %v317
  %v319 = vpop.f32.mrb[0].mxu0
  %v320 = vpop.f32.mrb[0].mxu0
  %v321 = vadd.f32 0.0, %v320
  %v322 = vpop.f32.mrb[0].mxu0
  %323 = vmatprep.mubr.bf16.mxu0 %v152
  %324 = vmatmul.mubr.bf16.gmra.mrb[0].mxu0 %v151
  %v325 = vpop.f32.mrb[0].mxu0
  %v326 = vadd.f32 0.0, %v325
  %v327 = vpop.f32.mrb[0].mxu0
  %v328 = vpop.f32.mrb[0].mxu0
  %v329 = vadd.f32 0.0, %v328
  %v330 = vpop.f32.mrb[0].mxu0
  %331 = vmatprep.mubr.bf16.mxu0 %v154
  %332 = vmatmul.mubr.bf16.gmra.mrb[0].mxu0 %v153
  %v333 = vpop.f32.mrb[0].mxu0
  %v334 = vadd.f32 0.0, %v333
  %v335 = vpop.f32.mrb[0].mxu0
  %v336 = vpop.f32.mrb[0].mxu0
  %v337 = vadd.f32 0.0, %v336
  %v338 = vpop.f32.mrb[0].mxu0
  %339 = vmatprep.mubr.bf16.mxu0 %v156
  %340 = vmatmul.mubr.bf16.gmra.mrb[0].mxu0 %v155
  %v341 = vpop.f32.mrb[0].mxu0
  %v342 = vadd.f32 0.0, %v341
  %v343 = vpop.f32.mrb[0].mxu0
  %v344 = vpop.f32.mrb[0].mxu0
  %v345 = vadd.f32 0.0, %v344
  %v346 = vpop.f32.mrb[0].mxu0
  %347 = vmatprep.mubr.bf16.mxu0 %v158
  %348 = vmatmul.mubr.bf16.gmra.mrb[0].mxu0 %v157
  %v349 = vpop.f32.mrb[0].mxu0
  %v350 = vadd.f32 0.0, %v349
  %v351 = vpop.f32.mrb[0].mxu0
  %v352 = vpop.f32.mrb[0].mxu0
  %v353 = vadd.f32 0.0, %v352
  %v354 = vpop.f32.mrb[0].mxu0
  %355 = vmatprep.mubr.bf16.mxu0 %v160
  %356 = vmatmul.mubr.bf16.gmra.mrb[0].mxu0 %v159
  %v357 = vpop.f32.mrb[0].mxu0
  %v358 = vadd.f32 0.0, %v357
  %v359 = vpop.f32.mrb[0].mxu0
  %v360 = vpop.f32.mrb[0].mxu0
  %v361 = vadd.f32 0.0, %v360
  %v362 = vpop.f32.mrb[0].mxu0
  %363 = vmatprep.mubr.bf16.mxu0 %v162
  %364 = vmatmul.mubr.bf16.gmra.mrb[0].mxu0 %v161
  %v365 = vpop.f32.mrb[0].mxu0
  %v366 = vadd.f32 0.0, %v365
  %v367 = vpop.f32.mrb[0].mxu0
  %v368 = vpop.f32.mrb[0].mxu0
  %v369 = vadd.f32 0.0, %v368
  %v370 = vpop.f32.mrb[0].mxu0
  %371 = vdwg.mxu0
  %v372 = vadd.f32 %v35, %v310
  %v373 = vadd.f32 %v36, %v313
  %v374 = vadd.f32 %v37, %v318
  %v375 = vadd.f32 %v38, %v321
  %v376 = vadd.f32 %v39, %v326
  %v377 = vadd.f32 %v40, %v329
  %v378 = vadd.f32 %v41, %v334
  %v379 = vadd.f32 %v42, %v337
  %v380 = vadd.f32 %v43, %v342
  %v381 = vadd.f32 %v44, %v345
  %v382 = vadd.f32 %v45, %v350
  %v383 = vadd.f32 %v46, %v353
  %v384 = vadd.f32 %v47, %v358
  %v385 = vadd.f32 %v48, %v361
  %v386 = vadd.f32 %v49, %v366
  %v387 = vadd.f32 %v50, %v369
  %388 = vst [vmem:[#allocation2] sm:$0xff] %v372
  %389 = vst [vmem:[#allocation2 + $0x8] sm:$0xff] %v373
  %390 = vst [vmem:[#allocation2 + $0x10] sm:$0xff] %v374
  %391 = vst [vmem:[#allocation2 + $0x18] sm:$0xff] %v375
  %392 = vst [vmem:[#allocation2 + $0x20] sm:$0xff] %v376
  %393 = vst [vmem:[#allocation2 + $0x28] sm:$0xff] %v377
  %394 = vst [vmem:[#allocation2 + $0x30] sm:$0xff] %v378
  %395 = vst [vmem:[#allocation2 + $0x38] sm:$0xff] %v379
  %396 = vst [vmem:[#allocation2 + $0x40] sm:$0xff] %v380
  %397 = vst [vmem:[#allocation2 + $0x48] sm:$0xff] %v381
  %398 = vst [vmem:[#allocation2 + $0x50] sm:$0xff] %v382
  %399 = vst [vmem:[#allocation2 + $0x58] sm:$0xff] %v383
  %400 = vst [vmem:[#allocation2 + $0x60] sm:$0xff] %v384
  %401 = vst [vmem:[#allocation2 + $0x68] sm:$0xff] %v385
  %402 = vst [vmem:[#allocation2 + $0x70] sm:$0xff] %v386
  %403 = vst [vmem:[#allocation2 + $0x78] sm:$0xff] %v387
  // Predicated region
  $region18: #{deeplab_cls_forward_test.13} parent=0 // pred_check
    %p404 = pneg %p15
  $region19: #{deeplab_cls_forward_test.13} parent=0 // pred_check_branch
    %406 = sbr.rel (%p404) target = $region21
  $region20: #{deeplab_cls_forward_test.13} parent=0 // pred_region
    %v407 = vld [vmem:[#allocation2] sm:$0xff]
    %v408 = vld [vmem:[#allocation2 + $0x8] sm:$0xff]
    %v409 = vld [vmem:[#allocation2 + $0x10] sm:$0xff]
    %v410 = vld [vmem:[#allocation2 + $0x18] sm:$0xff]
    %v411 = vld [vmem:[#allocation2 + $0x20] sm:$0xff]
    %v412 = vld [vmem:[#allocation2 + $0x28] sm:$0xff]
    %v413 = vld [vmem:[#allocation2 + $0x30] sm:$0xff]
    %v414 = vld [vmem:[#allocation2 + $0x38] sm:$0xff]
    %v415 = vld [vmem:[#allocation2 + $0x40] sm:$0xff]
    %v416 = vld [vmem:[#allocation2 + $0x48] sm:$0xff]
    %v417 = vld [vmem:[#allocation2 + $0x50] sm:$0xff]
    %v418 = vld [vmem:[#allocation2 + $0x58] sm:$0xff]
    %v419 = vld [vmem:[#allocation2 + $0x60] sm:$0xff]
    %v420 = vld [vmem:[#allocation2 + $0x68] sm:$0xff]
    %v421 = vld [vmem:[#allocation2 + $0x70] sm:$0xff]
    %v422 = vld [vmem:[#allocation2 + $0x78] sm:$0xff]
    %v423 = vld [vmem:[%s2] sm:$0x1]
    %v425 = vlaneseq
    %v426 = vshrl.u32 %v425, 7
    %v427 = vsub.s32 0, %v426
    %v428 = vrot.slane %v423, %v427
    %v430 = vadd.f32 %v407, %v428
    %v431 = vadd.f32 %v408, %v428
    %v432 = vadd.f32 %v409, %v428
    %v433 = vadd.f32 %v410, %v428
    %v434 = vadd.f32 %v411, %v428
    %v435 = vadd.f32 %v412, %v428
    %v436 = vadd.f32 %v413, %v428
    %v437 = vadd.f32 %v414, %v428
    %v438 = vadd.f32 %v415, %v428
    %v439 = vadd.f32 %v416, %v428
    %v440 = vadd.f32 %v417, %v428
    %v441 = vadd.f32 %v418, %v428
    %v442 = vadd.f32 %v419, %v428
    %v443 = vadd.f32 %v420, %v428
    %v444 = vadd.f32 %v421, %v428
    %v445 = vadd.f32 %v422, %v428
    %vm446 = vcmp.gt.f32.partialorder %v430, 0.0
    %vm447 = vcmp.gt.f32.partialorder %v431, 0.0
    %vm448 = vcmp.gt.f32.partialorder %v432, 0.0
    %vm449 = vcmp.gt.f32.partialorder %v433, 0.0
    %vm450 = vcmp.gt.f32.partialorder %v434, 0.0
    %vm451 = vcmp.gt.f32.partialorder %v435, 0.0
    %vm452 = vcmp.gt.f32.partialorder %v436, 0.0
    %vm453 = vcmp.gt.f32.partialorder %v437, 0.0
    %vm454 = vcmp.gt.f32.partialorder %v438, 0.0
    %vm455 = vcmp.gt.f32.partialorder %v439, 0.0
    %vm456 = vcmp.gt.f32.partialorder %v440, 0.0
    %vm457 = vcmp.gt.f32.partialorder %v441, 0.0
    %vm458 = vcmp.gt.f32.partialorder %v442, 0.0
    %vm459 = vcmp.gt.f32.partialorder %v443, 0.0
    %vm460 = vcmp.gt.f32.partialorder %v444, 0.0
    %vm461 = vcmp.gt.f32.partialorder %v445, 0.0
    %v462 = vmin.f32 %v430, 0.0
    %v463 = vmin.f32 %v431, 0.0
    %v464 = vmin.f32 %v432, 0.0
    %v465 = vmin.f32 %v433, 0.0
    %v466 = vmin.f32 %v434, 0.0
    %v467 = vmin.f32 %v435, 0.0
    %v468 = vmin.f32 %v436, 0.0
    %v469 = vmin.f32 %v437, 0.0
    %v470 = vmin.f32 %v438, 0.0
    %v471 = vmin.f32 %v439, 0.0
    %v472 = vmin.f32 %v440, 0.0
    %v473 = vmin.f32 %v441, 0.0
    %v474 = vmin.f32 %v442, 0.0
    %v475 = vmin.f32 %v443, 0.0
    %v476 = vmin.f32 %v444, 0.0
    %v477 = vmin.f32 %v445, 0.0
    %v478 = vmul.f32 %v462, 1.442695
    %v479 = vpow.pop %v478
    %v480 = vmul.f32 %v463, 1.442695
    %v481 = vpow.pop %v480
    %v482 = vmul.f32 %v464, 1.442695
    %v483 = vpow.pop %v482
    %v484 = vmul.f32 %v465, 1.442695
    %v485 = vpow.pop %v484
    %v486 = vmul.f32 %v466, 1.442695
    %v487 = vpow.pop %v486
    %v488 = vmul.f32 %v467, 1.442695
    %v489 = vpow.pop %v488
    %v490 = vmul.f32 %v468, 1.442695
    %v491 = vpow.pop %v490
    %v492 = vmul.f32 %v469, 1.442695
    %v493 = vpow.pop %v492
    %v494 = vmul.f32 %v470, 1.442695
    %v495 = vpow.pop %v494
    %v496 = vmul.f32 %v471, 1.442695
    %v497 = vpow.pop %v496
    %v498 = vmul.f32 %v472, 1.442695
    %v499 = vpow.pop %v498
    %v500 = vmul.f32 %v473, 1.442695
    %v501 = vpow.pop %v500
    %v502 = vmul.f32 %v474, 1.442695
    %v503 = vpow.pop %v502
    %v504 = vmul.f32 %v475, 1.442695
    %v505 = vpow.pop %v504
    %v506 = vmul.f32 %v476, 1.442695
    %v507 = vpow.pop %v506
    %v508 = vmul.f32 %v477, 1.442695
    %v509 = vpow.pop %v508
    %v510 = vsub.f32 %v479, 1.0
    %v511 = vsub.f32 %v481, 1.0
    %v512 = vsub.f32 %v483, 1.0
    %v513 = vsub.f32 %v485, 1.0
    %v514 = vsub.f32 %v487, 1.0
    %v515 = vsub.f32 %v489, 1.0
    %v516 = vsub.f32 %v491, 1.0
    %v517 = vsub.f32 %v493, 1.0
    %v518 = vsub.f32 %v495, 1.0
    %v519 = vsub.f32 %v497, 1.0
    %v520 = vsub.f32 %v499, 1.0
    %v521 = vsub.f32 %v501, 1.0
    %v522 = vsub.f32 %v503, 1.0
    %v523 = vsub.f32 %v505, 1.0
    %v524 = vsub.f32 %v507, 1.0
    %v525 = vsub.f32 %v509, 1.0
    %v526 = vsel %vm446, %v430, %v510
    %v527 = vsel %vm447, %v431, %v511
    %v528 = vsel %vm448, %v432, %v512
    %v529 = vsel %vm449, %v433, %v513
    %v530 = vsel %vm450, %v434, %v514
    %v531 = vsel %vm451, %v435, %v515
    %v532 = vsel %vm452, %v436, %v516
    %v533 = vsel %vm453, %v437, %v517
    %v534 = vsel %vm454, %v438, %v518
    %v535 = vsel %vm455, %v439, %v519
    %v536 = vsel %vm456, %v440, %v520
    %v537 = vsel %vm457, %v441, %v521
    %v538 = vsel %vm458, %v442, %v522
    %v539 = vsel %vm459, %v443, %v523
    %v540 = vsel %vm460, %v444, %v524
    %v541 = vsel %vm461, %v445, %v525
    %v542 = vpack.c.bf16 %v527, %v526
    %v543 = vpack.c.bf16 %v529, %v528
    %v544 = vpack.c.bf16 %v531, %v530
    %v545 = vpack.c.bf16 %v533, %v532
    %v546 = vpack.c.bf16 %v535, %v534
    %v547 = vpack.c.bf16 %v537, %v536
    %v548 = vpack.c.bf16 %v539, %v538
    %v549 = vpack.c.bf16 %v541, %v540
    %v558 = vunpack.c.l.b16 %v542
    %v559 = vunpack.c.h.b16 %v542
    %v560 = vunpack.c.l.b16 %v543
    %v561 = vunpack.c.h.b16 %v543
    %v562 = vunpack.c.l.b16 %v544
    %v563 = vunpack.c.h.b16 %v544
    %v564 = vunpack.c.l.b16 %v545
    %v565 = vunpack.c.h.b16 %v545
    %v566 = vunpack.c.l.b16 %v546
    %v567 = vunpack.c.h.b16 %v546
    %v568 = vunpack.c.l.b16 %v547
    %v569 = vunpack.c.h.b16 %v547
    %v570 = vunpack.c.l.b16 %v548
    %v571 = vunpack.c.h.b16 %v548
    %v572 = vunpack.c.l.b16 %v549
    %v573 = vunpack.c.h.b16 %v549
    %v574 = vpack.c.b16 %v558, %v558
    %v575 = vpack.c.b16 %v559, %v559
    %v576 = vpack.c.b16 %v560, %v560
    %v577 = vpack.c.b16 %v561, %v561
    %v578 = vpack.c.b16 %v562, %v562
    %v579 = vpack.c.b16 %v563, %v563
    %v580 = vpack.c.b16 %v564, %v564
    %v581 = vpack.c.b16 %v565, %v565
    %v582 = vpack.c.b16 %v566, %v566
    %v583 = vpack.c.b16 %v567, %v567
    %v584 = vpack.c.b16 %v568, %v568
    %v585 = vpack.c.b16 %v569, %v569
    %v586 = vpack.c.b16 %v570, %v570
    %v587 = vpack.c.b16 %v571, %v571
    %v588 = vpack.c.b16 %v572, %v572
    %v589 = vpack.c.b16 %v573, %v573
    %606 = vst [vmem:[%s3] sm:$0xf] %v574
    %607 = vst [vmem:[%s3 + $0x4] sm:$0xf] %v575
    %608 = vst [vmem:[%s3 + $0x8] sm:$0xf] %v576
    %609 = vst [vmem:[%s3 + $0xc] sm:$0xf] %v577
    %610 = vst [vmem:[%s3 + $0x10] sm:$0xf] %v578
    %611 = vst [vmem:[%s3 + $0x14] sm:$0xf] %v579
    %612 = vst [vmem:[%s3 + $0x18] sm:$0xf] %v580
    %613 = vst [vmem:[%s3 + $0x1c] sm:$0xf] %v581
    %614 = vst [vmem:[%s3 + $0x20] sm:$0xf] %v582
    %615 = vst [vmem:[%s3 + $0x24] sm:$0xf] %v583
    %616 = vst [vmem:[%s3 + $0x28] sm:$0xf] %v584
    %617 = vst [vmem:[%s3 + $0x2c] sm:$0xf] %v585
    %618 = vst [vmem:[%s3 + $0x30] sm:$0xf] %v586
    %619 = vst [vmem:[%s3 + $0x34] sm:$0xf] %v587
    %620 = vst [vmem:[%s3 + $0x38] sm:$0xf] %v588
    %621 = vst [vmem:[%s3 + $0x3c] sm:$0xf] %v589
  $region21: #{deeplab_cls_forward_test.13} parent=0 // pred_fallthru
    _
  // Predicated region
  $region22: #{deeplab_cls_forward_test.13} parent=0 // pred_check
    _
  $region23: #{deeplab_cls_forward_test.13} parent=0 // pred_check_branch
    %623 = sbr.rel (0) target = $region25
  $region24: #{deeplab_cls_forward_test.13} parent=0 // pred_region
    _
  $region25: #{deeplab_cls_forward_test.13} parent=0 // pred_fallthru
    _
  // Predicated region
  $region26: #{deeplab_cls_forward_test.13} parent=0 // pred_check
    _
  $region27: #{deeplab_cls_forward_test.13} parent=0 // pred_check_branch
    %625 = sbr.rel (0) target = $region29
  $region28: #{deeplab_cls_forward_test.13} parent=0 // pred_region
    _
  $region29: #{deeplab_cls_forward_test.13} parent=0 // pred_fallthru
    _

// kernel: deeplab_cls_forward_test.15
$region0: #{deeplab_cls_forward_test.15}
  #allocation0 [shape = 'u32[]', space=smem, size = 0x4, offset = 0x4, fixed_abs, tag = 'smem constant byte address 0x4 - core index']
  #allocation1 [shape = 'u32[144,128]{1,0:T(1,128)}', space=vmem, size = 0x12000, scoped, tag = 'internal scratch']
  #allocation2 [shape = 'f32[4,256]{1,0:T(4,128)}', space=vmem, size = 0x1000, scoped, tag = 'scratch operand']
  %s0 = inlined_call_operand.vmem [shape: bf16[2,16,16,128], index: 0, kind: input, shape index: {}]
  %s1 = inlined_call_operand.vmem [shape: bf16[3,3,128,256], index: 1, kind: input, shape index: {}]
  %s2 = inlined_call_operand.vmem [shape: f32[1,256], index: 2, kind: input, shape index: {}]
  %s3 = inlined_call_operand.vmem [shape: bf16[2,4,4,256], index: 3, kind: output, shape index: {}]
  %s4 = sld [smem:[#allocation0]]
  $region53: #{deeplab_cls_forward_test.15} parent=0
    _
  %s6 = ssub.s32 1, %s4
  %s7 = scalar_select 0, %s6, %s4
  loop: start=0, step=1, limit=26
  $region2: #{deeplab_cls_forward_test.15} parent=0 // loop_pre_header
    _
  $region3: #{deeplab_cls_forward_test.15} parent=0 // loop_header
    %s9 = sphi 0, %s13
    %p10 = scmp.ge.s32.totalorder %s9, 26
    %s16 = sphi 0, %s42
    %s17 = sphi 0, %s38
    %s18 = sphi 0, %s34
    %s19 = sphi 0, %s30
    %s20 = sphi 0, %s16
    %s21 = sphi 0, %s17
    %s22 = sphi 0, %s18
    %s23 = sphi 0, %s19
    %s24 = sphi 0, %s20
    %s25 = sphi 0, %s21
    %s26 = sphi 0, %s22
    %s27 = sphi 0, %s23
    %s51 = sphi 0, %s53
    %s54 = sphi 0, %s51
    %s55 = sphi 0, %s54
    %s71 = sphi 0, %s55
    %s79 = sphi 0, %s81
    %s82 = sphi 0, %s79
    %s83 = sphi 0, %s82
    %s99 = sphi 0, %s83
    %s105 = sphi 0, %s107
    %s108 = sphi 0, %s105
    %s109 = sphi 0, %s108
    %s125 = sphi 0, %s109
    %s135 = sphi 0, %s137
    %s138 = sphi 0, %s135
    %s139 = sphi 0, %s138
    %s155 = sphi 0, %s139
  $region4: #{deeplab_cls_forward_test.15} parent=0 // loop_header_branch
    %12 = sbr.rel (%p10) target = $region8
  $region5: #{deeplab_cls_forward_test.15} parent=0 // loop_body
    %s14 = ssub.s32 %s9, 1
    %s15 = ssub.s32 %s9, 2
    %s28 = sadd.s32 1, %s19
    %p29 = scmp.ge.s32.totalorder %s28, 3
    %s30 = scalar_select %p29, 0, %s28
    %s31 = sadd.s32 1, %s18
    %s32 = scalar_select %p29, %s31, %s18
    %p33 = scmp.ge.s32.totalorder %s32, 1
    %s34 = scalar_select %p33, 0, %s32
    %s35 = sadd.s32 1, %s17
    %s36 = scalar_select %p33, %s35, %s17
    %p37 = scmp.ge.s32.totalorder %s36, 4
    %s38 = scalar_select %p37, 0, %s36
    %s39 = sadd.s32 1, %s16
    %s40 = scalar_select %p37, %s39, %s16
    %p41 = scmp.ge.s32.totalorder %s40, 2
    %s42 = scalar_select %p41, 0, %s40
    %s43 = smul.u32 %s19, 6
    %s44 = sadd.s32 %s17, %s43
    %s45 = smul.u32 %s30, 6
    %s46 = sadd.s32 %s38, %s45
    %s47 = ssub.s32 %s16, %s42
    %s48 = ssub.s32 %s44, %s46
    %s49 = sor.u32 %s47, %s48
    %p50 = scmp.eq.s32.totalorder %s49, 0
    %s52 = sadd.s32 %s51, 1
    %s53 = scalar_select %p50, %s51, %s52
    %p56 = pneg %p50
    %p57 = scmp.eq.s32.totalorder %s9, 23
    %p58 = por %p56, %p57
    %p59 = scmp.ne.s32.totalorder %s51, %s54
    %p60 = scmp.eq.s32.totalorder %s9, 0
    %p61 = por %p59, %p60
    %p62 = scmp.ne.s32.totalorder %s51, %s54
    %p63 = scmp.eq.s32.totalorder %s14, 23
    %p64 = por %p62, %p63
    %p65 = scmp.ne.s32.totalorder %s54, %s55
    %p66 = scmp.eq.s32.totalorder %s14, 0
    %p67 = por %p65, %p66
    %p68 = scmp.ne.s32.totalorder %s54, %s55
    %p69 = scmp.eq.s32.totalorder %s15, 23
    %p70 = por %p68, %p69
    %p72 = scmp.ne.s32.totalorder %s55, %s71
    %p73 = scmp.eq.s32.totalorder %s15, 0
    %p74 = por %p72, %p73
    %s75 = ssub.s32 %s19, %s30
    %s76 = ssub.s32 %s18, %s34
    %s77 = sor.u32 %s75, %s76
    %p78 = scmp.eq.s32.totalorder %s77, 0
    %s80 = sadd.s32 %s79, 1
    %s81 = scalar_select %p78, %s79, %s80
    %p84 = pneg %p78
    %p85 = scmp.eq.s32.totalorder %s9, 23
    %p86 = por %p84, %p85
    %p87 = scmp.ne.s32.totalorder %s79, %s82
    %p88 = scmp.eq.s32.totalorder %s9, 0
    %p89 = por %p87, %p88
    %p90 = scmp.ne.s32.totalorder %s79, %s82
    %p91 = scmp.eq.s32.totalorder %s14, 23
    %p92 = por %p90, %p91
    %p93 = scmp.ne.s32.totalorder %s82, %s83
    %p94 = scmp.eq.s32.totalorder %s14, 0
    %p95 = por %p93, %p94
    %p96 = scmp.ne.s32.totalorder %s82, %s83
    %p97 = scmp.eq.s32.totalorder %s15, 23
    %p98 = por %p96, %p97
    %p100 = scmp.ne.s32.totalorder %s83, %s99
    %p101 = scmp.eq.s32.totalorder %s15, 0
    %p102 = por %p100, %p101
    %s103 = ssub.s32 %s18, %s34
    %p104 = scmp.eq.s32.totalorder %s103, 0
    %s106 = sadd.s32 %s105, 1
    %s107 = scalar_select %p104, %s105, %s106
    %p110 = pneg %p104
    %p111 = scmp.eq.s32.totalorder %s9, 23
    %p112 = por %p110, %p111
    %p113 = scmp.ne.s32.totalorder %s105, %s108
    %p114 = scmp.eq.s32.totalorder %s9, 0
    %p115 = por %p113, %p114
    %p116 = scmp.ne.s32.totalorder %s105, %s108
    %p117 = scmp.eq.s32.totalorder %s14, 23
    %p118 = por %p116, %p117
    %p119 = scmp.ne.s32.totalorder %s108, %s109
    %p120 = scmp.eq.s32.totalorder %s14, 0
    %p121 = por %p119, %p120
    %p122 = scmp.ne.s32.totalorder %s108, %s109
    %p123 = scmp.eq.s32.totalorder %s15, 23
    %p124 = por %p122, %p123
    %p126 = scmp.ne.s32.totalorder %s109, %s125
    %p127 = scmp.eq.s32.totalorder %s15, 0
    %p128 = por %p126, %p127
    %s129 = ssub.s32 %s16, %s42
    %s130 = ssub.s32 %s17, %s38
    %s131 = sor.u32 %s129, %s130
    %s132 = ssub.s32 %s18, %s34
    %s133 = sor.u32 %s131, %s132
    %p134 = scmp.eq.s32.totalorder %s133, 0
    %s136 = sadd.s32 %s135, 1
    %s137 = scalar_select %p134, %s135, %s136
    %p140 = pneg %p134
    %p141 = scmp.eq.s32.totalorder %s9, 23
    %p142 = por %p140, %p141
    %p143 = scmp.ne.s32.totalorder %s135, %s138
    %p144 = scmp.eq.s32.totalorder %s9, 0
    %p145 = por %p143, %p144
    %p146 = scmp.ne.s32.totalorder %s135, %s138
    %p147 = scmp.eq.s32.totalorder %s14, 23
    %p148 = por %p146, %p147
    %p149 = scmp.ne.s32.totalorder %s138, %s139
    %p150 = scmp.eq.s32.totalorder %s14, 0
    %p151 = por %p149, %p150
    %p152 = scmp.ne.s32.totalorder %s138, %s139
    %p153 = scmp.eq.s32.totalorder %s15, 23
    %p154 = por %p152, %p153
    %p156 = scmp.ne.s32.totalorder %s139, %s155
    %p157 = scmp.eq.s32.totalorder %s15, 0
    %p158 = por %p156, %p157
    %p159 = scmp.le.s32.totalorder 1, %s9
    %p160 = scmp.lt.s32.totalorder %s9, 25
    %p161 = pnand %p159, %p160
    %p162 = pneg %p161
    // Predicated region
    $region9: #{deeplab_cls_forward_test.15} parent=5 // pred_check
      _
    $region10: #{deeplab_cls_forward_test.15} parent=5 // pred_check_branch
      %164 = sbr.rel (%p161) target = $region12
    $region11: #{deeplab_cls_forward_test.15} parent=5 // pred_region
      %s165 = ssub.s32 %s9, 1
      // Predicated region
      $region13: #{deeplab_cls_forward_test.15} parent=11 // pred_check
        %p166 = pneg %p121
      $region14: #{deeplab_cls_forward_test.15} parent=11 // pred_check_branch
        %168 = sbr.rel (%p166) target = $region16
      $region15: #{deeplab_cls_forward_test.15} parent=11 // pred_region
        %s169 = smul.u32 2, %s22
        %p170 = scmp.lt.s32.totalorder %s169, 1
        %s171 = scalar_select %p170, %s169, 1
        %s172 = scalar_lea.vmem %s2, %s171
        %s173 = smul.u32 2, %s22
      $region16: #{deeplab_cls_forward_test.15} parent=11 // pred_fallthru
        _
    $region12: #{deeplab_cls_forward_test.15} parent=5 // pred_fallthru
      _
    %p174 = scmp.lt.s32.totalorder %s9, 24
    // Predicated region
    $region17: #{deeplab_cls_forward_test.15} parent=5 // pred_check
      %p175 = pneg %p174
    $region18: #{deeplab_cls_forward_test.15} parent=5 // pred_check_branch
      %177 = sbr.rel (%p175) target = $region20
    $region19: #{deeplab_cls_forward_test.15} parent=5 // pred_region
      // Predicated region
      $region21: #{deeplab_cls_forward_test.15} parent=19 // pred_check
        %p178 = pneg %p61
      $region22: #{deeplab_cls_forward_test.15} parent=19 // pred_check_branch
        %180 = sbr.rel (%p178) target = $region24
      $region23: #{deeplab_cls_forward_test.15} parent=19 // pred_region
        %s181 = smul.u32 %s19, 6
        %s182 = sadd.s32 %s17, %s181
        %p183 = scmp.lt.s32.totalorder %s16, 1
        %s184 = scalar_select %p183, %s16, 1
        %p185 = scmp.lt.s32.totalorder %s182, 15
        %s186 = scalar_select %p185, %s182, 15
        %s187 = smul.addr %s186, 2
        %s188 = smul.addr %s184, 32
        %s189 = sadd.s32 %s187, %s188
        %s190 = smul.addr %s189, 4
        %s191 = scalar_lea.vmem %s0, %s190
        %s192 = smul.u32 %s19, 6
        %s193 = sadd.s32 %s17, %s192
      $region24: #{deeplab_cls_forward_test.15} parent=19 // pred_fallthru
        _
      // Predicated region
      $region25: #{deeplab_cls_forward_test.15} parent=19 // pred_check
        %p194 = pneg %p89
      $region26: #{deeplab_cls_forward_test.15} parent=19 // pred_check_branch
        %196 = sbr.rel (%p194) target = $region28
      $region27: #{deeplab_cls_forward_test.15} parent=19 // pred_region
        %s197 = smul.u32 2, %s18
        %p198 = scmp.lt.s32.totalorder %s19, 2
        %s199 = scalar_select %p198, %s19, 2
        %p200 = scmp.lt.s32.totalorder %s197, 1
        %s201 = scalar_select %p200, %s197, 1
        %s202 = smul.addr %s199, 96
        %s203 = sadd.s32 %s201, %s202
        %s204 = smul.addr %s203, 4
        %s205 = scalar_lea.vmem %s1, %s204
        %s206 = smul.u32 2, %s18
      $region28: #{deeplab_cls_forward_test.15} parent=19 // pred_fallthru
        _
    $region20: #{deeplab_cls_forward_test.15} parent=5 // pred_fallthru
      _
    %p207 = scmp.le.s32.totalorder 1, %s9
    %p208 = scmp.lt.s32.totalorder %s9, 25
    %p209 = pnand %p207, %p208
    %p210 = pneg %p209
    // Predicated region
    $region29: #{deeplab_cls_forward_test.15} parent=5 // pred_check
      _
    $region30: #{deeplab_cls_forward_test.15} parent=5 // pred_check_branch
      %212 = sbr.rel (%p209) target = $region32
    $region31: #{deeplab_cls_forward_test.15} parent=5 // pred_region
      %s213 = ssub.s32 %s9, 1
      %s214 = smul.u32 %s23, 6
      %s215 = sadd.s32 %s21, %s214
      %p216 = scmp.lt.s32.totalorder %s20, 1
      %s217 = scalar_select %p216, %s20, 1
      %p218 = scmp.lt.s32.totalorder %s215, 15
      %s219 = scalar_select %p218, %s215, 15
      %s220 = smul.addr %s219, 2
      %s221 = smul.addr %s217, 32
      %s222 = sadd.s32 %s220, %s221
      %s223 = smul.addr %s222, 4
      %s224 = scalar_lea.vmem %s0, %s223
      %p225 = pneg %p67
      %p226 = pneg %p64
      %s227 = smul.u32 2, %s22
      %p228 = scmp.lt.s32.totalorder %s23, 2
      %s229 = scalar_select %p228, %s23, 2
      %p230 = scmp.lt.s32.totalorder %s227, 1
      %s231 = scalar_select %p230, %s227, 1
      %s232 = smul.addr %s229, 96
      %s233 = sadd.s32 %s231, %s232
      %s234 = smul.addr %s233, 4
      %s235 = scalar_lea.vmem %s1, %s234
      %p236 = pneg %p95
      %p237 = pneg %p92
      %s238 = smul.u32 2, %s22
      %p239 = scmp.lt.s32.totalorder %s238, 1
      %s240 = scalar_select %p239, %s238, 1
      %s241 = scalar_lea.vmem %s2, %s240
      %p242 = pneg %p121
      %p243 = pneg %p118
      %p244 = pneg %p151
      %p245 = pneg %p148
      %s246 = smul.u32 2, %s22
      %p247 = scmp.lt.s32.totalorder %s20, 1
      %s248 = scalar_select %p247, %s20, 1
      %p249 = scmp.lt.s32.totalorder %s21, 3
      %s250 = scalar_select %p249, %s21, 3
      %p251 = scmp.lt.s32.totalorder %s246, 1
      %s252 = scalar_select %p251, %s246, 1
      %s253 = smul.addr %s250, 2
      %s254 = sadd.s32 %s252, %s253
      %s255 = smul.addr %s248, 8
      %s256 = sadd.s32 %s254, %s255
      %s257 = smul.addr %s256, 2
      %s258 = scalar_lea.vmem %s3, %s257
      %s259 = smul.u32 %s23, 6
      %s260 = sadd.s32 %s21, %s259
      %p261 = scmp.lt.s32.totalorder %s20, 1
      %s262 = scalar_select %p261, %s20, 1
      %p263 = scmp.lt.s32.totalorder %s260, 15
      %s264 = scalar_select %p263, %s260, 15
      %s265 = smul.addr %s264, 2
      %s266 = smul.addr %s262, 32
      %s267 = sadd.s32 %s265, %s266
      %s268 = smul.addr %s267, 4
      %s269 = scalar_lea.vmem %s0, %s268
      %s270 = smul.u32 %s23, 6
      %s271 = sadd.s32 %s21, %s270
      %s272 = smul.u32 2, %s22
      %p273 = scmp.lt.s32.totalorder %s23, 2
      %s274 = scalar_select %p273, %s23, 2
      %p275 = scmp.lt.s32.totalorder %s272, 1
      %s276 = scalar_select %p275, %s272, 1
      %s277 = smul.addr %s274, 96
      %s278 = sadd.s32 %s276, %s277
      %s279 = smul.addr %s278, 4
      %s280 = scalar_lea.vmem %s1, %s279
      %s281 = smul.u32 2, %s22
      %s282 = smul.u32 2, %s22
      %p283 = scmp.lt.s32.totalorder %s282, 1
      %s284 = scalar_select %p283, %s282, 1
      %s285 = scalar_lea.vmem %s2, %s284
      %s286 = smul.u32 2, %s22
      %s287 = smul.u32 2, %s22
      %p288 = scmp.lt.s32.totalorder %s20, 1
      %s289 = scalar_select %p288, %s20, 1
      %p290 = scmp.lt.s32.totalorder %s21, 3
      %s291 = scalar_select %p290, %s21, 3
      %p292 = scmp.lt.s32.totalorder %s287, 1
      %s293 = scalar_select %p292, %s287, 1
      %s294 = smul.addr %s291, 2
      %s295 = sadd.s32 %s293, %s294
      %s296 = smul.addr %s289, 8
      %s297 = sadd.s32 %s295, %s296
      %s298 = smul.addr %s297, 2
      %s299 = scalar_lea.vmem %s3, %s298
      %s300 = smul.u32 2, %s22
      %p302 = scmp.eq.s32.totalorder %s23, 0
      // Predicated region
      $region33: #{deeplab_cls_forward_test.15} parent=31 // pred_check
        %p303 = pneg %p302
      $region34: #{deeplab_cls_forward_test.15} parent=31 // pred_check_branch
        %305 = sbr.rel (%p303) target = $region36
      $region35: #{deeplab_cls_forward_test.15} parent=31 // pred_region
        %306 = vst [vmem:[#allocation2] sm:$0xff] 0.0
      $region36: #{deeplab_cls_forward_test.15} parent=31 // pred_fallthru
        _
      %v307 = vld [vmem:[%s269] sm:$0x3]
      %v308 = vld [vmem:[#allocation2] sm:$0xff]
      %v309 = vld [vmem:[%s280] sm:$0xff]
      %v310 = vld [vmem:[%s280 + $0x8] sm:$0xff]
      %v311 = vld [vmem:[%s280 + $0x10] sm:$0xff]
      %v312 = vld [vmem:[%s280 + $0x18] sm:$0xff]
      %v313 = vld [vmem:[%s280 + $0x20] sm:$0xff]
      %v314 = vld [vmem:[%s280 + $0x28] sm:$0xff]
      %v315 = vld [vmem:[%s280 + $0x30] sm:$0xff]
      %v316 = vld [vmem:[%s280 + $0x38] sm:$0xff]
      %v317 = vld [vmem:[%s280 + $0x40] sm:$0xff]
      %v318 = vld [vmem:[%s280 + $0x48] sm:$0xff]
      %v319 = vld [vmem:[%s280 + $0x50] sm:$0xff]
      %v320 = vld [vmem:[%s280 + $0x58] sm:$0xff]
      %v321 = vld [vmem:[%s280 + $0x60] sm:$0xff]
      %v322 = vld [vmem:[%s280 + $0x68] sm:$0xff]
      %v323 = vld [vmem:[%s280 + $0x70] sm:$0xff]
      %v324 = vld [vmem:[%s280 + $0x78] sm:$0xff]
      %v341 = vunpack.c.l.b16 %v309
      %v342 = vunpack.c.h.b16 %v309
      %v343 = vunpack.c.l.b16 %v310
      %v344 = vunpack.c.h.b16 %v310
      %v345 = vunpack.c.l.b16 %v311
      %v346 = vunpack.c.h.b16 %v311
      %v347 = vunpack.c.l.b16 %v312
      %v348 = vunpack.c.h.b16 %v312
      %v349 = vunpack.c.l.b16 %v313
      %v350 = vunpack.c.h.b16 %v313
      %v351 = vunpack.c.l.b16 %v314
      %v352 = vunpack.c.h.b16 %v314
      %v353 = vunpack.c.l.b16 %v315
      %v354 = vunpack.c.h.b16 %v315
      %v355 = vunpack.c.l.b16 %v316
      %v356 = vunpack.c.h.b16 %v316
      %v357 = vunpack.c.l.b16 %v317
      %v358 = vunpack.c.h.b16 %v317
      %v359 = vunpack.c.l.b16 %v318
      %v360 = vunpack.c.h.b16 %v318
      %v361 = vunpack.c.l.b16 %v319
      %v362 = vunpack.c.h.b16 %v319
      %v363 = vunpack.c.l.b16 %v320
      %v364 = vunpack.c.h.b16 %v320
      %v365 = vunpack.c.l.b16 %v321
      %v366 = vunpack.c.h.b16 %v321
      %v367 = vunpack.c.l.b16 %v322
      %v368 = vunpack.c.h.b16 %v322
      %v369 = vunpack.c.l.b16 %v323
      %v370 = vunpack.c.h.b16 %v323
      %v371 = vunpack.c.l.b16 %v324
      %v372 = vunpack.c.h.b16 %v324
      %v373 = vpack.c.b16 %v343, %v341
      %v374 = vpack.c.b16 %v344, %v342
      %v375 = vpack.c.b16 %v347, %v345
      %v376 = vpack.c.b16 %v348, %v346
      %v377 = vpack.c.b16 %v351, %v349
      %v378 = vpack.c.b16 %v352, %v350
      %v379 = vpack.c.b16 %v355, %v353
      %v380 = vpack.c.b16 %v356, %v354
      %v381 = vpack.c.b16 %v359, %v357
      %v382 = vpack.c.b16 %v360, %v358
      %v383 = vpack.c.b16 %v363, %v361
      %v384 = vpack.c.b16 %v364, %v362
      %v385 = vpack.c.b16 %v367, %v365
      %v386 = vpack.c.b16 %v368, %v366
      %v387 = vpack.c.b16 %v371, %v369
      %v388 = vpack.c.b16 %v372, %v370
      %405 = vmatprep.subr.bf16.mxu0 %v374
      %406 = vmatpush1.bf16.msra.mxu0 %v373
      %407 = vmatprep.subr.bf16.mxu0 %v376
      %408 = vmatpush1.bf16.msra.mxu0 %v375
      %409 = vmatprep.subr.bf16.mxu0 %v378
      %410 = vmatpush1.bf16.msra.mxu0 %v377
      %411 = vmatprep.subr.bf16.mxu0 %v380
      %412 = vmatpush1.bf16.msra.mxu0 %v379
      %413 = vmatprep.subr.bf16.mxu0 %v382
      %414 = vmatpush1.bf16.msra.mxu0 %v381
      %415 = vmatprep.subr.bf16.mxu0 %v384
      %416 = vmatpush1.bf16.msra.mxu0 %v383
      %417 = vmatprep.subr.bf16.mxu0 %v386
      %418 = vmatpush1.bf16.msra.mxu0 %v385
      %419 = vmatprep.subr.bf16.mxu0 %v388
      %420 = vmatpush1.bf16.msra.mxu0 %v387
      %421 = vmatprep.subr.bf16.mxu0 0
      %422 = vmatpush1.bf16.msra.mxu0 0
      %423 = vmatprep.subr.bf16.mxu0 0
      %424 = vmatpush1.bf16.msra.mxu0 0
      %425 = vmatprep.subr.bf16.mxu0 0
      %426 = vmatpush1.bf16.msra.mxu0 0
      %427 = vmatprep.subr.bf16.mxu0 0
      %428 = vmatpush1.bf16.msra.mxu0 0
      %429 = vmatprep.subr.bf16.mxu0 0
      %430 = vmatpush1.bf16.msra.mxu0 0
      %431 = vmatprep.subr.bf16.mxu0 0
      %432 = vmatpush1.bf16.msra.mxu0 0
      %433 = vmatprep.subr.bf16.mxu0 0
      %434 = vmatpush1.bf16.msra.mxu0 0
      %435 = vmatprep.subr.bf16.mxu0 0
      %436 = vmatpush1.bf16.msra.mxu0 0
      %437 = vmatprep.mubr.bf16.mxu0 0
      %438 = vmatmul.mubr.bf16.gmra.mrb[0].mxu0 %v307
      %v439 = vpop.f32.mrb[0].mxu0
      %v440 = vadd.f32 0.0, %v439
      %v441 = vpop.f32.mrb[0].mxu0
      %v442 = vadd.f32 0.0, %v441
      %v443 = vpop.f32.mrb[0].mxu0
      %v444 = vpop.f32.mrb[0].mxu0
      %445 = vdwg.mxu0
      %v448 = vcombine.low %v440, %v442
      %v450 = vadd.f32 %v308, %v448
      %451 = vst [vmem:[#allocation2] sm:$0xff] %v450
      %v452 = vld [vmem:[%s269] sm:$0x8]
      %v453 = vld [vmem:[%s269 + $0x4] sm:$0x1]
      %v454 = vld [vmem:[#allocation2] sm:$0xff]
      %s455 = scalar_lea.vmem %s280, 128
      %v456 = vld [vmem:[%s455] sm:$0xff]
      %v457 = vld [vmem:[%s455 + $0x8] sm:$0xff]
      %v458 = vld [vmem:[%s455 + $0x10] sm:$0xff]
      %v459 = vld [vmem:[%s455 + $0x18] sm:$0xff]
      %v460 = vld [vmem:[%s455 + $0x20] sm:$0xff]
      %v461 = vld [vmem:[%s455 + $0x28] sm:$0xff]
      %v462 = vld [vmem:[%s455 + $0x30] sm:$0xff]
      %v463 = vld [vmem:[%s455 + $0x38] sm:$0xff]
      %v464 = vld [vmem:[%s455 + $0x40] sm:$0xff]
      %v465 = vld [vmem:[%s455 + $0x48] sm:$0xff]
      %v466 = vld [vmem:[%s455 + $0x50] sm:$0xff]
      %v467 = vld [vmem:[%s455 + $0x58] sm:$0xff]
      %v468 = vld [vmem:[%s455 + $0x60] sm:$0xff]
      %v469 = vld [vmem:[%s455 + $0x68] sm:$0xff]
      %v470 = vld [vmem:[%s455 + $0x70] sm:$0xff]
      %v471 = vld [vmem:[%s455 + $0x78] sm:$0xff]
      %v474 = vunpack.c.l.b16 %v452
      %v475 = vunpack.c.l.b16 %v453
      %v476 = vpack.c.b16 %v475, %v474
      %v477 = vrot.slane %v476, 3
      %v495 = vunpack.c.l.b16 %v456
      %v496 = vunpack.c.h.b16 %v456
      %v497 = vunpack.c.l.b16 %v457
      %v498 = vunpack.c.h.b16 %v457
      %v499 = vunpack.c.l.b16 %v458
      %v500 = vunpack.c.h.b16 %v458
      %v501 = vunpack.c.l.b16 %v459
      %v502 = vunpack.c.h.b16 %v459
      %v503 = vunpack.c.l.b16 %v460
      %v504 = vunpack.c.h.b16 %v460
      %v505 = vunpack.c.l.b16 %v461
      %v506 = vunpack.c.h.b16 %v461
      %v507 = vunpack.c.l.b16 %v462
      %v508 = vunpack.c.h.b16 %v462
      %v509 = vunpack.c.l.b16 %v463
      %v510 = vunpack.c.h.b16 %v463
      %v511 = vunpack.c.l.b16 %v464
      %v512 = vunpack.c.h.b16 %v464
      %v513 = vunpack.c.l.b16 %v465
      %v514 = vunpack.c.h.b16 %v465
      %v515 = vunpack.c.l.b16 %v466
      %v516 = vunpack.c.h.b16 %v466
      %v517 = vunpack.c.l.b16 %v467
      %v518 = vunpack.c.h.b16 %v467
      %v519 = vunpack.c.l.b16 %v468
      %v520 = vunpack.c.h.b16 %v468
      %v521 = vunpack.c.l.b16 %v469
      %v522 = vunpack.c.h.b16 %v469
      %v523 = vunpack.c.l.b16 %v470
      %v524 = vunpack.c.h.b16 %v470
      %v525 = vunpack.c.l.b16 %v471
      %v526 = vunpack.c.h.b16 %v471
      %v527 = vpack.c.b16 %v497, %v495
      %v528 = vpack.c.b16 %v498, %v496
      %v529 = vpack.c.b16 %v501, %v499
      %v530 = vpack.c.b16 %v502, %v500
      %v531 = vpack.c.b16 %v505, %v503
      %v532 = vpack.c.b16 %v506, %v504
      %v533 = vpack.c.b16 %v509, %v507
      %v534 = vpack.c.b16 %v510, %v508
      %v535 = vpack.c.b16 %v513, %v511
      %v536 = vpack.c.b16 %v514, %v512
      %v537 = vpack.c.b16 %v517, %v515
      %v538 = vpack.c.b16 %v518, %v516
      %v539 = vpack.c.b16 %v521, %v519
      %v540 = vpack.c.b16 %v522, %v520
      %v541 = vpack.c.b16 %v525, %v523
      %v542 = vpack.c.b16 %v526, %v524
      %559 = vmatprep.subr.bf16.mxu0 %v528
      %560 = vmatpush1.bf16.msra.mxu0 %v527
      %561 = vmatprep.subr.bf16.mxu0 %v530
      %562 = vmatpush1.bf16.msra.mxu0 %v529
      %563 = vmatprep.subr.bf16.mxu0 %v532
      %564 = vmatpush1.bf16.msra.mxu0 %v531
      %565 = vmatprep.subr.bf16.mxu0 %v534
      %566 = vmatpush1.bf16.msra.mxu0 %v533
      %567 = vmatprep.subr.bf16.mxu0 %v536
      %568 = vmatpush1.bf16.msra.mxu0 %v535
      %569 = vmatprep.subr.bf16.mxu0 %v538
      %570 = vmatpush1.bf16.msra.mxu0 %v537
      %571 = vmatprep.subr.bf16.mxu0 %v540
      %572 = vmatpush1.bf16.msra.mxu0 %v539
      %573 = vmatprep.subr.bf16.mxu0 %v542
      %574 = vmatpush1.bf16.msra.mxu0 %v541
      %575 = vmatprep.subr.bf16.mxu0 0
      %576 = vmatpush1.bf16.msra.mxu0 0
      %577 = vmatprep.subr.bf16.mxu0 0
      %578 = vmatpush1.bf16.msra.mxu0 0
      %579 = vmatprep.subr.bf16.mxu0 0
      %580 = vmatpush1.bf16.msra.mxu0 0
      %581 = vmatprep.subr.bf16.mxu0 0
      %582 = vmatpush1.bf16.msra.mxu0 0
      %583 = vmatprep.subr.bf16.mxu0 0
      %584 = vmatpush1.bf16.msra.mxu0 0
      %585 = vmatprep.subr.bf16.mxu0 0
      %586 = vmatpush1.bf16.msra.mxu0 0
      %587 = vmatprep.subr.bf16.mxu0 0
      %588 = vmatpush1.bf16.msra.mxu0 0
      %589 = vmatprep.subr.bf16.mxu0 0
      %590 = vmatpush1.bf16.msra.mxu0 0
      %591 = vmatprep.mubr.bf16.mxu0 0
      %592 = vmatmul.mubr.bf16.gmra.mrb[0].mxu0 %v477
      %v593 = vpop.f32.mrb[0].mxu0
      %v594 = vadd.f32 0.0, %v593
      %v595 = vpop.f32.mrb[0].mxu0
      %v596 = vadd.f32 0.0, %v595
      %v597 = vpop.f32.mrb[0].mxu0
      %v598 = vpop.f32.mrb[0].mxu0
      %599 = vdwg.mxu0
      %v602 = vcombine.low %v594, %v596
      %v604 = vadd.f32 %v454, %v602
      %605 = vst [vmem:[#allocation2] sm:$0xff] %v604
      %v606 = vld [vmem:[%s269 + $0x4] sm:$0xc]
      %v607 = vld [vmem:[#allocation2] sm:$0xff]
      %s608 = scalar_lea.vmem %s280, 256
      %v609 = vld [vmem:[%s608] sm:$0xff]
      %v610 = vld [vmem:[%s608 + $0x8] sm:$0xff]
      %v611 = vld [vmem:[%s608 + $0x10] sm:$0xff]
      %v612 = vld [vmem:[%s608 + $0x18] sm:$0xff]
      %v613 = vld [vmem:[%s608 + $0x20] sm:$0xff]
      %v614 = vld [vmem:[%s608 + $0x28] sm:$0xff]
      %v615 = vld [vmem:[%s608 + $0x30] sm:$0xff]
      %v616 = vld [vmem:[%s608 + $0x38] sm:$0xff]
      %v617 = vld [vmem:[%s608 + $0x40] sm:$0xff]
      %v618 = vld [vmem:[%s608 + $0x48] sm:$0xff]
      %v619 = vld [vmem:[%s608 + $0x50] sm:$0xff]
      %v620 = vld [vmem:[%s608 + $0x58] sm:$0xff]
      %v621 = vld [vmem:[%s608 + $0x60] sm:$0xff]
      %v622 = vld [vmem:[%s608 + $0x68] sm:$0xff]
      %v623 = vld [vmem:[%s608 + $0x70] sm:$0xff]
      %v624 = vld [vmem:[%s608 + $0x78] sm:$0xff]
      %v626 = vunpack.c.l.b16 %v606
      %v627 = vpack.c.b16 %v626, %v626
      %v628 = vrot.slane %v627, 2
      %v646 = vunpack.c.l.b16 %v609
      %v647 = vunpack.c.h.b16 %v609
      %v648 = vunpack.c.l.b16 %v610
      %v649 = vunpack.c.h.b16 %v610
      %v650 = vunpack.c.l.b16 %v611
      %v651 = vunpack.c.h.b16 %v611
      %v652 = vunpack.c.l.b16 %v612
      %v653 = vunpack.c.h.b16 %v612
      %v654 = vunpack.c.l.b16 %v613
      %v655 = vunpack.c.h.b16 %v613
      %v656 = vunpack.c.l.b16 %v614
      %v657 = vunpack.c.h.b16 %v614
      %v658 = vunpack.c.l.b16 %v615
      %v659 = vunpack.c.h.b16 %v615
      %v660 = vunpack.c.l.b16 %v616
      %v661 = vunpack.c.h.b16 %v616
      %v662 = vunpack.c.l.b16 %v617
      %v663 = vunpack.c.h.b16 %v617
      %v664 = vunpack.c.l.b16 %v618
      %v665 = vunpack.c.h.b16 %v618
      %v666 = vunpack.c.l.b16 %v619
      %v667 = vunpack.c.h.b16 %v619
      %v668 = vunpack.c.l.b16 %v620
      %v669 = vunpack.c.h.b16 %v620
      %v670 = vunpack.c.l.b16 %v621
      %v671 = vunpack.c.h.b16 %v621
      %v672 = vunpack.c.l.b16 %v622
      %v673 = vunpack.c.h.b16 %v622
      %v674 = vunpack.c.l.b16 %v623
      %v675 = vunpack.c.h.b16 %v623
      %v676 = vunpack.c.l.b16 %v624
      %v677 = vunpack.c.h.b16 %v624
      %v678 = vpack.c.b16 %v648, %v646
      %v679 = vpack.c.b16 %v649, %v647
      %v680 = vpack.c.b16 %v652, %v650
      %v681 = vpack.c.b16 %v653, %v651
      %v682 = vpack.c.b16 %v656, %v654
      %v683 = vpack.c.b16 %v657, %v655
      %v684 = vpack.c.b16 %v660, %v658
      %v685 = vpack.c.b16 %v661, %v659
      %v686 = vpack.c.b16 %v664, %v662
      %v687 = vpack.c.b16 %v665, %v663
      %v688 = vpack.c.b16 %v668, %v666
      %v689 = vpack.c.b16 %v669, %v667
      %v690 = vpack.c.b16 %v672, %v670
      %v691 = vpack.c.b16 %v673, %v671
      %v692 = vpack.c.b16 %v676, %v674
      %v693 = vpack.c.b16 %v677, %v675
      %710 = vmatprep.subr.bf16.mxu0 %v679
      %711 = vmatpush1.bf16.msra.mxu0 %v678
      %712 = vmatprep.subr.bf16.mxu0 %v681
      %713 = vmatpush1.bf16.msra.mxu0 %v680
      %714 = vmatprep.subr.bf16.mxu0 %v683
      %715 = vmatpush1.bf16.msra.mxu0 %v682
      %716 = vmatprep.subr.bf16.mxu0 %v685
      %717 = vmatpush1.bf16.msra.mxu0 %v684
      %718 = vmatprep.subr.bf16.mxu0 %v687
      %719 = vmatpush1.bf16.msra.mxu0 %v686
      %720 = vmatprep.subr.bf16.mxu0 %v689
      %721 = vmatpush1.bf16.msra.mxu0 %v688
      %722 = vmatprep.subr.bf16.mxu0 %v691
      %723 = vmatpush1.bf16.msra.mxu0 %v690
      %724 = vmatprep.subr.bf16.mxu0 %v693
      %725 = vmatpush1.bf16.msra.mxu0 %v692
      %726 = vmatprep.subr.bf16.mxu0 0
      %727 = vmatpush1.bf16.msra.mxu0 0
      %728 = vmatprep.subr.bf16.mxu0 0
      %729 = vmatpush1.bf16.msra.mxu0 0
      %730 = vmatprep.subr.bf16.mxu0 0
      %731 = vmatpush1.bf16.msra.mxu0 0
      %732 = vmatprep.subr.bf16.mxu0 0
      %733 = vmatpush1.bf16.msra.mxu0 0
      %734 = vmatprep.subr.bf16.mxu0 0
      %735 = vmatpush1.bf16.msra.mxu0 0
      %736 = vmatprep.subr.bf16.mxu0 0
      %737 = vmatpush1.bf16.msra.mxu0 0
      %738 = vmatprep.subr.bf16.mxu0 0
      %739 = vmatpush1.bf16.msra.mxu0 0
      %740 = vmatprep.subr.bf16.mxu0 0
      %741 = vmatpush1.bf16.msra.mxu0 0
      %742 = vmatprep.mubr.bf16.mxu0 0
      %743 = vmatmul.mubr.bf16.gmra.mrb[0].mxu0 %v628
      %v744 = vpop.f32.mrb[0].mxu0
      %v745 = vadd.f32 0.0, %v744
      %v746 = vpop.f32.mrb[0].mxu0
      %v747 = vadd.f32 0.0, %v746
      %v748 = vpop.f32.mrb[0].mxu0
      %v749 = vpop.f32.mrb[0].mxu0
      %750 = vdwg.mxu0
      %v753 = vcombine.low %v745, %v747
      %v755 = vadd.f32 %v607, %v753
      %756 = vst [vmem:[#allocation2] sm:$0xff] %v755
      %p757 = scmp.eq.s32.totalorder %s23, 2
      // Predicated region
      $region37: #{deeplab_cls_forward_test.15} parent=31 // pred_check
        %p758 = pneg %p757
      $region38: #{deeplab_cls_forward_test.15} parent=31 // pred_check_branch
        %760 = sbr.rel (%p758) target = $region40
      $region39: #{deeplab_cls_forward_test.15} parent=31 // pred_region
        %v761 = vld [vmem:[#allocation2] sm:$0xff]
        %v762 = vld [vmem:[%s285] sm:$0x3]
        %v764 = vlaneseq
        %v765 = vshrl.u32 %v764, 7
        %v766 = vsub.s32 0, %v765
        %v767 = vrot.slane %v762, %v766
        %v768 = vlaneseq
        %v769 = vshrl.u32 %v768, 7
        %v770 = vsub.s32 1, %v769
        %v771 = vrot.slane %v762, %v770
        %v772 = vcombine.low %v767, %v771
        %v774 = vadd.f32 %v761, %v772
        %vm775 = vcmp.gt.f32.partialorder %v774, 0.0
        %v776 = vmin.f32 %v774, 0.0
        %v777 = vmul.f32 %v776, 1.442695
        %v778 = vpow.pop %v777
        %v779 = vsub.f32 %v778, 1.0
        %v780 = vsel %vm775, %v774, %v779
        %v782 = vcombine.high %v780, %v780
        %v784 = vpack.c.bf16 %v780, %v780
        %v785 = vpack.c.bf16 %v782, %v782
        %v788 = vcombine.low %v784, %v785
        %v790 = vunpack.c.l.s4 1983009808
        %v791 = vunpack.c.0.s8 %v790
        %v792 = vlaneseq
        %v793 = vshrl.u32 %v792, 7
        %v794 = vsub.s32 %v791, %v793
        %v795 = vrot.slane %v788, %v794
        %797 = vst [vmem:[%s299] sm:$0xf] %v795
      $region40: #{deeplab_cls_forward_test.15} parent=31 // pred_fallthru
        _
      %s798 = smul.u32 2, %s22
      %p799 = scmp.lt.s32.totalorder %s20, 1
      %s800 = scalar_select %p799, %s20, 1
      %p801 = scmp.lt.s32.totalorder %s21, 3
      %s802 = scalar_select %p801, %s21, 3
      %p803 = scmp.lt.s32.totalorder %s798, 1
      %s804 = scalar_select %p803, %s798, 1
      %s805 = smul.addr %s802, 2
      %s806 = sadd.s32 %s804, %s805
      %s807 = smul.addr %s800, 8
      %s808 = sadd.s32 %s806, %s807
      %s809 = smul.addr %s808, 2
      %s810 = scalar_lea.vmem %s3, %s809
      // Predicated region
      $region41: #{deeplab_cls_forward_test.15} parent=31 // pred_check
        %p811 = pneg %p148
      $region42: #{deeplab_cls_forward_test.15} parent=31 // pred_check_branch
        %813 = sbr.rel (%p811) target = $region44
      $region43: #{deeplab_cls_forward_test.15} parent=31 // pred_region
        %s814 = smul.u32 2, %s22
      $region44: #{deeplab_cls_forward_test.15} parent=31 // pred_fallthru
        _
    $region32: #{deeplab_cls_forward_test.15} parent=5 // pred_fallthru
      _
    %p815 = scmp.le.s32.totalorder 2, %s9
    // Predicated region
    $region45: #{deeplab_cls_forward_test.15} parent=5 // pred_check
      %p816 = pneg %p815
    $region46: #{deeplab_cls_forward_test.15} parent=5 // pred_check_branch
      %818 = sbr.rel (%p816) target = $region48
    $region47: #{deeplab_cls_forward_test.15} parent=5 // pred_region
      %s819 = ssub.s32 %s9, 2
      // Predicated region
      $region49: #{deeplab_cls_forward_test.15} parent=47 // pred_check
        %p820 = pneg %p154
      $region50: #{deeplab_cls_forward_test.15} parent=47 // pred_check_branch
        %822 = sbr.rel (%p820) target = $region52
      $region51: #{deeplab_cls_forward_test.15} parent=47 // pred_region
        %s823 = smul.u32 2, %s26
        %p824 = scmp.lt.s32.totalorder %s24, 1
        %s825 = scalar_select %p824, %s24, 1
        %p826 = scmp.lt.s32.totalorder %s25, 3
        %s827 = scalar_select %p826, %s25, 3
        %p828 = scmp.lt.s32.totalorder %s823, 1
        %s829 = scalar_select %p828, %s823, 1
        %s830 = smul.addr %s827, 2
        %s831 = sadd.s32 %s829, %s830
        %s832 = smul.addr %s825, 8
        %s833 = sadd.s32 %s831, %s832
        %s834 = smul.addr %s833, 2
        %s835 = scalar_lea.vmem %s3, %s834
      $region52: #{deeplab_cls_forward_test.15} parent=47 // pred_fallthru
        _
    $region48: #{deeplab_cls_forward_test.15} parent=5 // pred_fallthru
      _
  $region6: #{deeplab_cls_forward_test.15} parent=0 // loop_footer
    %s13 = sadd.s32 1, %s9
  $region7: #{deeplab_cls_forward_test.15} parent=0 // loop_footer_branch
    %8 = sbr.rel target = $region3
  $region8: #{deeplab_cls_forward_test.15} parent=0 // loop_exit
    _

// kernel: deeplab_cls_forward_test.14
$region0: #{deeplab_cls_forward_test.14}
  #allocation0 [shape = 'u32[]', space=smem, size = 0x4, offset = 0x4, fixed_abs, tag = 'smem constant byte address 0x4 - core index']
  #allocation1 [shape = 'u32[144,128]{1,0:T(1,128)}', space=vmem, size = 0x12000, scoped, tag = 'internal scratch']
  #allocation2 [shape = 'f32[128,128]{1,0:T(8,128)}', space=vmem, size = 0x10000, scoped, tag = 'scratch operand']
  %s0 = inlined_call_operand.vmem [shape: bf16[128,128], index: 0, kind: input, shape index: {}]
  %s1 = inlined_call_operand.vmem [shape: bf16[128,256], index: 1, kind: input, shape index: {}]
  %s2 = inlined_call_operand.vmem [shape: f32[1,256], index: 2, kind: input, shape index: {}]
  %s3 = inlined_call_operand.vmem [shape: bf16[128,256], index: 3, kind: output, shape index: {}]
  %s4 = sld [smem:[#allocation0]]
  $region131: #{deeplab_cls_forward_test.14} parent=0
    _
  %s6 = ssub.s32 1, %s4
  %s7 = scalar_select 0, %s6, %s4
  $region1: #{deeplab_cls_forward_test.14} parent=0
    #allocation3 [shape = 'u8[65536]{0}', space=vmem, size = 0x10000, scoped, tag = 'input window, operand 1']
    #allocation4 [shape = 'u8[65536]{0}', space=vmem, size = 0x10000, scoped, tag = 'output window, operand 0']
    loop: start=0, step=1, limit=4
    $region2: #{deeplab_cls_forward_test.14} parent=1 // loop_pre_header
      _
    $region3: #{deeplab_cls_forward_test.14} parent=1 // loop_header
      %s9 = sphi 0, %s13
      %p10 = scmp.ge.s32.totalorder %s9, 4
      %s16 = sphi 0, %s35
      %s17 = sphi 0, %s31
      %s18 = sphi 0, %s27
      %s19 = sphi 0, %s16
      %s20 = sphi 0, %s17
      %s21 = sphi 0, %s18
      %s22 = sphi 0, %s19
      %s23 = sphi 0, %s20
      %s24 = sphi 0, %s21
      %s40 = sphi 0, %s42
      %s43 = sphi 0, %s40
      %s44 = sphi 0, %s43
      %s60 = sphi 0, %s44
      %s68 = sphi 0, %s70
      %s71 = sphi 0, %s68
      %s72 = sphi 0, %s71
      %s88 = sphi 0, %s72
      %s94 = sphi 0, %s96
      %s97 = sphi 0, %s94
      %s98 = sphi 0, %s97
      %s114 = sphi 0, %s98
      %s122 = sphi 0, %s124
      %s125 = sphi 0, %s122
      %s126 = sphi 0, %s125
      %s142 = sphi 0, %s126
    $region4: #{deeplab_cls_forward_test.14} parent=1 // loop_header_branch
      %12 = sbr.rel (%p10) target = $region8
    $region5: #{deeplab_cls_forward_test.14} parent=1 // loop_body
      %s14 = ssub.s32 %s9, 1
      %s15 = ssub.s32 %s9, 2
      %s25 = sadd.s32 1, %s18
      %p26 = scmp.ge.s32.totalorder %s25, 1
      %s27 = scalar_select %p26, 0, %s25
      %s28 = sadd.s32 1, %s17
      %s29 = scalar_select %p26, %s28, %s17
      %p30 = scmp.ge.s32.totalorder %s29, 2
      %s31 = scalar_select %p30, 0, %s29
      %s32 = sadd.s32 1, %s16
      %s33 = scalar_select %p30, %s32, %s16
      %p34 = scmp.ge.s32.totalorder %s33, 1
      %s35 = scalar_select %p34, 0, %s33
      %s36 = ssub.s32 %s16, %s35
      %s37 = ssub.s32 %s18, %s27
      %s38 = sor.u32 %s36, %s37
      %p39 = scmp.eq.s32.totalorder %s38, 0
      %s41 = sadd.s32 %s40, 1
      %s42 = scalar_select %p39, %s40, %s41
      %p45 = pneg %p39
      %p46 = scmp.eq.s32.totalorder %s9, 1
      %p47 = por %p45, %p46
      %p48 = scmp.ne.s32.totalorder %s40, %s43
      %p49 = scmp.eq.s32.totalorder %s9, 0
      %p50 = por %p48, %p49
      %p51 = scmp.ne.s32.totalorder %s40, %s43
      %p52 = scmp.eq.s32.totalorder %s14, 1
      %p53 = por %p51, %p52
      %p54 = scmp.ne.s32.totalorder %s43, %s44
      %p55 = scmp.eq.s32.totalorder %s14, 0
      %p56 = por %p54, %p55
      %p57 = scmp.ne.s32.totalorder %s43, %s44
      %p58 = scmp.eq.s32.totalorder %s15, 1
      %p59 = por %p57, %p58
      %p61 = scmp.ne.s32.totalorder %s44, %s60
      %p62 = scmp.eq.s32.totalorder %s15, 0
      %p63 = por %p61, %p62
      %s64 = ssub.s32 %s18, %s27
      %s65 = ssub.s32 %s17, %s31
      %s66 = sor.u32 %s64, %s65
      %p67 = scmp.eq.s32.totalorder %s66, 0
      %s69 = sadd.s32 %s68, 1
      %s70 = scalar_select %p67, %s68, %s69
      %p73 = pneg %p67
      %p74 = scmp.eq.s32.totalorder %s9, 1
      %p75 = por %p73, %p74
      %p76 = scmp.ne.s32.totalorder %s68, %s71
      %p77 = scmp.eq.s32.totalorder %s9, 0
      %p78 = por %p76, %p77
      %p79 = scmp.ne.s32.totalorder %s68, %s71
      %p80 = scmp.eq.s32.totalorder %s14, 1
      %p81 = por %p79, %p80
      %p82 = scmp.ne.s32.totalorder %s71, %s72
      %p83 = scmp.eq.s32.totalorder %s14, 0
      %p84 = por %p82, %p83
      %p85 = scmp.ne.s32.totalorder %s71, %s72
      %p86 = scmp.eq.s32.totalorder %s15, 1
      %p87 = por %p85, %p86
      %p89 = scmp.ne.s32.totalorder %s72, %s88
      %p90 = scmp.eq.s32.totalorder %s15, 0
      %p91 = por %p89, %p90
      %s92 = ssub.s32 %s17, %s31
      %p93 = scmp.eq.s32.totalorder %s92, 0
      %s95 = sadd.s32 %s94, 1
      %s96 = scalar_select %p93, %s94, %s95
      %p99 = pneg %p93
      %p100 = scmp.eq.s32.totalorder %s9, 1
      %p101 = por %p99, %p100
      %p102 = scmp.ne.s32.totalorder %s94, %s97
      %p103 = scmp.eq.s32.totalorder %s9, 0
      %p104 = por %p102, %p103
      %p105 = scmp.ne.s32.totalorder %s94, %s97
      %p106 = scmp.eq.s32.totalorder %s14, 1
      %p107 = por %p105, %p106
      %p108 = scmp.ne.s32.totalorder %s97, %s98
      %p109 = scmp.eq.s32.totalorder %s14, 0
      %p110 = por %p108, %p109
      %p111 = scmp.ne.s32.totalorder %s97, %s98
      %p112 = scmp.eq.s32.totalorder %s15, 1
      %p113 = por %p111, %p112
      %p115 = scmp.ne.s32.totalorder %s98, %s114
      %p116 = scmp.eq.s32.totalorder %s15, 0
      %p117 = por %p115, %p116
      %s118 = ssub.s32 %s16, %s35
      %s119 = ssub.s32 %s17, %s31
      %s120 = sor.u32 %s118, %s119
      %p121 = scmp.eq.s32.totalorder %s120, 0
      %s123 = sadd.s32 %s122, 1
      %s124 = scalar_select %p121, %s122, %s123
      %p127 = pneg %p121
      %p128 = scmp.eq.s32.totalorder %s9, 1
      %p129 = por %p127, %p128
      %p130 = scmp.ne.s32.totalorder %s122, %s125
      %p131 = scmp.eq.s32.totalorder %s9, 0
      %p132 = por %p130, %p131
      %p133 = scmp.ne.s32.totalorder %s122, %s125
      %p134 = scmp.eq.s32.totalorder %s14, 1
      %p135 = por %p133, %p134
      %p136 = scmp.ne.s32.totalorder %s125, %s126
      %p137 = scmp.eq.s32.totalorder %s14, 0
      %p138 = por %p136, %p137
      %p139 = scmp.ne.s32.totalorder %s125, %s126
      %p140 = scmp.eq.s32.totalorder %s15, 1
      %p141 = por %p139, %p140
      %p143 = scmp.ne.s32.totalorder %s126, %s142
      %p144 = scmp.eq.s32.totalorder %s15, 0
      %p145 = por %p143, %p144
      %p146 = scmp.le.s32.totalorder 1, %s9
      %p147 = scmp.lt.s32.totalorder %s9, 3
      %p148 = pnand %p146, %p147
      %p149 = pneg %p148
      // Predicated region
      $region9: #{deeplab_cls_forward_test.14} parent=5 // pred_check
        _
      $region10: #{deeplab_cls_forward_test.14} parent=5 // pred_check_branch
        %151 = sbr.rel (%p148) target = $region12
      $region11: #{deeplab_cls_forward_test.14} parent=5 // pred_region
        %s152 = ssub.s32 %s9, 1
        // Predicated region
        $region13: #{deeplab_cls_forward_test.14} parent=11 // pred_check
          %p153 = pneg %p56
        $region14: #{deeplab_cls_forward_test.14} parent=11 // pred_check_branch
          %155 = sbr.rel (%p153) target = $region16
        $region15: #{deeplab_cls_forward_test.14} parent=11 // pred_region
          %s156 = smul.u32 16, %s19
          %p157 = scmp.lt.s32.totalorder %s156, 15
          %s158 = scalar_select %p157, %s156, 15
          %p159 = scmp.lt.s32.totalorder %s21, 0
          %s160 = scalar_select %p159, %s21, 0
          %s161 = sadd.s32 %s160, %s158
          %s162 = smul.addr %s161, 4
          %s163 = scalar_lea.vmem %s0, %s162
          %s164 = smul.u32 16, %s19
        $region16: #{deeplab_cls_forward_test.14} parent=11 // pred_fallthru
          _
      $region12: #{deeplab_cls_forward_test.14} parent=5 // pred_fallthru
        _
      %p165 = scmp.lt.s32.totalorder %s9, 2
      // Predicated region
      $region17: #{deeplab_cls_forward_test.14} parent=5 // pred_check
        %p166 = pneg %p165
      $region18: #{deeplab_cls_forward_test.14} parent=5 // pred_check_branch
        %168 = sbr.rel (%p166) target = $region20
      $region19: #{deeplab_cls_forward_test.14} parent=5 // pred_region
        // Predicated region
        $region21: #{deeplab_cls_forward_test.14} parent=19 // pred_check
          %p169 = pneg %p78
        $region22: #{deeplab_cls_forward_test.14} parent=19 // pred_check_branch
          %171 = sbr.rel (%p169) target = $region24
        $region23: #{deeplab_cls_forward_test.14} parent=19 // pred_region
          %s172 = sand.u32 %s68, 1
          %s173 = sand.u32 %s68, 1
          %s174 = smul.addr %s173, 64
          %s175 = scalar_lea.vmem [#allocation3], %s174
          %s176 = smul.u32 16, %s18
          %s177 = smul.addr %s176, 2
          %s178 = sadd.s32 %s17, %s177
          %s179 = smul.addr %s178, 4
          %s180 = scalar_lea.vmem %s1, %s179
          // Predicated region
          $region25: #{deeplab_cls_forward_test.14} parent=23 // pred_check
            _
          $region26: #{deeplab_cls_forward_test.14} parent=23 // pred_check_branch
            %182 = sbr.rel (0) target = $region28
          $region27: #{deeplab_cls_forward_test.14} parent=23 // pred_region
            // Predicated region
            $region29: #{deeplab_cls_forward_test.14} parent=27 // pred_check
              _
            $region30: #{deeplab_cls_forward_test.14} parent=27 // pred_check_branch
              %184 = sbr.rel target = $region32
            $region31: #{deeplab_cls_forward_test.14} parent=27 // pred_region
              // Predicated region
              $region44: #{deeplab_cls_forward_test.14} parent=31 // pred_check
                _
              $region45: #{deeplab_cls_forward_test.14} parent=31 // pred_check_branch
                %229 = sbr.rel (0) target = $region47
              $region46: #{deeplab_cls_forward_test.14} parent=31 // pred_region
                loop: start=0, step=1, limit=1
                $region48: #{deeplab_cls_forward_test.14} parent=46 // loop_pre_header
                  _
                $region49: #{deeplab_cls_forward_test.14} parent=46 // loop_header
                  %s231 = sphi 0, %s235
                  %p232 = scmp.ge.s32.totalorder %s231, 1
                  %s236 = sphi %s180, %s180
                  %s237 = sphi %s175, %s175
                $region50: #{deeplab_cls_forward_test.14} parent=46 // loop_header_branch
                  %234 = sbr.rel (%p232) target = $region54
                $region51: #{deeplab_cls_forward_test.14} parent=46 // loop_body
                  _
                $region52: #{deeplab_cls_forward_test.14} parent=46 // loop_footer
                  %s235 = sadd.s32 1, %s231
                $region53: #{deeplab_cls_forward_test.14} parent=46 // loop_footer_branch
                  %230 = sbr.rel target = $region49
                $region54: #{deeplab_cls_forward_test.14} parent=46 // loop_exit
                  _
                loop: start=0, step=1, limit=1
                $region55: #{deeplab_cls_forward_test.14} parent=46 // loop_pre_header
                  _
                $region56: #{deeplab_cls_forward_test.14} parent=46 // loop_header
                  %s240 = sphi 0, %s244
                  %p241 = scmp.ge.s32.totalorder %s240, 1
                  %s245 = sphi %s180, %s180
                  %s246 = sphi %s175, %s175
                $region57: #{deeplab_cls_forward_test.14} parent=46 // loop_header_branch
                  %243 = sbr.rel (%p241) target = $region61
                $region58: #{deeplab_cls_forward_test.14} parent=46 // loop_body
                  %v247 = vld [vmem:[%s245] sm:$0xf]
                  %248 = vst [vmem:[%s246] sm:$0xf] %v247
                  %v249 = vld [vmem:[%s245 + $0x8] sm:$0xf]
                  %250 = vst [vmem:[%s246 + $0x4] sm:$0xf] %v249
                  %v251 = vld [vmem:[%s245 + $0x10] sm:$0xf]
                  %252 = vst [vmem:[%s246 + $0x8] sm:$0xf] %v251
                  %v253 = vld [vmem:[%s245 + $0x18] sm:$0xf]
                  %254 = vst [vmem:[%s246 + $0xc] sm:$0xf] %v253
                  %v255 = vld [vmem:[%s245 + $0x20] sm:$0xf]
                  %256 = vst [vmem:[%s246 + $0x10] sm:$0xf] %v255
                  %v257 = vld [vmem:[%s245 + $0x28] sm:$0xf]
                  %258 = vst [vmem:[%s246 + $0x14] sm:$0xf] %v257
                  %v259 = vld [vmem:[%s245 + $0x30] sm:$0xf]
                  %260 = vst [vmem:[%s246 + $0x18] sm:$0xf] %v259
                  %v261 = vld [vmem:[%s245 + $0x38] sm:$0xf]
                  %262 = vst [vmem:[%s246 + $0x1c] sm:$0xf] %v261
                  %v263 = vld [vmem:[%s245 + $0x40] sm:$0xf]
                  %264 = vst [vmem:[%s246 + $0x20] sm:$0xf] %v263
                  %v265 = vld [vmem:[%s245 + $0x48] sm:$0xf]
                  %266 = vst [vmem:[%s246 + $0x24] sm:$0xf] %v265
                  %v267 = vld [vmem:[%s245 + $0x50] sm:$0xf]
                  %268 = vst [vmem:[%s246 + $0x28] sm:$0xf] %v267
                  %v269 = vld [vmem:[%s245 + $0x58] sm:$0xf]
                  %270 = vst [vmem:[%s246 + $0x2c] sm:$0xf] %v269
                  %v271 = vld [vmem:[%s245 + $0x60] sm:$0xf]
                  %272 = vst [vmem:[%s246 + $0x30] sm:$0xf] %v271
                  %v273 = vld [vmem:[%s245 + $0x68] sm:$0xf]
                  %274 = vst [vmem:[%s246 + $0x34] sm:$0xf] %v273
                  %v275 = vld [vmem:[%s245 + $0x70] sm:$0xf]
                  %276 = vst [vmem:[%s246 + $0x38] sm:$0xf] %v275
                  %v277 = vld [vmem:[%s245 + $0x78] sm:$0xf]
                  %278 = vst [vmem:[%s246 + $0x3c] sm:$0xf] %v277
                $region59: #{deeplab_cls_forward_test.14} parent=46 // loop_footer
                  %s244 = sadd.s32 1, %s240
                $region60: #{deeplab_cls_forward_test.14} parent=46 // loop_footer_branch
                  %239 = sbr.rel target = $region56
                $region61: #{deeplab_cls_forward_test.14} parent=46 // loop_exit
                  _
              $region47: #{deeplab_cls_forward_test.14} parent=31 // pred_fallthru
                _
            $region32: #{deeplab_cls_forward_test.14} parent=27 // pred_fallthru
              _
            // Predicated region
            $region33: #{deeplab_cls_forward_test.14} parent=27 // pred_check
              _
            $region34: #{deeplab_cls_forward_test.14} parent=27 // pred_check_branch
              %186 = sbr.rel (0) target = $region36
            $region35: #{deeplab_cls_forward_test.14} parent=27 // pred_region
              loop: start=0, step=1, limit=1
              $region37: #{deeplab_cls_forward_test.14} parent=35 // loop_pre_header
                _
              $region38: #{deeplab_cls_forward_test.14} parent=35 // loop_header
                %s189 = sphi 0, %s193
                %p190 = scmp.ge.s32.totalorder %s189, 1
                %s194 = sphi %s180, %s180
                %s195 = sphi %s175, %s175
              $region39: #{deeplab_cls_forward_test.14} parent=35 // loop_header_branch
                %192 = sbr.rel (%p190) target = $region43
              $region40: #{deeplab_cls_forward_test.14} parent=35 // loop_body
                %v196 = vld [vmem:[%s194] sm:$0xf]
                %197 = vst [vmem:[%s195] sm:$0xf] %v196
                %v198 = vld [vmem:[%s194 + $0x8] sm:$0xf]
                %199 = vst [vmem:[%s195 + $0x4] sm:$0xf] %v198
                %v200 = vld [vmem:[%s194 + $0x10] sm:$0xf]
                %201 = vst [vmem:[%s195 + $0x8] sm:$0xf] %v200
                %v202 = vld [vmem:[%s194 + $0x18] sm:$0xf]
                %203 = vst [vmem:[%s195 + $0xc] sm:$0xf] %v202
                %v204 = vld [vmem:[%s194 + $0x20] sm:$0xf]
                %205 = vst [vmem:[%s195 + $0x10] sm:$0xf] %v204
                %v206 = vld [vmem:[%s194 + $0x28] sm:$0xf]
                %207 = vst [vmem:[%s195 + $0x14] sm:$0xf] %v206
                %v208 = vld [vmem:[%s194 + $0x30] sm:$0xf]
                %209 = vst [vmem:[%s195 + $0x18] sm:$0xf] %v208
                %v210 = vld [vmem:[%s194 + $0x38] sm:$0xf]
                %211 = vst [vmem:[%s195 + $0x1c] sm:$0xf] %v210
                %v212 = vld [vmem:[%s194 + $0x40] sm:$0xf]
                %213 = vst [vmem:[%s195 + $0x20] sm:$0xf] %v212
                %v214 = vld [vmem:[%s194 + $0x48] sm:$0xf]
                %215 = vst [vmem:[%s195 + $0x24] sm:$0xf] %v214
                %v216 = vld [vmem:[%s194 + $0x50] sm:$0xf]
                %217 = vst [vmem:[%s195 + $0x28] sm:$0xf] %v216
                %v218 = vld [vmem:[%s194 + $0x58] sm:$0xf]
                %219 = vst [vmem:[%s195 + $0x2c] sm:$0xf] %v218
                %v220 = vld [vmem:[%s194 + $0x60] sm:$0xf]
                %221 = vst [vmem:[%s195 + $0x30] sm:$0xf] %v220
                %v222 = vld [vmem:[%s194 + $0x68] sm:$0xf]
                %223 = vst [vmem:[%s195 + $0x34] sm:$0xf] %v222
                %v224 = vld [vmem:[%s194 + $0x70] sm:$0xf]
                %225 = vst [vmem:[%s195 + $0x38] sm:$0xf] %v224
                %v226 = vld [vmem:[%s194 + $0x78] sm:$0xf]
                %227 = vst [vmem:[%s195 + $0x3c] sm:$0xf] %v226
              $region41: #{deeplab_cls_forward_test.14} parent=35 // loop_footer
                %s193 = sadd.s32 1, %s189
              $region42: #{deeplab_cls_forward_test.14} parent=35 // loop_footer_branch
                %188 = sbr.rel target = $region38
              $region43: #{deeplab_cls_forward_test.14} parent=35 // loop_exit
                _
            $region36: #{deeplab_cls_forward_test.14} parent=27 // pred_fallthru
              _
          $region28: #{deeplab_cls_forward_test.14} parent=23 // pred_fallthru
            _
          %279 = vnop
        $region24: #{deeplab_cls_forward_test.14} parent=19 // pred_fallthru
          _
        // Predicated region
        $region62: #{deeplab_cls_forward_test.14} parent=19 // pred_check
          %p280 = pneg %p104
        $region63: #{deeplab_cls_forward_test.14} parent=19 // pred_check_branch
          %282 = sbr.rel (%p280) target = $region65
        $region64: #{deeplab_cls_forward_test.14} parent=19 // pred_region
          %p283 = scmp.lt.s32.totalorder %s17, 1
          %s284 = scalar_select %p283, %s17, 1
          %s285 = scalar_lea.vmem %s2, %s284
        $region65: #{deeplab_cls_forward_test.14} parent=19 // pred_fallthru
          _
      $region20: #{deeplab_cls_forward_test.14} parent=5 // pred_fallthru
        _
      %p286 = scmp.le.s32.totalorder 1, %s9
      %p287 = scmp.lt.s32.totalorder %s9, 3
      %p288 = pnand %p286, %p287
      %p289 = pneg %p288
      // Predicated region
      $region66: #{deeplab_cls_forward_test.14} parent=5 // pred_check
        _
      $region67: #{deeplab_cls_forward_test.14} parent=5 // pred_check_branch
        %291 = sbr.rel (%p288) target = $region69
      $region68: #{deeplab_cls_forward_test.14} parent=5 // pred_region
        %s292 = ssub.s32 %s9, 1
        %s293 = sand.u32 %s71, 1
        %s294 = sand.u32 %s71, 1
        %s295 = smul.addr %s294, 64
        %s296 = scalar_lea.vmem [#allocation3], %s295
        // Predicated region
        $region70: #{deeplab_cls_forward_test.14} parent=68 // pred_check
          %p297 = pneg %p84
        $region71: #{deeplab_cls_forward_test.14} parent=68 // pred_check_branch
          %299 = sbr.rel (%p297) target = $region73
        $region72: #{deeplab_cls_forward_test.14} parent=68 // pred_region
          _
        $region73: #{deeplab_cls_forward_test.14} parent=68 // pred_fallthru
          _
        %s300 = smul.u32 16, %s19
        %p301 = scmp.lt.s32.totalorder %s300, 15
        %s302 = scalar_select %p301, %s300, 15
        %p303 = scmp.lt.s32.totalorder %s21, 0
        %s304 = scalar_select %p303, %s21, 0
        %s305 = sadd.s32 %s304, %s302
        %s306 = smul.addr %s305, 4
        %s307 = scalar_lea.vmem %s0, %s306
        %p308 = pneg %p56
        %p309 = pneg %p53
        %s310 = sand.u32 %s71, 1
        %s311 = sand.u32 %s71, 1
        %s312 = smul.addr %s311, 64
        %s313 = scalar_lea.vmem [#allocation3], %s312
        %p314 = pneg %p84
        %p315 = pneg %p81
        %p316 = scmp.lt.s32.totalorder %s20, 1
        %s317 = scalar_select %p316, %s20, 1
        %s318 = scalar_lea.vmem %s2, %s317
        %p319 = pneg %p110
        %p320 = pneg %p107
        %p321 = pneg %p138
        %p322 = pneg %p135
        %s323 = sand.u32 %s125, 1
        %s324 = sand.u32 %s125, 1
        %s325 = smul.addr %s324, 64
        %s326 = scalar_lea.vmem [#allocation4], %s325
        %s327 = smul.u32 16, %s19
        %p328 = scmp.lt.s32.totalorder %s327, 15
        %s329 = scalar_select %p328, %s327, 15
        %p330 = scmp.lt.s32.totalorder %s21, 0
        %s331 = scalar_select %p330, %s21, 0
        %s332 = sadd.s32 %s331, %s329
        %s333 = smul.addr %s332, 4
        %s334 = scalar_lea.vmem %s0, %s333
        %s335 = smul.u32 16, %s19
        %s336 = smul.u32 16, %s21
        %p337 = scmp.lt.s32.totalorder %s20, 1
        %s338 = scalar_select %p337, %s20, 1
        %s339 = scalar_lea.vmem %s2, %s338
        %s340 = smul.u32 16, %s19
        %p342 = scmp.eq.s32.totalorder %s21, 0
        // Predicated region
        $region74: #{deeplab_cls_forward_test.14} parent=68 // pred_check
          %p343 = pneg %p342
        $region75: #{deeplab_cls_forward_test.14} parent=68 // pred_check_branch
          %345 = sbr.rel (%p343) target = $region77
        $region76: #{deeplab_cls_forward_test.14} parent=68 // pred_region
          %346 = vst [vmem:[#allocation2] sm:$0xff] 0.0
          %347 = vst [vmem:[#allocation2 + $0x8] sm:$0xff] 0.0
          %348 = vst [vmem:[#allocation2 + $0x10] sm:$0xff] 0.0
          %349 = vst [vmem:[#allocation2 + $0x18] sm:$0xff] 0.0
          %350 = vst [vmem:[#allocation2 + $0x20] sm:$0xff] 0.0
          %351 = vst [vmem:[#allocation2 + $0x28] sm:$0xff] 0.0
          %352 = vst [vmem:[#allocation2 + $0x30] sm:$0xff] 0.0
          %353 = vst [vmem:[#allocation2 + $0x38] sm:$0xff] 0.0
          %354 = vst [vmem:[#allocation2 + $0x40] sm:$0xff] 0.0
          %355 = vst [vmem:[#allocation2 + $0x48] sm:$0xff] 0.0
          %356 = vst [vmem:[#allocation2 + $0x50] sm:$0xff] 0.0
          %357 = vst [vmem:[#allocation2 + $0x58] sm:$0xff] 0.0
          %358 = vst [vmem:[#allocation2 + $0x60] sm:$0xff] 0.0
          %359 = vst [vmem:[#allocation2 + $0x68] sm:$0xff] 0.0
          %360 = vst [vmem:[#allocation2 + $0x70] sm:$0xff] 0.0
          %361 = vst [vmem:[#allocation2 + $0x78] sm:$0xff] 0.0
        $region77: #{deeplab_cls_forward_test.14} parent=68 // pred_fallthru
          _
        %v362 = vld [vmem:[#allocation2] sm:$0xff]
        %v363 = vld [vmem:[#allocation2 + $0x8] sm:$0xff]
        %v364 = vld [vmem:[#allocation2 + $0x10] sm:$0xff]
        %v365 = vld [vmem:[#allocation2 + $0x18] sm:$0xff]
        %v366 = vld [vmem:[#allocation2 + $0x20] sm:$0xff]
        %v367 = vld [vmem:[#allocation2 + $0x28] sm:$0xff]
        %v368 = vld [vmem:[#allocation2 + $0x30] sm:$0xff]
        %v369 = vld [vmem:[#allocation2 + $0x38] sm:$0xff]
        %v370 = vld [vmem:[#allocation2 + $0x40] sm:$0xff]
        %v371 = vld [vmem:[#allocation2 + $0x48] sm:$0xff]
        %v372 = vld [vmem:[#allocation2 + $0x50] sm:$0xff]
        %v373 = vld [vmem:[#allocation2 + $0x58] sm:$0xff]
        %v374 = vld [vmem:[#allocation2 + $0x60] sm:$0xff]
        %v375 = vld [vmem:[#allocation2 + $0x68] sm:$0xff]
        %v376 = vld [vmem:[#allocation2 + $0x70] sm:$0xff]
        %v377 = vld [vmem:[#allocation2 + $0x78] sm:$0xff]
        %v378 = vld [vmem:[%s334] sm:$0xf]
        %v379 = vld [vmem:[%s334 + $0x4] sm:$0xf]
        %v380 = vld [vmem:[%s334 + $0x8] sm:$0xf]
        %v381 = vld [vmem:[%s334 + $0xc] sm:$0xf]
        %v382 = vld [vmem:[%s334 + $0x10] sm:$0xf]
        %v383 = vld [vmem:[%s334 + $0x14] sm:$0xf]
        %v384 = vld [vmem:[%s334 + $0x18] sm:$0xf]
        %v385 = vld [vmem:[%s334 + $0x1c] sm:$0xf]
        %v386 = vld [vmem:[%s334 + $0x20] sm:$0xf]
        %v387 = vld [vmem:[%s334 + $0x24] sm:$0xf]
        %v388 = vld [vmem:[%s334 + $0x28] sm:$0xf]
        %v389 = vld [vmem:[%s334 + $0x2c] sm:$0xf]
        %v390 = vld [vmem:[%s334 + $0x30] sm:$0xf]
        %v391 = vld [vmem:[%s334 + $0x34] sm:$0xf]
        %v392 = vld [vmem:[%s334 + $0x38] sm:$0xf]
        %v393 = vld [vmem:[%s334 + $0x3c] sm:$0xf]
        %v394 = vld [vmem:[%s296] sm:$0xf]
        %v395 = vld [vmem:[%s296 + $0x4] sm:$0xf]
        %v396 = vld [vmem:[%s296 + $0x8] sm:$0xf]
        %v397 = vld [vmem:[%s296 + $0xc] sm:$0xf]
        %v398 = vld [vmem:[%s296 + $0x10] sm:$0xf]
        %v399 = vld [vmem:[%s296 + $0x14] sm:$0xf]
        %v400 = vld [vmem:[%s296 + $0x18] sm:$0xf]
        %v401 = vld [vmem:[%s296 + $0x1c] sm:$0xf]
        %v402 = vld [vmem:[%s296 + $0x20] sm:$0xf]
        %v403 = vld [vmem:[%s296 + $0x24] sm:$0xf]
        %v404 = vld [vmem:[%s296 + $0x28] sm:$0xf]
        %v405 = vld [vmem:[%s296 + $0x2c] sm:$0xf]
        %v406 = vld [vmem:[%s296 + $0x30] sm:$0xf]
        %v407 = vld [vmem:[%s296 + $0x34] sm:$0xf]
        %v408 = vld [vmem:[%s296 + $0x38] sm:$0xf]
        %v409 = vld [vmem:[%s296 + $0x3c] sm:$0xf]
        %v426 = vunpack.c.l.b16 %v378
        %v427 = vunpack.c.l.b16 %v379
        %v428 = vunpack.c.l.b16 %v380
        %v429 = vunpack.c.l.b16 %v381
        %v430 = vunpack.c.l.b16 %v382
        %v431 = vunpack.c.l.b16 %v383
        %v432 = vunpack.c.l.b16 %v384
        %v433 = vunpack.c.l.b16 %v385
        %v434 = vunpack.c.l.b16 %v386
        %v435 = vunpack.c.l.b16 %v387
        %v436 = vunpack.c.l.b16 %v388
        %v437 = vunpack.c.l.b16 %v389
        %v438 = vunpack.c.l.b16 %v390
        %v439 = vunpack.c.l.b16 %v391
        %v440 = vunpack.c.l.b16 %v392
        %v441 = vunpack.c.l.b16 %v393
        %v442 = vpack.c.b16 %v427, %v426
        %v443 = vpack.c.b16 %v429, %v428
        %v444 = vpack.c.b16 %v431, %v430
        %v445 = vpack.c.b16 %v433, %v432
        %v446 = vpack.c.b16 %v435, %v434
        %v447 = vpack.c.b16 %v437, %v436
        %v448 = vpack.c.b16 %v439, %v438
        %v449 = vpack.c.b16 %v441, %v440
        %v474 = vunpack.c.l.b16 %v394
        %v475 = vunpack.c.l.b16 %v395
        %v476 = vunpack.c.l.b16 %v396
        %v477 = vunpack.c.l.b16 %v397
        %v478 = vunpack.c.l.b16 %v398
        %v479 = vunpack.c.l.b16 %v399
        %v480 = vunpack.c.l.b16 %v400
        %v481 = vunpack.c.l.b16 %v401
        %v482 = vunpack.c.l.b16 %v402
        %v483 = vunpack.c.l.b16 %v403
        %v484 = vunpack.c.l.b16 %v404
        %v485 = vunpack.c.l.b16 %v405
        %v486 = vunpack.c.l.b16 %v406
        %v487 = vunpack.c.l.b16 %v407
        %v488 = vunpack.c.l.b16 %v408
        %v489 = vunpack.c.l.b16 %v409
        %v490 = vpack.c.b16 %v475, %v474
        %v491 = vpack.c.b16 %v477, %v476
        %v492 = vpack.c.b16 %v479, %v478
        %v493 = vpack.c.b16 %v481, %v480
        %v494 = vpack.c.b16 %v483, %v482
        %v495 = vpack.c.b16 %v485, %v484
        %v496 = vpack.c.b16 %v487, %v486
        %v497 = vpack.c.b16 %v489, %v488
        %506 = vmatprep.subr.bf16.mxu0 0
        %507 = vmatpush1.bf16.msra.mxu0 %v490
        %508 = vmatprep.subr.bf16.mxu0 0
        %509 = vmatpush1.bf16.msra.mxu0 %v491
        %510 = vmatprep.subr.bf16.mxu0 0
        %511 = vmatpush1.bf16.msra.mxu0 %v492
        %512 = vmatprep.subr.bf16.mxu0 0
        %513 = vmatpush1.bf16.msra.mxu0 %v493
        %514 = vmatprep.subr.bf16.mxu0 0
        %515 = vmatpush1.bf16.msra.mxu0 %v494
        %516 = vmatprep.subr.bf16.mxu0 0
        %517 = vmatpush1.bf16.msra.mxu0 %v495
        %518 = vmatprep.subr.bf16.mxu0 0
        %519 = vmatpush1.bf16.msra.mxu0 %v496
        %520 = vmatprep.subr.bf16.mxu0 0
        %521 = vmatpush1.bf16.msra.mxu0 %v497
        %522 = vmatprep.subr.bf16.mxu0 0
        %523 = vmatpush1.bf16.msra.mxu0 0
        %524 = vmatprep.subr.bf16.mxu0 0
        %525 = vmatpush1.bf16.msra.mxu0 0
        %526 = vmatprep.subr.bf16.mxu0 0
        %527 = vmatpush1.bf16.msra.mxu0 0
        %528 = vmatprep.subr.bf16.mxu0 0
        %529 = vmatpush1.bf16.msra.mxu0 0
        %530 = vmatprep.subr.bf16.mxu0 0
        %531 = vmatpush1.bf16.msra.mxu0 0
        %532 = vmatprep.subr.bf16.mxu0 0
        %533 = vmatpush1.bf16.msra.mxu0 0
        %534 = vmatprep.subr.bf16.mxu0 0
        %535 = vmatpush1.bf16.msra.mxu0 0
        %536 = vmatprep.subr.bf16.mxu0 0
        %537 = vmatpush1.bf16.msra.mxu0 0
        %538 = vmatprep.mubr.bf16.mxu0 0
        %539 = vmatmul.mubr.bf16.gmra.mrb[0].mxu0 %v442
        %v540 = vpop.f32.mrb[0].mxu0
        %v541 = vadd.f32 0.0, %v540
        %v542 = vpop.f32.mrb[0].mxu0
        %v543 = vpop.f32.mrb[0].mxu0
        %v544 = vadd.f32 0.0, %v543
        %v545 = vpop.f32.mrb[0].mxu0
        %546 = vmatprep.mubr.bf16.mxu0 0
        %547 = vmatmul.mubr.bf16.gmra.mrb[0].mxu0 %v443
        %v548 = vpop.f32.mrb[0].mxu0
        %v549 = vadd.f32 0.0, %v548
        %v550 = vpop.f32.mrb[0].mxu0
        %v551 = vpop.f32.mrb[0].mxu0
        %v552 = vadd.f32 0.0, %v551
        %v553 = vpop.f32.mrb[0].mxu0
        %554 = vmatprep.mubr.bf16.mxu0 0
        %555 = vmatmul.mubr.bf16.gmra.mrb[0].mxu0 %v444
        %v556 = vpop.f32.mrb[0].mxu0
        %v557 = vadd.f32 0.0, %v556
        %v558 = vpop.f32.mrb[0].mxu0
        %v559 = vpop.f32.mrb[0].mxu0
        %v560 = vadd.f32 0.0, %v559
        %v561 = vpop.f32.mrb[0].mxu0
        %562 = vmatprep.mubr.bf16.mxu0 0
        %563 = vmatmul.mubr.bf16.gmra.mrb[0].mxu0 %v445
        %v564 = vpop.f32.mrb[0].mxu0
        %v565 = vadd.f32 0.0, %v564
        %v566 = vpop.f32.mrb[0].mxu0
        %v567 = vpop.f32.mrb[0].mxu0
        %v568 = vadd.f32 0.0, %v567
        %v569 = vpop.f32.mrb[0].mxu0
        %570 = vmatprep.mubr.bf16.mxu0 0
        %571 = vmatmul.mubr.bf16.gmra.mrb[0].mxu0 %v446
        %v572 = vpop.f32.mrb[0].mxu0
        %v573 = vadd.f32 0.0, %v572
        %v574 = vpop.f32.mrb[0].mxu0
        %v575 = vpop.f32.mrb[0].mxu0
        %v576 = vadd.f32 0.0, %v575
        %v577 = vpop.f32.mrb[0].mxu0
        %578 = vmatprep.mubr.bf16.mxu0 0
        %579 = vmatmul.mubr.bf16.gmra.mrb[0].mxu0 %v447
        %v580 = vpop.f32.mrb[0].mxu0
        %v581 = vadd.f32 0.0, %v580
        %v582 = vpop.f32.mrb[0].mxu0
        %v583 = vpop.f32.mrb[0].mxu0
        %v584 = vadd.f32 0.0, %v583
        %v585 = vpop.f32.mrb[0].mxu0
        %586 = vmatprep.mubr.bf16.mxu0 0
        %587 = vmatmul.mubr.bf16.gmra.mrb[0].mxu0 %v448
        %v588 = vpop.f32.mrb[0].mxu0
        %v589 = vadd.f32 0.0, %v588
        %v590 = vpop.f32.mrb[0].mxu0
        %v591 = vpop.f32.mrb[0].mxu0
        %v592 = vadd.f32 0.0, %v591
        %v593 = vpop.f32.mrb[0].mxu0
        %594 = vmatprep.mubr.bf16.mxu0 0
        %595 = vmatmul.mubr.bf16.gmra.mrb[0].mxu0 %v449
        %v596 = vpop.f32.mrb[0].mxu0
        %v597 = vadd.f32 0.0, %v596
        %v598 = vpop.f32.mrb[0].mxu0
        %v599 = vpop.f32.mrb[0].mxu0
        %v600 = vadd.f32 0.0, %v599
        %v601 = vpop.f32.mrb[0].mxu0
        %602 = vdwg.mxu0
        %v603 = vadd.f32 %v362, %v541
        %v604 = vadd.f32 %v363, %v544
        %v605 = vadd.f32 %v364, %v549
        %v606 = vadd.f32 %v365, %v552
        %v607 = vadd.f32 %v366, %v557
        %v608 = vadd.f32 %v367, %v560
        %v609 = vadd.f32 %v368, %v565
        %v610 = vadd.f32 %v369, %v568
        %v611 = vadd.f32 %v370, %v573
        %v612 = vadd.f32 %v371, %v576
        %v613 = vadd.f32 %v372, %v581
        %v614 = vadd.f32 %v373, %v584
        %v615 = vadd.f32 %v374, %v589
        %v616 = vadd.f32 %v375, %v592
        %v617 = vadd.f32 %v376, %v597
        %v618 = vadd.f32 %v377, %v600
        %619 = vst [vmem:[#allocation2] sm:$0xff] %v603
        %620 = vst [vmem:[#allocation2 + $0x8] sm:$0xff] %v604
        %621 = vst [vmem:[#allocation2 + $0x10] sm:$0xff] %v605
        %622 = vst [vmem:[#allocation2 + $0x18] sm:$0xff] %v606
        %623 = vst [vmem:[#allocation2 + $0x20] sm:$0xff] %v607
        %624 = vst [vmem:[#allocation2 + $0x28] sm:$0xff] %v608
        %625 = vst [vmem:[#allocation2 + $0x30] sm:$0xff] %v609
        %626 = vst [vmem:[#allocation2 + $0x38] sm:$0xff] %v610
        %627 = vst [vmem:[#allocation2 + $0x40] sm:$0xff] %v611
        %628 = vst [vmem:[#allocation2 + $0x48] sm:$0xff] %v612
        %629 = vst [vmem:[#allocation2 + $0x50] sm:$0xff] %v613
        %630 = vst [vmem:[#allocation2 + $0x58] sm:$0xff] %v614
        %631 = vst [vmem:[#allocation2 + $0x60] sm:$0xff] %v615
        %632 = vst [vmem:[#allocation2 + $0x68] sm:$0xff] %v616
        %633 = vst [vmem:[#allocation2 + $0x70] sm:$0xff] %v617
        %634 = vst [vmem:[#allocation2 + $0x78] sm:$0xff] %v618
        // Predicated region
        $region78: #{deeplab_cls_forward_test.14} parent=68 // pred_check
          %p635 = pneg %p342
        $region79: #{deeplab_cls_forward_test.14} parent=68 // pred_check_branch
          %637 = sbr.rel (%p635) target = $region81
        $region80: #{deeplab_cls_forward_test.14} parent=68 // pred_region
          %v638 = vld [vmem:[#allocation2] sm:$0xff]
          %v639 = vld [vmem:[#allocation2 + $0x8] sm:$0xff]
          %v640 = vld [vmem:[#allocation2 + $0x10] sm:$0xff]
          %v641 = vld [vmem:[#allocation2 + $0x18] sm:$0xff]
          %v642 = vld [vmem:[#allocation2 + $0x20] sm:$0xff]
          %v643 = vld [vmem:[#allocation2 + $0x28] sm:$0xff]
          %v644 = vld [vmem:[#allocation2 + $0x30] sm:$0xff]
          %v645 = vld [vmem:[#allocation2 + $0x38] sm:$0xff]
          %v646 = vld [vmem:[#allocation2 + $0x40] sm:$0xff]
          %v647 = vld [vmem:[#allocation2 + $0x48] sm:$0xff]
          %v648 = vld [vmem:[#allocation2 + $0x50] sm:$0xff]
          %v649 = vld [vmem:[#allocation2 + $0x58] sm:$0xff]
          %v650 = vld [vmem:[#allocation2 + $0x60] sm:$0xff]
          %v651 = vld [vmem:[#allocation2 + $0x68] sm:$0xff]
          %v652 = vld [vmem:[#allocation2 + $0x70] sm:$0xff]
          %v653 = vld [vmem:[#allocation2 + $0x78] sm:$0xff]
          %v654 = vld [vmem:[%s339] sm:$0x1]
          %v656 = vlaneseq
          %v657 = vshrl.u32 %v656, 7
          %v658 = vsub.s32 0, %v657
          %v659 = vrot.slane %v654, %v658
          %v661 = vadd.f32 %v638, %v659
          %v662 = vadd.f32 %v639, %v659
          %v663 = vadd.f32 %v640, %v659
          %v664 = vadd.f32 %v641, %v659
          %v665 = vadd.f32 %v642, %v659
          %v666 = vadd.f32 %v643, %v659
          %v667 = vadd.f32 %v644, %v659
          %v668 = vadd.f32 %v645, %v659
          %v669 = vadd.f32 %v646, %v659
          %v670 = vadd.f32 %v647, %v659
          %v671 = vadd.f32 %v648, %v659
          %v672 = vadd.f32 %v649, %v659
          %v673 = vadd.f32 %v650, %v659
          %v674 = vadd.f32 %v651, %v659
          %v675 = vadd.f32 %v652, %v659
          %v676 = vadd.f32 %v653, %v659
          %vm677 = vcmp.gt.f32.partialorder %v661, 0.0
          %vm678 = vcmp.gt.f32.partialorder %v662, 0.0
          %vm679 = vcmp.gt.f32.partialorder %v663, 0.0
          %vm680 = vcmp.gt.f32.partialorder %v664, 0.0
          %vm681 = vcmp.gt.f32.partialorder %v665, 0.0
          %vm682 = vcmp.gt.f32.partialorder %v666, 0.0
          %vm683 = vcmp.gt.f32.partialorder %v667, 0.0
          %vm684 = vcmp.gt.f32.partialorder %v668, 0.0
          %vm685 = vcmp.gt.f32.partialorder %v669, 0.0
          %vm686 = vcmp.gt.f32.partialorder %v670, 0.0
          %vm687 = vcmp.gt.f32.partialorder %v671, 0.0
          %vm688 = vcmp.gt.f32.partialorder %v672, 0.0
          %vm689 = vcmp.gt.f32.partialorder %v673, 0.0
          %vm690 = vcmp.gt.f32.partialorder %v674, 0.0
          %vm691 = vcmp.gt.f32.partialorder %v675, 0.0
          %vm692 = vcmp.gt.f32.partialorder %v676, 0.0
          %v693 = vmin.f32 %v661, 0.0
          %v694 = vmin.f32 %v662, 0.0
          %v695 = vmin.f32 %v663, 0.0
          %v696 = vmin.f32 %v664, 0.0
          %v697 = vmin.f32 %v665, 0.0
          %v698 = vmin.f32 %v666, 0.0
          %v699 = vmin.f32 %v667, 0.0
          %v700 = vmin.f32 %v668, 0.0
          %v701 = vmin.f32 %v669, 0.0
          %v702 = vmin.f32 %v670, 0.0
          %v703 = vmin.f32 %v671, 0.0
          %v704 = vmin.f32 %v672, 0.0
          %v705 = vmin.f32 %v673, 0.0
          %v706 = vmin.f32 %v674, 0.0
          %v707 = vmin.f32 %v675, 0.0
          %v708 = vmin.f32 %v676, 0.0
          %v709 = vmul.f32 %v693, 1.442695
          %v710 = vpow.pop %v709
          %v711 = vmul.f32 %v694, 1.442695
          %v712 = vpow.pop %v711
          %v713 = vmul.f32 %v695, 1.442695
          %v714 = vpow.pop %v713
          %v715 = vmul.f32 %v696, 1.442695
          %v716 = vpow.pop %v715
          %v717 = vmul.f32 %v697, 1.442695
          %v718 = vpow.pop %v717
          %v719 = vmul.f32 %v698, 1.442695
          %v720 = vpow.pop %v719
          %v721 = vmul.f32 %v699, 1.442695
          %v722 = vpow.pop %v721
          %v723 = vmul.f32 %v700, 1.442695
          %v724 = vpow.pop %v723
          %v725 = vmul.f32 %v701, 1.442695
          %v726 = vpow.pop %v725
          %v727 = vmul.f32 %v702, 1.442695
          %v728 = vpow.pop %v727
          %v729 = vmul.f32 %v703, 1.442695
          %v730 = vpow.pop %v729
          %v731 = vmul.f32 %v704, 1.442695
          %v732 = vpow.pop %v731
          %v733 = vmul.f32 %v705, 1.442695
          %v734 = vpow.pop %v733
          %v735 = vmul.f32 %v706, 1.442695
          %v736 = vpow.pop %v735
          %v737 = vmul.f32 %v707, 1.442695
          %v738 = vpow.pop %v737
          %v739 = vmul.f32 %v708, 1.442695
          %v740 = vpow.pop %v739
          %v741 = vsub.f32 %v710, 1.0
          %v742 = vsub.f32 %v712, 1.0
          %v743 = vsub.f32 %v714, 1.0
          %v744 = vsub.f32 %v716, 1.0
          %v745 = vsub.f32 %v718, 1.0
          %v746 = vsub.f32 %v720, 1.0
          %v747 = vsub.f32 %v722, 1.0
          %v748 = vsub.f32 %v724, 1.0
          %v749 = vsub.f32 %v726, 1.0
          %v750 = vsub.f32 %v728, 1.0
          %v751 = vsub.f32 %v730, 1.0
          %v752 = vsub.f32 %v732, 1.0
          %v753 = vsub.f32 %v734, 1.0
          %v754 = vsub.f32 %v736, 1.0
          %v755 = vsub.f32 %v738, 1.0
          %v756 = vsub.f32 %v740, 1.0
          %v757 = vsel %vm677, %v661, %v741
          %v758 = vsel %vm678, %v662, %v742
          %v759 = vsel %vm679, %v663, %v743
          %v760 = vsel %vm680, %v664, %v744
          %v761 = vsel %vm681, %v665, %v745
          %v762 = vsel %vm682, %v666, %v746
          %v763 = vsel %vm683, %v667, %v747
          %v764 = vsel %vm684, %v668, %v748
          %v765 = vsel %vm685, %v669, %v749
          %v766 = vsel %vm686, %v670, %v750
          %v767 = vsel %vm687, %v671, %v751
          %v768 = vsel %vm688, %v672, %v752
          %v769 = vsel %vm689, %v673, %v753
          %v770 = vsel %vm690, %v674, %v754
          %v771 = vsel %vm691, %v675, %v755
          %v772 = vsel %vm692, %v676, %v756
          %v773 = vpack.c.bf16 %v758, %v757
          %v774 = vpack.c.bf16 %v760, %v759
          %v775 = vpack.c.bf16 %v762, %v761
          %v776 = vpack.c.bf16 %v764, %v763
          %v777 = vpack.c.bf16 %v766, %v765
          %v778 = vpack.c.bf16 %v768, %v767
          %v779 = vpack.c.bf16 %v770, %v769
          %v780 = vpack.c.bf16 %v772, %v771
          %v789 = vunpack.c.l.b16 %v773
          %v790 = vunpack.c.h.b16 %v773
          %v791 = vunpack.c.l.b16 %v774
          %v792 = vunpack.c.h.b16 %v774
          %v793 = vunpack.c.l.b16 %v775
          %v794 = vunpack.c.h.b16 %v775
          %v795 = vunpack.c.l.b16 %v776
          %v796 = vunpack.c.h.b16 %v776
          %v797 = vunpack.c.l.b16 %v777
          %v798 = vunpack.c.h.b16 %v777
          %v799 = vunpack.c.l.b16 %v778
          %v800 = vunpack.c.h.b16 %v778
          %v801 = vunpack.c.l.b16 %v779
          %v802 = vunpack.c.h.b16 %v779
          %v803 = vunpack.c.l.b16 %v780
          %v804 = vunpack.c.h.b16 %v780
          %v805 = vpack.c.b16 %v789, %v789
          %v806 = vpack.c.b16 %v790, %v790
          %v807 = vpack.c.b16 %v791, %v791
          %v808 = vpack.c.b16 %v792, %v792
          %v809 = vpack.c.b16 %v793, %v793
          %v810 = vpack.c.b16 %v794, %v794
          %v811 = vpack.c.b16 %v795, %v795
          %v812 = vpack.c.b16 %v796, %v796
          %v813 = vpack.c.b16 %v797, %v797
          %v814 = vpack.c.b16 %v798, %v798
          %v815 = vpack.c.b16 %v799, %v799
          %v816 = vpack.c.b16 %v800, %v800
          %v817 = vpack.c.b16 %v801, %v801
          %v818 = vpack.c.b16 %v802, %v802
          %v819 = vpack.c.b16 %v803, %v803
          %v820 = vpack.c.b16 %v804, %v804
          %837 = vst [vmem:[%s326] sm:$0xf] %v805
          %838 = vst [vmem:[%s326 + $0x4] sm:$0xf] %v806
          %839 = vst [vmem:[%s326 + $0x8] sm:$0xf] %v807
          %840 = vst [vmem:[%s326 + $0xc] sm:$0xf] %v808
          %841 = vst [vmem:[%s326 + $0x10] sm:$0xf] %v809
          %842 = vst [vmem:[%s326 + $0x14] sm:$0xf] %v810
          %843 = vst [vmem:[%s326 + $0x18] sm:$0xf] %v811
          %844 = vst [vmem:[%s326 + $0x1c] sm:$0xf] %v812
          %845 = vst [vmem:[%s326 + $0x20] sm:$0xf] %v813
          %846 = vst [vmem:[%s326 + $0x24] sm:$0xf] %v814
          %847 = vst [vmem:[%s326 + $0x28] sm:$0xf] %v815
          %848 = vst [vmem:[%s326 + $0x2c] sm:$0xf] %v816
          %849 = vst [vmem:[%s326 + $0x30] sm:$0xf] %v817
          %850 = vst [vmem:[%s326 + $0x34] sm:$0xf] %v818
          %851 = vst [vmem:[%s326 + $0x38] sm:$0xf] %v819
          %852 = vst [vmem:[%s326 + $0x3c] sm:$0xf] %v820
        $region81: #{deeplab_cls_forward_test.14} parent=68 // pred_fallthru
          _
        %s853 = sand.u32 %s125, 1
        %s854 = sand.u32 %s125, 1
        %s855 = smul.addr %s854, 64
        %s856 = scalar_lea.vmem [#allocation4], %s855
        // Predicated region
        $region82: #{deeplab_cls_forward_test.14} parent=68 // pred_check
          %p857 = pneg %p135
        $region83: #{deeplab_cls_forward_test.14} parent=68 // pred_check_branch
          %859 = sbr.rel (%p857) target = $region85
        $region84: #{deeplab_cls_forward_test.14} parent=68 // pred_region
          %s860 = smul.u32 16, %s19
          %s861 = smul.addr %s860, 2
          %s862 = sadd.s32 %s20, %s861
          %s863 = smul.addr %s862, 4
          %s864 = scalar_lea.vmem %s3, %s863
          // Predicated region
          $region86: #{deeplab_cls_forward_test.14} parent=84 // pred_check
            _
          $region87: #{deeplab_cls_forward_test.14} parent=84 // pred_check_branch
            %866 = sbr.rel (0) target = $region89
          $region88: #{deeplab_cls_forward_test.14} parent=84 // pred_region
            // Predicated region
            $region90: #{deeplab_cls_forward_test.14} parent=88 // pred_check
              _
            $region91: #{deeplab_cls_forward_test.14} parent=88 // pred_check_branch
              %868 = sbr.rel target = $region93
            $region92: #{deeplab_cls_forward_test.14} parent=88 // pred_region
              // Predicated region
              $region105: #{deeplab_cls_forward_test.14} parent=92 // pred_check
                _
              $region106: #{deeplab_cls_forward_test.14} parent=92 // pred_check_branch
                %913 = sbr.rel (0) target = $region108
              $region107: #{deeplab_cls_forward_test.14} parent=92 // pred_region
                loop: start=0, step=1, limit=1
                $region109: #{deeplab_cls_forward_test.14} parent=107 // loop_pre_header
                  _
                $region110: #{deeplab_cls_forward_test.14} parent=107 // loop_header
                  %s915 = sphi 0, %s919
                  %p916 = scmp.ge.s32.totalorder %s915, 1
                  %s920 = sphi %s856, %s856
                  %s921 = sphi %s864, %s864
                $region111: #{deeplab_cls_forward_test.14} parent=107 // loop_header_branch
                  %918 = sbr.rel (%p916) target = $region115
                $region112: #{deeplab_cls_forward_test.14} parent=107 // loop_body
                  _
                $region113: #{deeplab_cls_forward_test.14} parent=107 // loop_footer
                  %s919 = sadd.s32 1, %s915
                $region114: #{deeplab_cls_forward_test.14} parent=107 // loop_footer_branch
                  %914 = sbr.rel target = $region110
                $region115: #{deeplab_cls_forward_test.14} parent=107 // loop_exit
                  _
                loop: start=0, step=1, limit=1
                $region116: #{deeplab_cls_forward_test.14} parent=107 // loop_pre_header
                  _
                $region117: #{deeplab_cls_forward_test.14} parent=107 // loop_header
                  %s924 = sphi 0, %s928
                  %p925 = scmp.ge.s32.totalorder %s924, 1
                  %s929 = sphi %s856, %s856
                  %s930 = sphi %s864, %s864
                $region118: #{deeplab_cls_forward_test.14} parent=107 // loop_header_branch
                  %927 = sbr.rel (%p925) target = $region122
                $region119: #{deeplab_cls_forward_test.14} parent=107 // loop_body
                  %v931 = vld [vmem:[%s929] sm:$0xf]
                  %932 = vst [vmem:[%s930] sm:$0xf] %v931
                  %v933 = vld [vmem:[%s929 + $0x4] sm:$0xf]
                  %934 = vst [vmem:[%s930 + $0x8] sm:$0xf] %v933
                  %v935 = vld [vmem:[%s929 + $0x8] sm:$0xf]
                  %936 = vst [vmem:[%s930 + $0x10] sm:$0xf] %v935
                  %v937 = vld [vmem:[%s929 + $0xc] sm:$0xf]
                  %938 = vst [vmem:[%s930 + $0x18] sm:$0xf] %v937
                  %v939 = vld [vmem:[%s929 + $0x10] sm:$0xf]
                  %940 = vst [vmem:[%s930 + $0x20] sm:$0xf] %v939
                  %v941 = vld [vmem:[%s929 + $0x14] sm:$0xf]
                  %942 = vst [vmem:[%s930 + $0x28] sm:$0xf] %v941
                  %v943 = vld [vmem:[%s929 + $0x18] sm:$0xf]
                  %944 = vst [vmem:[%s930 + $0x30] sm:$0xf] %v943
                  %v945 = vld [vmem:[%s929 + $0x1c] sm:$0xf]
                  %946 = vst [vmem:[%s930 + $0x38] sm:$0xf] %v945
                  %v947 = vld [vmem:[%s929 + $0x20] sm:$0xf]
                  %948 = vst [vmem:[%s930 + $0x40] sm:$0xf] %v947
                  %v949 = vld [vmem:[%s929 + $0x24] sm:$0xf]
                  %950 = vst [vmem:[%s930 + $0x48] sm:$0xf] %v949
                  %v951 = vld [vmem:[%s929 + $0x28] sm:$0xf]
                  %952 = vst [vmem:[%s930 + $0x50] sm:$0xf] %v951
                  %v953 = vld [vmem:[%s929 + $0x2c] sm:$0xf]
                  %954 = vst [vmem:[%s930 + $0x58] sm:$0xf] %v953
                  %v955 = vld [vmem:[%s929 + $0x30] sm:$0xf]
                  %956 = vst [vmem:[%s930 + $0x60] sm:$0xf] %v955
                  %v957 = vld [vmem:[%s929 + $0x34] sm:$0xf]
                  %958 = vst [vmem:[%s930 + $0x68] sm:$0xf] %v957
                  %v959 = vld [vmem:[%s929 + $0x38] sm:$0xf]
                  %960 = vst [vmem:[%s930 + $0x70] sm:$0xf] %v959
                  %v961 = vld [vmem:[%s929 + $0x3c] sm:$0xf]
                  %962 = vst [vmem:[%s930 + $0x78] sm:$0xf] %v961
                $region120: #{deeplab_cls_forward_test.14} parent=107 // loop_footer
                  %s928 = sadd.s32 1, %s924
                $region121: #{deeplab_cls_forward_test.14} parent=107 // loop_footer_branch
                  %923 = sbr.rel target = $region117
                $region122: #{deeplab_cls_forward_test.14} parent=107 // loop_exit
                  _
              $region108: #{deeplab_cls_forward_test.14} parent=92 // pred_fallthru
                _
            $region93: #{deeplab_cls_forward_test.14} parent=88 // pred_fallthru
              _
            // Predicated region
            $region94: #{deeplab_cls_forward_test.14} parent=88 // pred_check
              _
            $region95: #{deeplab_cls_forward_test.14} parent=88 // pred_check_branch
              %870 = sbr.rel (0) target = $region97
            $region96: #{deeplab_cls_forward_test.14} parent=88 // pred_region
              loop: start=0, step=1, limit=1
              $region98: #{deeplab_cls_forward_test.14} parent=96 // loop_pre_header
                _
              $region99: #{deeplab_cls_forward_test.14} parent=96 // loop_header
                %s873 = sphi 0, %s877
                %p874 = scmp.ge.s32.totalorder %s873, 1
                %s878 = sphi %s856, %s856
                %s879 = sphi %s864, %s864
              $region100: #{deeplab_cls_forward_test.14} parent=96 // loop_header_branch
                %876 = sbr.rel (%p874) target = $region104
              $region101: #{deeplab_cls_forward_test.14} parent=96 // loop_body
                %v880 = vld [vmem:[%s878] sm:$0xf]
                %881 = vst [vmem:[%s879] sm:$0xf] %v880
                %v882 = vld [vmem:[%s878 + $0x4] sm:$0xf]
                %883 = vst [vmem:[%s879 + $0x8] sm:$0xf] %v882
                %v884 = vld [vmem:[%s878 + $0x8] sm:$0xf]
                %885 = vst [vmem:[%s879 + $0x10] sm:$0xf] %v884
                %v886 = vld [vmem:[%s878 + $0xc] sm:$0xf]
                %887 = vst [vmem:[%s879 + $0x18] sm:$0xf] %v886
                %v888 = vld [vmem:[%s878 + $0x10] sm:$0xf]
                %889 = vst [vmem:[%s879 + $0x20] sm:$0xf] %v888
                %v890 = vld [vmem:[%s878 + $0x14] sm:$0xf]
                %891 = vst [vmem:[%s879 + $0x28] sm:$0xf] %v890
                %v892 = vld [vmem:[%s878 + $0x18] sm:$0xf]
                %893 = vst [vmem:[%s879 + $0x30] sm:$0xf] %v892
                %v894 = vld [vmem:[%s878 + $0x1c] sm:$0xf]
                %895 = vst [vmem:[%s879 + $0x38] sm:$0xf] %v894
                %v896 = vld [vmem:[%s878 + $0x20] sm:$0xf]
                %897 = vst [vmem:[%s879 + $0x40] sm:$0xf] %v896
                %v898 = vld [vmem:[%s878 + $0x24] sm:$0xf]
                %899 = vst [vmem:[%s879 + $0x48] sm:$0xf] %v898
                %v900 = vld [vmem:[%s878 + $0x28] sm:$0xf]
                %901 = vst [vmem:[%s879 + $0x50] sm:$0xf] %v900
                %v902 = vld [vmem:[%s878 + $0x2c] sm:$0xf]
                %903 = vst [vmem:[%s879 + $0x58] sm:$0xf] %v902
                %v904 = vld [vmem:[%s878 + $0x30] sm:$0xf]
                %905 = vst [vmem:[%s879 + $0x60] sm:$0xf] %v904
                %v906 = vld [vmem:[%s878 + $0x34] sm:$0xf]
                %907 = vst [vmem:[%s879 + $0x68] sm:$0xf] %v906
                %v908 = vld [vmem:[%s878 + $0x38] sm:$0xf]
                %909 = vst [vmem:[%s879 + $0x70] sm:$0xf] %v908
                %v910 = vld [vmem:[%s878 + $0x3c] sm:$0xf]
                %911 = vst [vmem:[%s879 + $0x78] sm:$0xf] %v910
              $region102: #{deeplab_cls_forward_test.14} parent=96 // loop_footer
                %s877 = sadd.s32 1, %s873
              $region103: #{deeplab_cls_forward_test.14} parent=96 // loop_footer_branch
                %872 = sbr.rel target = $region99
              $region104: #{deeplab_cls_forward_test.14} parent=96 // loop_exit
                _
            $region97: #{deeplab_cls_forward_test.14} parent=88 // pred_fallthru
              _
          $region89: #{deeplab_cls_forward_test.14} parent=84 // pred_fallthru
            _
          %963 = vnop
        $region85: #{deeplab_cls_forward_test.14} parent=68 // pred_fallthru
          _
      $region69: #{deeplab_cls_forward_test.14} parent=5 // pred_fallthru
        _
      %p964 = scmp.le.s32.totalorder 2, %s9
      // Predicated region
      $region123: #{deeplab_cls_forward_test.14} parent=5 // pred_check
        %p965 = pneg %p964
      $region124: #{deeplab_cls_forward_test.14} parent=5 // pred_check_branch
        %967 = sbr.rel (%p965) target = $region126
      $region125: #{deeplab_cls_forward_test.14} parent=5 // pred_region
        %s968 = ssub.s32 %s9, 2
        // Predicated region
        $region127: #{deeplab_cls_forward_test.14} parent=125 // pred_check
          %p969 = pneg %p141
        $region128: #{deeplab_cls_forward_test.14} parent=125 // pred_check_branch
          %971 = sbr.rel (%p969) target = $region130
        $region129: #{deeplab_cls_forward_test.14} parent=125 // pred_region
          %s972 = sand.u32 %s126, 1
          %s973 = sand.u32 %s126, 1
          %s974 = smul.addr %s973, 64
          %s975 = scalar_lea.vmem [#allocation4], %s974
        $region130: #{deeplab_cls_forward_test.14} parent=125 // pred_fallthru
          _
      $region126: #{deeplab_cls_forward_test.14} parent=5 // pred_fallthru
        _
    $region6: #{deeplab_cls_forward_test.14} parent=1 // loop_footer
      %s13 = sadd.s32 1, %s9
    $region7: #{deeplab_cls_forward_test.14} parent=1 // loop_footer_branch
      %8 = sbr.rel target = $region3
    $region8: #{deeplab_cls_forward_test.14} parent=1 // loop_exit
      _

// kernel: deeplab_cls_forward_test.16
$region0: #{deeplab_cls_forward_test.16}
  #allocation0 [shape = 'u32[]', space=smem, size = 0x4, offset = 0x4, fixed_abs, tag = 'smem constant byte address 0x4 - core index']
  #allocation1 [shape = 'u32[144,128]{1,0:T(1,128)}', space=vmem, size = 0x12000, scoped, tag = 'internal scratch']
  #allocation2 [shape = 'f32[4,256]{1,0:T(4,128)}', space=vmem, size = 0x1000, scoped, tag = 'scratch operand']
  %s0 = inlined_call_operand.vmem [shape: bf16[2,28,28,128], index: 0, kind: input, shape index: {}]
  %s1 = inlined_call_operand.vmem [shape: bf16[3,3,128,256], index: 1, kind: input, shape index: {}]
  %s2 = inlined_call_operand.vmem [shape: f32[1,256], index: 2, kind: input, shape index: {}]
  %s3 = inlined_call_operand.vmem [shape: bf16[2,4,4,256], index: 3, kind: output, shape index: {}]
  %s4 = sld [smem:[#allocation0]]
  $region53: #{deeplab_cls_forward_test.16} parent=0
    _
  %s6 = ssub.s32 1, %s4
  %s7 = scalar_select 0, %s6, %s4
  loop: start=0, step=1, limit=26
  $region2: #{deeplab_cls_forward_test.16} parent=0 // loop_pre_header
    _
  $region3: #{deeplab_cls_forward_test.16} parent=0 // loop_header
    %s9 = sphi 0, %s13
    %p10 = scmp.ge.s32.totalorder %s9, 26
    %s16 = sphi 0, %s42
    %s17 = sphi 0, %s38
    %s18 = sphi 0, %s34
    %s19 = sphi 0, %s30
    %s20 = sphi 0, %s16
    %s21 = sphi 0, %s17
    %s22 = sphi 0, %s18
    %s23 = sphi 0, %s19
    %s24 = sphi 0, %s20
    %s25 = sphi 0, %s21
    %s26 = sphi 0, %s22
    %s27 = sphi 0, %s23
    %s51 = sphi 0, %s53
    %s54 = sphi 0, %s51
    %s55 = sphi 0, %s54
    %s71 = sphi 0, %s55
    %s79 = sphi 0, %s81
    %s82 = sphi 0, %s79
    %s83 = sphi 0, %s82
    %s99 = sphi 0, %s83
    %s105 = sphi 0, %s107
    %s108 = sphi 0, %s105
    %s109 = sphi 0, %s108
    %s125 = sphi 0, %s109
    %s135 = sphi 0, %s137
    %s138 = sphi 0, %s135
    %s139 = sphi 0, %s138
    %s155 = sphi 0, %s139
  $region4: #{deeplab_cls_forward_test.16} parent=0 // loop_header_branch
    %12 = sbr.rel (%p10) target = $region8
  $region5: #{deeplab_cls_forward_test.16} parent=0 // loop_body
    %s14 = ssub.s32 %s9, 1
    %s15 = ssub.s32 %s9, 2
    %s28 = sadd.s32 1, %s19
    %p29 = scmp.ge.s32.totalorder %s28, 3
    %s30 = scalar_select %p29, 0, %s28
    %s31 = sadd.s32 1, %s18
    %s32 = scalar_select %p29, %s31, %s18
    %p33 = scmp.ge.s32.totalorder %s32, 1
    %s34 = scalar_select %p33, 0, %s32
    %s35 = sadd.s32 1, %s17
    %s36 = scalar_select %p33, %s35, %s17
    %p37 = scmp.ge.s32.totalorder %s36, 4
    %s38 = scalar_select %p37, 0, %s36
    %s39 = sadd.s32 1, %s16
    %s40 = scalar_select %p37, %s39, %s16
    %p41 = scmp.ge.s32.totalorder %s40, 2
    %s42 = scalar_select %p41, 0, %s40
    %s43 = smul.u32 %s19, 12
    %s44 = sadd.s32 %s17, %s43
    %s45 = smul.u32 %s30, 12
    %s46 = sadd.s32 %s38, %s45
    %s47 = ssub.s32 %s16, %s42
    %s48 = ssub.s32 %s44, %s46
    %s49 = sor.u32 %s47, %s48
    %p50 = scmp.eq.s32.totalorder %s49, 0
    %s52 = sadd.s32 %s51, 1
    %s53 = scalar_select %p50, %s51, %s52
    %p56 = pneg %p50
    %p57 = scmp.eq.s32.totalorder %s9, 23
    %p58 = por %p56, %p57
    %p59 = scmp.ne.s32.totalorder %s51, %s54
    %p60 = scmp.eq.s32.totalorder %s9, 0
    %p61 = por %p59, %p60
    %p62 = scmp.ne.s32.totalorder %s51, %s54
    %p63 = scmp.eq.s32.totalorder %s14, 23
    %p64 = por %p62, %p63
    %p65 = scmp.ne.s32.totalorder %s54, %s55
    %p66 = scmp.eq.s32.totalorder %s14, 0
    %p67 = por %p65, %p66
    %p68 = scmp.ne.s32.totalorder %s54, %s55
    %p69 = scmp.eq.s32.totalorder %s15, 23
    %p70 = por %p68, %p69
    %p72 = scmp.ne.s32.totalorder %s55, %s71
    %p73 = scmp.eq.s32.totalorder %s15, 0
    %p74 = por %p72, %p73
    %s75 = ssub.s32 %s19, %s30
    %s76 = ssub.s32 %s18, %s34
    %s77 = sor.u32 %s75, %s76
    %p78 = scmp.eq.s32.totalorder %s77, 0
    %s80 = sadd.s32 %s79, 1
    %s81 = scalar_select %p78, %s79, %s80
    %p84 = pneg %p78
    %p85 = scmp.eq.s32.totalorder %s9, 23
    %p86 = por %p84, %p85
    %p87 = scmp.ne.s32.totalorder %s79, %s82
    %p88 = scmp.eq.s32.totalorder %s9, 0
    %p89 = por %p87, %p88
    %p90 = scmp.ne.s32.totalorder %s79, %s82
    %p91 = scmp.eq.s32.totalorder %s14, 23
    %p92 = por %p90, %p91
    %p93 = scmp.ne.s32.totalorder %s82, %s83
    %p94 = scmp.eq.s32.totalorder %s14, 0
    %p95 = por %p93, %p94
    %p96 = scmp.ne.s32.totalorder %s82, %s83
    %p97 = scmp.eq.s32.totalorder %s15, 23
    %p98 = por %p96, %p97
    %p100 = scmp.ne.s32.totalorder %s83, %s99
    %p101 = scmp.eq.s32.totalorder %s15, 0
    %p102 = por %p100, %p101
    %s103 = ssub.s32 %s18, %s34
    %p104 = scmp.eq.s32.totalorder %s103, 0
    %s106 = sadd.s32 %s105, 1
    %s107 = scalar_select %p104, %s105, %s106
    %p110 = pneg %p104
    %p111 = scmp.eq.s32.totalorder %s9, 23
    %p112 = por %p110, %p111
    %p113 = scmp.ne.s32.totalorder %s105, %s108
    %p114 = scmp.eq.s32.totalorder %s9, 0
    %p115 = por %p113, %p114
    %p116 = scmp.ne.s32.totalorder %s105, %s108
    %p117 = scmp.eq.s32.totalorder %s14, 23
    %p118 = por %p116, %p117
    %p119 = scmp.ne.s32.totalorder %s108, %s109
    %p120 = scmp.eq.s32.totalorder %s14, 0
    %p121 = por %p119, %p120
    %p122 = scmp.ne.s32.totalorder %s108, %s109
    %p123 = scmp.eq.s32.totalorder %s15, 23
    %p124 = por %p122, %p123
    %p126 = scmp.ne.s32.totalorder %s109, %s125
    %p127 = scmp.eq.s32.totalorder %s15, 0
    %p128 = por %p126, %p127
    %s129 = ssub.s32 %s16, %s42
    %s130 = ssub.s32 %s17, %s38
    %s131 = sor.u32 %s129, %s130
    %s132 = ssub.s32 %s18, %s34
    %s133 = sor.u32 %s131, %s132
    %p134 = scmp.eq.s32.totalorder %s133, 0
    %s136 = sadd.s32 %s135, 1
    %s137 = scalar_select %p134, %s135, %s136
    %p140 = pneg %p134
    %p141 = scmp.eq.s32.totalorder %s9, 23
    %p142 = por %p140, %p141
    %p143 = scmp.ne.s32.totalorder %s135, %s138
    %p144 = scmp.eq.s32.totalorder %s9, 0
    %p145 = por %p143, %p144
    %p146 = scmp.ne.s32.totalorder %s135, %s138
    %p147 = scmp.eq.s32.totalorder %s14, 23
    %p148 = por %p146, %p147
    %p149 = scmp.ne.s32.totalorder %s138, %s139
    %p150 = scmp.eq.s32.totalorder %s14, 0
    %p151 = por %p149, %p150
    %p152 = scmp.ne.s32.totalorder %s138, %s139
    %p153 = scmp.eq.s32.totalorder %s15, 23
    %p154 = por %p152, %p153
    %p156 = scmp.ne.s32.totalorder %s139, %s155
    %p157 = scmp.eq.s32.totalorder %s15, 0
    %p158 = por %p156, %p157
    %p159 = scmp.le.s32.totalorder 1, %s9
    %p160 = scmp.lt.s32.totalorder %s9, 25
    %p161 = pnand %p159, %p160
    %p162 = pneg %p161
    // Predicated region
    $region9: #{deeplab_cls_forward_test.16} parent=5 // pred_check
      _
    $region10: #{deeplab_cls_forward_test.16} parent=5 // pred_check_branch
      %164 = sbr.rel (%p161) target = $region12
    $region11: #{deeplab_cls_forward_test.16} parent=5 // pred_region
      %s165 = ssub.s32 %s9, 1
      // Predicated region
      $region13: #{deeplab_cls_forward_test.16} parent=11 // pred_check
        %p166 = pneg %p121
      $region14: #{deeplab_cls_forward_test.16} parent=11 // pred_check_branch
        %168 = sbr.rel (%p166) target = $region16
      $region15: #{deeplab_cls_forward_test.16} parent=11 // pred_region
        %s169 = smul.u32 2, %s22
        %p170 = scmp.lt.s32.totalorder %s169, 1
        %s171 = scalar_select %p170, %s169, 1
        %s172 = scalar_lea.vmem %s2, %s171
        %s173 = smul.u32 2, %s22
      $region16: #{deeplab_cls_forward_test.16} parent=11 // pred_fallthru
        _
    $region12: #{deeplab_cls_forward_test.16} parent=5 // pred_fallthru
      _
    %p174 = scmp.lt.s32.totalorder %s9, 24
    // Predicated region
    $region17: #{deeplab_cls_forward_test.16} parent=5 // pred_check
      %p175 = pneg %p174
    $region18: #{deeplab_cls_forward_test.16} parent=5 // pred_check_branch
      %177 = sbr.rel (%p175) target = $region20
    $region19: #{deeplab_cls_forward_test.16} parent=5 // pred_region
      // Predicated region
      $region21: #{deeplab_cls_forward_test.16} parent=19 // pred_check
        %p178 = pneg %p61
      $region22: #{deeplab_cls_forward_test.16} parent=19 // pred_check_branch
        %180 = sbr.rel (%p178) target = $region24
      $region23: #{deeplab_cls_forward_test.16} parent=19 // pred_region
        %s181 = smul.u32 %s19, 12
        %s182 = sadd.s32 %s17, %s181
        %p183 = scmp.lt.s32.totalorder %s16, 1
        %s184 = scalar_select %p183, %s16, 1
        %p185 = scmp.lt.s32.totalorder %s182, 27
        %s186 = scalar_select %p185, %s182, 27
        %s187 = smul.addr %s186, 4
        %s188 = smul.addr %s184, 112
        %s189 = sadd.s32 %s187, %s188
        %s190 = smul.addr %s189, 4
        %s191 = scalar_lea.vmem %s0, %s190
        %s192 = smul.u32 %s19, 12
        %s193 = sadd.s32 %s17, %s192
      $region24: #{deeplab_cls_forward_test.16} parent=19 // pred_fallthru
        _
      // Predicated region
      $region25: #{deeplab_cls_forward_test.16} parent=19 // pred_check
        %p194 = pneg %p89
      $region26: #{deeplab_cls_forward_test.16} parent=19 // pred_check_branch
        %196 = sbr.rel (%p194) target = $region28
      $region27: #{deeplab_cls_forward_test.16} parent=19 // pred_region
        %s197 = smul.u32 2, %s18
        %p198 = scmp.lt.s32.totalorder %s19, 2
        %s199 = scalar_select %p198, %s19, 2
        %p200 = scmp.lt.s32.totalorder %s197, 1
        %s201 = scalar_select %p200, %s197, 1
        %s202 = smul.addr %s199, 96
        %s203 = sadd.s32 %s201, %s202
        %s204 = smul.addr %s203, 4
        %s205 = scalar_lea.vmem %s1, %s204
        %s206 = smul.u32 2, %s18
      $region28: #{deeplab_cls_forward_test.16} parent=19 // pred_fallthru
        _
    $region20: #{deeplab_cls_forward_test.16} parent=5 // pred_fallthru
      _
    %p207 = scmp.le.s32.totalorder 1, %s9
    %p208 = scmp.lt.s32.totalorder %s9, 25
    %p209 = pnand %p207, %p208
    %p210 = pneg %p209
    // Predicated region
    $region29: #{deeplab_cls_forward_test.16} parent=5 // pred_check
      _
    $region30: #{deeplab_cls_forward_test.16} parent=5 // pred_check_branch
      %212 = sbr.rel (%p209) target = $region32
    $region31: #{deeplab_cls_forward_test.16} parent=5 // pred_region
      %s213 = ssub.s32 %s9, 1
      %s214 = smul.u32 %s23, 12
      %s215 = sadd.s32 %s21, %s214
      %p216 = scmp.lt.s32.totalorder %s20, 1
      %s217 = scalar_select %p216, %s20, 1
      %p218 = scmp.lt.s32.totalorder %s215, 27
      %s219 = scalar_select %p218, %s215, 27
      %s220 = smul.addr %s219, 4
      %s221 = smul.addr %s217, 112
      %s222 = sadd.s32 %s220, %s221
      %s223 = smul.addr %s222, 4
      %s224 = scalar_lea.vmem %s0, %s223
      %p225 = pneg %p67
      %p226 = pneg %p64
      %s227 = smul.u32 2, %s22
      %p228 = scmp.lt.s32.totalorder %s23, 2
      %s229 = scalar_select %p228, %s23, 2
      %p230 = scmp.lt.s32.totalorder %s227, 1
      %s231 = scalar_select %p230, %s227, 1
      %s232 = smul.addr %s229, 96
      %s233 = sadd.s32 %s231, %s232
      %s234 = smul.addr %s233, 4
      %s235 = scalar_lea.vmem %s1, %s234
      %p236 = pneg %p95
      %p237 = pneg %p92
      %s238 = smul.u32 2, %s22
      %p239 = scmp.lt.s32.totalorder %s238, 1
      %s240 = scalar_select %p239, %s238, 1
      %s241 = scalar_lea.vmem %s2, %s240
      %p242 = pneg %p121
      %p243 = pneg %p118
      %p244 = pneg %p151
      %p245 = pneg %p148
      %s246 = smul.u32 2, %s22
      %p247 = scmp.lt.s32.totalorder %s20, 1
      %s248 = scalar_select %p247, %s20, 1
      %p249 = scmp.lt.s32.totalorder %s21, 3
      %s250 = scalar_select %p249, %s21, 3
      %p251 = scmp.lt.s32.totalorder %s246, 1
      %s252 = scalar_select %p251, %s246, 1
      %s253 = smul.addr %s250, 2
      %s254 = sadd.s32 %s252, %s253
      %s255 = smul.addr %s248, 8
      %s256 = sadd.s32 %s254, %s255
      %s257 = smul.addr %s256, 2
      %s258 = scalar_lea.vmem %s3, %s257
      %s259 = smul.u32 %s23, 12
      %s260 = sadd.s32 %s21, %s259
      %p261 = scmp.lt.s32.totalorder %s20, 1
      %s262 = scalar_select %p261, %s20, 1
      %p263 = scmp.lt.s32.totalorder %s260, 27
      %s264 = scalar_select %p263, %s260, 27
      %s265 = smul.addr %s264, 4
      %s266 = smul.addr %s262, 112
      %s267 = sadd.s32 %s265, %s266
      %s268 = smul.addr %s267, 4
      %s269 = scalar_lea.vmem %s0, %s268
      %s270 = smul.u32 %s23, 12
      %s271 = sadd.s32 %s21, %s270
      %s272 = smul.u32 2, %s22
      %p273 = scmp.lt.s32.totalorder %s23, 2
      %s274 = scalar_select %p273, %s23, 2
      %p275 = scmp.lt.s32.totalorder %s272, 1
      %s276 = scalar_select %p275, %s272, 1
      %s277 = smul.addr %s274, 96
      %s278 = sadd.s32 %s276, %s277
      %s279 = smul.addr %s278, 4
      %s280 = scalar_lea.vmem %s1, %s279
      %s281 = smul.u32 2, %s22
      %s282 = smul.u32 2, %s22
      %p283 = scmp.lt.s32.totalorder %s282, 1
      %s284 = scalar_select %p283, %s282, 1
      %s285 = scalar_lea.vmem %s2, %s284
      %s286 = smul.u32 2, %s22
      %s287 = smul.u32 2, %s22
      %p288 = scmp.lt.s32.totalorder %s20, 1
      %s289 = scalar_select %p288, %s20, 1
      %p290 = scmp.lt.s32.totalorder %s21, 3
      %s291 = scalar_select %p290, %s21, 3
      %p292 = scmp.lt.s32.totalorder %s287, 1
      %s293 = scalar_select %p292, %s287, 1
      %s294 = smul.addr %s291, 2
      %s295 = sadd.s32 %s293, %s294
      %s296 = smul.addr %s289, 8
      %s297 = sadd.s32 %s295, %s296
      %s298 = smul.addr %s297, 2
      %s299 = scalar_lea.vmem %s3, %s298
      %s300 = smul.u32 2, %s22
      %p302 = scmp.eq.s32.totalorder %s23, 0
      // Predicated region
      $region33: #{deeplab_cls_forward_test.16} parent=31 // pred_check
        %p303 = pneg %p302
      $region34: #{deeplab_cls_forward_test.16} parent=31 // pred_check_branch
        %305 = sbr.rel (%p303) target = $region36
      $region35: #{deeplab_cls_forward_test.16} parent=31 // pred_region
        %306 = vst [vmem:[#allocation2] sm:$0xff] 0.0
      $region36: #{deeplab_cls_forward_test.16} parent=31 // pred_fallthru
        _
      %v307 = vld [vmem:[%s269] sm:$0x3]
      %v308 = vld [vmem:[#allocation2] sm:$0xff]
      %v309 = vld [vmem:[%s280] sm:$0xff]
      %v310 = vld [vmem:[%s280 + $0x8] sm:$0xff]
      %v311 = vld [vmem:[%s280 + $0x10] sm:$0xff]
      %v312 = vld [vmem:[%s280 + $0x18] sm:$0xff]
      %v313 = vld [vmem:[%s280 + $0x20] sm:$0xff]
      %v314 = vld [vmem:[%s280 + $0x28] sm:$0xff]
      %v315 = vld [vmem:[%s280 + $0x30] sm:$0xff]
      %v316 = vld [vmem:[%s280 + $0x38] sm:$0xff]
      %v317 = vld [vmem:[%s280 + $0x40] sm:$0xff]
      %v318 = vld [vmem:[%s280 + $0x48] sm:$0xff]
      %v319 = vld [vmem:[%s280 + $0x50] sm:$0xff]
      %v320 = vld [vmem:[%s280 + $0x58] sm:$0xff]
      %v321 = vld [vmem:[%s280 + $0x60] sm:$0xff]
      %v322 = vld [vmem:[%s280 + $0x68] sm:$0xff]
      %v323 = vld [vmem:[%s280 + $0x70] sm:$0xff]
      %v324 = vld [vmem:[%s280 + $0x78] sm:$0xff]
      %v341 = vunpack.c.l.b16 %v309
      %v342 = vunpack.c.h.b16 %v309
      %v343 = vunpack.c.l.b16 %v310
      %v344 = vunpack.c.h.b16 %v310
      %v345 = vunpack.c.l.b16 %v311
      %v346 = vunpack.c.h.b16 %v311
      %v347 = vunpack.c.l.b16 %v312
      %v348 = vunpack.c.h.b16 %v312
      %v349 = vunpack.c.l.b16 %v313
      %v350 = vunpack.c.h.b16 %v313
      %v351 = vunpack.c.l.b16 %v314
      %v352 = vunpack.c.h.b16 %v314
      %v353 = vunpack.c.l.b16 %v315
      %v354 = vunpack.c.h.b16 %v315
      %v355 = vunpack.c.l.b16 %v316
      %v356 = vunpack.c.h.b16 %v316
      %v357 = vunpack.c.l.b16 %v317
      %v358 = vunpack.c.h.b16 %v317
      %v359 = vunpack.c.l.b16 %v318
      %v360 = vunpack.c.h.b16 %v318
      %v361 = vunpack.c.l.b16 %v319
      %v362 = vunpack.c.h.b16 %v319
      %v363 = vunpack.c.l.b16 %v320
      %v364 = vunpack.c.h.b16 %v320
      %v365 = vunpack.c.l.b16 %v321
      %v366 = vunpack.c.h.b16 %v321
      %v367 = vunpack.c.l.b16 %v322
      %v368 = vunpack.c.h.b16 %v322
      %v369 = vunpack.c.l.b16 %v323
      %v370 = vunpack.c.h.b16 %v323
      %v371 = vunpack.c.l.b16 %v324
      %v372 = vunpack.c.h.b16 %v324
      %v373 = vpack.c.b16 %v343, %v341
      %v374 = vpack.c.b16 %v344, %v342
      %v375 = vpack.c.b16 %v347, %v345
      %v376 = vpack.c.b16 %v348, %v346
      %v377 = vpack.c.b16 %v351, %v349
      %v378 = vpack.c.b16 %v352, %v350
      %v379 = vpack.c.b16 %v355, %v353
      %v380 = vpack.c.b16 %v356, %v354
      %v381 = vpack.c.b16 %v359, %v357
      %v382 = vpack.c.b16 %v360, %v358
      %v383 = vpack.c.b16 %v363, %v361
      %v384 = vpack.c.b16 %v364, %v362
      %v385 = vpack.c.b16 %v367, %v365
      %v386 = vpack.c.b16 %v368, %v366
      %v387 = vpack.c.b16 %v371, %v369
      %v388 = vpack.c.b16 %v372, %v370
      %405 = vmatprep.subr.bf16.mxu0 %v374
      %406 = vmatpush1.bf16.msra.mxu0 %v373
      %407 = vmatprep.subr.bf16.mxu0 %v376
      %408 = vmatpush1.bf16.msra.mxu0 %v375
      %409 = vmatprep.subr.bf16.mxu0 %v378
      %410 = vmatpush1.bf16.msra.mxu0 %v377
      %411 = vmatprep.subr.bf16.mxu0 %v380
      %412 = vmatpush1.bf16.msra.mxu0 %v379
      %413 = vmatprep.subr.bf16.mxu0 %v382
      %414 = vmatpush1.bf16.msra.mxu0 %v381
      %415 = vmatprep.subr.bf16.mxu0 %v384
      %416 = vmatpush1.bf16.msra.mxu0 %v383
      %417 = vmatprep.subr.bf16.mxu0 %v386
      %418 = vmatpush1.bf16.msra.mxu0 %v385
      %419 = vmatprep.subr.bf16.mxu0 %v388
      %420 = vmatpush1.bf16.msra.mxu0 %v387
      %421 = vmatprep.subr.bf16.mxu0 0
      %422 = vmatpush1.bf16.msra.mxu0 0
      %423 = vmatprep.subr.bf16.mxu0 0
      %424 = vmatpush1.bf16.msra.mxu0 0
      %425 = vmatprep.subr.bf16.mxu0 0
      %426 = vmatpush1.bf16.msra.mxu0 0
      %427 = vmatprep.subr.bf16.mxu0 0
      %428 = vmatpush1.bf16.msra.mxu0 0
      %429 = vmatprep.subr.bf16.mxu0 0
      %430 = vmatpush1.bf16.msra.mxu0 0
      %431 = vmatprep.subr.bf16.mxu0 0
      %432 = vmatpush1.bf16.msra.mxu0 0
      %433 = vmatprep.subr.bf16.mxu0 0
      %434 = vmatpush1.bf16.msra.mxu0 0
      %435 = vmatprep.subr.bf16.mxu0 0
      %436 = vmatpush1.bf16.msra.mxu0 0
      %437 = vmatprep.mubr.bf16.mxu0 0
      %438 = vmatmul.mubr.bf16.gmra.mrb[0].mxu0 %v307
      %v439 = vpop.f32.mrb[0].mxu0
      %v440 = vadd.f32 0.0, %v439
      %v441 = vpop.f32.mrb[0].mxu0
      %v442 = vadd.f32 0.0, %v441
      %v443 = vpop.f32.mrb[0].mxu0
      %v444 = vpop.f32.mrb[0].mxu0
      %445 = vdwg.mxu0
      %v448 = vcombine.low %v440, %v442
      %v450 = vadd.f32 %v308, %v448
      %451 = vst [vmem:[#allocation2] sm:$0xff] %v450
      %v452 = vld [vmem:[%s269 + $0x4] sm:$0xc]
      %v453 = vld [vmem:[#allocation2] sm:$0xff]
      %s454 = scalar_lea.vmem %s280, 128
      %v455 = vld [vmem:[%s454] sm:$0xff]
      %v456 = vld [vmem:[%s454 + $0x8] sm:$0xff]
      %v457 = vld [vmem:[%s454 + $0x10] sm:$0xff]
      %v458 = vld [vmem:[%s454 + $0x18] sm:$0xff]
      %v459 = vld [vmem:[%s454 + $0x20] sm:$0xff]
      %v460 = vld [vmem:[%s454 + $0x28] sm:$0xff]
      %v461 = vld [vmem:[%s454 + $0x30] sm:$0xff]
      %v462 = vld [vmem:[%s454 + $0x38] sm:$0xff]
      %v463 = vld [vmem:[%s454 + $0x40] sm:$0xff]
      %v464 = vld [vmem:[%s454 + $0x48] sm:$0xff]
      %v465 = vld [vmem:[%s454 + $0x50] sm:$0xff]
      %v466 = vld [vmem:[%s454 + $0x58] sm:$0xff]
      %v467 = vld [vmem:[%s454 + $0x60] sm:$0xff]
      %v468 = vld [vmem:[%s454 + $0x68] sm:$0xff]
      %v469 = vld [vmem:[%s454 + $0x70] sm:$0xff]
      %v470 = vld [vmem:[%s454 + $0x78] sm:$0xff]
      %v472 = vunpack.c.l.b16 %v452
      %v473 = vpack.c.b16 %v472, %v472
      %v474 = vrot.slane %v473, 2
      %v492 = vunpack.c.l.b16 %v455
      %v493 = vunpack.c.h.b16 %v455
      %v494 = vunpack.c.l.b16 %v456
      %v495 = vunpack.c.h.b16 %v456
      %v496 = vunpack.c.l.b16 %v457
      %v497 = vunpack.c.h.b16 %v457
      %v498 = vunpack.c.l.b16 %v458
      %v499 = vunpack.c.h.b16 %v458
      %v500 = vunpack.c.l.b16 %v459
      %v501 = vunpack.c.h.b16 %v459
      %v502 = vunpack.c.l.b16 %v460
      %v503 = vunpack.c.h.b16 %v460
      %v504 = vunpack.c.l.b16 %v461
      %v505 = vunpack.c.h.b16 %v461
      %v506 = vunpack.c.l.b16 %v462
      %v507 = vunpack.c.h.b16 %v462
      %v508 = vunpack.c.l.b16 %v463
      %v509 = vunpack.c.h.b16 %v463
      %v510 = vunpack.c.l.b16 %v464
      %v511 = vunpack.c.h.b16 %v464
      %v512 = vunpack.c.l.b16 %v465
      %v513 = vunpack.c.h.b16 %v465
      %v514 = vunpack.c.l.b16 %v466
      %v515 = vunpack.c.h.b16 %v466
      %v516 = vunpack.c.l.b16 %v467
      %v517 = vunpack.c.h.b16 %v467
      %v518 = vunpack.c.l.b16 %v468
      %v519 = vunpack.c.h.b16 %v468
      %v520 = vunpack.c.l.b16 %v469
      %v521 = vunpack.c.h.b16 %v469
      %v522 = vunpack.c.l.b16 %v470
      %v523 = vunpack.c.h.b16 %v470
      %v524 = vpack.c.b16 %v494, %v492
      %v525 = vpack.c.b16 %v495, %v493
      %v526 = vpack.c.b16 %v498, %v496
      %v527 = vpack.c.b16 %v499, %v497
      %v528 = vpack.c.b16 %v502, %v500
      %v529 = vpack.c.b16 %v503, %v501
      %v530 = vpack.c.b16 %v506, %v504
      %v531 = vpack.c.b16 %v507, %v505
      %v532 = vpack.c.b16 %v510, %v508
      %v533 = vpack.c.b16 %v511, %v509
      %v534 = vpack.c.b16 %v514, %v512
      %v535 = vpack.c.b16 %v515, %v513
      %v536 = vpack.c.b16 %v518, %v516
      %v537 = vpack.c.b16 %v519, %v517
      %v538 = vpack.c.b16 %v522, %v520
      %v539 = vpack.c.b16 %v523, %v521
      %556 = vmatprep.subr.bf16.mxu0 %v525
      %557 = vmatpush1.bf16.msra.mxu0 %v524
      %558 = vmatprep.subr.bf16.mxu0 %v527
      %559 = vmatpush1.bf16.msra.mxu0 %v526
      %560 = vmatprep.subr.bf16.mxu0 %v529
      %561 = vmatpush1.bf16.msra.mxu0 %v528
      %562 = vmatprep.subr.bf16.mxu0 %v531
      %563 = vmatpush1.bf16.msra.mxu0 %v530
      %564 = vmatprep.subr.bf16.mxu0 %v533
      %565 = vmatpush1.bf16.msra.mxu0 %v532
      %566 = vmatprep.subr.bf16.mxu0 %v535
      %567 = vmatpush1.bf16.msra.mxu0 %v534
      %568 = vmatprep.subr.bf16.mxu0 %v537
      %569 = vmatpush1.bf16.msra.mxu0 %v536
      %570 = vmatprep.subr.bf16.mxu0 %v539
      %571 = vmatpush1.bf16.msra.mxu0 %v538
      %572 = vmatprep.subr.bf16.mxu0 0
      %573 = vmatpush1.bf16.msra.mxu0 0
      %574 = vmatprep.subr.bf16.mxu0 0
      %575 = vmatpush1.bf16.msra.mxu0 0
      %576 = vmatprep.subr.bf16.mxu0 0
      %577 = vmatpush1.bf16.msra.mxu0 0
      %578 = vmatprep.subr.bf16.mxu0 0
      %579 = vmatpush1.bf16.msra.mxu0 0
      %580 = vmatprep.subr.bf16.mxu0 0
      %581 = vmatpush1.bf16.msra.mxu0 0
      %582 = vmatprep.subr.bf16.mxu0 0
      %583 = vmatpush1.bf16.msra.mxu0 0
      %584 = vmatprep.subr.bf16.mxu0 0
      %585 = vmatpush1.bf16.msra.mxu0 0
      %586 = vmatprep.subr.bf16.mxu0 0
      %587 = vmatpush1.bf16.msra.mxu0 0
      %588 = vmatprep.mubr.bf16.mxu0 0
      %589 = vmatmul.mubr.bf16.gmra.mrb[0].mxu0 %v474
      %v590 = vpop.f32.mrb[0].mxu0
      %v591 = vadd.f32 0.0, %v590
      %v592 = vpop.f32.mrb[0].mxu0
      %v593 = vadd.f32 0.0, %v592
      %v594 = vpop.f32.mrb[0].mxu0
      %v595 = vpop.f32.mrb[0].mxu0
      %596 = vdwg.mxu0
      %v599 = vcombine.low %v591, %v593
      %v601 = vadd.f32 %v453, %v599
      %602 = vst [vmem:[#allocation2] sm:$0xff] %v601
      %v603 = vld [vmem:[%s269 + $0xc] sm:$0x3]
      %v604 = vld [vmem:[#allocation2] sm:$0xff]
      %s605 = scalar_lea.vmem %s280, 256
      %v606 = vld [vmem:[%s605] sm:$0xff]
      %v607 = vld [vmem:[%s605 + $0x8] sm:$0xff]
      %v608 = vld [vmem:[%s605 + $0x10] sm:$0xff]
      %v609 = vld [vmem:[%s605 + $0x18] sm:$0xff]
      %v610 = vld [vmem:[%s605 + $0x20] sm:$0xff]
      %v611 = vld [vmem:[%s605 + $0x28] sm:$0xff]
      %v612 = vld [vmem:[%s605 + $0x30] sm:$0xff]
      %v613 = vld [vmem:[%s605 + $0x38] sm:$0xff]
      %v614 = vld [vmem:[%s605 + $0x40] sm:$0xff]
      %v615 = vld [vmem:[%s605 + $0x48] sm:$0xff]
      %v616 = vld [vmem:[%s605 + $0x50] sm:$0xff]
      %v617 = vld [vmem:[%s605 + $0x58] sm:$0xff]
      %v618 = vld [vmem:[%s605 + $0x60] sm:$0xff]
      %v619 = vld [vmem:[%s605 + $0x68] sm:$0xff]
      %v620 = vld [vmem:[%s605 + $0x70] sm:$0xff]
      %v621 = vld [vmem:[%s605 + $0x78] sm:$0xff]
      %v638 = vunpack.c.l.b16 %v606
      %v639 = vunpack.c.h.b16 %v606
      %v640 = vunpack.c.l.b16 %v607
      %v641 = vunpack.c.h.b16 %v607
      %v642 = vunpack.c.l.b16 %v608
      %v643 = vunpack.c.h.b16 %v608
      %v644 = vunpack.c.l.b16 %v609
      %v645 = vunpack.c.h.b16 %v609
      %v646 = vunpack.c.l.b16 %v610
      %v647 = vunpack.c.h.b16 %v610
      %v648 = vunpack.c.l.b16 %v611
      %v649 = vunpack.c.h.b16 %v611
      %v650 = vunpack.c.l.b16 %v612
      %v651 = vunpack.c.h.b16 %v612
      %v652 = vunpack.c.l.b16 %v613
      %v653 = vunpack.c.h.b16 %v613
      %v654 = vunpack.c.l.b16 %v614
      %v655 = vunpack.c.h.b16 %v614
      %v656 = vunpack.c.l.b16 %v615
      %v657 = vunpack.c.h.b16 %v615
      %v658 = vunpack.c.l.b16 %v616
      %v659 = vunpack.c.h.b16 %v616
      %v660 = vunpack.c.l.b16 %v617
      %v661 = vunpack.c.h.b16 %v617
      %v662 = vunpack.c.l.b16 %v618
      %v663 = vunpack.c.h.b16 %v618
      %v664 = vunpack.c.l.b16 %v619
      %v665 = vunpack.c.h.b16 %v619
      %v666 = vunpack.c.l.b16 %v620
      %v667 = vunpack.c.h.b16 %v620
      %v668 = vunpack.c.l.b16 %v621
      %v669 = vunpack.c.h.b16 %v621
      %v670 = vpack.c.b16 %v640, %v638
      %v671 = vpack.c.b16 %v641, %v639
      %v672 = vpack.c.b16 %v644, %v642
      %v673 = vpack.c.b16 %v645, %v643
      %v674 = vpack.c.b16 %v648, %v646
      %v675 = vpack.c.b16 %v649, %v647
      %v676 = vpack.c.b16 %v652, %v650
      %v677 = vpack.c.b16 %v653, %v651
      %v678 = vpack.c.b16 %v656, %v654
      %v679 = vpack.c.b16 %v657, %v655
      %v680 = vpack.c.b16 %v660, %v658
      %v681 = vpack.c.b16 %v661, %v659
      %v682 = vpack.c.b16 %v664, %v662
      %v683 = vpack.c.b16 %v665, %v663
      %v684 = vpack.c.b16 %v668, %v666
      %v685 = vpack.c.b16 %v669, %v667
      %702 = vmatprep.subr.bf16.mxu0 %v671
      %703 = vmatpush1.bf16.msra.mxu0 %v670
      %704 = vmatprep.subr.bf16.mxu0 %v673
      %705 = vmatpush1.bf16.msra.mxu0 %v672
      %706 = vmatprep.subr.bf16.mxu0 %v675
      %707 = vmatpush1.bf16.msra.mxu0 %v674
      %708 = vmatprep.subr.bf16.mxu0 %v677
      %709 = vmatpush1.bf16.msra.mxu0 %v676
      %710 = vmatprep.subr.bf16.mxu0 %v679
      %711 = vmatpush1.bf16.msra.mxu0 %v678
      %712 = vmatprep.subr.bf16.mxu0 %v681
      %713 = vmatpush1.bf16.msra.mxu0 %v680
      %714 = vmatprep.subr.bf16.mxu0 %v683
      %715 = vmatpush1.bf16.msra.mxu0 %v682
      %716 = vmatprep.subr.bf16.mxu0 %v685
      %717 = vmatpush1.bf16.msra.mxu0 %v684
      %718 = vmatprep.subr.bf16.mxu0 0
      %719 = vmatpush1.bf16.msra.mxu0 0
      %720 = vmatprep.subr.bf16.mxu0 0
      %721 = vmatpush1.bf16.msra.mxu0 0
      %722 = vmatprep.subr.bf16.mxu0 0
      %723 = vmatpush1.bf16.msra.mxu0 0
      %724 = vmatprep.subr.bf16.mxu0 0
      %725 = vmatpush1.bf16.msra.mxu0 0
      %726 = vmatprep.subr.bf16.mxu0 0
      %727 = vmatpush1.bf16.msra.mxu0 0
      %728 = vmatprep.subr.bf16.mxu0 0
      %729 = vmatpush1.bf16.msra.mxu0 0
      %730 = vmatprep.subr.bf16.mxu0 0
      %731 = vmatpush1.bf16.msra.mxu0 0
      %732 = vmatprep.subr.bf16.mxu0 0
      %733 = vmatpush1.bf16.msra.mxu0 0
      %734 = vmatprep.mubr.bf16.mxu0 0
      %735 = vmatmul.mubr.bf16.gmra.mrb[0].mxu0 %v603
      %v736 = vpop.f32.mrb[0].mxu0
      %v737 = vadd.f32 0.0, %v736
      %v738 = vpop.f32.mrb[0].mxu0
      %v739 = vadd.f32 0.0, %v738
      %v740 = vpop.f32.mrb[0].mxu0
      %v741 = vpop.f32.mrb[0].mxu0
      %742 = vdwg.mxu0
      %v745 = vcombine.low %v737, %v739
      %v747 = vadd.f32 %v604, %v745
      %748 = vst [vmem:[#allocation2] sm:$0xff] %v747
      %p749 = scmp.eq.s32.totalorder %s23, 2
      // Predicated region
      $region37: #{deeplab_cls_forward_test.16} parent=31 // pred_check
        %p750 = pneg %p749
      $region38: #{deeplab_cls_forward_test.16} parent=31 // pred_check_branch
        %752 = sbr.rel (%p750) target = $region40
      $region39: #{deeplab_cls_forward_test.16} parent=31 // pred_region
        %v753 = vld [vmem:[#allocation2] sm:$0xff]
        %v754 = vld [vmem:[%s285] sm:$0x3]
        %v756 = vlaneseq
        %v757 = vshrl.u32 %v756, 7
        %v758 = vsub.s32 0, %v757
        %v759 = vrot.slane %v754, %v758
        %v760 = vlaneseq
        %v761 = vshrl.u32 %v760, 7
        %v762 = vsub.s32 1, %v761
        %v763 = vrot.slane %v754, %v762
        %v764 = vcombine.low %v759, %v763
        %v766 = vadd.f32 %v753, %v764
        %vm767 = vcmp.gt.f32.partialorder %v766, 0.0
        %v768 = vmin.f32 %v766, 0.0
        %v769 = vmul.f32 %v768, 1.442695
        %v770 = vpow.pop %v769
        %v771 = vsub.f32 %v770, 1.0
        %v772 = vsel %vm767, %v766, %v771
        %v774 = vcombine.high %v772, %v772
        %v776 = vpack.c.bf16 %v772, %v772
        %v777 = vpack.c.bf16 %v774, %v774
        %v780 = vcombine.low %v776, %v777
        %v782 = vunpack.c.l.s4 1983009808
        %v783 = vunpack.c.0.s8 %v782
        %v784 = vlaneseq
        %v785 = vshrl.u32 %v784, 7
        %v786 = vsub.s32 %v783, %v785
        %v787 = vrot.slane %v780, %v786
        %789 = vst [vmem:[%s299] sm:$0xf] %v787
      $region40: #{deeplab_cls_forward_test.16} parent=31 // pred_fallthru
        _
      %s790 = smul.u32 2, %s22
      %p791 = scmp.lt.s32.totalorder %s20, 1
      %s792 = scalar_select %p791, %s20, 1
      %p793 = scmp.lt.s32.totalorder %s21, 3
      %s794 = scalar_select %p793, %s21, 3
      %p795 = scmp.lt.s32.totalorder %s790, 1
      %s796 = scalar_select %p795, %s790, 1
      %s797 = smul.addr %s794, 2
      %s798 = sadd.s32 %s796, %s797
      %s799 = smul.addr %s792, 8
      %s800 = sadd.s32 %s798, %s799
      %s801 = smul.addr %s800, 2
      %s802 = scalar_lea.vmem %s3, %s801
      // Predicated region
      $region41: #{deeplab_cls_forward_test.16} parent=31 // pred_check
        %p803 = pneg %p148
      $region42: #{deeplab_cls_forward_test.16} parent=31 // pred_check_branch
        %805 = sbr.rel (%p803) target = $region44
      $region43: #{deeplab_cls_forward_test.16} parent=31 // pred_region
        %s806 = smul.u32 2, %s22
      $region44: #{deeplab_cls_forward_test.16} parent=31 // pred_fallthru
        _
    $region32: #{deeplab_cls_forward_test.16} parent=5 // pred_fallthru
      _
    %p807 = scmp.le.s32.totalorder 2, %s9
    // Predicated region
    $region45: #{deeplab_cls_forward_test.16} parent=5 // pred_check
      %p808 = pneg %p807
    $region46: #{deeplab_cls_forward_test.16} parent=5 // pred_check_branch
      %810 = sbr.rel (%p808) target = $region48
    $region47: #{deeplab_cls_forward_test.16} parent=5 // pred_region
      %s811 = ssub.s32 %s9, 2
      // Predicated region
      $region49: #{deeplab_cls_forward_test.16} parent=47 // pred_check
        %p812 = pneg %p154
      $region50: #{deeplab_cls_forward_test.16} parent=47 // pred_check_branch
        %814 = sbr.rel (%p812) target = $region52
      $region51: #{deeplab_cls_forward_test.16} parent=47 // pred_region
        %s815 = smul.u32 2, %s26
        %p816 = scmp.lt.s32.totalorder %s24, 1
        %s817 = scalar_select %p816, %s24, 1
        %p818 = scmp.lt.s32.totalorder %s25, 3
        %s819 = scalar_select %p818, %s25, 3
        %p820 = scmp.lt.s32.totalorder %s815, 1
        %s821 = scalar_select %p820, %s815, 1
        %s822 = smul.addr %s819, 2
        %s823 = sadd.s32 %s821, %s822
        %s824 = smul.addr %s817, 8
        %s825 = sadd.s32 %s823, %s824
        %s826 = smul.addr %s825, 2
        %s827 = scalar_lea.vmem %s3, %s826
      $region52: #{deeplab_cls_forward_test.16} parent=47 // pred_fallthru
        _
    $region48: #{deeplab_cls_forward_test.16} parent=5 // pred_fallthru
      _
  $region6: #{deeplab_cls_forward_test.16} parent=0 // loop_footer
    %s13 = sadd.s32 1, %s9
  $region7: #{deeplab_cls_forward_test.16} parent=0 // loop_footer_branch
    %8 = sbr.rel target = $region3
  $region8: #{deeplab_cls_forward_test.16} parent=0 // loop_exit
    _

// kernel: deeplab_cls_forward_test.17
$region0: #{deeplab_cls_forward_test.17}
  #allocation0 [shape = 'u32[]', space=smem, size = 0x4, offset = 0x4, fixed_abs, tag = 'smem constant byte address 0x4 - core index']
  #allocation1 [shape = 'u32[144,128]{1,0:T(1,128)}', space=vmem, size = 0x12000, scoped, tag = 'internal scratch']
  #allocation2 [shape = 'f32[4,256]{1,0:T(4,128)}', space=vmem, size = 0x1000, scoped, tag = 'scratch operand']
  %s0 = inlined_call_operand.vmem [shape: bf16[2,40,40,128], index: 0, kind: input, shape index: {}]
  %s1 = inlined_call_operand.vmem [shape: bf16[3,3,128,256], index: 1, kind: input, shape index: {}]
  %s2 = inlined_call_operand.vmem [shape: f32[1,256], index: 2, kind: input, shape index: {}]
  %s3 = inlined_call_operand.vmem [shape: bf16[2,4,4,256], index: 3, kind: output, shape index: {}]
  %s4 = sld [smem:[#allocation0]]
  $region53: #{deeplab_cls_forward_test.17} parent=0
    _
  %s6 = ssub.s32 1, %s4
  %s7 = scalar_select 0, %s6, %s4
  loop: start=0, step=1, limit=26
  $region2: #{deeplab_cls_forward_test.17} parent=0 // loop_pre_header
    _
  $region3: #{deeplab_cls_forward_test.17} parent=0 // loop_header
    %s9 = sphi 0, %s13
    %p10 = scmp.ge.s32.totalorder %s9, 26
    %s16 = sphi 0, %s42
    %s17 = sphi 0, %s38
    %s18 = sphi 0, %s34
    %s19 = sphi 0, %s30
    %s20 = sphi 0, %s16
    %s21 = sphi 0, %s17
    %s22 = sphi 0, %s18
    %s23 = sphi 0, %s19
    %s24 = sphi 0, %s20
    %s25 = sphi 0, %s21
    %s26 = sphi 0, %s22
    %s27 = sphi 0, %s23
    %s51 = sphi 0, %s53
    %s54 = sphi 0, %s51
    %s55 = sphi 0, %s54
    %s71 = sphi 0, %s55
    %s79 = sphi 0, %s81
    %s82 = sphi 0, %s79
    %s83 = sphi 0, %s82
    %s99 = sphi 0, %s83
    %s105 = sphi 0, %s107
    %s108 = sphi 0, %s105
    %s109 = sphi 0, %s108
    %s125 = sphi 0, %s109
    %s135 = sphi 0, %s137
    %s138 = sphi 0, %s135
    %s139 = sphi 0, %s138
    %s155 = sphi 0, %s139
  $region4: #{deeplab_cls_forward_test.17} parent=0 // loop_header_branch
    %12 = sbr.rel (%p10) target = $region8
  $region5: #{deeplab_cls_forward_test.17} parent=0 // loop_body
    %s14 = ssub.s32 %s9, 1
    %s15 = ssub.s32 %s9, 2
    %s28 = sadd.s32 1, %s19
    %p29 = scmp.ge.s32.totalorder %s28, 3
    %s30 = scalar_select %p29, 0, %s28
    %s31 = sadd.s32 1, %s18
    %s32 = scalar_select %p29, %s31, %s18
    %p33 = scmp.ge.s32.totalorder %s32, 1
    %s34 = scalar_select %p33, 0, %s32
    %s35 = sadd.s32 1, %s17
    %s36 = scalar_select %p33, %s35, %s17
    %p37 = scmp.ge.s32.totalorder %s36, 4
    %s38 = scalar_select %p37, 0, %s36
    %s39 = sadd.s32 1, %s16
    %s40 = scalar_select %p37, %s39, %s16
    %p41 = scmp.ge.s32.totalorder %s40, 2
    %s42 = scalar_select %p41, 0, %s40
    %s43 = smul.u32 %s19, 18
    %s44 = sadd.s32 %s17, %s43
    %s45 = smul.u32 %s30, 18
    %s46 = sadd.s32 %s38, %s45
    %s47 = ssub.s32 %s16, %s42
    %s48 = ssub.s32 %s44, %s46
    %s49 = sor.u32 %s47, %s48
    %p50 = scmp.eq.s32.totalorder %s49, 0
    %s52 = sadd.s32 %s51, 1
    %s53 = scalar_select %p50, %s51, %s52
    %p56 = pneg %p50
    %p57 = scmp.eq.s32.totalorder %s9, 23
    %p58 = por %p56, %p57
    %p59 = scmp.ne.s32.totalorder %s51, %s54
    %p60 = scmp.eq.s32.totalorder %s9, 0
    %p61 = por %p59, %p60
    %p62 = scmp.ne.s32.totalorder %s51, %s54
    %p63 = scmp.eq.s32.totalorder %s14, 23
    %p64 = por %p62, %p63
    %p65 = scmp.ne.s32.totalorder %s54, %s55
    %p66 = scmp.eq.s32.totalorder %s14, 0
    %p67 = por %p65, %p66
    %p68 = scmp.ne.s32.totalorder %s54, %s55
    %p69 = scmp.eq.s32.totalorder %s15, 23
    %p70 = por %p68, %p69
    %p72 = scmp.ne.s32.totalorder %s55, %s71
    %p73 = scmp.eq.s32.totalorder %s15, 0
    %p74 = por %p72, %p73
    %s75 = ssub.s32 %s19, %s30
    %s76 = ssub.s32 %s18, %s34
    %s77 = sor.u32 %s75, %s76
    %p78 = scmp.eq.s32.totalorder %s77, 0
    %s80 = sadd.s32 %s79, 1
    %s81 = scalar_select %p78, %s79, %s80
    %p84 = pneg %p78
    %p85 = scmp.eq.s32.totalorder %s9, 23
    %p86 = por %p84, %p85
    %p87 = scmp.ne.s32.totalorder %s79, %s82
    %p88 = scmp.eq.s32.totalorder %s9, 0
    %p89 = por %p87, %p88
    %p90 = scmp.ne.s32.totalorder %s79, %s82
    %p91 = scmp.eq.s32.totalorder %s14, 23
    %p92 = por %p90, %p91
    %p93 = scmp.ne.s32.totalorder %s82, %s83
    %p94 = scmp.eq.s32.totalorder %s14, 0
    %p95 = por %p93, %p94
    %p96 = scmp.ne.s32.totalorder %s82, %s83
    %p97 = scmp.eq.s32.totalorder %s15, 23
    %p98 = por %p96, %p97
    %p100 = scmp.ne.s32.totalorder %s83, %s99
    %p101 = scmp.eq.s32.totalorder %s15, 0
    %p102 = por %p100, %p101
    %s103 = ssub.s32 %s18, %s34
    %p104 = scmp.eq.s32.totalorder %s103, 0
    %s106 = sadd.s32 %s105, 1
    %s107 = scalar_select %p104, %s105, %s106
    %p110 = pneg %p104
    %p111 = scmp.eq.s32.totalorder %s9, 23
    %p112 = por %p110, %p111
    %p113 = scmp.ne.s32.totalorder %s105, %s108
    %p114 = scmp.eq.s32.totalorder %s9, 0
    %p115 = por %p113, %p114
    %p116 = scmp.ne.s32.totalorder %s105, %s108
    %p117 = scmp.eq.s32.totalorder %s14, 23
    %p118 = por %p116, %p117
    %p119 = scmp.ne.s32.totalorder %s108, %s109
    %p120 = scmp.eq.s32.totalorder %s14, 0
    %p121 = por %p119, %p120
    %p122 = scmp.ne.s32.totalorder %s108, %s109
    %p123 = scmp.eq.s32.totalorder %s15, 23
    %p124 = por %p122, %p123
    %p126 = scmp.ne.s32.totalorder %s109, %s125
    %p127 = scmp.eq.s32.totalorder %s15, 0
    %p128 = por %p126, %p127
    %s129 = ssub.s32 %s16, %s42
    %s130 = ssub.s32 %s17, %s38
    %s131 = sor.u32 %s129, %s130
    %s132 = ssub.s32 %s18, %s34
    %s133 = sor.u32 %s131, %s132
    %p134 = scmp.eq.s32.totalorder %s133, 0
    %s136 = sadd.s32 %s135, 1
    %s137 = scalar_select %p134, %s135, %s136
    %p140 = pneg %p134
    %p141 = scmp.eq.s32.totalorder %s9, 23
    %p142 = por %p140, %p141
    %p143 = scmp.ne.s32.totalorder %s135, %s138
    %p144 = scmp.eq.s32.totalorder %s9, 0
    %p145 = por %p143, %p144
    %p146 = scmp.ne.s32.totalorder %s135, %s138
    %p147 = scmp.eq.s32.totalorder %s14, 23
    %p148 = por %p146, %p147
    %p149 = scmp.ne.s32.totalorder %s138, %s139
    %p150 = scmp.eq.s32.totalorder %s14, 0
    %p151 = por %p149, %p150
    %p152 = scmp.ne.s32.totalorder %s138, %s139
    %p153 = scmp.eq.s32.totalorder %s15, 23
    %p154 = por %p152, %p153
    %p156 = scmp.ne.s32.totalorder %s139, %s155
    %p157 = scmp.eq.s32.totalorder %s15, 0
    %p158 = por %p156, %p157
    %p159 = scmp.le.s32.totalorder 1, %s9
    %p160 = scmp.lt.s32.totalorder %s9, 25
    %p161 = pnand %p159, %p160
    %p162 = pneg %p161
    // Predicated region
    $region9: #{deeplab_cls_forward_test.17} parent=5 // pred_check
      _
    $region10: #{deeplab_cls_forward_test.17} parent=5 // pred_check_branch
      %164 = sbr.rel (%p161) target = $region12
    $region11: #{deeplab_cls_forward_test.17} parent=5 // pred_region
      %s165 = ssub.s32 %s9, 1
      // Predicated region
      $region13: #{deeplab_cls_forward_test.17} parent=11 // pred_check
        %p166 = pneg %p121
      $region14: #{deeplab_cls_forward_test.17} parent=11 // pred_check_branch
        %168 = sbr.rel (%p166) target = $region16
      $region15: #{deeplab_cls_forward_test.17} parent=11 // pred_region
        %s169 = smul.u32 2, %s22
        %p170 = scmp.lt.s32.totalorder %s169, 1
        %s171 = scalar_select %p170, %s169, 1
        %s172 = scalar_lea.vmem %s2, %s171
        %s173 = smul.u32 2, %s22
      $region16: #{deeplab_cls_forward_test.17} parent=11 // pred_fallthru
        _
    $region12: #{deeplab_cls_forward_test.17} parent=5 // pred_fallthru
      _
    %p174 = scmp.lt.s32.totalorder %s9, 24
    // Predicated region
    $region17: #{deeplab_cls_forward_test.17} parent=5 // pred_check
      %p175 = pneg %p174
    $region18: #{deeplab_cls_forward_test.17} parent=5 // pred_check_branch
      %177 = sbr.rel (%p175) target = $region20
    $region19: #{deeplab_cls_forward_test.17} parent=5 // pred_region
      // Predicated region
      $region21: #{deeplab_cls_forward_test.17} parent=19 // pred_check
        %p178 = pneg %p61
      $region22: #{deeplab_cls_forward_test.17} parent=19 // pred_check_branch
        %180 = sbr.rel (%p178) target = $region24
      $region23: #{deeplab_cls_forward_test.17} parent=19 // pred_region
        %s181 = smul.u32 %s19, 18
        %s182 = sadd.s32 %s17, %s181
        %p183 = scmp.lt.s32.totalorder %s16, 1
        %s184 = scalar_select %p183, %s16, 1
        %p185 = scmp.lt.s32.totalorder %s182, 39
        %s186 = scalar_select %p185, %s182, 39
        %s187 = smul.addr %s186, 5
        %s188 = smul.addr %s184, 200
        %s189 = sadd.s32 %s187, %s188
        %s190 = smul.addr %s189, 4
        %s191 = scalar_lea.vmem %s0, %s190
        %s192 = smul.u32 %s19, 18
        %s193 = sadd.s32 %s17, %s192
      $region24: #{deeplab_cls_forward_test.17} parent=19 // pred_fallthru
        _
      // Predicated region
      $region25: #{deeplab_cls_forward_test.17} parent=19 // pred_check
        %p194 = pneg %p89
      $region26: #{deeplab_cls_forward_test.17} parent=19 // pred_check_branch
        %196 = sbr.rel (%p194) target = $region28
      $region27: #{deeplab_cls_forward_test.17} parent=19 // pred_region
        %s197 = smul.u32 2, %s18
        %p198 = scmp.lt.s32.totalorder %s19, 2
        %s199 = scalar_select %p198, %s19, 2
        %p200 = scmp.lt.s32.totalorder %s197, 1
        %s201 = scalar_select %p200, %s197, 1
        %s202 = smul.addr %s199, 96
        %s203 = sadd.s32 %s201, %s202
        %s204 = smul.addr %s203, 4
        %s205 = scalar_lea.vmem %s1, %s204
        %s206 = smul.u32 2, %s18
      $region28: #{deeplab_cls_forward_test.17} parent=19 // pred_fallthru
        _
    $region20: #{deeplab_cls_forward_test.17} parent=5 // pred_fallthru
      _
    %p207 = scmp.le.s32.totalorder 1, %s9
    %p208 = scmp.lt.s32.totalorder %s9, 25
    %p209 = pnand %p207, %p208
    %p210 = pneg %p209
    // Predicated region
    $region29: #{deeplab_cls_forward_test.17} parent=5 // pred_check
      _
    $region30: #{deeplab_cls_forward_test.17} parent=5 // pred_check_branch
      %212 = sbr.rel (%p209) target = $region32
    $region31: #{deeplab_cls_forward_test.17} parent=5 // pred_region
      %s213 = ssub.s32 %s9, 1
      %s214 = smul.u32 %s23, 18
      %s215 = sadd.s32 %s21, %s214
      %p216 = scmp.lt.s32.totalorder %s20, 1
      %s217 = scalar_select %p216, %s20, 1
      %p218 = scmp.lt.s32.totalorder %s215, 39
      %s219 = scalar_select %p218, %s215, 39
      %s220 = smul.addr %s219, 5
      %s221 = smul.addr %s217, 200
      %s222 = sadd.s32 %s220, %s221
      %s223 = smul.addr %s222, 4
      %s224 = scalar_lea.vmem %s0, %s223
      %p225 = pneg %p67
      %p226 = pneg %p64
      %s227 = smul.u32 2, %s22
      %p228 = scmp.lt.s32.totalorder %s23, 2
      %s229 = scalar_select %p228, %s23, 2
      %p230 = scmp.lt.s32.totalorder %s227, 1
      %s231 = scalar_select %p230, %s227, 1
      %s232 = smul.addr %s229, 96
      %s233 = sadd.s32 %s231, %s232
      %s234 = smul.addr %s233, 4
      %s235 = scalar_lea.vmem %s1, %s234
      %p236 = pneg %p95
      %p237 = pneg %p92
      %s238 = smul.u32 2, %s22
      %p239 = scmp.lt.s32.totalorder %s238, 1
      %s240 = scalar_select %p239, %s238, 1
      %s241 = scalar_lea.vmem %s2, %s240
      %p242 = pneg %p121
      %p243 = pneg %p118
      %p244 = pneg %p151
      %p245 = pneg %p148
      %s246 = smul.u32 2, %s22
      %p247 = scmp.lt.s32.totalorder %s20, 1
      %s248 = scalar_select %p247, %s20, 1
      %p249 = scmp.lt.s32.totalorder %s21, 3
      %s250 = scalar_select %p249, %s21, 3
      %p251 = scmp.lt.s32.totalorder %s246, 1
      %s252 = scalar_select %p251, %s246, 1
      %s253 = smul.addr %s250, 2
      %s254 = sadd.s32 %s252, %s253
      %s255 = smul.addr %s248, 8
      %s256 = sadd.s32 %s254, %s255
      %s257 = smul.addr %s256, 2
      %s258 = scalar_lea.vmem %s3, %s257
      %s259 = smul.u32 %s23, 18
      %s260 = sadd.s32 %s21, %s259
      %p261 = scmp.lt.s32.totalorder %s20, 1
      %s262 = scalar_select %p261, %s20, 1
      %p263 = scmp.lt.s32.totalorder %s260, 39
      %s264 = scalar_select %p263, %s260, 39
      %s265 = smul.addr %s264, 5
      %s266 = smul.addr %s262, 200
      %s267 = sadd.s32 %s265, %s266
      %s268 = smul.addr %s267, 4
      %s269 = scalar_lea.vmem %s0, %s268
      %s270 = smul.u32 %s23, 18
      %s271 = sadd.s32 %s21, %s270
      %s272 = smul.u32 2, %s22
      %p273 = scmp.lt.s32.totalorder %s23, 2
      %s274 = scalar_select %p273, %s23, 2
      %p275 = scmp.lt.s32.totalorder %s272, 1
      %s276 = scalar_select %p275, %s272, 1
      %s277 = smul.addr %s274, 96
      %s278 = sadd.s32 %s276, %s277
      %s279 = smul.addr %s278, 4
      %s280 = scalar_lea.vmem %s1, %s279
      %s281 = smul.u32 2, %s22
      %s282 = smul.u32 2, %s22
      %p283 = scmp.lt.s32.totalorder %s282, 1
      %s284 = scalar_select %p283, %s282, 1
      %s285 = scalar_lea.vmem %s2, %s284
      %s286 = smul.u32 2, %s22
      %s287 = smul.u32 2, %s22
      %p288 = scmp.lt.s32.totalorder %s20, 1
      %s289 = scalar_select %p288, %s20, 1
      %p290 = scmp.lt.s32.totalorder %s21, 3
      %s291 = scalar_select %p290, %s21, 3
      %p292 = scmp.lt.s32.totalorder %s287, 1
      %s293 = scalar_select %p292, %s287, 1
      %s294 = smul.addr %s291, 2
      %s295 = sadd.s32 %s293, %s294
      %s296 = smul.addr %s289, 8
      %s297 = sadd.s32 %s295, %s296
      %s298 = smul.addr %s297, 2
      %s299 = scalar_lea.vmem %s3, %s298
      %s300 = smul.u32 2, %s22
      %p302 = scmp.eq.s32.totalorder %s23, 0
      // Predicated region
      $region33: #{deeplab_cls_forward_test.17} parent=31 // pred_check
        %p303 = pneg %p302
      $region34: #{deeplab_cls_forward_test.17} parent=31 // pred_check_branch
        %305 = sbr.rel (%p303) target = $region36
      $region35: #{deeplab_cls_forward_test.17} parent=31 // pred_region
        %306 = vst [vmem:[#allocation2] sm:$0xff] 0.0
      $region36: #{deeplab_cls_forward_test.17} parent=31 // pred_fallthru
        _
      %v307 = vld [vmem:[%s269] sm:$0x3]
      %v308 = vld [vmem:[#allocation2] sm:$0xff]
      %v309 = vld [vmem:[%s280] sm:$0xff]
      %v310 = vld [vmem:[%s280 + $0x8] sm:$0xff]
      %v311 = vld [vmem:[%s280 + $0x10] sm:$0xff]
      %v312 = vld [vmem:[%s280 + $0x18] sm:$0xff]
      %v313 = vld [vmem:[%s280 + $0x20] sm:$0xff]
      %v314 = vld [vmem:[%s280 + $0x28] sm:$0xff]
      %v315 = vld [vmem:[%s280 + $0x30] sm:$0xff]
      %v316 = vld [vmem:[%s280 + $0x38] sm:$0xff]
      %v317 = vld [vmem:[%s280 + $0x40] sm:$0xff]
      %v318 = vld [vmem:[%s280 + $0x48] sm:$0xff]
      %v319 = vld [vmem:[%s280 + $0x50] sm:$0xff]
      %v320 = vld [vmem:[%s280 + $0x58] sm:$0xff]
      %v321 = vld [vmem:[%s280 + $0x60] sm:$0xff]
      %v322 = vld [vmem:[%s280 + $0x68] sm:$0xff]
      %v323 = vld [vmem:[%s280 + $0x70] sm:$0xff]
      %v324 = vld [vmem:[%s280 + $0x78] sm:$0xff]
      %v341 = vunpack.c.l.b16 %v309
      %v342 = vunpack.c.h.b16 %v309
      %v343 = vunpack.c.l.b16 %v310
      %v344 = vunpack.c.h.b16 %v310
      %v345 = vunpack.c.l.b16 %v311
      %v346 = vunpack.c.h.b16 %v311
      %v347 = vunpack.c.l.b16 %v312
      %v348 = vunpack.c.h.b16 %v312
      %v349 = vunpack.c.l.b16 %v313
      %v350 = vunpack.c.h.b16 %v313
      %v351 = vunpack.c.l.b16 %v314
      %v352 = vunpack.c.h.b16 %v314
      %v353 = vunpack.c.l.b16 %v315
      %v354 = vunpack.c.h.b16 %v315
      %v355 = vunpack.c.l.b16 %v316
      %v356 = vunpack.c.h.b16 %v316
      %v357 = vunpack.c.l.b16 %v317
      %v358 = vunpack.c.h.b16 %v317
      %v359 = vunpack.c.l.b16 %v318
      %v360 = vunpack.c.h.b16 %v318
      %v361 = vunpack.c.l.b16 %v319
      %v362 = vunpack.c.h.b16 %v319
      %v363 = vunpack.c.l.b16 %v320
      %v364 = vunpack.c.h.b16 %v320
      %v365 = vunpack.c.l.b16 %v321
      %v366 = vunpack.c.h.b16 %v321
      %v367 = vunpack.c.l.b16 %v322
      %v368 = vunpack.c.h.b16 %v322
      %v369 = vunpack.c.l.b16 %v323
      %v370 = vunpack.c.h.b16 %v323
      %v371 = vunpack.c.l.b16 %v324
      %v372 = vunpack.c.h.b16 %v324
      %v373 = vpack.c.b16 %v343, %v341
      %v374 = vpack.c.b16 %v344, %v342
      %v375 = vpack.c.b16 %v347, %v345
      %v376 = vpack.c.b16 %v348, %v346
      %v377 = vpack.c.b16 %v351, %v349
      %v378 = vpack.c.b16 %v352, %v350
      %v379 = vpack.c.b16 %v355, %v353
      %v380 = vpack.c.b16 %v356, %v354
      %v381 = vpack.c.b16 %v359, %v357
      %v382 = vpack.c.b16 %v360, %v358
      %v383 = vpack.c.b16 %v363, %v361
      %v384 = vpack.c.b16 %v364, %v362
      %v385 = vpack.c.b16 %v367, %v365
      %v386 = vpack.c.b16 %v368, %v366
      %v387 = vpack.c.b16 %v371, %v369
      %v388 = vpack.c.b16 %v372, %v370
      %405 = vmatprep.subr.bf16.mxu0 %v374
      %406 = vmatpush1.bf16.msra.mxu0 %v373
      %407 = vmatprep.subr.bf16.mxu0 %v376
      %408 = vmatpush1.bf16.msra.mxu0 %v375
      %409 = vmatprep.subr.bf16.mxu0 %v378
      %410 = vmatpush1.bf16.msra.mxu0 %v377
      %411 = vmatprep.subr.bf16.mxu0 %v380
      %412 = vmatpush1.bf16.msra.mxu0 %v379
      %413 = vmatprep.subr.bf16.mxu0 %v382
      %414 = vmatpush1.bf16.msra.mxu0 %v381
      %415 = vmatprep.subr.bf16.mxu0 %v384
      %416 = vmatpush1.bf16.msra.mxu0 %v383
      %417 = vmatprep.subr.bf16.mxu0 %v386
      %418 = vmatpush1.bf16.msra.mxu0 %v385
      %419 = vmatprep.subr.bf16.mxu0 %v388
      %420 = vmatpush1.bf16.msra.mxu0 %v387
      %421 = vmatprep.subr.bf16.mxu0 0
      %422 = vmatpush1.bf16.msra.mxu0 0
      %423 = vmatprep.subr.bf16.mxu0 0
      %424 = vmatpush1.bf16.msra.mxu0 0
      %425 = vmatprep.subr.bf16.mxu0 0
      %426 = vmatpush1.bf16.msra.mxu0 0
      %427 = vmatprep.subr.bf16.mxu0 0
      %428 = vmatpush1.bf16.msra.mxu0 0
      %429 = vmatprep.subr.bf16.mxu0 0
      %430 = vmatpush1.bf16.msra.mxu0 0
      %431 = vmatprep.subr.bf16.mxu0 0
      %432 = vmatpush1.bf16.msra.mxu0 0
      %433 = vmatprep.subr.bf16.mxu0 0
      %434 = vmatpush1.bf16.msra.mxu0 0
      %435 = vmatprep.subr.bf16.mxu0 0
      %436 = vmatpush1.bf16.msra.mxu0 0
      %437 = vmatprep.mubr.bf16.mxu0 0
      %438 = vmatmul.mubr.bf16.gmra.mrb[0].mxu0 %v307
      %v439 = vpop.f32.mrb[0].mxu0
      %v440 = vadd.f32 0.0, %v439
      %v441 = vpop.f32.mrb[0].mxu0
      %v442 = vadd.f32 0.0, %v441
      %v443 = vpop.f32.mrb[0].mxu0
      %v444 = vpop.f32.mrb[0].mxu0
      %445 = vdwg.mxu0
      %v448 = vcombine.low %v440, %v442
      %v450 = vadd.f32 %v308, %v448
      %451 = vst [vmem:[#allocation2] sm:$0xff] %v450
      %v452 = vld [vmem:[%s269 + $0x8] sm:$0x6]
      %v453 = vld [vmem:[#allocation2] sm:$0xff]
      %s454 = scalar_lea.vmem %s280, 128
      %v455 = vld [vmem:[%s454] sm:$0xff]
      %v456 = vld [vmem:[%s454 + $0x8] sm:$0xff]
      %v457 = vld [vmem:[%s454 + $0x10] sm:$0xff]
      %v458 = vld [vmem:[%s454 + $0x18] sm:$0xff]
      %v459 = vld [vmem:[%s454 + $0x20] sm:$0xff]
      %v460 = vld [vmem:[%s454 + $0x28] sm:$0xff]
      %v461 = vld [vmem:[%s454 + $0x30] sm:$0xff]
      %v462 = vld [vmem:[%s454 + $0x38] sm:$0xff]
      %v463 = vld [vmem:[%s454 + $0x40] sm:$0xff]
      %v464 = vld [vmem:[%s454 + $0x48] sm:$0xff]
      %v465 = vld [vmem:[%s454 + $0x50] sm:$0xff]
      %v466 = vld [vmem:[%s454 + $0x58] sm:$0xff]
      %v467 = vld [vmem:[%s454 + $0x60] sm:$0xff]
      %v468 = vld [vmem:[%s454 + $0x68] sm:$0xff]
      %v469 = vld [vmem:[%s454 + $0x70] sm:$0xff]
      %v470 = vld [vmem:[%s454 + $0x78] sm:$0xff]
      %v472 = vunpack.c.l.b16 %v452
      %v473 = vpack.c.b16 %v472, %v472
      %v474 = vrot.slane %v473, 1
      %v492 = vunpack.c.l.b16 %v455
      %v493 = vunpack.c.h.b16 %v455
      %v494 = vunpack.c.l.b16 %v456
      %v495 = vunpack.c.h.b16 %v456
      %v496 = vunpack.c.l.b16 %v457
      %v497 = vunpack.c.h.b16 %v457
      %v498 = vunpack.c.l.b16 %v458
      %v499 = vunpack.c.h.b16 %v458
      %v500 = vunpack.c.l.b16 %v459
      %v501 = vunpack.c.h.b16 %v459
      %v502 = vunpack.c.l.b16 %v460
      %v503 = vunpack.c.h.b16 %v460
      %v504 = vunpack.c.l.b16 %v461
      %v505 = vunpack.c.h.b16 %v461
      %v506 = vunpack.c.l.b16 %v462
      %v507 = vunpack.c.h.b16 %v462
      %v508 = vunpack.c.l.b16 %v463
      %v509 = vunpack.c.h.b16 %v463
      %v510 = vunpack.c.l.b16 %v464
      %v511 = vunpack.c.h.b16 %v464
      %v512 = vunpack.c.l.b16 %v465
      %v513 = vunpack.c.h.b16 %v465
      %v514 = vunpack.c.l.b16 %v466
      %v515 = vunpack.c.h.b16 %v466
      %v516 = vunpack.c.l.b16 %v467
      %v517 = vunpack.c.h.b16 %v467
      %v518 = vunpack.c.l.b16 %v468
      %v519 = vunpack.c.h.b16 %v468
      %v520 = vunpack.c.l.b16 %v469
      %v521 = vunpack.c.h.b16 %v469
      %v522 = vunpack.c.l.b16 %v470
      %v523 = vunpack.c.h.b16 %v470
      %v524 = vpack.c.b16 %v494, %v492
      %v525 = vpack.c.b16 %v495, %v493
      %v526 = vpack.c.b16 %v498, %v496
      %v527 = vpack.c.b16 %v499, %v497
      %v528 = vpack.c.b16 %v502, %v500
      %v529 = vpack.c.b16 %v503, %v501
      %v530 = vpack.c.b16 %v506, %v504
      %v531 = vpack.c.b16 %v507, %v505
      %v532 = vpack.c.b16 %v510, %v508
      %v533 = vpack.c.b16 %v511, %v509
      %v534 = vpack.c.b16 %v514, %v512
      %v535 = vpack.c.b16 %v515, %v513
      %v536 = vpack.c.b16 %v518, %v516
      %v537 = vpack.c.b16 %v519, %v517
      %v538 = vpack.c.b16 %v522, %v520
      %v539 = vpack.c.b16 %v523, %v521
      %556 = vmatprep.subr.bf16.mxu0 %v525
      %557 = vmatpush1.bf16.msra.mxu0 %v524
      %558 = vmatprep.subr.bf16.mxu0 %v527
      %559 = vmatpush1.bf16.msra.mxu0 %v526
      %560 = vmatprep.subr.bf16.mxu0 %v529
      %561 = vmatpush1.bf16.msra.mxu0 %v528
      %562 = vmatprep.subr.bf16.mxu0 %v531
      %563 = vmatpush1.bf16.msra.mxu0 %v530
      %564 = vmatprep.subr.bf16.mxu0 %v533
      %565 = vmatpush1.bf16.msra.mxu0 %v532
      %566 = vmatprep.subr.bf16.mxu0 %v535
      %567 = vmatpush1.bf16.msra.mxu0 %v534
      %568 = vmatprep.subr.bf16.mxu0 %v537
      %569 = vmatpush1.bf16.msra.mxu0 %v536
      %570 = vmatprep.subr.bf16.mxu0 %v539
      %571 = vmatpush1.bf16.msra.mxu0 %v538
      %572 = vmatprep.subr.bf16.mxu0 0
      %573 = vmatpush1.bf16.msra.mxu0 0
      %574 = vmatprep.subr.bf16.mxu0 0
      %575 = vmatpush1.bf16.msra.mxu0 0
      %576 = vmatprep.subr.bf16.mxu0 0
      %577 = vmatpush1.bf16.msra.mxu0 0
      %578 = vmatprep.subr.bf16.mxu0 0
      %579 = vmatpush1.bf16.msra.mxu0 0
      %580 = vmatprep.subr.bf16.mxu0 0
      %581 = vmatpush1.bf16.msra.mxu0 0
      %582 = vmatprep.subr.bf16.mxu0 0
      %583 = vmatpush1.bf16.msra.mxu0 0
      %584 = vmatprep.subr.bf16.mxu0 0
      %585 = vmatpush1.bf16.msra.mxu0 0
      %586 = vmatprep.subr.bf16.mxu0 0
      %587 = vmatpush1.bf16.msra.mxu0 0
      %588 = vmatprep.mubr.bf16.mxu0 0
      %589 = vmatmul.mubr.bf16.gmra.mrb[0].mxu0 %v474
      %v590 = vpop.f32.mrb[0].mxu0
      %v591 = vadd.f32 0.0, %v590
      %v592 = vpop.f32.mrb[0].mxu0
      %v593 = vadd.f32 0.0, %v592
      %v594 = vpop.f32.mrb[0].mxu0
      %v595 = vpop.f32.mrb[0].mxu0
      %596 = vdwg.mxu0
      %v599 = vcombine.low %v591, %v593
      %v601 = vadd.f32 %v453, %v599
      %602 = vst [vmem:[#allocation2] sm:$0xff] %v601
      %v603 = vld [vmem:[%s269 + $0x10] sm:$0xc]
      %v604 = vld [vmem:[#allocation2] sm:$0xff]
      %s605 = scalar_lea.vmem %s280, 256
      %v606 = vld [vmem:[%s605] sm:$0xff]
      %v607 = vld [vmem:[%s605 + $0x8] sm:$0xff]
      %v608 = vld [vmem:[%s605 + $0x10] sm:$0xff]
      %v609 = vld [vmem:[%s605 + $0x18] sm:$0xff]
      %v610 = vld [vmem:[%s605 + $0x20] sm:$0xff]
      %v611 = vld [vmem:[%s605 + $0x28] sm:$0xff]
      %v612 = vld [vmem:[%s605 + $0x30] sm:$0xff]
      %v613 = vld [vmem:[%s605 + $0x38] sm:$0xff]
      %v614 = vld [vmem:[%s605 + $0x40] sm:$0xff]
      %v615 = vld [vmem:[%s605 + $0x48] sm:$0xff]
      %v616 = vld [vmem:[%s605 + $0x50] sm:$0xff]
      %v617 = vld [vmem:[%s605 + $0x58] sm:$0xff]
      %v618 = vld [vmem:[%s605 + $0x60] sm:$0xff]
      %v619 = vld [vmem:[%s605 + $0x68] sm:$0xff]
      %v620 = vld [vmem:[%s605 + $0x70] sm:$0xff]
      %v621 = vld [vmem:[%s605 + $0x78] sm:$0xff]
      %v623 = vunpack.c.l.b16 %v603
      %v624 = vpack.c.b16 %v623, %v623
      %v625 = vrot.slane %v624, 2
      %v643 = vunpack.c.l.b16 %v606
      %v644 = vunpack.c.h.b16 %v606
      %v645 = vunpack.c.l.b16 %v607
      %v646 = vunpack.c.h.b16 %v607
      %v647 = vunpack.c.l.b16 %v608
      %v648 = vunpack.c.h.b16 %v608
      %v649 = vunpack.c.l.b16 %v609
      %v650 = vunpack.c.h.b16 %v609
      %v651 = vunpack.c.l.b16 %v610
      %v652 = vunpack.c.h.b16 %v610
      %v653 = vunpack.c.l.b16 %v611
      %v654 = vunpack.c.h.b16 %v611
      %v655 = vunpack.c.l.b16 %v612
      %v656 = vunpack.c.h.b16 %v612
      %v657 = vunpack.c.l.b16 %v613
      %v658 = vunpack.c.h.b16 %v613
      %v659 = vunpack.c.l.b16 %v614
      %v660 = vunpack.c.h.b16 %v614
      %v661 = vunpack.c.l.b16 %v615
      %v662 = vunpack.c.h.b16 %v615
      %v663 = vunpack.c.l.b16 %v616
      %v664 = vunpack.c.h.b16 %v616
      %v665 = vunpack.c.l.b16 %v617
      %v666 = vunpack.c.h.b16 %v617
      %v667 = vunpack.c.l.b16 %v618
      %v668 = vunpack.c.h.b16 %v618
      %v669 = vunpack.c.l.b16 %v619
      %v670 = vunpack.c.h.b16 %v619
      %v671 = vunpack.c.l.b16 %v620
      %v672 = vunpack.c.h.b16 %v620
      %v673 = vunpack.c.l.b16 %v621
      %v674 = vunpack.c.h.b16 %v621
      %v675 = vpack.c.b16 %v645, %v643
      %v676 = vpack.c.b16 %v646, %v644
      %v677 = vpack.c.b16 %v649, %v647
      %v678 = vpack.c.b16 %v650, %v648
      %v679 = vpack.c.b16 %v653, %v651
      %v680 = vpack.c.b16 %v654, %v652
      %v681 = vpack.c.b16 %v657, %v655
      %v682 = vpack.c.b16 %v658, %v656
      %v683 = vpack.c.b16 %v661, %v659
      %v684 = vpack.c.b16 %v662, %v660
      %v685 = vpack.c.b16 %v665, %v663
      %v686 = vpack.c.b16 %v666, %v664
      %v687 = vpack.c.b16 %v669, %v667
      %v688 = vpack.c.b16 %v670, %v668
      %v689 = vpack.c.b16 %v673, %v671
      %v690 = vpack.c.b16 %v674, %v672
      %707 = vmatprep.subr.bf16.mxu0 %v676
      %708 = vmatpush1.bf16.msra.mxu0 %v675
      %709 = vmatprep.subr.bf16.mxu0 %v678
      %710 = vmatpush1.bf16.msra.mxu0 %v677
      %711 = vmatprep.subr.bf16.mxu0 %v680
      %712 = vmatpush1.bf16.msra.mxu0 %v679
      %713 = vmatprep.subr.bf16.mxu0 %v682
      %714 = vmatpush1.bf16.msra.mxu0 %v681
      %715 = vmatprep.subr.bf16.mxu0 %v684
      %716 = vmatpush1.bf16.msra.mxu0 %v683
      %717 = vmatprep.subr.bf16.mxu0 %v686
      %718 = vmatpush1.bf16.msra.mxu0 %v685
      %719 = vmatprep.subr.bf16.mxu0 %v688
      %720 = vmatpush1.bf16.msra.mxu0 %v687
      %721 = vmatprep.subr.bf16.mxu0 %v690
      %722 = vmatpush1.bf16.msra.mxu0 %v689
      %723 = vmatprep.subr.bf16.mxu0 0
      %724 = vmatpush1.bf16.msra.mxu0 0
      %725 = vmatprep.subr.bf16.mxu0 0
      %726 = vmatpush1.bf16.msra.mxu0 0
      %727 = vmatprep.subr.bf16.mxu0 0
      %728 = vmatpush1.bf16.msra.mxu0 0
      %729 = vmatprep.subr.bf16.mxu0 0
      %730 = vmatpush1.bf16.msra.mxu0 0
      %731 = vmatprep.subr.bf16.mxu0 0
      %732 = vmatpush1.bf16.msra.mxu0 0
      %733 = vmatprep.subr.bf16.mxu0 0
      %734 = vmatpush1.bf16.msra.mxu0 0
      %735 = vmatprep.subr.bf16.mxu0 0
      %736 = vmatpush1.bf16.msra.mxu0 0
      %737 = vmatprep.subr.bf16.mxu0 0
      %738 = vmatpush1.bf16.msra.mxu0 0
      %739 = vmatprep.mubr.bf16.mxu0 0
      %740 = vmatmul.mubr.bf16.gmra.mrb[0].mxu0 %v625
      %v741 = vpop.f32.mrb[0].mxu0
      %v742 = vadd.f32 0.0, %v741
      %v743 = vpop.f32.mrb[0].mxu0
      %v744 = vadd.f32 0.0, %v743
      %v745 = vpop.f32.mrb[0].mxu0
      %v746 = vpop.f32.mrb[0].mxu0
      %747 = vdwg.mxu0
      %v750 = vcombine.low %v742, %v744
      %v752 = vadd.f32 %v604, %v750
      %753 = vst [vmem:[#allocation2] sm:$0xff] %v752
      %p754 = scmp.eq.s32.totalorder %s23, 2
      // Predicated region
      $region37: #{deeplab_cls_forward_test.17} parent=31 // pred_check
        %p755 = pneg %p754
      $region38: #{deeplab_cls_forward_test.17} parent=31 // pred_check_branch
        %757 = sbr.rel (%p755) target = $region40
      $region39: #{deeplab_cls_forward_test.17} parent=31 // pred_region
        %v758 = vld [vmem:[#allocation2] sm:$0xff]
        %v759 = vld [vmem:[%s285] sm:$0x3]
        %v761 = vlaneseq
        %v762 = vshrl.u32 %v761, 7
        %v763 = vsub.s32 0, %v762
        %v764 = vrot.slane %v759, %v763
        %v765 = vlaneseq
        %v766 = vshrl.u32 %v765, 7
        %v767 = vsub.s32 1, %v766
        %v768 = vrot.slane %v759, %v767
        %v769 = vcombine.low %v764, %v768
        %v771 = vadd.f32 %v758, %v769
        %vm772 = vcmp.gt.f32.partialorder %v771, 0.0
        %v773 = vmin.f32 %v771, 0.0
        %v774 = vmul.f32 %v773, 1.442695
        %v775 = vpow.pop %v774
        %v776 = vsub.f32 %v775, 1.0
        %v777 = vsel %vm772, %v771, %v776
        %v779 = vcombine.high %v777, %v777
        %v781 = vpack.c.bf16 %v777, %v777
        %v782 = vpack.c.bf16 %v779, %v779
        %v785 = vcombine.low %v781, %v782
        %v787 = vunpack.c.l.s4 1983009808
        %v788 = vunpack.c.0.s8 %v787
        %v789 = vlaneseq
        %v790 = vshrl.u32 %v789, 7
        %v791 = vsub.s32 %v788, %v790
        %v792 = vrot.slane %v785, %v791
        %794 = vst [vmem:[%s299] sm:$0xf] %v792
      $region40: #{deeplab_cls_forward_test.17} parent=31 // pred_fallthru
        _
      %s795 = smul.u32 2, %s22
      %p796 = scmp.lt.s32.totalorder %s20, 1
      %s797 = scalar_select %p796, %s20, 1
      %p798 = scmp.lt.s32.totalorder %s21, 3
      %s799 = scalar_select %p798, %s21, 3
      %p800 = scmp.lt.s32.totalorder %s795, 1
      %s801 = scalar_select %p800, %s795, 1
      %s802 = smul.addr %s799, 2
      %s803 = sadd.s32 %s801, %s802
      %s804 = smul.addr %s797, 8
      %s805 = sadd.s32 %s803, %s804
      %s806 = smul.addr %s805, 2
      %s807 = scalar_lea.vmem %s3, %s806
      // Predicated region
      $region41: #{deeplab_cls_forward_test.17} parent=31 // pred_check
        %p808 = pneg %p148
      $region42: #{deeplab_cls_forward_test.17} parent=31 // pred_check_branch
        %810 = sbr.rel (%p808) target = $region44
      $region43: #{deeplab_cls_forward_test.17} parent=31 // pred_region
        %s811 = smul.u32 2, %s22
      $region44: #{deeplab_cls_forward_test.17} parent=31 // pred_fallthru
        _
    $region32: #{deeplab_cls_forward_test.17} parent=5 // pred_fallthru
      _
    %p812 = scmp.le.s32.totalorder 2, %s9
    // Predicated region
    $region45: #{deeplab_cls_forward_test.17} parent=5 // pred_check
      %p813 = pneg %p812
    $region46: #{deeplab_cls_forward_test.17} parent=5 // pred_check_branch
      %815 = sbr.rel (%p813) target = $region48
    $region47: #{deeplab_cls_forward_test.17} parent=5 // pred_region
      %s816 = ssub.s32 %s9, 2
      // Predicated region
      $region49: #{deeplab_cls_forward_test.17} parent=47 // pred_check
        %p817 = pneg %p154
      $region50: #{deeplab_cls_forward_test.17} parent=47 // pred_check_branch
        %819 = sbr.rel (%p817) target = $region52
      $region51: #{deeplab_cls_forward_test.17} parent=47 // pred_region
        %s820 = smul.u32 2, %s26
        %p821 = scmp.lt.s32.totalorder %s24, 1
        %s822 = scalar_select %p821, %s24, 1
        %p823 = scmp.lt.s32.totalorder %s25, 3
        %s824 = scalar_select %p823, %s25, 3
        %p825 = scmp.lt.s32.totalorder %s820, 1
        %s826 = scalar_select %p825, %s820, 1
        %s827 = smul.addr %s824, 2
        %s828 = sadd.s32 %s826, %s827
        %s829 = smul.addr %s822, 8
        %s830 = sadd.s32 %s828, %s829
        %s831 = smul.addr %s830, 2
        %s832 = scalar_lea.vmem %s3, %s831
      $region52: #{deeplab_cls_forward_test.17} parent=47 // pred_fallthru
        _
    $region48: #{deeplab_cls_forward_test.17} parent=5 // pred_fallthru
      _
  $region6: #{deeplab_cls_forward_test.17} parent=0 // loop_footer
    %s13 = sadd.s32 1, %s9
  $region7: #{deeplab_cls_forward_test.17} parent=0 // loop_footer_branch
    %8 = sbr.rel target = $region3
  $region8: #{deeplab_cls_forward_test.17} parent=0 // loop_exit
    _

// kernel: deeplab_cls_forward_test.18
$region0: #{deeplab_cls_forward_test.18}
  #allocation0 [shape = 'u32[]', space=smem, size = 0x4, offset = 0x4, fixed_abs, tag = 'smem constant byte address 0x4 - core index']
  #allocation1 [shape = 'u32[144,128]{1,0:T(1,128)}', space=vmem, size = 0x12000, scoped, tag = 'internal scratch']
  #allocation2 [shape = 'f32[128,128]{1,0:T(8,128)}', space=vmem, size = 0x10000, scoped, tag = 'scratch operand']
  %s0 = inlined_call_operand.vmem [shape: bf16[128,1280], index: 0, kind: input, shape index: {}]
  %s1 = inlined_call_operand.vmem [shape: bf16[1280,256], index: 1, kind: input, shape index: {}]
  %s2 = inlined_call_operand.vmem [shape: f32[1,256], index: 2, kind: input, shape index: {}]
  %s3 = inlined_call_operand.vmem [shape: bf16[128,256], index: 3, kind: output, shape index: {}]
  %s4 = sld [smem:[#allocation0]]
  $region169: #{deeplab_cls_forward_test.18} parent=0
    _
  %s6 = ssub.s32 1, %s4
  %s7 = scalar_select 0, %s6, %s4
  $region1: #{deeplab_cls_forward_test.18} parent=0
    #allocation3 [shape = 'u8[131072]{0}', space=vmem, size = 0x20000, scoped, tag = 'input window, operand 0']
    #allocation4 [shape = 'u8[131072]{0}', space=vmem, size = 0x20000, scoped, tag = 'input window, operand 1']
    #allocation5 [shape = 'u8[65536]{0}', space=vmem, size = 0x10000, scoped, tag = 'output window, operand 0']
    loop: start=0, step=1, limit=12
    $region2: #{deeplab_cls_forward_test.18} parent=1 // loop_pre_header
      _
    $region3: #{deeplab_cls_forward_test.18} parent=1 // loop_header
      %s9 = sphi 0, %s13
      %p10 = scmp.ge.s32.totalorder %s9, 12
      %s16 = sphi 0, %s35
      %s17 = sphi 0, %s31
      %s18 = sphi 0, %s27
      %s19 = sphi 0, %s16
      %s20 = sphi 0, %s17
      %s21 = sphi 0, %s18
      %s22 = sphi 0, %s19
      %s23 = sphi 0, %s20
      %s24 = sphi 0, %s21
      %s40 = sphi 0, %s42
      %s43 = sphi 0, %s40
      %s44 = sphi 0, %s43
      %s60 = sphi 0, %s44
      %s68 = sphi 0, %s70
      %s71 = sphi 0, %s68
      %s72 = sphi 0, %s71
      %s88 = sphi 0, %s72
      %s94 = sphi 0, %s96
      %s97 = sphi 0, %s94
      %s98 = sphi 0, %s97
      %s114 = sphi 0, %s98
      %s122 = sphi 0, %s124
      %s125 = sphi 0, %s122
      %s126 = sphi 0, %s125
      %s142 = sphi 0, %s126
    $region4: #{deeplab_cls_forward_test.18} parent=1 // loop_header_branch
      %12 = sbr.rel (%p10) target = $region8
    $region5: #{deeplab_cls_forward_test.18} parent=1 // loop_body
      %s14 = ssub.s32 %s9, 1
      %s15 = ssub.s32 %s9, 2
      %s25 = sadd.s32 1, %s18
      %p26 = scmp.ge.s32.totalorder %s25, 5
      %s27 = scalar_select %p26, 0, %s25
      %s28 = sadd.s32 1, %s17
      %s29 = scalar_select %p26, %s28, %s17
      %p30 = scmp.ge.s32.totalorder %s29, 2
      %s31 = scalar_select %p30, 0, %s29
      %s32 = sadd.s32 1, %s16
      %s33 = scalar_select %p30, %s32, %s16
      %p34 = scmp.ge.s32.totalorder %s33, 1
      %s35 = scalar_select %p34, 0, %s33
      %s36 = ssub.s32 %s16, %s35
      %s37 = ssub.s32 %s18, %s27
      %s38 = sor.u32 %s36, %s37
      %p39 = scmp.eq.s32.totalorder %s38, 0
      %s41 = sadd.s32 %s40, 1
      %s42 = scalar_select %p39, %s40, %s41
      %p45 = pneg %p39
      %p46 = scmp.eq.s32.totalorder %s9, 9
      %p47 = por %p45, %p46
      %p48 = scmp.ne.s32.totalorder %s40, %s43
      %p49 = scmp.eq.s32.totalorder %s9, 0
      %p50 = por %p48, %p49
      %p51 = scmp.ne.s32.totalorder %s40, %s43
      %p52 = scmp.eq.s32.totalorder %s14, 9
      %p53 = por %p51, %p52
      %p54 = scmp.ne.s32.totalorder %s43, %s44
      %p55 = scmp.eq.s32.totalorder %s14, 0
      %p56 = por %p54, %p55
      %p57 = scmp.ne.s32.totalorder %s43, %s44
      %p58 = scmp.eq.s32.totalorder %s15, 9
      %p59 = por %p57, %p58
      %p61 = scmp.ne.s32.totalorder %s44, %s60
      %p62 = scmp.eq.s32.totalorder %s15, 0
      %p63 = por %p61, %p62
      %s64 = ssub.s32 %s18, %s27
      %s65 = ssub.s32 %s17, %s31
      %s66 = sor.u32 %s64, %s65
      %p67 = scmp.eq.s32.totalorder %s66, 0
      %s69 = sadd.s32 %s68, 1
      %s70 = scalar_select %p67, %s68, %s69
      %p73 = pneg %p67
      %p74 = scmp.eq.s32.totalorder %s9, 9
      %p75 = por %p73, %p74
      %p76 = scmp.ne.s32.totalorder %s68, %s71
      %p77 = scmp.eq.s32.totalorder %s9, 0
      %p78 = por %p76, %p77
      %p79 = scmp.ne.s32.totalorder %s68, %s71
      %p80 = scmp.eq.s32.totalorder %s14, 9
      %p81 = por %p79, %p80
      %p82 = scmp.ne.s32.totalorder %s71, %s72
      %p83 = scmp.eq.s32.totalorder %s14, 0
      %p84 = por %p82, %p83
      %p85 = scmp.ne.s32.totalorder %s71, %s72
      %p86 = scmp.eq.s32.totalorder %s15, 9
      %p87 = por %p85, %p86
      %p89 = scmp.ne.s32.totalorder %s72, %s88
      %p90 = scmp.eq.s32.totalorder %s15, 0
      %p91 = por %p89, %p90
      %s92 = ssub.s32 %s17, %s31
      %p93 = scmp.eq.s32.totalorder %s92, 0
      %s95 = sadd.s32 %s94, 1
      %s96 = scalar_select %p93, %s94, %s95
      %p99 = pneg %p93
      %p100 = scmp.eq.s32.totalorder %s9, 9
      %p101 = por %p99, %p100
      %p102 = scmp.ne.s32.totalorder %s94, %s97
      %p103 = scmp.eq.s32.totalorder %s9, 0
      %p104 = por %p102, %p103
      %p105 = scmp.ne.s32.totalorder %s94, %s97
      %p106 = scmp.eq.s32.totalorder %s14, 9
      %p107 = por %p105, %p106
      %p108 = scmp.ne.s32.totalorder %s97, %s98
      %p109 = scmp.eq.s32.totalorder %s14, 0
      %p110 = por %p108, %p109
      %p111 = scmp.ne.s32.totalorder %s97, %s98
      %p112 = scmp.eq.s32.totalorder %s15, 9
      %p113 = por %p111, %p112
      %p115 = scmp.ne.s32.totalorder %s98, %s114
      %p116 = scmp.eq.s32.totalorder %s15, 0
      %p117 = por %p115, %p116
      %s118 = ssub.s32 %s16, %s35
      %s119 = ssub.s32 %s17, %s31
      %s120 = sor.u32 %s118, %s119
      %p121 = scmp.eq.s32.totalorder %s120, 0
      %s123 = sadd.s32 %s122, 1
      %s124 = scalar_select %p121, %s122, %s123
      %p127 = pneg %p121
      %p128 = scmp.eq.s32.totalorder %s9, 9
      %p129 = por %p127, %p128
      %p130 = scmp.ne.s32.totalorder %s122, %s125
      %p131 = scmp.eq.s32.totalorder %s9, 0
      %p132 = por %p130, %p131
      %p133 = scmp.ne.s32.totalorder %s122, %s125
      %p134 = scmp.eq.s32.totalorder %s14, 9
      %p135 = por %p133, %p134
      %p136 = scmp.ne.s32.totalorder %s125, %s126
      %p137 = scmp.eq.s32.totalorder %s14, 0
      %p138 = por %p136, %p137
      %p139 = scmp.ne.s32.totalorder %s125, %s126
      %p140 = scmp.eq.s32.totalorder %s15, 9
      %p141 = por %p139, %p140
      %p143 = scmp.ne.s32.totalorder %s126, %s142
      %p144 = scmp.eq.s32.totalorder %s15, 0
      %p145 = por %p143, %p144
      %p146 = scmp.le.s32.totalorder 1, %s9
      %p147 = scmp.lt.s32.totalorder %s9, 11
      %p148 = pnand %p146, %p147
      %p149 = pneg %p148
      // Predicated region
      $region9: #{deeplab_cls_forward_test.18} parent=5 // pred_check
        _
      $region10: #{deeplab_cls_forward_test.18} parent=5 // pred_check_branch
        %151 = sbr.rel (%p148) target = $region12
      $region11: #{deeplab_cls_forward_test.18} parent=5 // pred_region
        %s152 = ssub.s32 %s9, 1
      $region12: #{deeplab_cls_forward_test.18} parent=5 // pred_fallthru
        _
      %p153 = scmp.lt.s32.totalorder %s9, 10
      // Predicated region
      $region13: #{deeplab_cls_forward_test.18} parent=5 // pred_check
        %p154 = pneg %p153
      $region14: #{deeplab_cls_forward_test.18} parent=5 // pred_check_branch
        %156 = sbr.rel (%p154) target = $region16
      $region15: #{deeplab_cls_forward_test.18} parent=5 // pred_region
        // Predicated region
        $region17: #{deeplab_cls_forward_test.18} parent=15 // pred_check
          %p157 = pneg %p50
        $region18: #{deeplab_cls_forward_test.18} parent=15 // pred_check_branch
          %159 = sbr.rel (%p157) target = $region20
        $region19: #{deeplab_cls_forward_test.18} parent=15 // pred_region
          %s160 = sand.u32 %s40, 1
          %s161 = sand.u32 %s40, 1
          %s162 = smul.addr %s161, 128
          %s163 = scalar_lea.vmem [#allocation3], %s162
          %s164 = smul.u32 16, %s16
          %s165 = smul.u32 2, %s18
          %s166 = smul.addr %s164, 10
          %s167 = sadd.s32 %s165, %s166
          %s168 = smul.addr %s167, 4
          %s169 = scalar_lea.vmem %s0, %s168
          // Predicated region
          $region21: #{deeplab_cls_forward_test.18} parent=19 // pred_check
            _
          $region22: #{deeplab_cls_forward_test.18} parent=19 // pred_check_branch
            %171 = sbr.rel (0) target = $region24
          $region23: #{deeplab_cls_forward_test.18} parent=19 // pred_region
            // Predicated region
            $region25: #{deeplab_cls_forward_test.18} parent=23 // pred_check
              _
            $region26: #{deeplab_cls_forward_test.18} parent=23 // pred_check_branch
              %173 = sbr.rel (0) target = $region28
            $region27: #{deeplab_cls_forward_test.18} parent=23 // pred_region
              // Predicated region
              $region40: #{deeplab_cls_forward_test.18} parent=27 // pred_check
                _
              $region41: #{deeplab_cls_forward_test.18} parent=27 // pred_check_branch
                %218 = sbr.rel (0) target = $region43
              $region42: #{deeplab_cls_forward_test.18} parent=27 // pred_region
                loop: start=0, step=1, limit=1
                $region44: #{deeplab_cls_forward_test.18} parent=42 // loop_pre_header
                  _
                $region45: #{deeplab_cls_forward_test.18} parent=42 // loop_header
                  %s220 = sphi 0, %s224
                  %p221 = scmp.ge.s32.totalorder %s220, 1
                  %s225 = sphi %s169, %s169
                  %s226 = sphi %s163, %s163
                $region46: #{deeplab_cls_forward_test.18} parent=42 // loop_header_branch
                  %223 = sbr.rel (%p221) target = $region50
                $region47: #{deeplab_cls_forward_test.18} parent=42 // loop_body
                  %v227 = vld [vmem:[%s225] sm:$0xff]
                  %228 = vst [vmem:[%s226] sm:$0xff] %v227
                  %v229 = vld [vmem:[%s225 + $0x28] sm:$0xff]
                  %230 = vst [vmem:[%s226 + $0x8] sm:$0xff] %v229
                  %v231 = vld [vmem:[%s225 + $0x50] sm:$0xff]
                  %232 = vst [vmem:[%s226 + $0x10] sm:$0xff] %v231
                  %v233 = vld [vmem:[%s225 + $0x78] sm:$0xff]
                  %234 = vst [vmem:[%s226 + $0x18] sm:$0xff] %v233
                  %v235 = vld [vmem:[%s225 + $0xa0] sm:$0xff]
                  %236 = vst [vmem:[%s226 + $0x20] sm:$0xff] %v235
                  %v237 = vld [vmem:[%s225 + $0xc8] sm:$0xff]
                  %238 = vst [vmem:[%s226 + $0x28] sm:$0xff] %v237
                  %v239 = vld [vmem:[%s225 + $0xf0] sm:$0xff]
                  %240 = vst [vmem:[%s226 + $0x30] sm:$0xff] %v239
                  %v241 = vld [vmem:[%s225 + $0x118] sm:$0xff]
                  %242 = vst [vmem:[%s226 + $0x38] sm:$0xff] %v241
                  %v243 = vld [vmem:[%s225 + $0x140] sm:$0xff]
                  %244 = vst [vmem:[%s226 + $0x40] sm:$0xff] %v243
                  %v245 = vld [vmem:[%s225 + $0x168] sm:$0xff]
                  %246 = vst [vmem:[%s226 + $0x48] sm:$0xff] %v245
                  %v247 = vld [vmem:[%s225 + $0x190] sm:$0xff]
                  %248 = vst [vmem:[%s226 + $0x50] sm:$0xff] %v247
                  %v249 = vld [vmem:[%s225 + $0x1b8] sm:$0xff]
                  %250 = vst [vmem:[%s226 + $0x58] sm:$0xff] %v249
                  %v251 = vld [vmem:[%s225 + $0x1e0] sm:$0xff]
                  %252 = vst [vmem:[%s226 + $0x60] sm:$0xff] %v251
                  %v253 = vld [vmem:[%s225 + $0x208] sm:$0xff]
                  %254 = vst [vmem:[%s226 + $0x68] sm:$0xff] %v253
                  %v255 = vld [vmem:[%s225 + $0x230] sm:$0xff]
                  %256 = vst [vmem:[%s226 + $0x70] sm:$0xff] %v255
                  %v257 = vld [vmem:[%s225 + $0x258] sm:$0xff]
                  %258 = vst [vmem:[%s226 + $0x78] sm:$0xff] %v257
                $region48: #{deeplab_cls_forward_test.18} parent=42 // loop_footer
                  %s224 = sadd.s32 1, %s220
                $region49: #{deeplab_cls_forward_test.18} parent=42 // loop_footer_branch
                  %219 = sbr.rel target = $region45
                $region50: #{deeplab_cls_forward_test.18} parent=42 // loop_exit
                  _
              $region43: #{deeplab_cls_forward_test.18} parent=27 // pred_fallthru
                _
              // Predicated region
              $region51: #{deeplab_cls_forward_test.18} parent=27 // pred_check
                _
              $region52: #{deeplab_cls_forward_test.18} parent=27 // pred_check_branch
                %260 = sbr.rel target = $region54
              $region53: #{deeplab_cls_forward_test.18} parent=27 // pred_region
                _
              $region54: #{deeplab_cls_forward_test.18} parent=27 // pred_fallthru
                _
            $region28: #{deeplab_cls_forward_test.18} parent=23 // pred_fallthru
              _
            // Predicated region
            $region29: #{deeplab_cls_forward_test.18} parent=23 // pred_check
              _
            $region30: #{deeplab_cls_forward_test.18} parent=23 // pred_check_branch
              %175 = sbr.rel target = $region32
            $region31: #{deeplab_cls_forward_test.18} parent=23 // pred_region
              loop: start=0, step=1, limit=1
              $region33: #{deeplab_cls_forward_test.18} parent=31 // loop_pre_header
                _
              $region34: #{deeplab_cls_forward_test.18} parent=31 // loop_header
                %s178 = sphi 0, %s182
                %p179 = scmp.ge.s32.totalorder %s178, 1
                %s183 = sphi %s169, %s169
                %s184 = sphi %s163, %s163
              $region35: #{deeplab_cls_forward_test.18} parent=31 // loop_header_branch
                %181 = sbr.rel (%p179) target = $region39
              $region36: #{deeplab_cls_forward_test.18} parent=31 // loop_body
                %v185 = vld [vmem:[%s183] sm:$0xff]
                %186 = vst [vmem:[%s184] sm:$0xff] %v185
                %v187 = vld [vmem:[%s183 + $0x28] sm:$0xff]
                %188 = vst [vmem:[%s184 + $0x8] sm:$0xff] %v187
                %v189 = vld [vmem:[%s183 + $0x50] sm:$0xff]
                %190 = vst [vmem:[%s184 + $0x10] sm:$0xff] %v189
                %v191 = vld [vmem:[%s183 + $0x78] sm:$0xff]
                %192 = vst [vmem:[%s184 + $0x18] sm:$0xff] %v191
                %v193 = vld [vmem:[%s183 + $0xa0] sm:$0xff]
                %194 = vst [vmem:[%s184 + $0x20] sm:$0xff] %v193
                %v195 = vld [vmem:[%s183 + $0xc8] sm:$0xff]
                %196 = vst [vmem:[%s184 + $0x28] sm:$0xff] %v195
                %v197 = vld [vmem:[%s183 + $0xf0] sm:$0xff]
                %198 = vst [vmem:[%s184 + $0x30] sm:$0xff] %v197
                %v199 = vld [vmem:[%s183 + $0x118] sm:$0xff]
                %200 = vst [vmem:[%s184 + $0x38] sm:$0xff] %v199
                %v201 = vld [vmem:[%s183 + $0x140] sm:$0xff]
                %202 = vst [vmem:[%s184 + $0x40] sm:$0xff] %v201
                %v203 = vld [vmem:[%s183 + $0x168] sm:$0xff]
                %204 = vst [vmem:[%s184 + $0x48] sm:$0xff] %v203
                %v205 = vld [vmem:[%s183 + $0x190] sm:$0xff]
                %206 = vst [vmem:[%s184 + $0x50] sm:$0xff] %v205
                %v207 = vld [vmem:[%s183 + $0x1b8] sm:$0xff]
                %208 = vst [vmem:[%s184 + $0x58] sm:$0xff] %v207
                %v209 = vld [vmem:[%s183 + $0x1e0] sm:$0xff]
                %210 = vst [vmem:[%s184 + $0x60] sm:$0xff] %v209
                %v211 = vld [vmem:[%s183 + $0x208] sm:$0xff]
                %212 = vst [vmem:[%s184 + $0x68] sm:$0xff] %v211
                %v213 = vld [vmem:[%s183 + $0x230] sm:$0xff]
                %214 = vst [vmem:[%s184 + $0x70] sm:$0xff] %v213
                %v215 = vld [vmem:[%s183 + $0x258] sm:$0xff]
                %216 = vst [vmem:[%s184 + $0x78] sm:$0xff] %v215
              $region37: #{deeplab_cls_forward_test.18} parent=31 // loop_footer
                %s182 = sadd.s32 1, %s178
              $region38: #{deeplab_cls_forward_test.18} parent=31 // loop_footer_branch
                %177 = sbr.rel target = $region34
              $region39: #{deeplab_cls_forward_test.18} parent=31 // loop_exit
                _
            $region32: #{deeplab_cls_forward_test.18} parent=23 // pred_fallthru
              _
          $region24: #{deeplab_cls_forward_test.18} parent=19 // pred_fallthru
            _
          %261 = vnop
        $region20: #{deeplab_cls_forward_test.18} parent=15 // pred_fallthru
          _
        // Predicated region
        $region55: #{deeplab_cls_forward_test.18} parent=15 // pred_check
          %p262 = pneg %p78
        $region56: #{deeplab_cls_forward_test.18} parent=15 // pred_check_branch
          %264 = sbr.rel (%p262) target = $region58
        $region57: #{deeplab_cls_forward_test.18} parent=15 // pred_region
          %s265 = sand.u32 %s68, 1
          %s266 = sand.u32 %s68, 1
          %s267 = smul.addr %s266, 128
          %s268 = scalar_lea.vmem [#allocation4], %s267
          %s269 = smul.u32 32, %s18
          %s270 = smul.addr %s269, 2
          %s271 = sadd.s32 %s17, %s270
          %s272 = smul.addr %s271, 4
          %s273 = scalar_lea.vmem %s1, %s272
          // Predicated region
          $region59: #{deeplab_cls_forward_test.18} parent=57 // pred_check
            _
          $region60: #{deeplab_cls_forward_test.18} parent=57 // pred_check_branch
            %275 = sbr.rel (0) target = $region62
          $region61: #{deeplab_cls_forward_test.18} parent=57 // pred_region
            // Predicated region
            $region63: #{deeplab_cls_forward_test.18} parent=61 // pred_check
              _
            $region64: #{deeplab_cls_forward_test.18} parent=61 // pred_check_branch
              %277 = sbr.rel target = $region66
            $region65: #{deeplab_cls_forward_test.18} parent=61 // pred_region
              // Predicated region
              $region78: #{deeplab_cls_forward_test.18} parent=65 // pred_check
                _
              $region79: #{deeplab_cls_forward_test.18} parent=65 // pred_check_branch
                %354 = sbr.rel (0) target = $region81
              $region80: #{deeplab_cls_forward_test.18} parent=65 // pred_region
                loop: start=0, step=1, limit=1
                $region82: #{deeplab_cls_forward_test.18} parent=80 // loop_pre_header
                  _
                $region83: #{deeplab_cls_forward_test.18} parent=80 // loop_header
                  %s356 = sphi 0, %s360
                  %p357 = scmp.ge.s32.totalorder %s356, 1
                  %s361 = sphi %s273, %s273
                  %s362 = sphi %s268, %s268
                $region84: #{deeplab_cls_forward_test.18} parent=80 // loop_header_branch
                  %359 = sbr.rel (%p357) target = $region88
                $region85: #{deeplab_cls_forward_test.18} parent=80 // loop_body
                  _
                $region86: #{deeplab_cls_forward_test.18} parent=80 // loop_footer
                  %s360 = sadd.s32 1, %s356
                $region87: #{deeplab_cls_forward_test.18} parent=80 // loop_footer_branch
                  %355 = sbr.rel target = $region83
                $region88: #{deeplab_cls_forward_test.18} parent=80 // loop_exit
                  _
                loop: start=0, step=1, limit=1
                $region89: #{deeplab_cls_forward_test.18} parent=80 // loop_pre_header
                  _
                $region90: #{deeplab_cls_forward_test.18} parent=80 // loop_header
                  %s365 = sphi 0, %s369
                  %p366 = scmp.ge.s32.totalorder %s365, 1
                  %s370 = sphi %s273, %s273
                  %s371 = sphi %s268, %s268
                $region91: #{deeplab_cls_forward_test.18} parent=80 // loop_header_branch
                  %368 = sbr.rel (%p366) target = $region95
                $region92: #{deeplab_cls_forward_test.18} parent=80 // loop_body
                  %v372 = vld [vmem:[%s370] sm:$0xf]
                  %373 = vst [vmem:[%s371] sm:$0xf] %v372
                  %v374 = vld [vmem:[%s370 + $0x8] sm:$0xf]
                  %375 = vst [vmem:[%s371 + $0x4] sm:$0xf] %v374
                  %v376 = vld [vmem:[%s370 + $0x10] sm:$0xf]
                  %377 = vst [vmem:[%s371 + $0x8] sm:$0xf] %v376
                  %v378 = vld [vmem:[%s370 + $0x18] sm:$0xf]
                  %379 = vst [vmem:[%s371 + $0xc] sm:$0xf] %v378
                  %v380 = vld [vmem:[%s370 + $0x20] sm:$0xf]
                  %381 = vst [vmem:[%s371 + $0x10] sm:$0xf] %v380
                  %v382 = vld [vmem:[%s370 + $0x28] sm:$0xf]
                  %383 = vst [vmem:[%s371 + $0x14] sm:$0xf] %v382
                  %v384 = vld [vmem:[%s370 + $0x30] sm:$0xf]
                  %385 = vst [vmem:[%s371 + $0x18] sm:$0xf] %v384
                  %v386 = vld [vmem:[%s370 + $0x38] sm:$0xf]
                  %387 = vst [vmem:[%s371 + $0x1c] sm:$0xf] %v386
                  %v388 = vld [vmem:[%s370 + $0x40] sm:$0xf]
                  %389 = vst [vmem:[%s371 + $0x20] sm:$0xf] %v388
                  %v390 = vld [vmem:[%s370 + $0x48] sm:$0xf]
                  %391 = vst [vmem:[%s371 + $0x24] sm:$0xf] %v390
                  %v392 = vld [vmem:[%s370 + $0x50] sm:$0xf]
                  %393 = vst [vmem:[%s371 + $0x28] sm:$0xf] %v392
                  %v394 = vld [vmem:[%s370 + $0x58] sm:$0xf]
                  %395 = vst [vmem:[%s371 + $0x2c] sm:$0xf] %v394
                  %v396 = vld [vmem:[%s370 + $0x60] sm:$0xf]
                  %397 = vst [vmem:[%s371 + $0x30] sm:$0xf] %v396
                  %v398 = vld [vmem:[%s370 + $0x68] sm:$0xf]
                  %399 = vst [vmem:[%s371 + $0x34] sm:$0xf] %v398
                  %v400 = vld [vmem:[%s370 + $0x70] sm:$0xf]
                  %401 = vst [vmem:[%s371 + $0x38] sm:$0xf] %v400
                  %v402 = vld [vmem:[%s370 + $0x78] sm:$0xf]
                  %403 = vst [vmem:[%s371 + $0x3c] sm:$0xf] %v402
                  %v404 = vld [vmem:[%s370 + $0x80] sm:$0xf]
                  %405 = vst [vmem:[%s371 + $0x40] sm:$0xf] %v404
                  %v406 = vld [vmem:[%s370 + $0x88] sm:$0xf]
                  %407 = vst [vmem:[%s371 + $0x44] sm:$0xf] %v406
                  %v408 = vld [vmem:[%s370 + $0x90] sm:$0xf]
                  %409 = vst [vmem:[%s371 + $0x48] sm:$0xf] %v408
                  %v410 = vld [vmem:[%s370 + $0x98] sm:$0xf]
                  %411 = vst [vmem:[%s371 + $0x4c] sm:$0xf] %v410
                  %v412 = vld [vmem:[%s370 + $0xa0] sm:$0xf]
                  %413 = vst [vmem:[%s371 + $0x50] sm:$0xf] %v412
                  %v414 = vld [vmem:[%s370 + $0xa8] sm:$0xf]
                  %415 = vst [vmem:[%s371 + $0x54] sm:$0xf] %v414
                  %v416 = vld [vmem:[%s370 + $0xb0] sm:$0xf]
                  %417 = vst [vmem:[%s371 + $0x58] sm:$0xf] %v416
                  %v418 = vld [vmem:[%s370 + $0xb8] sm:$0xf]
                  %419 = vst [vmem:[%s371 + $0x5c] sm:$0xf] %v418
                  %v420 = vld [vmem:[%s370 + $0xc0] sm:$0xf]
                  %421 = vst [vmem:[%s371 + $0x60] sm:$0xf] %v420
                  %v422 = vld [vmem:[%s370 + $0xc8] sm:$0xf]
                  %423 = vst [vmem:[%s371 + $0x64] sm:$0xf] %v422
                  %v424 = vld [vmem:[%s370 + $0xd0] sm:$0xf]
                  %425 = vst [vmem:[%s371 + $0x68] sm:$0xf] %v424
                  %v426 = vld [vmem:[%s370 + $0xd8] sm:$0xf]
                  %427 = vst [vmem:[%s371 + $0x6c] sm:$0xf] %v426
                  %v428 = vld [vmem:[%s370 + $0xe0] sm:$0xf]
                  %429 = vst [vmem:[%s371 + $0x70] sm:$0xf] %v428
                  %v430 = vld [vmem:[%s370 + $0xe8] sm:$0xf]
                  %431 = vst [vmem:[%s371 + $0x74] sm:$0xf] %v430
                  %v432 = vld [vmem:[%s370 + $0xf0] sm:$0xf]
                  %433 = vst [vmem:[%s371 + $0x78] sm:$0xf] %v432
                  %v434 = vld [vmem:[%s370 + $0xf8] sm:$0xf]
                  %435 = vst [vmem:[%s371 + $0x7c] sm:$0xf] %v434
                $region93: #{deeplab_cls_forward_test.18} parent=80 // loop_footer
                  %s369 = sadd.s32 1, %s365
                $region94: #{deeplab_cls_forward_test.18} parent=80 // loop_footer_branch
                  %364 = sbr.rel target = $region90
                $region95: #{deeplab_cls_forward_test.18} parent=80 // loop_exit
                  _
              $region81: #{deeplab_cls_forward_test.18} parent=65 // pred_fallthru
                _
            $region66: #{deeplab_cls_forward_test.18} parent=61 // pred_fallthru
              _
            // Predicated region
            $region67: #{deeplab_cls_forward_test.18} parent=61 // pred_check
              _
            $region68: #{deeplab_cls_forward_test.18} parent=61 // pred_check_branch
              %279 = sbr.rel (0) target = $region70
            $region69: #{deeplab_cls_forward_test.18} parent=61 // pred_region
              loop: start=0, step=1, limit=1
              $region71: #{deeplab_cls_forward_test.18} parent=69 // loop_pre_header
                _
              $region72: #{deeplab_cls_forward_test.18} parent=69 // loop_header
                %s282 = sphi 0, %s286
                %p283 = scmp.ge.s32.totalorder %s282, 1
                %s287 = sphi %s273, %s273
                %s288 = sphi %s268, %s268
              $region73: #{deeplab_cls_forward_test.18} parent=69 // loop_header_branch
                %285 = sbr.rel (%p283) target = $region77
              $region74: #{deeplab_cls_forward_test.18} parent=69 // loop_body
                %v289 = vld [vmem:[%s287] sm:$0xf]
                %290 = vst [vmem:[%s288] sm:$0xf] %v289
                %v291 = vld [vmem:[%s287 + $0x8] sm:$0xf]
                %292 = vst [vmem:[%s288 + $0x4] sm:$0xf] %v291
                %v293 = vld [vmem:[%s287 + $0x10] sm:$0xf]
                %294 = vst [vmem:[%s288 + $0x8] sm:$0xf] %v293
                %v295 = vld [vmem:[%s287 + $0x18] sm:$0xf]
                %296 = vst [vmem:[%s288 + $0xc] sm:$0xf] %v295
                %v297 = vld [vmem:[%s287 + $0x20] sm:$0xf]
                %298 = vst [vmem:[%s288 + $0x10] sm:$0xf] %v297
                %v299 = vld [vmem:[%s287 + $0x28] sm:$0xf]
                %300 = vst [vmem:[%s288 + $0x14] sm:$0xf] %v299
                %v301 = vld [vmem:[%s287 + $0x30] sm:$0xf]
                %302 = vst [vmem:[%s288 + $0x18] sm:$0xf] %v301
                %v303 = vld [vmem:[%s287 + $0x38] sm:$0xf]
                %304 = vst [vmem:[%s288 + $0x1c] sm:$0xf] %v303
                %v305 = vld [vmem:[%s287 + $0x40] sm:$0xf]
                %306 = vst [vmem:[%s288 + $0x20] sm:$0xf] %v305
                %v307 = vld [vmem:[%s287 + $0x48] sm:$0xf]
                %308 = vst [vmem:[%s288 + $0x24] sm:$0xf] %v307
                %v309 = vld [vmem:[%s287 + $0x50] sm:$0xf]
                %310 = vst [vmem:[%s288 + $0x28] sm:$0xf] %v309
                %v311 = vld [vmem:[%s287 + $0x58] sm:$0xf]
                %312 = vst [vmem:[%s288 + $0x2c] sm:$0xf] %v311
                %v313 = vld [vmem:[%s287 + $0x60] sm:$0xf]
                %314 = vst [vmem:[%s288 + $0x30] sm:$0xf] %v313
                %v315 = vld [vmem:[%s287 + $0x68] sm:$0xf]
                %316 = vst [vmem:[%s288 + $0x34] sm:$0xf] %v315
                %v317 = vld [vmem:[%s287 + $0x70] sm:$0xf]
                %318 = vst [vmem:[%s288 + $0x38] sm:$0xf] %v317
                %v319 = vld [vmem:[%s287 + $0x78] sm:$0xf]
                %320 = vst [vmem:[%s288 + $0x3c] sm:$0xf] %v319
                %v321 = vld [vmem:[%s287 + $0x80] sm:$0xf]
                %322 = vst [vmem:[%s288 + $0x40] sm:$0xf] %v321
                %v323 = vld [vmem:[%s287 + $0x88] sm:$0xf]
                %324 = vst [vmem:[%s288 + $0x44] sm:$0xf] %v323
                %v325 = vld [vmem:[%s287 + $0x90] sm:$0xf]
                %326 = vst [vmem:[%s288 + $0x48] sm:$0xf] %v325
                %v327 = vld [vmem:[%s287 + $0x98] sm:$0xf]
                %328 = vst [vmem:[%s288 + $0x4c] sm:$0xf] %v327
                %v329 = vld [vmem:[%s287 + $0xa0] sm:$0xf]
                %330 = vst [vmem:[%s288 + $0x50] sm:$0xf] %v329
                %v331 = vld [vmem:[%s287 + $0xa8] sm:$0xf]
                %332 = vst [vmem:[%s288 + $0x54] sm:$0xf] %v331
                %v333 = vld [vmem:[%s287 + $0xb0] sm:$0xf]
                %334 = vst [vmem:[%s288 + $0x58] sm:$0xf] %v333
                %v335 = vld [vmem:[%s287 + $0xb8] sm:$0xf]
                %336 = vst [vmem:[%s288 + $0x5c] sm:$0xf] %v335
                %v337 = vld [vmem:[%s287 + $0xc0] sm:$0xf]
                %338 = vst [vmem:[%s288 + $0x60] sm:$0xf] %v337
                %v339 = vld [vmem:[%s287 + $0xc8] sm:$0xf]
                %340 = vst [vmem:[%s288 + $0x64] sm:$0xf] %v339
                %v341 = vld [vmem:[%s287 + $0xd0] sm:$0xf]
                %342 = vst [vmem:[%s288 + $0x68] sm:$0xf] %v341
                %v343 = vld [vmem:[%s287 + $0xd8] sm:$0xf]
                %344 = vst [vmem:[%s288 + $0x6c] sm:$0xf] %v343
                %v345 = vld [vmem:[%s287 + $0xe0] sm:$0xf]
                %346 = vst [vmem:[%s288 + $0x70] sm:$0xf] %v345
                %v347 = vld [vmem:[%s287 + $0xe8] sm:$0xf]
                %348 = vst [vmem:[%s288 + $0x74] sm:$0xf] %v347
                %v349 = vld [vmem:[%s287 + $0xf0] sm:$0xf]
                %350 = vst [vmem:[%s288 + $0x78] sm:$0xf] %v349
                %v351 = vld [vmem:[%s287 + $0xf8] sm:$0xf]
                %352 = vst [vmem:[%s288 + $0x7c] sm:$0xf] %v351
              $region75: #{deeplab_cls_forward_test.18} parent=69 // loop_footer
                %s286 = sadd.s32 1, %s282
              $region76: #{deeplab_cls_forward_test.18} parent=69 // loop_footer_branch
                %281 = sbr.rel target = $region72
              $region77: #{deeplab_cls_forward_test.18} parent=69 // loop_exit
                _
            $region70: #{deeplab_cls_forward_test.18} parent=61 // pred_fallthru
              _
          $region62: #{deeplab_cls_forward_test.18} parent=57 // pred_fallthru
            _
          %436 = vnop
        $region58: #{deeplab_cls_forward_test.18} parent=15 // pred_fallthru
          _
        // Predicated region
        $region96: #{deeplab_cls_forward_test.18} parent=15 // pred_check
          %p437 = pneg %p104
        $region97: #{deeplab_cls_forward_test.18} parent=15 // pred_check_branch
          %439 = sbr.rel (%p437) target = $region99
        $region98: #{deeplab_cls_forward_test.18} parent=15 // pred_region
          %p440 = scmp.lt.s32.totalorder %s17, 1
          %s441 = scalar_select %p440, %s17, 1
          %s442 = scalar_lea.vmem %s2, %s441
        $region99: #{deeplab_cls_forward_test.18} parent=15 // pred_fallthru
          _
      $region16: #{deeplab_cls_forward_test.18} parent=5 // pred_fallthru
        _
      %p443 = scmp.le.s32.totalorder 1, %s9
      %p444 = scmp.lt.s32.totalorder %s9, 11
      %p445 = pnand %p443, %p444
      %p446 = pneg %p445
      // Predicated region
      $region100: #{deeplab_cls_forward_test.18} parent=5 // pred_check
        _
      $region101: #{deeplab_cls_forward_test.18} parent=5 // pred_check_branch
        %448 = sbr.rel (%p445) target = $region103
      $region102: #{deeplab_cls_forward_test.18} parent=5 // pred_region
        %s449 = ssub.s32 %s9, 1
        %s450 = sand.u32 %s43, 1
        %s451 = sand.u32 %s43, 1
        %s452 = smul.addr %s451, 128
        %s453 = scalar_lea.vmem [#allocation3], %s452
        // Predicated region
        $region104: #{deeplab_cls_forward_test.18} parent=102 // pred_check
          %p454 = pneg %p56
        $region105: #{deeplab_cls_forward_test.18} parent=102 // pred_check_branch
          %456 = sbr.rel (%p454) target = $region107
        $region106: #{deeplab_cls_forward_test.18} parent=102 // pred_region
          _
        $region107: #{deeplab_cls_forward_test.18} parent=102 // pred_fallthru
          _
        %s457 = sand.u32 %s71, 1
        %s458 = sand.u32 %s71, 1
        %s459 = smul.addr %s458, 128
        %s460 = scalar_lea.vmem [#allocation4], %s459
        // Predicated region
        $region108: #{deeplab_cls_forward_test.18} parent=102 // pred_check
          %p461 = pneg %p84
        $region109: #{deeplab_cls_forward_test.18} parent=102 // pred_check_branch
          %463 = sbr.rel (%p461) target = $region111
        $region110: #{deeplab_cls_forward_test.18} parent=102 // pred_region
          _
        $region111: #{deeplab_cls_forward_test.18} parent=102 // pred_fallthru
          _
        %s464 = sand.u32 %s43, 1
        %s465 = sand.u32 %s43, 1
        %s466 = smul.addr %s465, 128
        %s467 = scalar_lea.vmem [#allocation3], %s466
        %p468 = pneg %p56
        %p469 = pneg %p53
        %s470 = sand.u32 %s71, 1
        %s471 = sand.u32 %s71, 1
        %s472 = smul.addr %s471, 128
        %s473 = scalar_lea.vmem [#allocation4], %s472
        %p474 = pneg %p84
        %p475 = pneg %p81
        %p476 = scmp.lt.s32.totalorder %s20, 1
        %s477 = scalar_select %p476, %s20, 1
        %s478 = scalar_lea.vmem %s2, %s477
        %p479 = pneg %p110
        %p480 = pneg %p107
        %p481 = pneg %p138
        %p482 = pneg %p135
        %s483 = sand.u32 %s125, 1
        %s484 = sand.u32 %s125, 1
        %s485 = smul.addr %s484, 64
        %s486 = scalar_lea.vmem [#allocation5], %s485
        %s487 = smul.u32 16, %s19
        %s488 = smul.u32 2, %s21
        %s489 = smul.u32 32, %s21
        %p490 = scmp.lt.s32.totalorder %s20, 1
        %s491 = scalar_select %p490, %s20, 1
        %s492 = scalar_lea.vmem %s2, %s491
        %s493 = smul.u32 16, %s19
        %p495 = scmp.eq.s32.totalorder %s21, 0
        // Predicated region
        $region112: #{deeplab_cls_forward_test.18} parent=102 // pred_check
          %p496 = pneg %p495
        $region113: #{deeplab_cls_forward_test.18} parent=102 // pred_check_branch
          %498 = sbr.rel (%p496) target = $region115
        $region114: #{deeplab_cls_forward_test.18} parent=102 // pred_region
          %499 = vst [vmem:[#allocation2] sm:$0xff] 0.0
          %500 = vst [vmem:[#allocation2 + $0x8] sm:$0xff] 0.0
          %501 = vst [vmem:[#allocation2 + $0x10] sm:$0xff] 0.0
          %502 = vst [vmem:[#allocation2 + $0x18] sm:$0xff] 0.0
          %503 = vst [vmem:[#allocation2 + $0x20] sm:$0xff] 0.0
          %504 = vst [vmem:[#allocation2 + $0x28] sm:$0xff] 0.0
          %505 = vst [vmem:[#allocation2 + $0x30] sm:$0xff] 0.0
          %506 = vst [vmem:[#allocation2 + $0x38] sm:$0xff] 0.0
          %507 = vst [vmem:[#allocation2 + $0x40] sm:$0xff] 0.0
          %508 = vst [vmem:[#allocation2 + $0x48] sm:$0xff] 0.0
          %509 = vst [vmem:[#allocation2 + $0x50] sm:$0xff] 0.0
          %510 = vst [vmem:[#allocation2 + $0x58] sm:$0xff] 0.0
          %511 = vst [vmem:[#allocation2 + $0x60] sm:$0xff] 0.0
          %512 = vst [vmem:[#allocation2 + $0x68] sm:$0xff] 0.0
          %513 = vst [vmem:[#allocation2 + $0x70] sm:$0xff] 0.0
          %514 = vst [vmem:[#allocation2 + $0x78] sm:$0xff] 0.0
        $region115: #{deeplab_cls_forward_test.18} parent=102 // pred_fallthru
          _
        %v515 = vld [vmem:[#allocation2] sm:$0xff]
        %v516 = vld [vmem:[#allocation2 + $0x8] sm:$0xff]
        %v517 = vld [vmem:[#allocation2 + $0x10] sm:$0xff]
        %v518 = vld [vmem:[#allocation2 + $0x18] sm:$0xff]
        %v519 = vld [vmem:[#allocation2 + $0x20] sm:$0xff]
        %v520 = vld [vmem:[#allocation2 + $0x28] sm:$0xff]
        %v521 = vld [vmem:[#allocation2 + $0x30] sm:$0xff]
        %v522 = vld [vmem:[#allocation2 + $0x38] sm:$0xff]
        %v523 = vld [vmem:[#allocation2 + $0x40] sm:$0xff]
        %v524 = vld [vmem:[#allocation2 + $0x48] sm:$0xff]
        %v525 = vld [vmem:[#allocation2 + $0x50] sm:$0xff]
        %v526 = vld [vmem:[#allocation2 + $0x58] sm:$0xff]
        %v527 = vld [vmem:[#allocation2 + $0x60] sm:$0xff]
        %v528 = vld [vmem:[#allocation2 + $0x68] sm:$0xff]
        %v529 = vld [vmem:[#allocation2 + $0x70] sm:$0xff]
        %v530 = vld [vmem:[#allocation2 + $0x78] sm:$0xff]
        %v531 = vld [vmem:[%s453] sm:$0xff]
        %v532 = vld [vmem:[%s453 + $0x8] sm:$0xff]
        %v533 = vld [vmem:[%s453 + $0x10] sm:$0xff]
        %v534 = vld [vmem:[%s453 + $0x18] sm:$0xff]
        %v535 = vld [vmem:[%s453 + $0x20] sm:$0xff]
        %v536 = vld [vmem:[%s453 + $0x28] sm:$0xff]
        %v537 = vld [vmem:[%s453 + $0x30] sm:$0xff]
        %v538 = vld [vmem:[%s453 + $0x38] sm:$0xff]
        %v539 = vld [vmem:[%s453 + $0x40] sm:$0xff]
        %v540 = vld [vmem:[%s453 + $0x48] sm:$0xff]
        %v541 = vld [vmem:[%s453 + $0x50] sm:$0xff]
        %v542 = vld [vmem:[%s453 + $0x58] sm:$0xff]
        %v543 = vld [vmem:[%s453 + $0x60] sm:$0xff]
        %v544 = vld [vmem:[%s453 + $0x68] sm:$0xff]
        %v545 = vld [vmem:[%s453 + $0x70] sm:$0xff]
        %v546 = vld [vmem:[%s453 + $0x78] sm:$0xff]
        %v547 = vld [vmem:[%s460] sm:$0xf]
        %v548 = vld [vmem:[%s460 + $0x4] sm:$0xf]
        %v549 = vld [vmem:[%s460 + $0x8] sm:$0xf]
        %v550 = vld [vmem:[%s460 + $0xc] sm:$0xf]
        %v551 = vld [vmem:[%s460 + $0x10] sm:$0xf]
        %v552 = vld [vmem:[%s460 + $0x14] sm:$0xf]
        %v553 = vld [vmem:[%s460 + $0x18] sm:$0xf]
        %v554 = vld [vmem:[%s460 + $0x1c] sm:$0xf]
        %v555 = vld [vmem:[%s460 + $0x20] sm:$0xf]
        %v556 = vld [vmem:[%s460 + $0x24] sm:$0xf]
        %v557 = vld [vmem:[%s460 + $0x28] sm:$0xf]
        %v558 = vld [vmem:[%s460 + $0x2c] sm:$0xf]
        %v559 = vld [vmem:[%s460 + $0x30] sm:$0xf]
        %v560 = vld [vmem:[%s460 + $0x34] sm:$0xf]
        %v561 = vld [vmem:[%s460 + $0x38] sm:$0xf]
        %v562 = vld [vmem:[%s460 + $0x3c] sm:$0xf]
        %v563 = vld [vmem:[%s460 + $0x40] sm:$0xf]
        %v564 = vld [vmem:[%s460 + $0x44] sm:$0xf]
        %v565 = vld [vmem:[%s460 + $0x48] sm:$0xf]
        %v566 = vld [vmem:[%s460 + $0x4c] sm:$0xf]
        %v567 = vld [vmem:[%s460 + $0x50] sm:$0xf]
        %v568 = vld [vmem:[%s460 + $0x54] sm:$0xf]
        %v569 = vld [vmem:[%s460 + $0x58] sm:$0xf]
        %v570 = vld [vmem:[%s460 + $0x5c] sm:$0xf]
        %v571 = vld [vmem:[%s460 + $0x60] sm:$0xf]
        %v572 = vld [vmem:[%s460 + $0x64] sm:$0xf]
        %v573 = vld [vmem:[%s460 + $0x68] sm:$0xf]
        %v574 = vld [vmem:[%s460 + $0x6c] sm:$0xf]
        %v575 = vld [vmem:[%s460 + $0x70] sm:$0xf]
        %v576 = vld [vmem:[%s460 + $0x74] sm:$0xf]
        %v577 = vld [vmem:[%s460 + $0x78] sm:$0xf]
        %v578 = vld [vmem:[%s460 + $0x7c] sm:$0xf]
        %v595 = vunpack.c.l.b16 %v531
        %v596 = vunpack.c.h.b16 %v531
        %v597 = vunpack.c.l.b16 %v532
        %v598 = vunpack.c.h.b16 %v532
        %v599 = vunpack.c.l.b16 %v533
        %v600 = vunpack.c.h.b16 %v533
        %v601 = vunpack.c.l.b16 %v534
        %v602 = vunpack.c.h.b16 %v534
        %v603 = vunpack.c.l.b16 %v535
        %v604 = vunpack.c.h.b16 %v535
        %v605 = vunpack.c.l.b16 %v536
        %v606 = vunpack.c.h.b16 %v536
        %v607 = vunpack.c.l.b16 %v537
        %v608 = vunpack.c.h.b16 %v537
        %v609 = vunpack.c.l.b16 %v538
        %v610 = vunpack.c.h.b16 %v538
        %v611 = vunpack.c.l.b16 %v539
        %v612 = vunpack.c.h.b16 %v539
        %v613 = vunpack.c.l.b16 %v540
        %v614 = vunpack.c.h.b16 %v540
        %v615 = vunpack.c.l.b16 %v541
        %v616 = vunpack.c.h.b16 %v541
        %v617 = vunpack.c.l.b16 %v542
        %v618 = vunpack.c.h.b16 %v542
        %v619 = vunpack.c.l.b16 %v543
        %v620 = vunpack.c.h.b16 %v543
        %v621 = vunpack.c.l.b16 %v544
        %v622 = vunpack.c.h.b16 %v544
        %v623 = vunpack.c.l.b16 %v545
        %v624 = vunpack.c.h.b16 %v545
        %v625 = vunpack.c.l.b16 %v546
        %v626 = vunpack.c.h.b16 %v546
        %v627 = vpack.c.b16 %v597, %v595
        %v628 = vpack.c.b16 %v598, %v596
        %v629 = vpack.c.b16 %v601, %v599
        %v630 = vpack.c.b16 %v602, %v600
        %v631 = vpack.c.b16 %v605, %v603
        %v632 = vpack.c.b16 %v606, %v604
        %v633 = vpack.c.b16 %v609, %v607
        %v634 = vpack.c.b16 %v610, %v608
        %v635 = vpack.c.b16 %v613, %v611
        %v636 = vpack.c.b16 %v614, %v612
        %v637 = vpack.c.b16 %v617, %v615
        %v638 = vpack.c.b16 %v618, %v616
        %v639 = vpack.c.b16 %v621, %v619
        %v640 = vpack.c.b16 %v622, %v620
        %v641 = vpack.c.b16 %v625, %v623
        %v642 = vpack.c.b16 %v626, %v624
        %v691 = vunpack.c.l.b16 %v547
        %v692 = vunpack.c.l.b16 %v548
        %v693 = vunpack.c.l.b16 %v549
        %v694 = vunpack.c.l.b16 %v550
        %v695 = vunpack.c.l.b16 %v551
        %v696 = vunpack.c.l.b16 %v552
        %v697 = vunpack.c.l.b16 %v553
        %v698 = vunpack.c.l.b16 %v554
        %v699 = vunpack.c.l.b16 %v555
        %v700 = vunpack.c.l.b16 %v556
        %v701 = vunpack.c.l.b16 %v557
        %v702 = vunpack.c.l.b16 %v558
        %v703 = vunpack.c.l.b16 %v559
        %v704 = vunpack.c.l.b16 %v560
        %v705 = vunpack.c.l.b16 %v561
        %v706 = vunpack.c.l.b16 %v562
        %v707 = vunpack.c.l.b16 %v563
        %v708 = vunpack.c.l.b16 %v564
        %v709 = vunpack.c.l.b16 %v565
        %v710 = vunpack.c.l.b16 %v566
        %v711 = vunpack.c.l.b16 %v567
        %v712 = vunpack.c.l.b16 %v568
        %v713 = vunpack.c.l.b16 %v569
        %v714 = vunpack.c.l.b16 %v570
        %v715 = vunpack.c.l.b16 %v571
        %v716 = vunpack.c.l.b16 %v572
        %v717 = vunpack.c.l.b16 %v573
        %v718 = vunpack.c.l.b16 %v574
        %v719 = vunpack.c.l.b16 %v575
        %v720 = vunpack.c.l.b16 %v576
        %v721 = vunpack.c.l.b16 %v577
        %v722 = vunpack.c.l.b16 %v578
        %v723 = vpack.c.b16 %v692, %v691
        %v724 = vpack.c.b16 %v694, %v693
        %v725 = vpack.c.b16 %v696, %v695
        %v726 = vpack.c.b16 %v698, %v697
        %v727 = vpack.c.b16 %v700, %v699
        %v728 = vpack.c.b16 %v702, %v701
        %v729 = vpack.c.b16 %v704, %v703
        %v730 = vpack.c.b16 %v706, %v705
        %v731 = vpack.c.b16 %v708, %v707
        %v732 = vpack.c.b16 %v710, %v709
        %v733 = vpack.c.b16 %v712, %v711
        %v734 = vpack.c.b16 %v714, %v713
        %v735 = vpack.c.b16 %v716, %v715
        %v736 = vpack.c.b16 %v718, %v717
        %v737 = vpack.c.b16 %v720, %v719
        %v738 = vpack.c.b16 %v722, %v721
        %755 = vmatprep.subr.bf16.mxu0 0
        %756 = vmatpush1.bf16.msra.mxu0 %v723
        %757 = vmatprep.subr.bf16.mxu0 0
        %758 = vmatpush1.bf16.msra.mxu0 %v724
        %759 = vmatprep.subr.bf16.mxu0 0
        %760 = vmatpush1.bf16.msra.mxu0 %v725
        %761 = vmatprep.subr.bf16.mxu0 0
        %762 = vmatpush1.bf16.msra.mxu0 %v726
        %763 = vmatprep.subr.bf16.mxu0 0
        %764 = vmatpush1.bf16.msra.mxu0 %v727
        %765 = vmatprep.subr.bf16.mxu0 0
        %766 = vmatpush1.bf16.msra.mxu0 %v728
        %767 = vmatprep.subr.bf16.mxu0 0
        %768 = vmatpush1.bf16.msra.mxu0 %v729
        %769 = vmatprep.subr.bf16.mxu0 0
        %770 = vmatpush1.bf16.msra.mxu0 %v730
        %771 = vmatprep.subr.bf16.mxu0 0
        %772 = vmatpush1.bf16.msra.mxu0 %v731
        %773 = vmatprep.subr.bf16.mxu0 0
        %774 = vmatpush1.bf16.msra.mxu0 %v732
        %775 = vmatprep.subr.bf16.mxu0 0
        %776 = vmatpush1.bf16.msra.mxu0 %v733
        %777 = vmatprep.subr.bf16.mxu0 0
        %778 = vmatpush1.bf16.msra.mxu0 %v734
        %779 = vmatprep.subr.bf16.mxu0 0
        %780 = vmatpush1.bf16.msra.mxu0 %v735
        %781 = vmatprep.subr.bf16.mxu0 0
        %782 = vmatpush1.bf16.msra.mxu0 %v736
        %783 = vmatprep.subr.bf16.mxu0 0
        %784 = vmatpush1.bf16.msra.mxu0 %v737
        %785 = vmatprep.subr.bf16.mxu0 0
        %786 = vmatpush1.bf16.msra.mxu0 %v738
        %787 = vmatprep.mubr.bf16.mxu0 %v628
        %788 = vmatmul.mubr.bf16.gmra.mrb[0].mxu0 %v627
        %v789 = vpop.f32.mrb[0].mxu0
        %v790 = vadd.f32 0.0, %v789
        %v791 = vpop.f32.mrb[0].mxu0
        %v792 = vpop.f32.mrb[0].mxu0
        %v793 = vadd.f32 0.0, %v792
        %v794 = vpop.f32.mrb[0].mxu0
        %795 = vmatprep.mubr.bf16.mxu0 %v630
        %796 = vmatmul.mubr.bf16.gmra.mrb[0].mxu0 %v629
        %v797 = vpop.f32.mrb[0].mxu0
        %v798 = vadd.f32 0.0, %v797
        %v799 = vpop.f32.mrb[0].mxu0
        %v800 = vpop.f32.mrb[0].mxu0
        %v801 = vadd.f32 0.0, %v800
        %v802 = vpop.f32.mrb[0].mxu0
        %803 = vmatprep.mubr.bf16.mxu0 %v632
        %804 = vmatmul.mubr.bf16.gmra.mrb[0].mxu0 %v631
        %v805 = vpop.f32.mrb[0].mxu0
        %v806 = vadd.f32 0.0, %v805
        %v807 = vpop.f32.mrb[0].mxu0
        %v808 = vpop.f32.mrb[0].mxu0
        %v809 = vadd.f32 0.0, %v808
        %v810 = vpop.f32.mrb[0].mxu0
        %811 = vmatprep.mubr.bf16.mxu0 %v634
        %812 = vmatmul.mubr.bf16.gmra.mrb[0].mxu0 %v633
        %v813 = vpop.f32.mrb[0].mxu0
        %v814 = vadd.f32 0.0, %v813
        %v815 = vpop.f32.mrb[0].mxu0
        %v816 = vpop.f32.mrb[0].mxu0
        %v817 = vadd.f32 0.0, %v816
        %v818 = vpop.f32.mrb[0].mxu0
        %819 = vmatprep.mubr.bf16.mxu0 %v636
        %820 = vmatmul.mubr.bf16.gmra.mrb[0].mxu0 %v635
        %v821 = vpop.f32.mrb[0].mxu0
        %v822 = vadd.f32 0.0, %v821
        %v823 = vpop.f32.mrb[0].mxu0
        %v824 = vpop.f32.mrb[0].mxu0
        %v825 = vadd.f32 0.0, %v824
        %v826 = vpop.f32.mrb[0].mxu0
        %827 = vmatprep.mubr.bf16.mxu0 %v638
        %828 = vmatmul.mubr.bf16.gmra.mrb[0].mxu0 %v637
        %v829 = vpop.f32.mrb[0].mxu0
        %v830 = vadd.f32 0.0, %v829
        %v831 = vpop.f32.mrb[0].mxu0
        %v832 = vpop.f32.mrb[0].mxu0
        %v833 = vadd.f32 0.0, %v832
        %v834 = vpop.f32.mrb[0].mxu0
        %835 = vmatprep.mubr.bf16.mxu0 %v640
        %836 = vmatmul.mubr.bf16.gmra.mrb[0].mxu0 %v639
        %v837 = vpop.f32.mrb[0].mxu0
        %v838 = vadd.f32 0.0, %v837
        %v839 = vpop.f32.mrb[0].mxu0
        %v840 = vpop.f32.mrb[0].mxu0
        %v841 = vadd.f32 0.0, %v840
        %v842 = vpop.f32.mrb[0].mxu0
        %843 = vmatprep.mubr.bf16.mxu0 %v642
        %844 = vmatmul.mubr.bf16.gmra.mrb[0].mxu0 %v641
        %v845 = vpop.f32.mrb[0].mxu0
        %v846 = vadd.f32 0.0, %v845
        %v847 = vpop.f32.mrb[0].mxu0
        %v848 = vpop.f32.mrb[0].mxu0
        %v849 = vadd.f32 0.0, %v848
        %v850 = vpop.f32.mrb[0].mxu0
        %851 = vdwg.mxu0
        %v852 = vadd.f32 %v515, %v790
        %v853 = vadd.f32 %v516, %v793
        %v854 = vadd.f32 %v517, %v798
        %v855 = vadd.f32 %v518, %v801
        %v856 = vadd.f32 %v519, %v806
        %v857 = vadd.f32 %v520, %v809
        %v858 = vadd.f32 %v521, %v814
        %v859 = vadd.f32 %v522, %v817
        %v860 = vadd.f32 %v523, %v822
        %v861 = vadd.f32 %v524, %v825
        %v862 = vadd.f32 %v525, %v830
        %v863 = vadd.f32 %v526, %v833
        %v864 = vadd.f32 %v527, %v838
        %v865 = vadd.f32 %v528, %v841
        %v866 = vadd.f32 %v529, %v846
        %v867 = vadd.f32 %v530, %v849
        %868 = vst [vmem:[#allocation2] sm:$0xff] %v852
        %869 = vst [vmem:[#allocation2 + $0x8] sm:$0xff] %v853
        %870 = vst [vmem:[#allocation2 + $0x10] sm:$0xff] %v854
        %871 = vst [vmem:[#allocation2 + $0x18] sm:$0xff] %v855
        %872 = vst [vmem:[#allocation2 + $0x20] sm:$0xff] %v856
        %873 = vst [vmem:[#allocation2 + $0x28] sm:$0xff] %v857
        %874 = vst [vmem:[#allocation2 + $0x30] sm:$0xff] %v858
        %875 = vst [vmem:[#allocation2 + $0x38] sm:$0xff] %v859
        %876 = vst [vmem:[#allocation2 + $0x40] sm:$0xff] %v860
        %877 = vst [vmem:[#allocation2 + $0x48] sm:$0xff] %v861
        %878 = vst [vmem:[#allocation2 + $0x50] sm:$0xff] %v862
        %879 = vst [vmem:[#allocation2 + $0x58] sm:$0xff] %v863
        %880 = vst [vmem:[#allocation2 + $0x60] sm:$0xff] %v864
        %881 = vst [vmem:[#allocation2 + $0x68] sm:$0xff] %v865
        %882 = vst [vmem:[#allocation2 + $0x70] sm:$0xff] %v866
        %883 = vst [vmem:[#allocation2 + $0x78] sm:$0xff] %v867
        %p884 = scmp.eq.s32.totalorder %s21, 4
        // Predicated region
        $region116: #{deeplab_cls_forward_test.18} parent=102 // pred_check
          %p885 = pneg %p884
        $region117: #{deeplab_cls_forward_test.18} parent=102 // pred_check_branch
          %887 = sbr.rel (%p885) target = $region119
        $region118: #{deeplab_cls_forward_test.18} parent=102 // pred_region
          %v888 = vld [vmem:[#allocation2] sm:$0xff]
          %v889 = vld [vmem:[#allocation2 + $0x8] sm:$0xff]
          %v890 = vld [vmem:[#allocation2 + $0x10] sm:$0xff]
          %v891 = vld [vmem:[#allocation2 + $0x18] sm:$0xff]
          %v892 = vld [vmem:[#allocation2 + $0x20] sm:$0xff]
          %v893 = vld [vmem:[#allocation2 + $0x28] sm:$0xff]
          %v894 = vld [vmem:[#allocation2 + $0x30] sm:$0xff]
          %v895 = vld [vmem:[#allocation2 + $0x38] sm:$0xff]
          %v896 = vld [vmem:[#allocation2 + $0x40] sm:$0xff]
          %v897 = vld [vmem:[#allocation2 + $0x48] sm:$0xff]
          %v898 = vld [vmem:[#allocation2 + $0x50] sm:$0xff]
          %v899 = vld [vmem:[#allocation2 + $0x58] sm:$0xff]
          %v900 = vld [vmem:[#allocation2 + $0x60] sm:$0xff]
          %v901 = vld [vmem:[#allocation2 + $0x68] sm:$0xff]
          %v902 = vld [vmem:[#allocation2 + $0x70] sm:$0xff]
          %v903 = vld [vmem:[#allocation2 + $0x78] sm:$0xff]
          %v904 = vld [vmem:[%s492] sm:$0x1]
          %v906 = vlaneseq
          %v907 = vshrl.u32 %v906, 7
          %v908 = vsub.s32 0, %v907
          %v909 = vrot.slane %v904, %v908
          %v911 = vadd.f32 %v888, %v909
          %v912 = vadd.f32 %v889, %v909
          %v913 = vadd.f32 %v890, %v909
          %v914 = vadd.f32 %v891, %v909
          %v915 = vadd.f32 %v892, %v909
          %v916 = vadd.f32 %v893, %v909
          %v917 = vadd.f32 %v894, %v909
          %v918 = vadd.f32 %v895, %v909
          %v919 = vadd.f32 %v896, %v909
          %v920 = vadd.f32 %v897, %v909
          %v921 = vadd.f32 %v898, %v909
          %v922 = vadd.f32 %v899, %v909
          %v923 = vadd.f32 %v900, %v909
          %v924 = vadd.f32 %v901, %v909
          %v925 = vadd.f32 %v902, %v909
          %v926 = vadd.f32 %v903, %v909
          %vm927 = vcmp.gt.f32.partialorder %v911, 0.0
          %vm928 = vcmp.gt.f32.partialorder %v912, 0.0
          %vm929 = vcmp.gt.f32.partialorder %v913, 0.0
          %vm930 = vcmp.gt.f32.partialorder %v914, 0.0
          %vm931 = vcmp.gt.f32.partialorder %v915, 0.0
          %vm932 = vcmp.gt.f32.partialorder %v916, 0.0
          %vm933 = vcmp.gt.f32.partialorder %v917, 0.0
          %vm934 = vcmp.gt.f32.partialorder %v918, 0.0
          %vm935 = vcmp.gt.f32.partialorder %v919, 0.0
          %vm936 = vcmp.gt.f32.partialorder %v920, 0.0
          %vm937 = vcmp.gt.f32.partialorder %v921, 0.0
          %vm938 = vcmp.gt.f32.partialorder %v922, 0.0
          %vm939 = vcmp.gt.f32.partialorder %v923, 0.0
          %vm940 = vcmp.gt.f32.partialorder %v924, 0.0
          %vm941 = vcmp.gt.f32.partialorder %v925, 0.0
          %vm942 = vcmp.gt.f32.partialorder %v926, 0.0
          %v943 = vmin.f32 %v911, 0.0
          %v944 = vmin.f32 %v912, 0.0
          %v945 = vmin.f32 %v913, 0.0
          %v946 = vmin.f32 %v914, 0.0
          %v947 = vmin.f32 %v915, 0.0
          %v948 = vmin.f32 %v916, 0.0
          %v949 = vmin.f32 %v917, 0.0
          %v950 = vmin.f32 %v918, 0.0
          %v951 = vmin.f32 %v919, 0.0
          %v952 = vmin.f32 %v920, 0.0
          %v953 = vmin.f32 %v921, 0.0
          %v954 = vmin.f32 %v922, 0.0
          %v955 = vmin.f32 %v923, 0.0
          %v956 = vmin.f32 %v924, 0.0
          %v957 = vmin.f32 %v925, 0.0
          %v958 = vmin.f32 %v926, 0.0
          %v959 = vmul.f32 %v943, 1.442695
          %v960 = vpow.pop %v959
          %v961 = vmul.f32 %v944, 1.442695
          %v962 = vpow.pop %v961
          %v963 = vmul.f32 %v945, 1.442695
          %v964 = vpow.pop %v963
          %v965 = vmul.f32 %v946, 1.442695
          %v966 = vpow.pop %v965
          %v967 = vmul.f32 %v947, 1.442695
          %v968 = vpow.pop %v967
          %v969 = vmul.f32 %v948, 1.442695
          %v970 = vpow.pop %v969
          %v971 = vmul.f32 %v949, 1.442695
          %v972 = vpow.pop %v971
          %v973 = vmul.f32 %v950, 1.442695
          %v974 = vpow.pop %v973
          %v975 = vmul.f32 %v951, 1.442695
          %v976 = vpow.pop %v975
          %v977 = vmul.f32 %v952, 1.442695
          %v978 = vpow.pop %v977
          %v979 = vmul.f32 %v953, 1.442695
          %v980 = vpow.pop %v979
          %v981 = vmul.f32 %v954, 1.442695
          %v982 = vpow.pop %v981
          %v983 = vmul.f32 %v955, 1.442695
          %v984 = vpow.pop %v983
          %v985 = vmul.f32 %v956, 1.442695
          %v986 = vpow.pop %v985
          %v987 = vmul.f32 %v957, 1.442695
          %v988 = vpow.pop %v987
          %v989 = vmul.f32 %v958, 1.442695
          %v990 = vpow.pop %v989
          %v991 = vsub.f32 %v960, 1.0
          %v992 = vsub.f32 %v962, 1.0
          %v993 = vsub.f32 %v964, 1.0
          %v994 = vsub.f32 %v966, 1.0
          %v995 = vsub.f32 %v968, 1.0
          %v996 = vsub.f32 %v970, 1.0
          %v997 = vsub.f32 %v972, 1.0
          %v998 = vsub.f32 %v974, 1.0
          %v999 = vsub.f32 %v976, 1.0
          %v1000 = vsub.f32 %v978, 1.0
          %v1001 = vsub.f32 %v980, 1.0
          %v1002 = vsub.f32 %v982, 1.0
          %v1003 = vsub.f32 %v984, 1.0
          %v1004 = vsub.f32 %v986, 1.0
          %v1005 = vsub.f32 %v988, 1.0
          %v1006 = vsub.f32 %v990, 1.0
          %v1007 = vsel %vm927, %v911, %v991
          %v1008 = vsel %vm928, %v912, %v992
          %v1009 = vsel %vm929, %v913, %v993
          %v1010 = vsel %vm930, %v914, %v994
          %v1011 = vsel %vm931, %v915, %v995
          %v1012 = vsel %vm932, %v916, %v996
          %v1013 = vsel %vm933, %v917, %v997
          %v1014 = vsel %vm934, %v918, %v998
          %v1015 = vsel %vm935, %v919, %v999
          %v1016 = vsel %vm936, %v920, %v1000
          %v1017 = vsel %vm937, %v921, %v1001
          %v1018 = vsel %vm938, %v922, %v1002
          %v1019 = vsel %vm939, %v923, %v1003
          %v1020 = vsel %vm940, %v924, %v1004
          %v1021 = vsel %vm941, %v925, %v1005
          %v1022 = vsel %vm942, %v926, %v1006
          %v1023 = vpack.c.bf16 %v1008, %v1007
          %v1024 = vpack.c.bf16 %v1010, %v1009
          %v1025 = vpack.c.bf16 %v1012, %v1011
          %v1026 = vpack.c.bf16 %v1014, %v1013
          %v1027 = vpack.c.bf16 %v1016, %v1015
          %v1028 = vpack.c.bf16 %v1018, %v1017
          %v1029 = vpack.c.bf16 %v1020, %v1019
          %v1030 = vpack.c.bf16 %v1022, %v1021
          %v1039 = vunpack.c.l.b16 %v1023
          %v1040 = vunpack.c.h.b16 %v1023
          %v1041 = vunpack.c.l.b16 %v1024
          %v1042 = vunpack.c.h.b16 %v1024
          %v1043 = vunpack.c.l.b16 %v1025
          %v1044 = vunpack.c.h.b16 %v1025
          %v1045 = vunpack.c.l.b16 %v1026
          %v1046 = vunpack.c.h.b16 %v1026
          %v1047 = vunpack.c.l.b16 %v1027
          %v1048 = vunpack.c.h.b16 %v1027
          %v1049 = vunpack.c.l.b16 %v1028
          %v1050 = vunpack.c.h.b16 %v1028
          %v1051 = vunpack.c.l.b16 %v1029
          %v1052 = vunpack.c.h.b16 %v1029
          %v1053 = vunpack.c.l.b16 %v1030
          %v1054 = vunpack.c.h.b16 %v1030
          %v1055 = vpack.c.b16 %v1039, %v1039
          %v1056 = vpack.c.b16 %v1040, %v1040
          %v1057 = vpack.c.b16 %v1041, %v1041
          %v1058 = vpack.c.b16 %v1042, %v1042
          %v1059 = vpack.c.b16 %v1043, %v1043
          %v1060 = vpack.c.b16 %v1044, %v1044
          %v1061 = vpack.c.b16 %v1045, %v1045
          %v1062 = vpack.c.b16 %v1046, %v1046
          %v1063 = vpack.c.b16 %v1047, %v1047
          %v1064 = vpack.c.b16 %v1048, %v1048
          %v1065 = vpack.c.b16 %v1049, %v1049
          %v1066 = vpack.c.b16 %v1050, %v1050
          %v1067 = vpack.c.b16 %v1051, %v1051
          %v1068 = vpack.c.b16 %v1052, %v1052
          %v1069 = vpack.c.b16 %v1053, %v1053
          %v1070 = vpack.c.b16 %v1054, %v1054
          %1087 = vst [vmem:[%s486] sm:$0xf] %v1055
          %1088 = vst [vmem:[%s486 + $0x4] sm:$0xf] %v1056
          %1089 = vst [vmem:[%s486 + $0x8] sm:$0xf] %v1057
          %1090 = vst [vmem:[%s486 + $0xc] sm:$0xf] %v1058
          %1091 = vst [vmem:[%s486 + $0x10] sm:$0xf] %v1059
          %1092 = vst [vmem:[%s486 + $0x14] sm:$0xf] %v1060
          %1093 = vst [vmem:[%s486 + $0x18] sm:$0xf] %v1061
          %1094 = vst [vmem:[%s486 + $0x1c] sm:$0xf] %v1062
          %1095 = vst [vmem:[%s486 + $0x20] sm:$0xf] %v1063
          %1096 = vst [vmem:[%s486 + $0x24] sm:$0xf] %v1064
          %1097 = vst [vmem:[%s486 + $0x28] sm:$0xf] %v1065
          %1098 = vst [vmem:[%s486 + $0x2c] sm:$0xf] %v1066
          %1099 = vst [vmem:[%s486 + $0x30] sm:$0xf] %v1067
          %1100 = vst [vmem:[%s486 + $0x34] sm:$0xf] %v1068
          %1101 = vst [vmem:[%s486 + $0x38] sm:$0xf] %v1069
          %1102 = vst [vmem:[%s486 + $0x3c] sm:$0xf] %v1070
        $region119: #{deeplab_cls_forward_test.18} parent=102 // pred_fallthru
          _
        %s1103 = sand.u32 %s125, 1
        %s1104 = sand.u32 %s125, 1
        %s1105 = smul.addr %s1104, 64
        %s1106 = scalar_lea.vmem [#allocation5], %s1105
        // Predicated region
        $region120: #{deeplab_cls_forward_test.18} parent=102 // pred_check
          %p1107 = pneg %p135
        $region121: #{deeplab_cls_forward_test.18} parent=102 // pred_check_branch
          %1109 = sbr.rel (%p1107) target = $region123
        $region122: #{deeplab_cls_forward_test.18} parent=102 // pred_region
          %s1110 = smul.u32 16, %s19
          %s1111 = smul.addr %s1110, 2
          %s1112 = sadd.s32 %s20, %s1111
          %s1113 = smul.addr %s1112, 4
          %s1114 = scalar_lea.vmem %s3, %s1113
          // Predicated region
          $region124: #{deeplab_cls_forward_test.18} parent=122 // pred_check
            _
          $region125: #{deeplab_cls_forward_test.18} parent=122 // pred_check_branch
            %1116 = sbr.rel (0) target = $region127
          $region126: #{deeplab_cls_forward_test.18} parent=122 // pred_region
            // Predicated region
            $region128: #{deeplab_cls_forward_test.18} parent=126 // pred_check
              _
            $region129: #{deeplab_cls_forward_test.18} parent=126 // pred_check_branch
              %1118 = sbr.rel target = $region131
            $region130: #{deeplab_cls_forward_test.18} parent=126 // pred_region
              // Predicated region
              $region143: #{deeplab_cls_forward_test.18} parent=130 // pred_check
                _
              $region144: #{deeplab_cls_forward_test.18} parent=130 // pred_check_branch
                %1163 = sbr.rel (0) target = $region146
              $region145: #{deeplab_cls_forward_test.18} parent=130 // pred_region
                loop: start=0, step=1, limit=1
                $region147: #{deeplab_cls_forward_test.18} parent=145 // loop_pre_header
                  _
                $region148: #{deeplab_cls_forward_test.18} parent=145 // loop_header
                  %s1165 = sphi 0, %s1169
                  %p1166 = scmp.ge.s32.totalorder %s1165, 1
                  %s1170 = sphi %s1106, %s1106
                  %s1171 = sphi %s1114, %s1114
                $region149: #{deeplab_cls_forward_test.18} parent=145 // loop_header_branch
                  %1168 = sbr.rel (%p1166) target = $region153
                $region150: #{deeplab_cls_forward_test.18} parent=145 // loop_body
                  _
                $region151: #{deeplab_cls_forward_test.18} parent=145 // loop_footer
                  %s1169 = sadd.s32 1, %s1165
                $region152: #{deeplab_cls_forward_test.18} parent=145 // loop_footer_branch
                  %1164 = sbr.rel target = $region148
                $region153: #{deeplab_cls_forward_test.18} parent=145 // loop_exit
                  _
                loop: start=0, step=1, limit=1
                $region154: #{deeplab_cls_forward_test.18} parent=145 // loop_pre_header
                  _
                $region155: #{deeplab_cls_forward_test.18} parent=145 // loop_header
                  %s1174 = sphi 0, %s1178
                  %p1175 = scmp.ge.s32.totalorder %s1174, 1
                  %s1179 = sphi %s1106, %s1106
                  %s1180 = sphi %s1114, %s1114
                $region156: #{deeplab_cls_forward_test.18} parent=145 // loop_header_branch
                  %1177 = sbr.rel (%p1175) target = $region160
                $region157: #{deeplab_cls_forward_test.18} parent=145 // loop_body
                  %v1181 = vld [vmem:[%s1179] sm:$0xf]
                  %1182 = vst [vmem:[%s1180] sm:$0xf] %v1181
                  %v1183 = vld [vmem:[%s1179 + $0x4] sm:$0xf]
                  %1184 = vst [vmem:[%s1180 + $0x8] sm:$0xf] %v1183
                  %v1185 = vld [vmem:[%s1179 + $0x8] sm:$0xf]
                  %1186 = vst [vmem:[%s1180 + $0x10] sm:$0xf] %v1185
                  %v1187 = vld [vmem:[%s1179 + $0xc] sm:$0xf]
                  %1188 = vst [vmem:[%s1180 + $0x18] sm:$0xf] %v1187
                  %v1189 = vld [vmem:[%s1179 + $0x10] sm:$0xf]
                  %1190 = vst [vmem:[%s1180 + $0x20] sm:$0xf] %v1189
                  %v1191 = vld [vmem:[%s1179 + $0x14] sm:$0xf]
                  %1192 = vst [vmem:[%s1180 + $0x28] sm:$0xf] %v1191
                  %v1193 = vld [vmem:[%s1179 + $0x18] sm:$0xf]
                  %1194 = vst [vmem:[%s1180 + $0x30] sm:$0xf] %v1193
                  %v1195 = vld [vmem:[%s1179 + $0x1c] sm:$0xf]
                  %1196 = vst [vmem:[%s1180 + $0x38] sm:$0xf] %v1195
                  %v1197 = vld [vmem:[%s1179 + $0x20] sm:$0xf]
                  %1198 = vst [vmem:[%s1180 + $0x40] sm:$0xf] %v1197
                  %v1199 = vld [vmem:[%s1179 + $0x24] sm:$0xf]
                  %1200 = vst [vmem:[%s1180 + $0x48] sm:$0xf] %v1199
                  %v1201 = vld [vmem:[%s1179 + $0x28] sm:$0xf]
                  %1202 = vst [vmem:[%s1180 + $0x50] sm:$0xf] %v1201
                  %v1203 = vld [vmem:[%s1179 + $0x2c] sm:$0xf]
                  %1204 = vst [vmem:[%s1180 + $0x58] sm:$0xf] %v1203
                  %v1205 = vld [vmem:[%s1179 + $0x30] sm:$0xf]
                  %1206 = vst [vmem:[%s1180 + $0x60] sm:$0xf] %v1205
                  %v1207 = vld [vmem:[%s1179 + $0x34] sm:$0xf]
                  %1208 = vst [vmem:[%s1180 + $0x68] sm:$0xf] %v1207
                  %v1209 = vld [vmem:[%s1179 + $0x38] sm:$0xf]
                  %1210 = vst [vmem:[%s1180 + $0x70] sm:$0xf] %v1209
                  %v1211 = vld [vmem:[%s1179 + $0x3c] sm:$0xf]
                  %1212 = vst [vmem:[%s1180 + $0x78] sm:$0xf] %v1211
                $region158: #{deeplab_cls_forward_test.18} parent=145 // loop_footer
                  %s1178 = sadd.s32 1, %s1174
                $region159: #{deeplab_cls_forward_test.18} parent=145 // loop_footer_branch
                  %1173 = sbr.rel target = $region155
                $region160: #{deeplab_cls_forward_test.18} parent=145 // loop_exit
                  _
              $region146: #{deeplab_cls_forward_test.18} parent=130 // pred_fallthru
                _
            $region131: #{deeplab_cls_forward_test.18} parent=126 // pred_fallthru
              _
            // Predicated region
            $region132: #{deeplab_cls_forward_test.18} parent=126 // pred_check
              _
            $region133: #{deeplab_cls_forward_test.18} parent=126 // pred_check_branch
              %1120 = sbr.rel (0) target = $region135
            $region134: #{deeplab_cls_forward_test.18} parent=126 // pred_region
              loop: start=0, step=1, limit=1
              $region136: #{deeplab_cls_forward_test.18} parent=134 // loop_pre_header
                _
              $region137: #{deeplab_cls_forward_test.18} parent=134 // loop_header
                %s1123 = sphi 0, %s1127
                %p1124 = scmp.ge.s32.totalorder %s1123, 1
                %s1128 = sphi %s1106, %s1106
                %s1129 = sphi %s1114, %s1114
              $region138: #{deeplab_cls_forward_test.18} parent=134 // loop_header_branch
                %1126 = sbr.rel (%p1124) target = $region142
              $region139: #{deeplab_cls_forward_test.18} parent=134 // loop_body
                %v1130 = vld [vmem:[%s1128] sm:$0xf]
                %1131 = vst [vmem:[%s1129] sm:$0xf] %v1130
                %v1132 = vld [vmem:[%s1128 + $0x4] sm:$0xf]
                %1133 = vst [vmem:[%s1129 + $0x8] sm:$0xf] %v1132
                %v1134 = vld [vmem:[%s1128 + $0x8] sm:$0xf]
                %1135 = vst [vmem:[%s1129 + $0x10] sm:$0xf] %v1134
                %v1136 = vld [vmem:[%s1128 + $0xc] sm:$0xf]
                %1137 = vst [vmem:[%s1129 + $0x18] sm:$0xf] %v1136
                %v1138 = vld [vmem:[%s1128 + $0x10] sm:$0xf]
                %1139 = vst [vmem:[%s1129 + $0x20] sm:$0xf] %v1138
                %v1140 = vld [vmem:[%s1128 + $0x14] sm:$0xf]
                %1141 = vst [vmem:[%s1129 + $0x28] sm:$0xf] %v1140
                %v1142 = vld [vmem:[%s1128 + $0x18] sm:$0xf]
                %1143 = vst [vmem:[%s1129 + $0x30] sm:$0xf] %v1142
                %v1144 = vld [vmem:[%s1128 + $0x1c] sm:$0xf]
                %1145 = vst [vmem:[%s1129 + $0x38] sm:$0xf] %v1144
                %v1146 = vld [vmem:[%s1128 + $0x20] sm:$0xf]
                %1147 = vst [vmem:[%s1129 + $0x40] sm:$0xf] %v1146
                %v1148 = vld [vmem:[%s1128 + $0x24] sm:$0xf]
                %1149 = vst [vmem:[%s1129 + $0x48] sm:$0xf] %v1148
                %v1150 = vld [vmem:[%s1128 + $0x28] sm:$0xf]
                %1151 = vst [vmem:[%s1129 + $0x50] sm:$0xf] %v1150
                %v1152 = vld [vmem:[%s1128 + $0x2c] sm:$0xf]
                %1153 = vst [vmem:[%s1129 + $0x58] sm:$0xf] %v1152
                %v1154 = vld [vmem:[%s1128 + $0x30] sm:$0xf]
                %1155 = vst [vmem:[%s1129 + $0x60] sm:$0xf] %v1154
                %v1156 = vld [vmem:[%s1128 + $0x34] sm:$0xf]
                %1157 = vst [vmem:[%s1129 + $0x68] sm:$0xf] %v1156
                %v1158 = vld [vmem:[%s1128 + $0x38] sm:$0xf]
                %1159 = vst [vmem:[%s1129 + $0x70] sm:$0xf] %v1158
                %v1160 = vld [vmem:[%s1128 + $0x3c] sm:$0xf]
                %1161 = vst [vmem:[%s1129 + $0x78] sm:$0xf] %v1160
              $region140: #{deeplab_cls_forward_test.18} parent=134 // loop_footer
                %s1127 = sadd.s32 1, %s1123
              $region141: #{deeplab_cls_forward_test.18} parent=134 // loop_footer_branch
                %1122 = sbr.rel target = $region137
              $region142: #{deeplab_cls_forward_test.18} parent=134 // loop_exit
                _
            $region135: #{deeplab_cls_forward_test.18} parent=126 // pred_fallthru
              _
          $region127: #{deeplab_cls_forward_test.18} parent=122 // pred_fallthru
            _
          %1213 = vnop
        $region123: #{deeplab_cls_forward_test.18} parent=102 // pred_fallthru
          _
      $region103: #{deeplab_cls_forward_test.18} parent=5 // pred_fallthru
        _
      %p1214 = scmp.le.s32.totalorder 2, %s9
      // Predicated region
      $region161: #{deeplab_cls_forward_test.18} parent=5 // pred_check
        %p1215 = pneg %p1214
      $region162: #{deeplab_cls_forward_test.18} parent=5 // pred_check_branch
        %1217 = sbr.rel (%p1215) target = $region164
      $region163: #{deeplab_cls_forward_test.18} parent=5 // pred_region
        %s1218 = ssub.s32 %s9, 2
        // Predicated region
        $region165: #{deeplab_cls_forward_test.18} parent=163 // pred_check
          %p1219 = pneg %p141
        $region166: #{deeplab_cls_forward_test.18} parent=163 // pred_check_branch
          %1221 = sbr.rel (%p1219) target = $region168
        $region167: #{deeplab_cls_forward_test.18} parent=163 // pred_region
          %s1222 = sand.u32 %s126, 1
          %s1223 = sand.u32 %s126, 1
          %s1224 = smul.addr %s1223, 64
          %s1225 = scalar_lea.vmem [#allocation5], %s1224
        $region168: #{deeplab_cls_forward_test.18} parent=163 // pred_fallthru
          _
      $region164: #{deeplab_cls_forward_test.18} parent=5 // pred_fallthru
        _
    $region6: #{deeplab_cls_forward_test.18} parent=1 // loop_footer
      %s13 = sadd.s32 1, %s9
    $region7: #{deeplab_cls_forward_test.18} parent=1 // loop_footer_branch
      %8 = sbr.rel target = $region3
    $region8: #{deeplab_cls_forward_test.18} parent=1 // loop_exit
      _

// kernel: deeplab_cls_forward_test.19
$region0: #{deeplab_cls_forward_test.19}
  #allocation0 [shape = 'u32[]', space=smem, size = 0x4, offset = 0x4, fixed_abs, tag = 'smem constant byte address 0x4 - core index']
  #allocation1 [shape = 'u32[144,128]{1,0:T(1,128)}', space=vmem, size = 0x12000, scoped, tag = 'internal scratch']
  #allocation2 [shape = 'f32[128,128]{1,0:T(8,128)}', space=vmem, size = 0x10000, scoped, tag = 'scratch operand']
  %s0 = inlined_call_operand.vmem [shape: bf16[128,128], index: 0, kind: input, shape index: {}]
  %s1 = inlined_call_operand.vmem [shape: bf16[128,128], index: 1, kind: input, shape index: {}]
  %s2 = inlined_call_operand.vmem [shape: f32[1,128], index: 2, kind: input, shape index: {}]
  %s3 = inlined_call_operand.vmem [shape: bf16[128,128], index: 3, kind: output, shape index: {}]
  %s4 = sld [smem:[#allocation0]]
  $region30: #{deeplab_cls_forward_test.19} parent=0
    _
  %s6 = ssub.s32 1, %s4
  %s7 = scalar_select 0, %s6, %s4
  // Predicated region
  $region2: #{deeplab_cls_forward_test.19} parent=0 // pred_check
    _
  $region3: #{deeplab_cls_forward_test.19} parent=0 // pred_check_branch
    %9 = sbr.rel (0) target = $region5
  $region4: #{deeplab_cls_forward_test.19} parent=0 // pred_region
    _
  $region5: #{deeplab_cls_forward_test.19} parent=0 // pred_fallthru
    _
  // Predicated region
  $region6: #{deeplab_cls_forward_test.19} parent=0 // pred_check
    _
  $region7: #{deeplab_cls_forward_test.19} parent=0 // pred_check_branch
    %11 = sbr.rel (0) target = $region9
  $region8: #{deeplab_cls_forward_test.19} parent=0 // pred_region
    _
  $region9: #{deeplab_cls_forward_test.19} parent=0 // pred_fallthru
    _
  // Predicated region
  $region10: #{deeplab_cls_forward_test.19} parent=0 // pred_check
    _
  $region11: #{deeplab_cls_forward_test.19} parent=0 // pred_check_branch
    %13 = sbr.rel (0) target = $region13
  $region12: #{deeplab_cls_forward_test.19} parent=0 // pred_region
    _
  $region13: #{deeplab_cls_forward_test.19} parent=0 // pred_fallthru
    _
  %p15 = scmp.eq.s32.totalorder 0, 0
  // Predicated region
  $region14: #{deeplab_cls_forward_test.19} parent=0 // pred_check
    %p16 = pneg %p15
  $region15: #{deeplab_cls_forward_test.19} parent=0 // pred_check_branch
    %18 = sbr.rel (%p16) target = $region17
  $region16: #{deeplab_cls_forward_test.19} parent=0 // pred_region
    %19 = vst [vmem:[#allocation2] sm:$0xff] 0.0
    %20 = vst [vmem:[#allocation2 + $0x8] sm:$0xff] 0.0
    %21 = vst [vmem:[#allocation2 + $0x10] sm:$0xff] 0.0
    %22 = vst [vmem:[#allocation2 + $0x18] sm:$0xff] 0.0
    %23 = vst [vmem:[#allocation2 + $0x20] sm:$0xff] 0.0
    %24 = vst [vmem:[#allocation2 + $0x28] sm:$0xff] 0.0
    %25 = vst [vmem:[#allocation2 + $0x30] sm:$0xff] 0.0
    %26 = vst [vmem:[#allocation2 + $0x38] sm:$0xff] 0.0
    %27 = vst [vmem:[#allocation2 + $0x40] sm:$0xff] 0.0
    %28 = vst [vmem:[#allocation2 + $0x48] sm:$0xff] 0.0
    %29 = vst [vmem:[#allocation2 + $0x50] sm:$0xff] 0.0
    %30 = vst [vmem:[#allocation2 + $0x58] sm:$0xff] 0.0
    %31 = vst [vmem:[#allocation2 + $0x60] sm:$0xff] 0.0
    %32 = vst [vmem:[#allocation2 + $0x68] sm:$0xff] 0.0
    %33 = vst [vmem:[#allocation2 + $0x70] sm:$0xff] 0.0
    %34 = vst [vmem:[#allocation2 + $0x78] sm:$0xff] 0.0
  $region17: #{deeplab_cls_forward_test.19} parent=0 // pred_fallthru
    _
  %v35 = vld [vmem:[#allocation2] sm:$0xff]
  %v36 = vld [vmem:[#allocation2 + $0x8] sm:$0xff]
  %v37 = vld [vmem:[#allocation2 + $0x10] sm:$0xff]
  %v38 = vld [vmem:[#allocation2 + $0x18] sm:$0xff]
  %v39 = vld [vmem:[#allocation2 + $0x20] sm:$0xff]
  %v40 = vld [vmem:[#allocation2 + $0x28] sm:$0xff]
  %v41 = vld [vmem:[#allocation2 + $0x30] sm:$0xff]
  %v42 = vld [vmem:[#allocation2 + $0x38] sm:$0xff]
  %v43 = vld [vmem:[#allocation2 + $0x40] sm:$0xff]
  %v44 = vld [vmem:[#allocation2 + $0x48] sm:$0xff]
  %v45 = vld [vmem:[#allocation2 + $0x50] sm:$0xff]
  %v46 = vld [vmem:[#allocation2 + $0x58] sm:$0xff]
  %v47 = vld [vmem:[#allocation2 + $0x60] sm:$0xff]
  %v48 = vld [vmem:[#allocation2 + $0x68] sm:$0xff]
  %v49 = vld [vmem:[#allocation2 + $0x70] sm:$0xff]
  %v50 = vld [vmem:[#allocation2 + $0x78] sm:$0xff]
  %v51 = vld [vmem:[%s0] sm:$0xf]
  %v52 = vld [vmem:[%s0 + $0x4] sm:$0xf]
  %v53 = vld [vmem:[%s0 + $0x8] sm:$0xf]
  %v54 = vld [vmem:[%s0 + $0xc] sm:$0xf]
  %v55 = vld [vmem:[%s0 + $0x10] sm:$0xf]
  %v56 = vld [vmem:[%s0 + $0x14] sm:$0xf]
  %v57 = vld [vmem:[%s0 + $0x18] sm:$0xf]
  %v58 = vld [vmem:[%s0 + $0x1c] sm:$0xf]
  %v59 = vld [vmem:[%s0 + $0x20] sm:$0xf]
  %v60 = vld [vmem:[%s0 + $0x24] sm:$0xf]
  %v61 = vld [vmem:[%s0 + $0x28] sm:$0xf]
  %v62 = vld [vmem:[%s0 + $0x2c] sm:$0xf]
  %v63 = vld [vmem:[%s0 + $0x30] sm:$0xf]
  %v64 = vld [vmem:[%s0 + $0x34] sm:$0xf]
  %v65 = vld [vmem:[%s0 + $0x38] sm:$0xf]
  %v66 = vld [vmem:[%s0 + $0x3c] sm:$0xf]
  %v67 = vld [vmem:[%s1] sm:$0xf]
  %v68 = vld [vmem:[%s1 + $0x4] sm:$0xf]
  %v69 = vld [vmem:[%s1 + $0x8] sm:$0xf]
  %v70 = vld [vmem:[%s1 + $0xc] sm:$0xf]
  %v71 = vld [vmem:[%s1 + $0x10] sm:$0xf]
  %v72 = vld [vmem:[%s1 + $0x14] sm:$0xf]
  %v73 = vld [vmem:[%s1 + $0x18] sm:$0xf]
  %v74 = vld [vmem:[%s1 + $0x1c] sm:$0xf]
  %v75 = vld [vmem:[%s1 + $0x20] sm:$0xf]
  %v76 = vld [vmem:[%s1 + $0x24] sm:$0xf]
  %v77 = vld [vmem:[%s1 + $0x28] sm:$0xf]
  %v78 = vld [vmem:[%s1 + $0x2c] sm:$0xf]
  %v79 = vld [vmem:[%s1 + $0x30] sm:$0xf]
  %v80 = vld [vmem:[%s1 + $0x34] sm:$0xf]
  %v81 = vld [vmem:[%s1 + $0x38] sm:$0xf]
  %v82 = vld [vmem:[%s1 + $0x3c] sm:$0xf]
  %v99 = vunpack.c.l.b16 %v51
  %v100 = vunpack.c.l.b16 %v52
  %v101 = vunpack.c.l.b16 %v53
  %v102 = vunpack.c.l.b16 %v54
  %v103 = vunpack.c.l.b16 %v55
  %v104 = vunpack.c.l.b16 %v56
  %v105 = vunpack.c.l.b16 %v57
  %v106 = vunpack.c.l.b16 %v58
  %v107 = vunpack.c.l.b16 %v59
  %v108 = vunpack.c.l.b16 %v60
  %v109 = vunpack.c.l.b16 %v61
  %v110 = vunpack.c.l.b16 %v62
  %v111 = vunpack.c.l.b16 %v63
  %v112 = vunpack.c.l.b16 %v64
  %v113 = vunpack.c.l.b16 %v65
  %v114 = vunpack.c.l.b16 %v66
  %v115 = vpack.c.b16 %v100, %v99
  %v116 = vpack.c.b16 %v102, %v101
  %v117 = vpack.c.b16 %v104, %v103
  %v118 = vpack.c.b16 %v106, %v105
  %v119 = vpack.c.b16 %v108, %v107
  %v120 = vpack.c.b16 %v110, %v109
  %v121 = vpack.c.b16 %v112, %v111
  %v122 = vpack.c.b16 %v114, %v113
  %v147 = vunpack.c.l.b16 %v67
  %v148 = vunpack.c.l.b16 %v68
  %v149 = vunpack.c.l.b16 %v69
  %v150 = vunpack.c.l.b16 %v70
  %v151 = vunpack.c.l.b16 %v71
  %v152 = vunpack.c.l.b16 %v72
  %v153 = vunpack.c.l.b16 %v73
  %v154 = vunpack.c.l.b16 %v74
  %v155 = vunpack.c.l.b16 %v75
  %v156 = vunpack.c.l.b16 %v76
  %v157 = vunpack.c.l.b16 %v77
  %v158 = vunpack.c.l.b16 %v78
  %v159 = vunpack.c.l.b16 %v79
  %v160 = vunpack.c.l.b16 %v80
  %v161 = vunpack.c.l.b16 %v81
  %v162 = vunpack.c.l.b16 %v82
  %v163 = vpack.c.b16 %v148, %v147
  %v164 = vpack.c.b16 %v150, %v149
  %v165 = vpack.c.b16 %v152, %v151
  %v166 = vpack.c.b16 %v154, %v153
  %v167 = vpack.c.b16 %v156, %v155
  %v168 = vpack.c.b16 %v158, %v157
  %v169 = vpack.c.b16 %v160, %v159
  %v170 = vpack.c.b16 %v162, %v161
  %179 = vmatprep.subr.bf16.mxu0 0
  %180 = vmatpush1.bf16.msra.mxu0 %v163
  %181 = vmatprep.subr.bf16.mxu0 0
  %182 = vmatpush1.bf16.msra.mxu0 %v164
  %183 = vmatprep.subr.bf16.mxu0 0
  %184 = vmatpush1.bf16.msra.mxu0 %v165
  %185 = vmatprep.subr.bf16.mxu0 0
  %186 = vmatpush1.bf16.msra.mxu0 %v166
  %187 = vmatprep.subr.bf16.mxu0 0
  %188 = vmatpush1.bf16.msra.mxu0 %v167
  %189 = vmatprep.subr.bf16.mxu0 0
  %190 = vmatpush1.bf16.msra.mxu0 %v168
  %191 = vmatprep.subr.bf16.mxu0 0
  %192 = vmatpush1.bf16.msra.mxu0 %v169
  %193 = vmatprep.subr.bf16.mxu0 0
  %194 = vmatpush1.bf16.msra.mxu0 %v170
  %195 = vmatprep.subr.bf16.mxu0 0
  %196 = vmatpush1.bf16.msra.mxu0 0
  %197 = vmatprep.subr.bf16.mxu0 0
  %198 = vmatpush1.bf16.msra.mxu0 0
  %199 = vmatprep.subr.bf16.mxu0 0
  %200 = vmatpush1.bf16.msra.mxu0 0
  %201 = vmatprep.subr.bf16.mxu0 0
  %202 = vmatpush1.bf16.msra.mxu0 0
  %203 = vmatprep.subr.bf16.mxu0 0
  %204 = vmatpush1.bf16.msra.mxu0 0
  %205 = vmatprep.subr.bf16.mxu0 0
  %206 = vmatpush1.bf16.msra.mxu0 0
  %207 = vmatprep.subr.bf16.mxu0 0
  %208 = vmatpush1.bf16.msra.mxu0 0
  %209 = vmatprep.subr.bf16.mxu0 0
  %210 = vmatpush1.bf16.msra.mxu0 0
  %211 = vmatprep.mubr.bf16.mxu0 0
  %212 = vmatmul.mubr.bf16.gmra.mrb[0].mxu0 %v115
  %v213 = vpop.f32.mrb[0].mxu0
  %v214 = vadd.f32 0.0, %v213
  %v215 = vpop.f32.mrb[0].mxu0
  %v216 = vpop.f32.mrb[0].mxu0
  %v217 = vadd.f32 0.0, %v216
  %v218 = vpop.f32.mrb[0].mxu0
  %219 = vmatprep.mubr.bf16.mxu0 0
  %220 = vmatmul.mubr.bf16.gmra.mrb[0].mxu0 %v116
  %v221 = vpop.f32.mrb[0].mxu0
  %v222 = vadd.f32 0.0, %v221
  %v223 = vpop.f32.mrb[0].mxu0
  %v224 = vpop.f32.mrb[0].mxu0
  %v225 = vadd.f32 0.0, %v224
  %v226 = vpop.f32.mrb[0].mxu0
  %227 = vmatprep.mubr.bf16.mxu0 0
  %228 = vmatmul.mubr.bf16.gmra.mrb[0].mxu0 %v117
  %v229 = vpop.f32.mrb[0].mxu0
  %v230 = vadd.f32 0.0, %v229
  %v231 = vpop.f32.mrb[0].mxu0
  %v232 = vpop.f32.mrb[0].mxu0
  %v233 = vadd.f32 0.0, %v232
  %v234 = vpop.f32.mrb[0].mxu0
  %235 = vmatprep.mubr.bf16.mxu0 0
  %236 = vmatmul.mubr.bf16.gmra.mrb[0].mxu0 %v118
  %v237 = vpop.f32.mrb[0].mxu0
  %v238 = vadd.f32 0.0, %v237
  %v239 = vpop.f32.mrb[0].mxu0
  %v240 = vpop.f32.mrb[0].mxu0
  %v241 = vadd.f32 0.0, %v240
  %v242 = vpop.f32.mrb[0].mxu0
  %243 = vmatprep.mubr.bf16.mxu0 0
  %244 = vmatmul.mubr.bf16.gmra.mrb[0].mxu0 %v119
  %v245 = vpop.f32.mrb[0].mxu0
  %v246 = vadd.f32 0.0, %v245
  %v247 = vpop.f32.mrb[0].mxu0
  %v248 = vpop.f32.mrb[0].mxu0
  %v249 = vadd.f32 0.0, %v248
  %v250 = vpop.f32.mrb[0].mxu0
  %251 = vmatprep.mubr.bf16.mxu0 0
  %252 = vmatmul.mubr.bf16.gmra.mrb[0].mxu0 %v120
  %v253 = vpop.f32.mrb[0].mxu0
  %v254 = vadd.f32 0.0, %v253
  %v255 = vpop.f32.mrb[0].mxu0
  %v256 = vpop.f32.mrb[0].mxu0
  %v257 = vadd.f32 0.0, %v256
  %v258 = vpop.f32.mrb[0].mxu0
  %259 = vmatprep.mubr.bf16.mxu0 0
  %260 = vmatmul.mubr.bf16.gmra.mrb[0].mxu0 %v121
  %v261 = vpop.f32.mrb[0].mxu0
  %v262 = vadd.f32 0.0, %v261
  %v263 = vpop.f32.mrb[0].mxu0
  %v264 = vpop.f32.mrb[0].mxu0
  %v265 = vadd.f32 0.0, %v264
  %v266 = vpop.f32.mrb[0].mxu0
  %267 = vmatprep.mubr.bf16.mxu0 0
  %268 = vmatmul.mubr.bf16.gmra.mrb[0].mxu0 %v122
  %v269 = vpop.f32.mrb[0].mxu0
  %v270 = vadd.f32 0.0, %v269
  %v271 = vpop.f32.mrb[0].mxu0
  %v272 = vpop.f32.mrb[0].mxu0
  %v273 = vadd.f32 0.0, %v272
  %v274 = vpop.f32.mrb[0].mxu0
  %275 = vdwg.mxu0
  %v276 = vadd.f32 %v35, %v214
  %v277 = vadd.f32 %v36, %v217
  %v278 = vadd.f32 %v37, %v222
  %v279 = vadd.f32 %v38, %v225
  %v280 = vadd.f32 %v39, %v230
  %v281 = vadd.f32 %v40, %v233
  %v282 = vadd.f32 %v41, %v238
  %v283 = vadd.f32 %v42, %v241
  %v284 = vadd.f32 %v43, %v246
  %v285 = vadd.f32 %v44, %v249
  %v286 = vadd.f32 %v45, %v254
  %v287 = vadd.f32 %v46, %v257
  %v288 = vadd.f32 %v47, %v262
  %v289 = vadd.f32 %v48, %v265
  %v290 = vadd.f32 %v49, %v270
  %v291 = vadd.f32 %v50, %v273
  %292 = vst [vmem:[#allocation2] sm:$0xff] %v276
  %293 = vst [vmem:[#allocation2 + $0x8] sm:$0xff] %v277
  %294 = vst [vmem:[#allocation2 + $0x10] sm:$0xff] %v278
  %295 = vst [vmem:[#allocation2 + $0x18] sm:$0xff] %v279
  %296 = vst [vmem:[#allocation2 + $0x20] sm:$0xff] %v280
  %297 = vst [vmem:[#allocation2 + $0x28] sm:$0xff] %v281
  %298 = vst [vmem:[#allocation2 + $0x30] sm:$0xff] %v282
  %299 = vst [vmem:[#allocation2 + $0x38] sm:$0xff] %v283
  %300 = vst [vmem:[#allocation2 + $0x40] sm:$0xff] %v284
  %301 = vst [vmem:[#allocation2 + $0x48] sm:$0xff] %v285
  %302 = vst [vmem:[#allocation2 + $0x50] sm:$0xff] %v286
  %303 = vst [vmem:[#allocation2 + $0x58] sm:$0xff] %v287
  %304 = vst [vmem:[#allocation2 + $0x60] sm:$0xff] %v288
  %305 = vst [vmem:[#allocation2 + $0x68] sm:$0xff] %v289
  %306 = vst [vmem:[#allocation2 + $0x70] sm:$0xff] %v290
  %307 = vst [vmem:[#allocation2 + $0x78] sm:$0xff] %v291
  // Predicated region
  $region18: #{deeplab_cls_forward_test.19} parent=0 // pred_check
    %p308 = pneg %p15
  $region19: #{deeplab_cls_forward_test.19} parent=0 // pred_check_branch
    %310 = sbr.rel (%p308) target = $region21
  $region20: #{deeplab_cls_forward_test.19} parent=0 // pred_region
    %v311 = vld [vmem:[#allocation2] sm:$0xff]
    %v312 = vld [vmem:[#allocation2 + $0x8] sm:$0xff]
    %v313 = vld [vmem:[#allocation2 + $0x10] sm:$0xff]
    %v314 = vld [vmem:[#allocation2 + $0x18] sm:$0xff]
    %v315 = vld [vmem:[#allocation2 + $0x20] sm:$0xff]
    %v316 = vld [vmem:[#allocation2 + $0x28] sm:$0xff]
    %v317 = vld [vmem:[#allocation2 + $0x30] sm:$0xff]
    %v318 = vld [vmem:[#allocation2 + $0x38] sm:$0xff]
    %v319 = vld [vmem:[#allocation2 + $0x40] sm:$0xff]
    %v320 = vld [vmem:[#allocation2 + $0x48] sm:$0xff]
    %v321 = vld [vmem:[#allocation2 + $0x50] sm:$0xff]
    %v322 = vld [vmem:[#allocation2 + $0x58] sm:$0xff]
    %v323 = vld [vmem:[#allocation2 + $0x60] sm:$0xff]
    %v324 = vld [vmem:[#allocation2 + $0x68] sm:$0xff]
    %v325 = vld [vmem:[#allocation2 + $0x70] sm:$0xff]
    %v326 = vld [vmem:[#allocation2 + $0x78] sm:$0xff]
    %v327 = vld [vmem:[%s2] sm:$0x1]
    %v329 = vlaneseq
    %v330 = vshrl.u32 %v329, 7
    %v331 = vsub.s32 0, %v330
    %v332 = vrot.slane %v327, %v331
    %v334 = vadd.f32 %v311, %v332
    %v335 = vadd.f32 %v312, %v332
    %v336 = vadd.f32 %v313, %v332
    %v337 = vadd.f32 %v314, %v332
    %v338 = vadd.f32 %v315, %v332
    %v339 = vadd.f32 %v316, %v332
    %v340 = vadd.f32 %v317, %v332
    %v341 = vadd.f32 %v318, %v332
    %v342 = vadd.f32 %v319, %v332
    %v343 = vadd.f32 %v320, %v332
    %v344 = vadd.f32 %v321, %v332
    %v345 = vadd.f32 %v322, %v332
    %v346 = vadd.f32 %v323, %v332
    %v347 = vadd.f32 %v324, %v332
    %v348 = vadd.f32 %v325, %v332
    %v349 = vadd.f32 %v326, %v332
    %vm350 = vcmp.gt.f32.partialorder %v334, 0.0
    %vm351 = vcmp.gt.f32.partialorder %v335, 0.0
    %vm352 = vcmp.gt.f32.partialorder %v336, 0.0
    %vm353 = vcmp.gt.f32.partialorder %v337, 0.0
    %vm354 = vcmp.gt.f32.partialorder %v338, 0.0
    %vm355 = vcmp.gt.f32.partialorder %v339, 0.0
    %vm356 = vcmp.gt.f32.partialorder %v340, 0.0
    %vm357 = vcmp.gt.f32.partialorder %v341, 0.0
    %vm358 = vcmp.gt.f32.partialorder %v342, 0.0
    %vm359 = vcmp.gt.f32.partialorder %v343, 0.0
    %vm360 = vcmp.gt.f32.partialorder %v344, 0.0
    %vm361 = vcmp.gt.f32.partialorder %v345, 0.0
    %vm362 = vcmp.gt.f32.partialorder %v346, 0.0
    %vm363 = vcmp.gt.f32.partialorder %v347, 0.0
    %vm364 = vcmp.gt.f32.partialorder %v348, 0.0
    %vm365 = vcmp.gt.f32.partialorder %v349, 0.0
    %v366 = vmin.f32 %v334, 0.0
    %v367 = vmin.f32 %v335, 0.0
    %v368 = vmin.f32 %v336, 0.0
    %v369 = vmin.f32 %v337, 0.0
    %v370 = vmin.f32 %v338, 0.0
    %v371 = vmin.f32 %v339, 0.0
    %v372 = vmin.f32 %v340, 0.0
    %v373 = vmin.f32 %v341, 0.0
    %v374 = vmin.f32 %v342, 0.0
    %v375 = vmin.f32 %v343, 0.0
    %v376 = vmin.f32 %v344, 0.0
    %v377 = vmin.f32 %v345, 0.0
    %v378 = vmin.f32 %v346, 0.0
    %v379 = vmin.f32 %v347, 0.0
    %v380 = vmin.f32 %v348, 0.0
    %v381 = vmin.f32 %v349, 0.0
    %v382 = vmul.f32 %v366, 1.442695
    %v383 = vpow.pop %v382
    %v384 = vmul.f32 %v367, 1.442695
    %v385 = vpow.pop %v384
    %v386 = vmul.f32 %v368, 1.442695
    %v387 = vpow.pop %v386
    %v388 = vmul.f32 %v369, 1.442695
    %v389 = vpow.pop %v388
    %v390 = vmul.f32 %v370, 1.442695
    %v391 = vpow.pop %v390
    %v392 = vmul.f32 %v371, 1.442695
    %v393 = vpow.pop %v392
    %v394 = vmul.f32 %v372, 1.442695
    %v395 = vpow.pop %v394
    %v396 = vmul.f32 %v373, 1.442695
    %v397 = vpow.pop %v396
    %v398 = vmul.f32 %v374, 1.442695
    %v399 = vpow.pop %v398
    %v400 = vmul.f32 %v375, 1.442695
    %v401 = vpow.pop %v400
    %v402 = vmul.f32 %v376, 1.442695
    %v403 = vpow.pop %v402
    %v404 = vmul.f32 %v377, 1.442695
    %v405 = vpow.pop %v404
    %v406 = vmul.f32 %v378, 1.442695
    %v407 = vpow.pop %v406
    %v408 = vmul.f32 %v379, 1.442695
    %v409 = vpow.pop %v408
    %v410 = vmul.f32 %v380, 1.442695
    %v411 = vpow.pop %v410
    %v412 = vmul.f32 %v381, 1.442695
    %v413 = vpow.pop %v412
    %v414 = vsub.f32 %v383, 1.0
    %v415 = vsub.f32 %v385, 1.0
    %v416 = vsub.f32 %v387, 1.0
    %v417 = vsub.f32 %v389, 1.0
    %v418 = vsub.f32 %v391, 1.0
    %v419 = vsub.f32 %v393, 1.0
    %v420 = vsub.f32 %v395, 1.0
    %v421 = vsub.f32 %v397, 1.0
    %v422 = vsub.f32 %v399, 1.0
    %v423 = vsub.f32 %v401, 1.0
    %v424 = vsub.f32 %v403, 1.0
    %v425 = vsub.f32 %v405, 1.0
    %v426 = vsub.f32 %v407, 1.0
    %v427 = vsub.f32 %v409, 1.0
    %v428 = vsub.f32 %v411, 1.0
    %v429 = vsub.f32 %v413, 1.0
    %v430 = vsel %vm350, %v334, %v414
    %v431 = vsel %vm351, %v335, %v415
    %v432 = vsel %vm352, %v336, %v416
    %v433 = vsel %vm353, %v337, %v417
    %v434 = vsel %vm354, %v338, %v418
    %v435 = vsel %vm355, %v339, %v419
    %v436 = vsel %vm356, %v340, %v420
    %v437 = vsel %vm357, %v341, %v421
    %v438 = vsel %vm358, %v342, %v422
    %v439 = vsel %vm359, %v343, %v423
    %v440 = vsel %vm360, %v344, %v424
    %v441 = vsel %vm361, %v345, %v425
    %v442 = vsel %vm362, %v346, %v426
    %v443 = vsel %vm363, %v347, %v427
    %v444 = vsel %vm364, %v348, %v428
    %v445 = vsel %vm365, %v349, %v429
    %v446 = vpack.c.bf16 %v431, %v430
    %v447 = vpack.c.bf16 %v433, %v432
    %v448 = vpack.c.bf16 %v435, %v434
    %v449 = vpack.c.bf16 %v437, %v436
    %v450 = vpack.c.bf16 %v439, %v438
    %v451 = vpack.c.bf16 %v441, %v440
    %v452 = vpack.c.bf16 %v443, %v442
    %v453 = vpack.c.bf16 %v445, %v444
    %v462 = vunpack.c.l.b16 %v446
    %v463 = vunpack.c.h.b16 %v446
    %v464 = vunpack.c.l.b16 %v447
    %v465 = vunpack.c.h.b16 %v447
    %v466 = vunpack.c.l.b16 %v448
    %v467 = vunpack.c.h.b16 %v448
    %v468 = vunpack.c.l.b16 %v449
    %v469 = vunpack.c.h.b16 %v449
    %v470 = vunpack.c.l.b16 %v450
    %v471 = vunpack.c.h.b16 %v450
    %v472 = vunpack.c.l.b16 %v451
    %v473 = vunpack.c.h.b16 %v451
    %v474 = vunpack.c.l.b16 %v452
    %v475 = vunpack.c.h.b16 %v452
    %v476 = vunpack.c.l.b16 %v453
    %v477 = vunpack.c.h.b16 %v453
    %v478 = vpack.c.b16 %v462, %v462
    %v479 = vpack.c.b16 %v463, %v463
    %v480 = vpack.c.b16 %v464, %v464
    %v481 = vpack.c.b16 %v465, %v465
    %v482 = vpack.c.b16 %v466, %v466
    %v483 = vpack.c.b16 %v467, %v467
    %v484 = vpack.c.b16 %v468, %v468
    %v485 = vpack.c.b16 %v469, %v469
    %v486 = vpack.c.b16 %v470, %v470
    %v487 = vpack.c.b16 %v471, %v471
    %v488 = vpack.c.b16 %v472, %v472
    %v489 = vpack.c.b16 %v473, %v473
    %v490 = vpack.c.b16 %v474, %v474
    %v491 = vpack.c.b16 %v475, %v475
    %v492 = vpack.c.b16 %v476, %v476
    %v493 = vpack.c.b16 %v477, %v477
    %510 = vst [vmem:[%s3] sm:$0xf] %v478
    %511 = vst [vmem:[%s3 + $0x4] sm:$0xf] %v479
    %512 = vst [vmem:[%s3 + $0x8] sm:$0xf] %v480
    %513 = vst [vmem:[%s3 + $0xc] sm:$0xf] %v481
    %514 = vst [vmem:[%s3 + $0x10] sm:$0xf] %v482
    %515 = vst [vmem:[%s3 + $0x14] sm:$0xf] %v483
    %516 = vst [vmem:[%s3 + $0x18] sm:$0xf] %v484
    %517 = vst [vmem:[%s3 + $0x1c] sm:$0xf] %v485
    %518 = vst [vmem:[%s3 + $0x20] sm:$0xf] %v486
    %519 = vst [vmem:[%s3 + $0x24] sm:$0xf] %v487
    %520 = vst [vmem:[%s3 + $0x28] sm:$0xf] %v488
    %521 = vst [vmem:[%s3 + $0x2c] sm:$0xf] %v489
    %522 = vst [vmem:[%s3 + $0x30] sm:$0xf] %v490
    %523 = vst [vmem:[%s3 + $0x34] sm:$0xf] %v491
    %524 = vst [vmem:[%s3 + $0x38] sm:$0xf] %v492
    %525 = vst [vmem:[%s3 + $0x3c] sm:$0xf] %v493
  $region21: #{deeplab_cls_forward_test.19} parent=0 // pred_fallthru
    _
  // Predicated region
  $region22: #{deeplab_cls_forward_test.19} parent=0 // pred_check
    _
  $region23: #{deeplab_cls_forward_test.19} parent=0 // pred_check_branch
    %527 = sbr.rel (0) target = $region25
  $region24: #{deeplab_cls_forward_test.19} parent=0 // pred_region
    _
  $region25: #{deeplab_cls_forward_test.19} parent=0 // pred_fallthru
    _
  // Predicated region
  $region26: #{deeplab_cls_forward_test.19} parent=0 // pred_check
    _
  $region27: #{deeplab_cls_forward_test.19} parent=0 // pred_check_branch
    %529 = sbr.rel (0) target = $region29
  $region28: #{deeplab_cls_forward_test.19} parent=0 // pred_region
    _
  $region29: #{deeplab_cls_forward_test.19} parent=0 // pred_fallthru
    _

// kernel: deeplab_cls_forward_test.20
$region0: #{deeplab_cls_forward_test.20}
  #allocation0 [shape = 'u32[]', space=smem, size = 0x4, offset = 0x4, fixed_abs, tag = 'smem constant byte address 0x4 - core index']
  #allocation1 [shape = 'u32[144,128]{1,0:T(1,128)}', space=vmem, size = 0x12000, scoped, tag = 'internal scratch']
  #allocation2 [shape = 'f32[8,256]{1,0:T(8,128)}', space=vmem, size = 0x2000, scoped, tag = 'scratch operand']
  %s0 = inlined_call_operand.vmem [shape: bf16[2,10,10,384], index: 0, kind: input, shape index: {}]
  %s1 = inlined_call_operand.vmem [shape: bf16[3,3,384,256], index: 1, kind: input, shape index: {}]
  %s2 = inlined_call_operand.vmem [shape: f32[1,256], index: 2, kind: input, shape index: {}]
  %s3 = inlined_call_operand.vmem [shape: bf16[2,8,8,256], index: 3, kind: output, shape index: {}]
  %s4 = sld [smem:[#allocation0]]
  $region53: #{deeplab_cls_forward_test.20} parent=0
    _
  %s6 = ssub.s32 1, %s4
  %s7 = scalar_select 0, %s6, %s4
  loop: start=0, step=1, limit=50
  $region2: #{deeplab_cls_forward_test.20} parent=0 // loop_pre_header
    _
  $region3: #{deeplab_cls_forward_test.20} parent=0 // loop_header
    %s9 = sphi 0, %s13
    %p10 = scmp.ge.s32.totalorder %s9, 50
    %s16 = sphi 0, %s42
    %s17 = sphi 0, %s38
    %s18 = sphi 0, %s34
    %s19 = sphi 0, %s30
    %s20 = sphi 0, %s16
    %s21 = sphi 0, %s17
    %s22 = sphi 0, %s18
    %s23 = sphi 0, %s19
    %s24 = sphi 0, %s20
    %s25 = sphi 0, %s21
    %s26 = sphi 0, %s22
    %s27 = sphi 0, %s23
    %s49 = sphi 0, %s51
    %s52 = sphi 0, %s49
    %s53 = sphi 0, %s52
    %s69 = sphi 0, %s53
    %s77 = sphi 0, %s79
    %s80 = sphi 0, %s77
    %s81 = sphi 0, %s80
    %s97 = sphi 0, %s81
    %s103 = sphi 0, %s105
    %s106 = sphi 0, %s103
    %s107 = sphi 0, %s106
    %s123 = sphi 0, %s107
    %s133 = sphi 0, %s135
    %s136 = sphi 0, %s133
    %s137 = sphi 0, %s136
    %s153 = sphi 0, %s137
  $region4: #{deeplab_cls_forward_test.20} parent=0 // loop_header_branch
    %12 = sbr.rel (%p10) target = $region8
  $region5: #{deeplab_cls_forward_test.20} parent=0 // loop_body
    %s14 = ssub.s32 %s9, 1
    %s15 = ssub.s32 %s9, 2
    %s28 = sadd.s32 1, %s19
    %p29 = scmp.ge.s32.totalorder %s28, 3
    %s30 = scalar_select %p29, 0, %s28
    %s31 = sadd.s32 1, %s18
    %s32 = scalar_select %p29, %s31, %s18
    %p33 = scmp.ge.s32.totalorder %s32, 1
    %s34 = scalar_select %p33, 0, %s32
    %s35 = sadd.s32 1, %s17
    %s36 = scalar_select %p33, %s35, %s17
    %p37 = scmp.ge.s32.totalorder %s36, 8
    %s38 = scalar_select %p37, 0, %s36
    %s39 = sadd.s32 1, %s16
    %s40 = scalar_select %p37, %s39, %s16
    %p41 = scmp.ge.s32.totalorder %s40, 2
    %s42 = scalar_select %p41, 0, %s40
    %s43 = sadd.s32 %s17, %s19
    %s44 = sadd.s32 %s38, %s30
    %s45 = ssub.s32 %s16, %s42
    %s46 = ssub.s32 %s43, %s44
    %s47 = sor.u32 %s45, %s46
    %p48 = scmp.eq.s32.totalorder %s47, 0
    %s50 = sadd.s32 %s49, 1
    %s51 = scalar_select %p48, %s49, %s50
    %p54 = pneg %p48
    %p55 = scmp.eq.s32.totalorder %s9, 47
    %p56 = por %p54, %p55
    %p57 = scmp.ne.s32.totalorder %s49, %s52
    %p58 = scmp.eq.s32.totalorder %s9, 0
    %p59 = por %p57, %p58
    %p60 = scmp.ne.s32.totalorder %s49, %s52
    %p61 = scmp.eq.s32.totalorder %s14, 47
    %p62 = por %p60, %p61
    %p63 = scmp.ne.s32.totalorder %s52, %s53
    %p64 = scmp.eq.s32.totalorder %s14, 0
    %p65 = por %p63, %p64
    %p66 = scmp.ne.s32.totalorder %s52, %s53
    %p67 = scmp.eq.s32.totalorder %s15, 47
    %p68 = por %p66, %p67
    %p70 = scmp.ne.s32.totalorder %s53, %s69
    %p71 = scmp.eq.s32.totalorder %s15, 0
    %p72 = por %p70, %p71
    %s73 = ssub.s32 %s19, %s30
    %s74 = ssub.s32 %s18, %s34
    %s75 = sor.u32 %s73, %s74
    %p76 = scmp.eq.s32.totalorder %s75, 0
    %s78 = sadd.s32 %s77, 1
    %s79 = scalar_select %p76, %s77, %s78
    %p82 = pneg %p76
    %p83 = scmp.eq.s32.totalorder %s9, 47
    %p84 = por %p82, %p83
    %p85 = scmp.ne.s32.totalorder %s77, %s80
    %p86 = scmp.eq.s32.totalorder %s9, 0
    %p87 = por %p85, %p86
    %p88 = scmp.ne.s32.totalorder %s77, %s80
    %p89 = scmp.eq.s32.totalorder %s14, 47
    %p90 = por %p88, %p89
    %p91 = scmp.ne.s32.totalorder %s80, %s81
    %p92 = scmp.eq.s32.totalorder %s14, 0
    %p93 = por %p91, %p92
    %p94 = scmp.ne.s32.totalorder %s80, %s81
    %p95 = scmp.eq.s32.totalorder %s15, 47
    %p96 = por %p94, %p95
    %p98 = scmp.ne.s32.totalorder %s81, %s97
    %p99 = scmp.eq.s32.totalorder %s15, 0
    %p100 = por %p98, %p99
    %s101 = ssub.s32 %s18, %s34
    %p102 = scmp.eq.s32.totalorder %s101, 0
    %s104 = sadd.s32 %s103, 1
    %s105 = scalar_select %p102, %s103, %s104
    %p108 = pneg %p102
    %p109 = scmp.eq.s32.totalorder %s9, 47
    %p110 = por %p108, %p109
    %p111 = scmp.ne.s32.totalorder %s103, %s106
    %p112 = scmp.eq.s32.totalorder %s9, 0
    %p113 = por %p111, %p112
    %p114 = scmp.ne.s32.totalorder %s103, %s106
    %p115 = scmp.eq.s32.totalorder %s14, 47
    %p116 = por %p114, %p115
    %p117 = scmp.ne.s32.totalorder %s106, %s107
    %p118 = scmp.eq.s32.totalorder %s14, 0
    %p119 = por %p117, %p118
    %p120 = scmp.ne.s32.totalorder %s106, %s107
    %p121 = scmp.eq.s32.totalorder %s15, 47
    %p122 = por %p120, %p121
    %p124 = scmp.ne.s32.totalorder %s107, %s123
    %p125 = scmp.eq.s32.totalorder %s15, 0
    %p126 = por %p124, %p125
    %s127 = ssub.s32 %s16, %s42
    %s128 = ssub.s32 %s17, %s38
    %s129 = sor.u32 %s127, %s128
    %s130 = ssub.s32 %s18, %s34
    %s131 = sor.u32 %s129, %s130
    %p132 = scmp.eq.s32.totalorder %s131, 0
    %s134 = sadd.s32 %s133, 1
    %s135 = scalar_select %p132, %s133, %s134
    %p138 = pneg %p132
    %p139 = scmp.eq.s32.totalorder %s9, 47
    %p140 = por %p138, %p139
    %p141 = scmp.ne.s32.totalorder %s133, %s136
    %p142 = scmp.eq.s32.totalorder %s9, 0
    %p143 = por %p141, %p142
    %p144 = scmp.ne.s32.totalorder %s133, %s136
    %p145 = scmp.eq.s32.totalorder %s14, 47
    %p146 = por %p144, %p145
    %p147 = scmp.ne.s32.totalorder %s136, %s137
    %p148 = scmp.eq.s32.totalorder %s14, 0
    %p149 = por %p147, %p148
    %p150 = scmp.ne.s32.totalorder %s136, %s137
    %p151 = scmp.eq.s32.totalorder %s15, 47
    %p152 = por %p150, %p151
    %p154 = scmp.ne.s32.totalorder %s137, %s153
    %p155 = scmp.eq.s32.totalorder %s15, 0
    %p156 = por %p154, %p155
    %p157 = scmp.le.s32.totalorder 1, %s9
    %p158 = scmp.lt.s32.totalorder %s9, 49
    %p159 = pnand %p157, %p158
    %p160 = pneg %p159
    // Predicated region
    $region9: #{deeplab_cls_forward_test.20} parent=5 // pred_check
      _
    $region10: #{deeplab_cls_forward_test.20} parent=5 // pred_check_branch
      %162 = sbr.rel (%p159) target = $region12
    $region11: #{deeplab_cls_forward_test.20} parent=5 // pred_region
      %s163 = ssub.s32 %s9, 1
      // Predicated region
      $region13: #{deeplab_cls_forward_test.20} parent=11 // pred_check
        %p164 = pneg %p119
      $region14: #{deeplab_cls_forward_test.20} parent=11 // pred_check_branch
        %166 = sbr.rel (%p164) target = $region16
      $region15: #{deeplab_cls_forward_test.20} parent=11 // pred_region
        %s167 = smul.u32 2, %s22
        %p168 = scmp.lt.s32.totalorder %s167, 1
        %s169 = scalar_select %p168, %s167, 1
        %s170 = scalar_lea.vmem %s2, %s169
        %s171 = smul.u32 2, %s22
      $region16: #{deeplab_cls_forward_test.20} parent=11 // pred_fallthru
        _
    $region12: #{deeplab_cls_forward_test.20} parent=5 // pred_fallthru
      _
    %p172 = scmp.lt.s32.totalorder %s9, 48
    // Predicated region
    $region17: #{deeplab_cls_forward_test.20} parent=5 // pred_check
      %p173 = pneg %p172
    $region18: #{deeplab_cls_forward_test.20} parent=5 // pred_check_branch
      %175 = sbr.rel (%p173) target = $region20
    $region19: #{deeplab_cls_forward_test.20} parent=5 // pred_region
      // Predicated region
      $region21: #{deeplab_cls_forward_test.20} parent=19 // pred_check
        %p176 = pneg %p59
      $region22: #{deeplab_cls_forward_test.20} parent=19 // pred_check_branch
        %178 = sbr.rel (%p176) target = $region24
      $region23: #{deeplab_cls_forward_test.20} parent=19 // pred_region
        %s179 = sadd.s32 %s17, %s19
        %p180 = scmp.lt.s32.totalorder %s16, 1
        %s181 = scalar_select %p180, %s16, 1
        %p182 = scmp.lt.s32.totalorder %s179, 9
        %s183 = scalar_select %p182, %s179, 9
        %s184 = smul.addr %s183, 6
        %s185 = smul.addr %s181, 60
        %s186 = sadd.s32 %s184, %s185
        %s187 = smul.addr %s186, 4
        %s188 = scalar_lea.vmem %s0, %s187
        %s189 = sadd.s32 %s17, %s19
      $region24: #{deeplab_cls_forward_test.20} parent=19 // pred_fallthru
        _
      // Predicated region
      $region25: #{deeplab_cls_forward_test.20} parent=19 // pred_check
        %p190 = pneg %p87
      $region26: #{deeplab_cls_forward_test.20} parent=19 // pred_check_branch
        %192 = sbr.rel (%p190) target = $region28
      $region27: #{deeplab_cls_forward_test.20} parent=19 // pred_region
        %s193 = smul.u32 2, %s18
        %p194 = scmp.lt.s32.totalorder %s19, 2
        %s195 = scalar_select %p194, %s19, 2
        %p196 = scmp.lt.s32.totalorder %s193, 1
        %s197 = scalar_select %p196, %s193, 1
        %s198 = smul.addr %s195, 288
        %s199 = sadd.s32 %s197, %s198
        %s200 = smul.addr %s199, 4
        %s201 = scalar_lea.vmem %s1, %s200
        %s202 = smul.u32 2, %s18
      $region28: #{deeplab_cls_forward_test.20} parent=19 // pred_fallthru
        _
    $region20: #{deeplab_cls_forward_test.20} parent=5 // pred_fallthru
      _
    %p203 = scmp.le.s32.totalorder 1, %s9
    %p204 = scmp.lt.s32.totalorder %s9, 49
    %p205 = pnand %p203, %p204
    %p206 = pneg %p205
    // Predicated region
    $region29: #{deeplab_cls_forward_test.20} parent=5 // pred_check
      _
    $region30: #{deeplab_cls_forward_test.20} parent=5 // pred_check_branch
      %208 = sbr.rel (%p205) target = $region32
    $region31: #{deeplab_cls_forward_test.20} parent=5 // pred_region
      %s209 = ssub.s32 %s9, 1
      %s210 = sadd.s32 %s21, %s23
      %p211 = scmp.lt.s32.totalorder %s20, 1
      %s212 = scalar_select %p211, %s20, 1
      %p213 = scmp.lt.s32.totalorder %s210, 9
      %s214 = scalar_select %p213, %s210, 9
      %s215 = smul.addr %s214, 6
      %s216 = smul.addr %s212, 60
      %s217 = sadd.s32 %s215, %s216
      %s218 = smul.addr %s217, 4
      %s219 = scalar_lea.vmem %s0, %s218
      %p220 = pneg %p65
      %p221 = pneg %p62
      %s222 = smul.u32 2, %s22
      %p223 = scmp.lt.s32.totalorder %s23, 2
      %s224 = scalar_select %p223, %s23, 2
      %p225 = scmp.lt.s32.totalorder %s222, 1
      %s226 = scalar_select %p225, %s222, 1
      %s227 = smul.addr %s224, 288
      %s228 = sadd.s32 %s226, %s227
      %s229 = smul.addr %s228, 4
      %s230 = scalar_lea.vmem %s1, %s229
      %p231 = pneg %p93
      %p232 = pneg %p90
      %s233 = smul.u32 2, %s22
      %p234 = scmp.lt.s32.totalorder %s233, 1
      %s235 = scalar_select %p234, %s233, 1
      %s236 = scalar_lea.vmem %s2, %s235
      %p237 = pneg %p119
      %p238 = pneg %p116
      %p239 = pneg %p149
      %p240 = pneg %p146
      %s241 = smul.u32 2, %s22
      %p242 = scmp.lt.s32.totalorder %s20, 1
      %s243 = scalar_select %p242, %s20, 1
      %p244 = scmp.lt.s32.totalorder %s21, 7
      %s245 = scalar_select %p244, %s21, 7
      %p246 = scmp.lt.s32.totalorder %s241, 1
      %s247 = scalar_select %p246, %s241, 1
      %s248 = smul.addr %s245, 2
      %s249 = sadd.s32 %s247, %s248
      %s250 = smul.addr %s243, 16
      %s251 = sadd.s32 %s249, %s250
      %s252 = smul.addr %s251, 4
      %s253 = scalar_lea.vmem %s3, %s252
      %s254 = sadd.s32 %s21, %s23
      %p255 = scmp.lt.s32.totalorder %s20, 1
      %s256 = scalar_select %p255, %s20, 1
      %p257 = scmp.lt.s32.totalorder %s254, 9
      %s258 = scalar_select %p257, %s254, 9
      %s259 = smul.addr %s258, 6
      %s260 = smul.addr %s256, 60
      %s261 = sadd.s32 %s259, %s260
      %s262 = smul.addr %s261, 4
      %s263 = scalar_lea.vmem %s0, %s262
      %s264 = sadd.s32 %s21, %s23
      %s265 = smul.u32 2, %s22
      %p266 = scmp.lt.s32.totalorder %s23, 2
      %s267 = scalar_select %p266, %s23, 2
      %p268 = scmp.lt.s32.totalorder %s265, 1
      %s269 = scalar_select %p268, %s265, 1
      %s270 = smul.addr %s267, 288
      %s271 = sadd.s32 %s269, %s270
      %s272 = smul.addr %s271, 4
      %s273 = scalar_lea.vmem %s1, %s272
      %s274 = smul.u32 2, %s22
      %s275 = smul.u32 2, %s22
      %p276 = scmp.lt.s32.totalorder %s275, 1
      %s277 = scalar_select %p276, %s275, 1
      %s278 = scalar_lea.vmem %s2, %s277
      %s279 = smul.u32 2, %s22
      %s280 = smul.u32 2, %s22
      %p281 = scmp.lt.s32.totalorder %s20, 1
      %s282 = scalar_select %p281, %s20, 1
      %p283 = scmp.lt.s32.totalorder %s21, 7
      %s284 = scalar_select %p283, %s21, 7
      %p285 = scmp.lt.s32.totalorder %s280, 1
      %s286 = scalar_select %p285, %s280, 1
      %s287 = smul.addr %s284, 2
      %s288 = sadd.s32 %s286, %s287
      %s289 = smul.addr %s282, 16
      %s290 = sadd.s32 %s288, %s289
      %s291 = smul.addr %s290, 4
      %s292 = scalar_lea.vmem %s3, %s291
      %s293 = smul.u32 2, %s22
      %p295 = scmp.eq.s32.totalorder %s23, 0
      // Predicated region
      $region33: #{deeplab_cls_forward_test.20} parent=31 // pred_check
        %p296 = pneg %p295
      $region34: #{deeplab_cls_forward_test.20} parent=31 // pred_check_branch
        %298 = sbr.rel (%p296) target = $region36
      $region35: #{deeplab_cls_forward_test.20} parent=31 // pred_region
        %299 = vst [vmem:[#allocation2] sm:$0xff] 0.0
        %300 = vst [vmem:[#allocation2 + $0x8] sm:$0xff] 0.0
      $region36: #{deeplab_cls_forward_test.20} parent=31 // pred_fallthru
        _
      %v301 = vld [vmem:[%s263] sm:$0xff]
      %v302 = vld [vmem:[%s263 + $0x8] sm:$0xf]
      %v303 = vld [vmem:[#allocation2] sm:$0xff]
      %v304 = vld [vmem:[#allocation2 + $0x8] sm:$0xff]
      %v305 = vld [vmem:[%s273] sm:$0xff]
      %v306 = vld [vmem:[%s273 + $0x8] sm:$0xff]
      %v307 = vld [vmem:[%s273 + $0x10] sm:$0xff]
      %v308 = vld [vmem:[%s273 + $0x18] sm:$0xff]
      %v309 = vld [vmem:[%s273 + $0x20] sm:$0xff]
      %v310 = vld [vmem:[%s273 + $0x28] sm:$0xff]
      %v311 = vld [vmem:[%s273 + $0x30] sm:$0xff]
      %v312 = vld [vmem:[%s273 + $0x38] sm:$0xff]
      %v313 = vld [vmem:[%s273 + $0x40] sm:$0xff]
      %v314 = vld [vmem:[%s273 + $0x48] sm:$0xff]
      %v315 = vld [vmem:[%s273 + $0x50] sm:$0xff]
      %v316 = vld [vmem:[%s273 + $0x58] sm:$0xff]
      %v317 = vld [vmem:[%s273 + $0x60] sm:$0xff]
      %v318 = vld [vmem:[%s273 + $0x68] sm:$0xff]
      %v319 = vld [vmem:[%s273 + $0x70] sm:$0xff]
      %v320 = vld [vmem:[%s273 + $0x78] sm:$0xff]
      %v321 = vld [vmem:[%s273 + $0x80] sm:$0xff]
      %v322 = vld [vmem:[%s273 + $0x88] sm:$0xff]
      %v323 = vld [vmem:[%s273 + $0x90] sm:$0xff]
      %v324 = vld [vmem:[%s273 + $0x98] sm:$0xff]
      %v325 = vld [vmem:[%s273 + $0xa0] sm:$0xff]
      %v326 = vld [vmem:[%s273 + $0xa8] sm:$0xff]
      %v327 = vld [vmem:[%s273 + $0xb0] sm:$0xff]
      %v328 = vld [vmem:[%s273 + $0xb8] sm:$0xff]
      %v329 = vld [vmem:[%s273 + $0xc0] sm:$0xff]
      %v330 = vld [vmem:[%s273 + $0xc8] sm:$0xff]
      %v331 = vld [vmem:[%s273 + $0xd0] sm:$0xff]
      %v332 = vld [vmem:[%s273 + $0xd8] sm:$0xff]
      %v333 = vld [vmem:[%s273 + $0xe0] sm:$0xff]
      %v334 = vld [vmem:[%s273 + $0xe8] sm:$0xff]
      %v335 = vld [vmem:[%s273 + $0xf0] sm:$0xff]
      %v336 = vld [vmem:[%s273 + $0xf8] sm:$0xff]
      %v337 = vld [vmem:[%s273 + $0x100] sm:$0xff]
      %v338 = vld [vmem:[%s273 + $0x108] sm:$0xff]
      %v339 = vld [vmem:[%s273 + $0x110] sm:$0xff]
      %v340 = vld [vmem:[%s273 + $0x118] sm:$0xff]
      %v341 = vld [vmem:[%s273 + $0x120] sm:$0xff]
      %v342 = vld [vmem:[%s273 + $0x128] sm:$0xff]
      %v343 = vld [vmem:[%s273 + $0x130] sm:$0xff]
      %v344 = vld [vmem:[%s273 + $0x138] sm:$0xff]
      %v345 = vld [vmem:[%s273 + $0x140] sm:$0xff]
      %v346 = vld [vmem:[%s273 + $0x148] sm:$0xff]
      %v347 = vld [vmem:[%s273 + $0x150] sm:$0xff]
      %v348 = vld [vmem:[%s273 + $0x158] sm:$0xff]
      %v349 = vld [vmem:[%s273 + $0x160] sm:$0xff]
      %v350 = vld [vmem:[%s273 + $0x168] sm:$0xff]
      %v351 = vld [vmem:[%s273 + $0x170] sm:$0xff]
      %v352 = vld [vmem:[%s273 + $0x178] sm:$0xff]
      %v355 = vunpack.c.l.b16 %v301
      %v356 = vunpack.c.h.b16 %v301
      %v357 = vunpack.c.l.b16 %v302
      %v358 = vpack.c.b16 %v355, %v355
      %v359 = vpack.c.b16 %v356, %v356
      %v360 = vpack.c.b16 %v357, %v357
      %v412 = vunpack.c.l.b16 %v305
      %v413 = vunpack.c.h.b16 %v305
      %v414 = vunpack.c.l.b16 %v306
      %v415 = vunpack.c.h.b16 %v306
      %v416 = vunpack.c.l.b16 %v307
      %v417 = vunpack.c.h.b16 %v307
      %v418 = vunpack.c.l.b16 %v308
      %v419 = vunpack.c.h.b16 %v308
      %v420 = vunpack.c.l.b16 %v309
      %v421 = vunpack.c.h.b16 %v309
      %v422 = vunpack.c.l.b16 %v310
      %v423 = vunpack.c.h.b16 %v310
      %v424 = vunpack.c.l.b16 %v311
      %v425 = vunpack.c.h.b16 %v311
      %v426 = vunpack.c.l.b16 %v312
      %v427 = vunpack.c.h.b16 %v312
      %v428 = vunpack.c.l.b16 %v313
      %v429 = vunpack.c.h.b16 %v313
      %v430 = vunpack.c.l.b16 %v314
      %v431 = vunpack.c.h.b16 %v314
      %v432 = vunpack.c.l.b16 %v315
      %v433 = vunpack.c.h.b16 %v315
      %v434 = vunpack.c.l.b16 %v316
      %v435 = vunpack.c.h.b16 %v316
      %v436 = vunpack.c.l.b16 %v317
      %v437 = vunpack.c.h.b16 %v317
      %v438 = vunpack.c.l.b16 %v318
      %v439 = vunpack.c.h.b16 %v318
      %v440 = vunpack.c.l.b16 %v319
      %v441 = vunpack.c.h.b16 %v319
      %v442 = vunpack.c.l.b16 %v320
      %v443 = vunpack.c.h.b16 %v320
      %v444 = vunpack.c.l.b16 %v321
      %v445 = vunpack.c.h.b16 %v321
      %v446 = vunpack.c.l.b16 %v322
      %v447 = vunpack.c.h.b16 %v322
      %v448 = vunpack.c.l.b16 %v323
      %v449 = vunpack.c.h.b16 %v323
      %v450 = vunpack.c.l.b16 %v324
      %v451 = vunpack.c.h.b16 %v324
      %v452 = vunpack.c.l.b16 %v325
      %v453 = vunpack.c.h.b16 %v325
      %v454 = vunpack.c.l.b16 %v326
      %v455 = vunpack.c.h.b16 %v326
      %v456 = vunpack.c.l.b16 %v327
      %v457 = vunpack.c.h.b16 %v327
      %v458 = vunpack.c.l.b16 %v328
      %v459 = vunpack.c.h.b16 %v328
      %v460 = vunpack.c.l.b16 %v329
      %v461 = vunpack.c.h.b16 %v329
      %v462 = vunpack.c.l.b16 %v330
      %v463 = vunpack.c.h.b16 %v330
      %v464 = vunpack.c.l.b16 %v331
      %v465 = vunpack.c.h.b16 %v331
      %v466 = vunpack.c.l.b16 %v332
      %v467 = vunpack.c.h.b16 %v332
      %v468 = vunpack.c.l.b16 %v333
      %v469 = vunpack.c.h.b16 %v333
      %v470 = vunpack.c.l.b16 %v334
      %v471 = vunpack.c.h.b16 %v334
      %v472 = vunpack.c.l.b16 %v335
      %v473 = vunpack.c.h.b16 %v335
      %v474 = vunpack.c.l.b16 %v336
      %v475 = vunpack.c.h.b16 %v336
      %v476 = vunpack.c.l.b16 %v337
      %v477 = vunpack.c.h.b16 %v337
      %v478 = vunpack.c.l.b16 %v338
      %v479 = vunpack.c.h.b16 %v338
      %v480 = vunpack.c.l.b16 %v339
      %v481 = vunpack.c.h.b16 %v339
      %v482 = vunpack.c.l.b16 %v340
      %v483 = vunpack.c.h.b16 %v340
      %v484 = vunpack.c.l.b16 %v341
      %v485 = vunpack.c.h.b16 %v341
      %v486 = vunpack.c.l.b16 %v342
      %v487 = vunpack.c.h.b16 %v342
      %v488 = vunpack.c.l.b16 %v343
      %v489 = vunpack.c.h.b16 %v343
      %v490 = vunpack.c.l.b16 %v344
      %v491 = vunpack.c.h.b16 %v344
      %v492 = vunpack.c.l.b16 %v345
      %v493 = vunpack.c.h.b16 %v345
      %v494 = vunpack.c.l.b16 %v346
      %v495 = vunpack.c.h.b16 %v346
      %v496 = vunpack.c.l.b16 %v347
      %v497 = vunpack.c.h.b16 %v347
      %v498 = vunpack.c.l.b16 %v348
      %v499 = vunpack.c.h.b16 %v348
      %v500 = vunpack.c.l.b16 %v349
      %v501 = vunpack.c.h.b16 %v349
      %v502 = vunpack.c.l.b16 %v350
      %v503 = vunpack.c.h.b16 %v350
      %v504 = vunpack.c.l.b16 %v351
      %v505 = vunpack.c.h.b16 %v351
      %v506 = vunpack.c.l.b16 %v352
      %v507 = vunpack.c.h.b16 %v352
      %v508 = vpack.c.b16 %v414, %v412
      %v509 = vpack.c.b16 %v415, %v413
      %v510 = vpack.c.b16 %v418, %v416
      %v511 = vpack.c.b16 %v419, %v417
      %v512 = vpack.c.b16 %v422, %v420
      %v513 = vpack.c.b16 %v423, %v421
      %v514 = vpack.c.b16 %v426, %v424
      %v515 = vpack.c.b16 %v427, %v425
      %v516 = vpack.c.b16 %v430, %v428
      %v517 = vpack.c.b16 %v431, %v429
      %v518 = vpack.c.b16 %v434, %v432
      %v519 = vpack.c.b16 %v435, %v433
      %v520 = vpack.c.b16 %v438, %v436
      %v521 = vpack.c.b16 %v439, %v437
      %v522 = vpack.c.b16 %v442, %v440
      %v523 = vpack.c.b16 %v443, %v441
      %v524 = vpack.c.b16 %v446, %v444
      %v525 = vpack.c.b16 %v447, %v445
      %v526 = vpack.c.b16 %v450, %v448
      %v527 = vpack.c.b16 %v451, %v449
      %v528 = vpack.c.b16 %v454, %v452
      %v529 = vpack.c.b16 %v455, %v453
      %v530 = vpack.c.b16 %v458, %v456
      %v531 = vpack.c.b16 %v459, %v457
      %v532 = vpack.c.b16 %v462, %v460
      %v533 = vpack.c.b16 %v463, %v461
      %v534 = vpack.c.b16 %v466, %v464
      %v535 = vpack.c.b16 %v467, %v465
      %v536 = vpack.c.b16 %v470, %v468
      %v537 = vpack.c.b16 %v471, %v469
      %v538 = vpack.c.b16 %v474, %v472
      %v539 = vpack.c.b16 %v475, %v473
      %v540 = vpack.c.b16 %v478, %v476
      %v541 = vpack.c.b16 %v479, %v477
      %v542 = vpack.c.b16 %v482, %v480
      %v543 = vpack.c.b16 %v483, %v481
      %v544 = vpack.c.b16 %v486, %v484
      %v545 = vpack.c.b16 %v487, %v485
      %v546 = vpack.c.b16 %v490, %v488
      %v547 = vpack.c.b16 %v491, %v489
      %v548 = vpack.c.b16 %v494, %v492
      %v549 = vpack.c.b16 %v495, %v493
      %v550 = vpack.c.b16 %v498, %v496
      %v551 = vpack.c.b16 %v499, %v497
      %v552 = vpack.c.b16 %v502, %v500
      %v553 = vpack.c.b16 %v503, %v501
      %v554 = vpack.c.b16 %v506, %v504
      %v555 = vpack.c.b16 %v507, %v505
      %604 = vmatprep.subr.bf16.mxu0 %v509
      %605 = vmatpush1.bf16.msra.mxu0 %v508
      %606 = vmatprep.subr.bf16.mxu0 %v511
      %607 = vmatpush1.bf16.msra.mxu0 %v510
      %608 = vmatprep.subr.bf16.mxu0 %v513
      %609 = vmatpush1.bf16.msra.mxu0 %v512
      %610 = vmatprep.subr.bf16.mxu0 %v515
      %611 = vmatpush1.bf16.msra.mxu0 %v514
      %612 = vmatprep.subr.bf16.mxu0 %v517
      %613 = vmatpush1.bf16.msra.mxu0 %v516
      %614 = vmatprep.subr.bf16.mxu0 %v519
      %615 = vmatpush1.bf16.msra.mxu0 %v518
      %616 = vmatprep.subr.bf16.mxu0 %v521
      %617 = vmatpush1.bf16.msra.mxu0 %v520
      %618 = vmatprep.subr.bf16.mxu0 %v523
      %619 = vmatpush1.bf16.msra.mxu0 %v522
      %620 = vmatprep.subr.bf16.mxu0 %v525
      %621 = vmatpush1.bf16.msra.mxu0 %v524
      %622 = vmatprep.subr.bf16.mxu0 %v527
      %623 = vmatpush1.bf16.msra.mxu0 %v526
      %624 = vmatprep.subr.bf16.mxu0 %v529
      %625 = vmatpush1.bf16.msra.mxu0 %v528
      %626 = vmatprep.subr.bf16.mxu0 %v531
      %627 = vmatpush1.bf16.msra.mxu0 %v530
      %628 = vmatprep.subr.bf16.mxu0 %v533
      %629 = vmatpush1.bf16.msra.mxu0 %v532
      %630 = vmatprep.subr.bf16.mxu0 %v535
      %631 = vmatpush1.bf16.msra.mxu0 %v534
      %632 = vmatprep.subr.bf16.mxu0 %v537
      %633 = vmatpush1.bf16.msra.mxu0 %v536
      %634 = vmatprep.subr.bf16.mxu0 %v539
      %635 = vmatpush1.bf16.msra.mxu0 %v538
      %636 = vmatprep.mubr.bf16.mxu0 %v359
      %637 = vmatmul.mubr.bf16.gmra.mrb[0].mxu0 %v358
      %v638 = vpop.f32.mrb[0].mxu0
      %v639 = vadd.f32 0.0, %v638
      %v640 = vpop.f32.mrb[0].mxu0
      %v641 = vadd.f32 0.0, %v640
      %v642 = vpop.f32.mrb[0].mxu0
      %v643 = vpop.f32.mrb[0].mxu0
      %644 = vdwg.mxu0
      %645 = vmatprep.subr.bf16.mxu0 %v541
      %646 = vmatpush1.bf16.msra.mxu0 %v540
      %647 = vmatprep.subr.bf16.mxu0 %v543
      %648 = vmatpush1.bf16.msra.mxu0 %v542
      %649 = vmatprep.subr.bf16.mxu0 %v545
      %650 = vmatpush1.bf16.msra.mxu0 %v544
      %651 = vmatprep.subr.bf16.mxu0 %v547
      %652 = vmatpush1.bf16.msra.mxu0 %v546
      %653 = vmatprep.subr.bf16.mxu0 %v549
      %654 = vmatpush1.bf16.msra.mxu0 %v548
      %655 = vmatprep.subr.bf16.mxu0 %v551
      %656 = vmatpush1.bf16.msra.mxu0 %v550
      %657 = vmatprep.subr.bf16.mxu0 %v553
      %658 = vmatpush1.bf16.msra.mxu0 %v552
      %659 = vmatprep.subr.bf16.mxu0 %v555
      %660 = vmatpush1.bf16.msra.mxu0 %v554
      %661 = vmatprep.subr.bf16.mxu0 0
      %662 = vmatpush1.bf16.msra.mxu0 0
      %663 = vmatprep.subr.bf16.mxu0 0
      %664 = vmatpush1.bf16.msra.mxu0 0
      %665 = vmatprep.subr.bf16.mxu0 0
      %666 = vmatpush1.bf16.msra.mxu0 0
      %667 = vmatprep.subr.bf16.mxu0 0
      %668 = vmatpush1.bf16.msra.mxu0 0
      %669 = vmatprep.subr.bf16.mxu0 0
      %670 = vmatpush1.bf16.msra.mxu0 0
      %671 = vmatprep.subr.bf16.mxu0 0
      %672 = vmatpush1.bf16.msra.mxu0 0
      %673 = vmatprep.subr.bf16.mxu0 0
      %674 = vmatpush1.bf16.msra.mxu0 0
      %675 = vmatprep.subr.bf16.mxu0 0
      %676 = vmatpush1.bf16.msra.mxu0 0
      %677 = vmatprep.mubr.bf16.mxu0 0
      %678 = vmatmul.mubr.bf16.gmra.mrb[0].mxu0 %v360
      %v679 = vpop.f32.mrb[0].mxu0
      %v680 = vadd.f32 %v639, %v679
      %v681 = vpop.f32.mrb[0].mxu0
      %v682 = vadd.f32 %v641, %v681
      %v683 = vpop.f32.mrb[0].mxu0
      %v684 = vpop.f32.mrb[0].mxu0
      %685 = vdwg.mxu0
      %v686 = vadd.f32 %v303, %v680
      %v687 = vadd.f32 %v304, %v682
      %688 = vst [vmem:[#allocation2] sm:$0xff] %v686
      %689 = vst [vmem:[#allocation2 + $0x8] sm:$0xff] %v687
      %v690 = vld [vmem:[%s263] sm:$0xff]
      %v691 = vld [vmem:[%s263 + $0x8] sm:$0xf]
      %v692 = vld [vmem:[%s263 + $0xc] sm:$0x11]
      %v693 = vld [vmem:[%s263 + $0x14] sm:$0x1]
      %v694 = vld [vmem:[#allocation2] sm:$0xff]
      %v695 = vld [vmem:[#allocation2 + $0x8] sm:$0xff]
      %s696 = scalar_lea.vmem %s273, 384
      %v697 = vld [vmem:[%s696] sm:$0xff]
      %v698 = vld [vmem:[%s696 + $0x8] sm:$0xff]
      %v699 = vld [vmem:[%s696 + $0x10] sm:$0xff]
      %v700 = vld [vmem:[%s696 + $0x18] sm:$0xff]
      %v701 = vld [vmem:[%s696 + $0x20] sm:$0xff]
      %v702 = vld [vmem:[%s696 + $0x28] sm:$0xff]
      %v703 = vld [vmem:[%s696 + $0x30] sm:$0xff]
      %v704 = vld [vmem:[%s696 + $0x38] sm:$0xff]
      %v705 = vld [vmem:[%s696 + $0x40] sm:$0xff]
      %v706 = vld [vmem:[%s696 + $0x48] sm:$0xff]
      %v707 = vld [vmem:[%s696 + $0x50] sm:$0xff]
      %v708 = vld [vmem:[%s696 + $0x58] sm:$0xff]
      %v709 = vld [vmem:[%s696 + $0x60] sm:$0xff]
      %v710 = vld [vmem:[%s696 + $0x68] sm:$0xff]
      %v711 = vld [vmem:[%s696 + $0x70] sm:$0xff]
      %v712 = vld [vmem:[%s696 + $0x78] sm:$0xff]
      %v713 = vld [vmem:[%s696 + $0x80] sm:$0xff]
      %v714 = vld [vmem:[%s696 + $0x88] sm:$0xff]
      %v715 = vld [vmem:[%s696 + $0x90] sm:$0xff]
      %v716 = vld [vmem:[%s696 + $0x98] sm:$0xff]
      %v717 = vld [vmem:[%s696 + $0xa0] sm:$0xff]
      %v718 = vld [vmem:[%s696 + $0xa8] sm:$0xff]
      %v719 = vld [vmem:[%s696 + $0xb0] sm:$0xff]
      %v720 = vld [vmem:[%s696 + $0xb8] sm:$0xff]
      %v721 = vld [vmem:[%s696 + $0xc0] sm:$0xff]
      %v722 = vld [vmem:[%s696 + $0xc8] sm:$0xff]
      %v723 = vld [vmem:[%s696 + $0xd0] sm:$0xff]
      %v724 = vld [vmem:[%s696 + $0xd8] sm:$0xff]
      %v725 = vld [vmem:[%s696 + $0xe0] sm:$0xff]
      %v726 = vld [vmem:[%s696 + $0xe8] sm:$0xff]
      %v727 = vld [vmem:[%s696 + $0xf0] sm:$0xff]
      %v728 = vld [vmem:[%s696 + $0xf8] sm:$0xff]
      %v729 = vld [vmem:[%s696 + $0x100] sm:$0xff]
      %v730 = vld [vmem:[%s696 + $0x108] sm:$0xff]
      %v731 = vld [vmem:[%s696 + $0x110] sm:$0xff]
      %v732 = vld [vmem:[%s696 + $0x118] sm:$0xff]
      %v733 = vld [vmem:[%s696 + $0x120] sm:$0xff]
      %v734 = vld [vmem:[%s696 + $0x128] sm:$0xff]
      %v735 = vld [vmem:[%s696 + $0x130] sm:$0xff]
      %v736 = vld [vmem:[%s696 + $0x138] sm:$0xff]
      %v737 = vld [vmem:[%s696 + $0x140] sm:$0xff]
      %v738 = vld [vmem:[%s696 + $0x148] sm:$0xff]
      %v739 = vld [vmem:[%s696 + $0x150] sm:$0xff]
      %v740 = vld [vmem:[%s696 + $0x158] sm:$0xff]
      %v741 = vld [vmem:[%s696 + $0x160] sm:$0xff]
      %v742 = vld [vmem:[%s696 + $0x168] sm:$0xff]
      %v743 = vld [vmem:[%s696 + $0x170] sm:$0xff]
      %v744 = vld [vmem:[%s696 + $0x178] sm:$0xff]
      %v749 = vunpack.c.l.b16 %v690
      %v750 = vunpack.c.h.b16 %v690
      %v751 = vunpack.c.l.b16 %v691
      %v752 = vunpack.c.l.b16 %v692
      %v753 = vunpack.c.h.b16 %v692
      %v754 = vunpack.c.l.b16 %v693
      %v755 = vpack.c.b16 %v752, %v749
      %v756 = vpack.c.b16 %v753, %v750
      %v757 = vpack.c.b16 %v754, %v751
      %v759 = vshrl.u32 %v755, 16
      %v761 = vshll.u32 %v755, 16
      %v763 = vrot.slane %v761, 1
      %v764 = vor.u32 %v759, %v763
      %v766 = vshrl.u32 %v756, 16
      %v768 = vshll.u32 %v756, 16
      %v770 = vrot.slane %v768, 1
      %v771 = vor.u32 %v766, %v770
      %v773 = vshrl.u32 %v757, 16
      %v775 = vshll.u32 %v757, 16
      %v777 = vrot.slane %v775, 1
      %v778 = vor.u32 %v773, %v777
      %v830 = vunpack.c.l.b16 %v697
      %v831 = vunpack.c.h.b16 %v697
      %v832 = vunpack.c.l.b16 %v698
      %v833 = vunpack.c.h.b16 %v698
      %v834 = vunpack.c.l.b16 %v699
      %v835 = vunpack.c.h.b16 %v699
      %v836 = vunpack.c.l.b16 %v700
      %v837 = vunpack.c.h.b16 %v700
      %v838 = vunpack.c.l.b16 %v701
      %v839 = vunpack.c.h.b16 %v701
      %v840 = vunpack.c.l.b16 %v702
      %v841 = vunpack.c.h.b16 %v702
      %v842 = vunpack.c.l.b16 %v703
      %v843 = vunpack.c.h.b16 %v703
      %v844 = vunpack.c.l.b16 %v704
      %v845 = vunpack.c.h.b16 %v704
      %v846 = vunpack.c.l.b16 %v705
      %v847 = vunpack.c.h.b16 %v705
      %v848 = vunpack.c.l.b16 %v706
      %v849 = vunpack.c.h.b16 %v706
      %v850 = vunpack.c.l.b16 %v707
      %v851 = vunpack.c.h.b16 %v707
      %v852 = vunpack.c.l.b16 %v708
      %v853 = vunpack.c.h.b16 %v708
      %v854 = vunpack.c.l.b16 %v709
      %v855 = vunpack.c.h.b16 %v709
      %v856 = vunpack.c.l.b16 %v710
      %v857 = vunpack.c.h.b16 %v710
      %v858 = vunpack.c.l.b16 %v711
      %v859 = vunpack.c.h.b16 %v711
      %v860 = vunpack.c.l.b16 %v712
      %v861 = vunpack.c.h.b16 %v712
      %v862 = vunpack.c.l.b16 %v713
      %v863 = vunpack.c.h.b16 %v713
      %v864 = vunpack.c.l.b16 %v714
      %v865 = vunpack.c.h.b16 %v714
      %v866 = vunpack.c.l.b16 %v715
      %v867 = vunpack.c.h.b16 %v715
      %v868 = vunpack.c.l.b16 %v716
      %v869 = vunpack.c.h.b16 %v716
      %v870 = vunpack.c.l.b16 %v717
      %v871 = vunpack.c.h.b16 %v717
      %v872 = vunpack.c.l.b16 %v718
      %v873 = vunpack.c.h.b16 %v718
      %v874 = vunpack.c.l.b16 %v719
      %v875 = vunpack.c.h.b16 %v719
      %v876 = vunpack.c.l.b16 %v720
      %v877 = vunpack.c.h.b16 %v720
      %v878 = vunpack.c.l.b16 %v721
      %v879 = vunpack.c.h.b16 %v721
      %v880 = vunpack.c.l.b16 %v722
      %v881 = vunpack.c.h.b16 %v722
      %v882 = vunpack.c.l.b16 %v723
      %v883 = vunpack.c.h.b16 %v723
      %v884 = vunpack.c.l.b16 %v724
      %v885 = vunpack.c.h.b16 %v724
      %v886 = vunpack.c.l.b16 %v725
      %v887 = vunpack.c.h.b16 %v725
      %v888 = vunpack.c.l.b16 %v726
      %v889 = vunpack.c.h.b16 %v726
      %v890 = vunpack.c.l.b16 %v727
      %v891 = vunpack.c.h.b16 %v727
      %v892 = vunpack.c.l.b16 %v728
      %v893 = vunpack.c.h.b16 %v728
      %v894 = vunpack.c.l.b16 %v729
      %v895 = vunpack.c.h.b16 %v729
      %v896 = vunpack.c.l.b16 %v730
      %v897 = vunpack.c.h.b16 %v730
      %v898 = vunpack.c.l.b16 %v731
      %v899 = vunpack.c.h.b16 %v731
      %v900 = vunpack.c.l.b16 %v732
      %v901 = vunpack.c.h.b16 %v732
      %v902 = vunpack.c.l.b16 %v733
      %v903 = vunpack.c.h.b16 %v733
      %v904 = vunpack.c.l.b16 %v734
      %v905 = vunpack.c.h.b16 %v734
      %v906 = vunpack.c.l.b16 %v735
      %v907 = vunpack.c.h.b16 %v735
      %v908 = vunpack.c.l.b16 %v736
      %v909 = vunpack.c.h.b16 %v736
      %v910 = vunpack.c.l.b16 %v737
      %v911 = vunpack.c.h.b16 %v737
      %v912 = vunpack.c.l.b16 %v738
      %v913 = vunpack.c.h.b16 %v738
      %v914 = vunpack.c.l.b16 %v739
      %v915 = vunpack.c.h.b16 %v739
      %v916 = vunpack.c.l.b16 %v740
      %v917 = vunpack.c.h.b16 %v740
      %v918 = vunpack.c.l.b16 %v741
      %v919 = vunpack.c.h.b16 %v741
      %v920 = vunpack.c.l.b16 %v742
      %v921 = vunpack.c.h.b16 %v742
      %v922 = vunpack.c.l.b16 %v743
      %v923 = vunpack.c.h.b16 %v743
      %v924 = vunpack.c.l.b16 %v744
      %v925 = vunpack.c.h.b16 %v744
      %v926 = vpack.c.b16 %v832, %v830
      %v927 = vpack.c.b16 %v833, %v831
      %v928 = vpack.c.b16 %v836, %v834
      %v929 = vpack.c.b16 %v837, %v835
      %v930 = vpack.c.b16 %v840, %v838
      %v931 = vpack.c.b16 %v841, %v839
      %v932 = vpack.c.b16 %v844, %v842
      %v933 = vpack.c.b16 %v845, %v843
      %v934 = vpack.c.b16 %v848, %v846
      %v935 = vpack.c.b16 %v849, %v847
      %v936 = vpack.c.b16 %v852, %v850
      %v937 = vpack.c.b16 %v853, %v851
      %v938 = vpack.c.b16 %v856, %v854
      %v939 = vpack.c.b16 %v857, %v855
      %v940 = vpack.c.b16 %v860, %v858
      %v941 = vpack.c.b16 %v861, %v859
      %v942 = vpack.c.b16 %v864, %v862
      %v943 = vpack.c.b16 %v865, %v863
      %v944 = vpack.c.b16 %v868, %v866
      %v945 = vpack.c.b16 %v869, %v867
      %v946 = vpack.c.b16 %v872, %v870
      %v947 = vpack.c.b16 %v873, %v871
      %v948 = vpack.c.b16 %v876, %v874
      %v949 = vpack.c.b16 %v877, %v875
      %v950 = vpack.c.b16 %v880, %v878
      %v951 = vpack.c.b16 %v881, %v879
      %v952 = vpack.c.b16 %v884, %v882
      %v953 = vpack.c.b16 %v885, %v883
      %v954 = vpack.c.b16 %v888, %v886
      %v955 = vpack.c.b16 %v889, %v887
      %v956 = vpack.c.b16 %v892, %v890
      %v957 = vpack.c.b16 %v893, %v891
      %v958 = vpack.c.b16 %v896, %v894
      %v959 = vpack.c.b16 %v897, %v895
      %v960 = vpack.c.b16 %v900, %v898
      %v961 = vpack.c.b16 %v901, %v899
      %v962 = vpack.c.b16 %v904, %v902
      %v963 = vpack.c.b16 %v905, %v903
      %v964 = vpack.c.b16 %v908, %v906
      %v965 = vpack.c.b16 %v909, %v907
      %v966 = vpack.c.b16 %v912, %v910
      %v967 = vpack.c.b16 %v913, %v911
      %v968 = vpack.c.b16 %v916, %v914
      %v969 = vpack.c.b16 %v917, %v915
      %v970 = vpack.c.b16 %v920, %v918
      %v971 = vpack.c.b16 %v921, %v919
      %v972 = vpack.c.b16 %v924, %v922
      %v973 = vpack.c.b16 %v925, %v923
      %1022 = vmatprep.subr.bf16.mxu0 %v927
      %1023 = vmatpush1.bf16.msra.mxu0 %v926
      %1024 = vmatprep.subr.bf16.mxu0 %v929
      %1025 = vmatpush1.bf16.msra.mxu0 %v928
      %1026 = vmatprep.subr.bf16.mxu0 %v931
      %1027 = vmatpush1.bf16.msra.mxu0 %v930
      %1028 = vmatprep.subr.bf16.mxu0 %v933
      %1029 = vmatpush1.bf16.msra.mxu0 %v932
      %1030 = vmatprep.subr.bf16.mxu0 %v935
      %1031 = vmatpush1.bf16.msra.mxu0 %v934
      %1032 = vmatprep.subr.bf16.mxu0 %v937
      %1033 = vmatpush1.bf16.msra.mxu0 %v936
      %1034 = vmatprep.subr.bf16.mxu0 %v939
      %1035 = vmatpush1.bf16.msra.mxu0 %v938
      %1036 = vmatprep.subr.bf16.mxu0 %v941
      %1037 = vmatpush1.bf16.msra.mxu0 %v940
      %1038 = vmatprep.subr.bf16.mxu0 %v943
      %1039 = vmatpush1.bf16.msra.mxu0 %v942
      %1040 = vmatprep.subr.bf16.mxu0 %v945
      %1041 = vmatpush1.bf16.msra.mxu0 %v944
      %1042 = vmatprep.subr.bf16.mxu0 %v947
      %1043 = vmatpush1.bf16.msra.mxu0 %v946
      %1044 = vmatprep.subr.bf16.mxu0 %v949
      %1045 = vmatpush1.bf16.msra.mxu0 %v948
      %1046 = vmatprep.subr.bf16.mxu0 %v951
      %1047 = vmatpush1.bf16.msra.mxu0 %v950
      %1048 = vmatprep.subr.bf16.mxu0 %v953
      %1049 = vmatpush1.bf16.msra.mxu0 %v952
      %1050 = vmatprep.subr.bf16.mxu0 %v955
      %1051 = vmatpush1.bf16.msra.mxu0 %v954
      %1052 = vmatprep.subr.bf16.mxu0 %v957
      %1053 = vmatpush1.bf16.msra.mxu0 %v956
      %1054 = vmatprep.mubr.bf16.mxu0 %v771
      %1055 = vmatmul.mubr.bf16.gmra.mrb[0].mxu0 %v764
      %v1056 = vpop.f32.mrb[0].mxu0
      %v1057 = vadd.f32 0.0, %v1056
      %v1058 = vpop.f32.mrb[0].mxu0
      %v1059 = vadd.f32 0.0, %v1058
      %v1060 = vpop.f32.mrb[0].mxu0
      %v1061 = vpop.f32.mrb[0].mxu0
      %1062 = vdwg.mxu0
      %1063 = vmatprep.subr.bf16.mxu0 %v959
      %1064 = vmatpush1.bf16.msra.mxu0 %v958
      %1065 = vmatprep.subr.bf16.mxu0 %v961
      %1066 = vmatpush1.bf16.msra.mxu0 %v960
      %1067 = vmatprep.subr.bf16.mxu0 %v963
      %1068 = vmatpush1.bf16.msra.mxu0 %v962
      %1069 = vmatprep.subr.bf16.mxu0 %v965
      %1070 = vmatpush1.bf16.msra.mxu0 %v964
      %1071 = vmatprep.subr.bf16.mxu0 %v967
      %1072 = vmatpush1.bf16.msra.mxu0 %v966
      %1073 = vmatprep.subr.bf16.mxu0 %v969
      %1074 = vmatpush1.bf16.msra.mxu0 %v968
      %1075 = vmatprep.subr.bf16.mxu0 %v971
      %1076 = vmatpush1.bf16.msra.mxu0 %v970
      %1077 = vmatprep.subr.bf16.mxu0 %v973
      %1078 = vmatpush1.bf16.msra.mxu0 %v972
      %1079 = vmatprep.subr.bf16.mxu0 0
      %1080 = vmatpush1.bf16.msra.mxu0 0
      %1081 = vmatprep.subr.bf16.mxu0 0
      %1082 = vmatpush1.bf16.msra.mxu0 0
      %1083 = vmatprep.subr.bf16.mxu0 0
      %1084 = vmatpush1.bf16.msra.mxu0 0
      %1085 = vmatprep.subr.bf16.mxu0 0
      %1086 = vmatpush1.bf16.msra.mxu0 0
      %1087 = vmatprep.subr.bf16.mxu0 0
      %1088 = vmatpush1.bf16.msra.mxu0 0
      %1089 = vmatprep.subr.bf16.mxu0 0
      %1090 = vmatpush1.bf16.msra.mxu0 0
      %1091 = vmatprep.subr.bf16.mxu0 0
      %1092 = vmatpush1.bf16.msra.mxu0 0
      %1093 = vmatprep.subr.bf16.mxu0 0
      %1094 = vmatpush1.bf16.msra.mxu0 0
      %1095 = vmatprep.mubr.bf16.mxu0 0
      %1096 = vmatmul.mubr.bf16.gmra.mrb[0].mxu0 %v778
      %v1097 = vpop.f32.mrb[0].mxu0
      %v1098 = vadd.f32 %v1057, %v1097
      %v1099 = vpop.f32.mrb[0].mxu0
      %v1100 = vadd.f32 %v1059, %v1099
      %v1101 = vpop.f32.mrb[0].mxu0
      %v1102 = vpop.f32.mrb[0].mxu0
      %1103 = vdwg.mxu0
      %v1104 = vadd.f32 %v694, %v1098
      %v1105 = vadd.f32 %v695, %v1100
      %1106 = vst [vmem:[#allocation2] sm:$0xff] %v1104
      %1107 = vst [vmem:[#allocation2 + $0x8] sm:$0xff] %v1105
      %v1108 = vld [vmem:[%s263] sm:$0xee]
      %v1109 = vld [vmem:[%s263 + $0x8] sm:$0xe]
      %v1110 = vld [vmem:[%s263 + $0xc] sm:$0x11]
      %v1111 = vld [vmem:[%s263 + $0x14] sm:$0x1]
      %v1112 = vld [vmem:[#allocation2] sm:$0xff]
      %v1113 = vld [vmem:[#allocation2 + $0x8] sm:$0xff]
      %s1114 = scalar_lea.vmem %s273, 768
      %v1115 = vld [vmem:[%s1114] sm:$0xff]
      %v1116 = vld [vmem:[%s1114 + $0x8] sm:$0xff]
      %v1117 = vld [vmem:[%s1114 + $0x10] sm:$0xff]
      %v1118 = vld [vmem:[%s1114 + $0x18] sm:$0xff]
      %v1119 = vld [vmem:[%s1114 + $0x20] sm:$0xff]
      %v1120 = vld [vmem:[%s1114 + $0x28] sm:$0xff]
      %v1121 = vld [vmem:[%s1114 + $0x30] sm:$0xff]
      %v1122 = vld [vmem:[%s1114 + $0x38] sm:$0xff]
      %v1123 = vld [vmem:[%s1114 + $0x40] sm:$0xff]
      %v1124 = vld [vmem:[%s1114 + $0x48] sm:$0xff]
      %v1125 = vld [vmem:[%s1114 + $0x50] sm:$0xff]
      %v1126 = vld [vmem:[%s1114 + $0x58] sm:$0xff]
      %v1127 = vld [vmem:[%s1114 + $0x60] sm:$0xff]
      %v1128 = vld [vmem:[%s1114 + $0x68] sm:$0xff]
      %v1129 = vld [vmem:[%s1114 + $0x70] sm:$0xff]
      %v1130 = vld [vmem:[%s1114 + $0x78] sm:$0xff]
      %v1131 = vld [vmem:[%s1114 + $0x80] sm:$0xff]
      %v1132 = vld [vmem:[%s1114 + $0x88] sm:$0xff]
      %v1133 = vld [vmem:[%s1114 + $0x90] sm:$0xff]
      %v1134 = vld [vmem:[%s1114 + $0x98] sm:$0xff]
      %v1135 = vld [vmem:[%s1114 + $0xa0] sm:$0xff]
      %v1136 = vld [vmem:[%s1114 + $0xa8] sm:$0xff]
      %v1137 = vld [vmem:[%s1114 + $0xb0] sm:$0xff]
      %v1138 = vld [vmem:[%s1114 + $0xb8] sm:$0xff]
      %v1139 = vld [vmem:[%s1114 + $0xc0] sm:$0xff]
      %v1140 = vld [vmem:[%s1114 + $0xc8] sm:$0xff]
      %v1141 = vld [vmem:[%s1114 + $0xd0] sm:$0xff]
      %v1142 = vld [vmem:[%s1114 + $0xd8] sm:$0xff]
      %v1143 = vld [vmem:[%s1114 + $0xe0] sm:$0xff]
      %v1144 = vld [vmem:[%s1114 + $0xe8] sm:$0xff]
      %v1145 = vld [vmem:[%s1114 + $0xf0] sm:$0xff]
      %v1146 = vld [vmem:[%s1114 + $0xf8] sm:$0xff]
      %v1147 = vld [vmem:[%s1114 + $0x100] sm:$0xff]
      %v1148 = vld [vmem:[%s1114 + $0x108] sm:$0xff]
      %v1149 = vld [vmem:[%s1114 + $0x110] sm:$0xff]
      %v1150 = vld [vmem:[%s1114 + $0x118] sm:$0xff]
      %v1151 = vld [vmem:[%s1114 + $0x120] sm:$0xff]
      %v1152 = vld [vmem:[%s1114 + $0x128] sm:$0xff]
      %v1153 = vld [vmem:[%s1114 + $0x130] sm:$0xff]
      %v1154 = vld [vmem:[%s1114 + $0x138] sm:$0xff]
      %v1155 = vld [vmem:[%s1114 + $0x140] sm:$0xff]
      %v1156 = vld [vmem:[%s1114 + $0x148] sm:$0xff]
      %v1157 = vld [vmem:[%s1114 + $0x150] sm:$0xff]
      %v1158 = vld [vmem:[%s1114 + $0x158] sm:$0xff]
      %v1159 = vld [vmem:[%s1114 + $0x160] sm:$0xff]
      %v1160 = vld [vmem:[%s1114 + $0x168] sm:$0xff]
      %v1161 = vld [vmem:[%s1114 + $0x170] sm:$0xff]
      %v1162 = vld [vmem:[%s1114 + $0x178] sm:$0xff]
      %v1167 = vunpack.c.l.b16 %v1108
      %v1168 = vunpack.c.h.b16 %v1108
      %v1169 = vunpack.c.l.b16 %v1109
      %v1170 = vunpack.c.l.b16 %v1110
      %v1171 = vunpack.c.h.b16 %v1110
      %v1172 = vunpack.c.l.b16 %v1111
      %v1173 = vpack.c.b16 %v1170, %v1167
      %v1174 = vpack.c.b16 %v1171, %v1168
      %v1175 = vpack.c.b16 %v1172, %v1169
      %v1176 = vrot.slane %v1173, 1
      %v1177 = vrot.slane %v1174, 1
      %v1178 = vrot.slane %v1175, 1
      %v1230 = vunpack.c.l.b16 %v1115
      %v1231 = vunpack.c.h.b16 %v1115
      %v1232 = vunpack.c.l.b16 %v1116
      %v1233 = vunpack.c.h.b16 %v1116
      %v1234 = vunpack.c.l.b16 %v1117
      %v1235 = vunpack.c.h.b16 %v1117
      %v1236 = vunpack.c.l.b16 %v1118
      %v1237 = vunpack.c.h.b16 %v1118
      %v1238 = vunpack.c.l.b16 %v1119
      %v1239 = vunpack.c.h.b16 %v1119
      %v1240 = vunpack.c.l.b16 %v1120
      %v1241 = vunpack.c.h.b16 %v1120
      %v1242 = vunpack.c.l.b16 %v1121
      %v1243 = vunpack.c.h.b16 %v1121
      %v1244 = vunpack.c.l.b16 %v1122
      %v1245 = vunpack.c.h.b16 %v1122
      %v1246 = vunpack.c.l.b16 %v1123
      %v1247 = vunpack.c.h.b16 %v1123
      %v1248 = vunpack.c.l.b16 %v1124
      %v1249 = vunpack.c.h.b16 %v1124
      %v1250 = vunpack.c.l.b16 %v1125
      %v1251 = vunpack.c.h.b16 %v1125
      %v1252 = vunpack.c.l.b16 %v1126
      %v1253 = vunpack.c.h.b16 %v1126
      %v1254 = vunpack.c.l.b16 %v1127
      %v1255 = vunpack.c.h.b16 %v1127
      %v1256 = vunpack.c.l.b16 %v1128
      %v1257 = vunpack.c.h.b16 %v1128
      %v1258 = vunpack.c.l.b16 %v1129
      %v1259 = vunpack.c.h.b16 %v1129
      %v1260 = vunpack.c.l.b16 %v1130
      %v1261 = vunpack.c.h.b16 %v1130
      %v1262 = vunpack.c.l.b16 %v1131
      %v1263 = vunpack.c.h.b16 %v1131
      %v1264 = vunpack.c.l.b16 %v1132
      %v1265 = vunpack.c.h.b16 %v1132
      %v1266 = vunpack.c.l.b16 %v1133
      %v1267 = vunpack.c.h.b16 %v1133
      %v1268 = vunpack.c.l.b16 %v1134
      %v1269 = vunpack.c.h.b16 %v1134
      %v1270 = vunpack.c.l.b16 %v1135
      %v1271 = vunpack.c.h.b16 %v1135
      %v1272 = vunpack.c.l.b16 %v1136
      %v1273 = vunpack.c.h.b16 %v1136
      %v1274 = vunpack.c.l.b16 %v1137
      %v1275 = vunpack.c.h.b16 %v1137
      %v1276 = vunpack.c.l.b16 %v1138
      %v1277 = vunpack.c.h.b16 %v1138
      %v1278 = vunpack.c.l.b16 %v1139
      %v1279 = vunpack.c.h.b16 %v1139
      %v1280 = vunpack.c.l.b16 %v1140
      %v1281 = vunpack.c.h.b16 %v1140
      %v1282 = vunpack.c.l.b16 %v1141
      %v1283 = vunpack.c.h.b16 %v1141
      %v1284 = vunpack.c.l.b16 %v1142
      %v1285 = vunpack.c.h.b16 %v1142
      %v1286 = vunpack.c.l.b16 %v1143
      %v1287 = vunpack.c.h.b16 %v1143
      %v1288 = vunpack.c.l.b16 %v1144
      %v1289 = vunpack.c.h.b16 %v1144
      %v1290 = vunpack.c.l.b16 %v1145
      %v1291 = vunpack.c.h.b16 %v1145
      %v1292 = vunpack.c.l.b16 %v1146
      %v1293 = vunpack.c.h.b16 %v1146
      %v1294 = vunpack.c.l.b16 %v1147
      %v1295 = vunpack.c.h.b16 %v1147
      %v1296 = vunpack.c.l.b16 %v1148
      %v1297 = vunpack.c.h.b16 %v1148
      %v1298 = vunpack.c.l.b16 %v1149
      %v1299 = vunpack.c.h.b16 %v1149
      %v1300 = vunpack.c.l.b16 %v1150
      %v1301 = vunpack.c.h.b16 %v1150
      %v1302 = vunpack.c.l.b16 %v1151
      %v1303 = vunpack.c.h.b16 %v1151
      %v1304 = vunpack.c.l.b16 %v1152
      %v1305 = vunpack.c.h.b16 %v1152
      %v1306 = vunpack.c.l.b16 %v1153
      %v1307 = vunpack.c.h.b16 %v1153
      %v1308 = vunpack.c.l.b16 %v1154
      %v1309 = vunpack.c.h.b16 %v1154
      %v1310 = vunpack.c.l.b16 %v1155
      %v1311 = vunpack.c.h.b16 %v1155
      %v1312 = vunpack.c.l.b16 %v1156
      %v1313 = vunpack.c.h.b16 %v1156
      %v1314 = vunpack.c.l.b16 %v1157
      %v1315 = vunpack.c.h.b16 %v1157
      %v1316 = vunpack.c.l.b16 %v1158
      %v1317 = vunpack.c.h.b16 %v1158
      %v1318 = vunpack.c.l.b16 %v1159
      %v1319 = vunpack.c.h.b16 %v1159
      %v1320 = vunpack.c.l.b16 %v1160
      %v1321 = vunpack.c.h.b16 %v1160
      %v1322 = vunpack.c.l.b16 %v1161
      %v1323 = vunpack.c.h.b16 %v1161
      %v1324 = vunpack.c.l.b16 %v1162
      %v1325 = vunpack.c.h.b16 %v1162
      %v1326 = vpack.c.b16 %v1232, %v1230
      %v1327 = vpack.c.b16 %v1233, %v1231
      %v1328 = vpack.c.b16 %v1236, %v1234
      %v1329 = vpack.c.b16 %v1237, %v1235
      %v1330 = vpack.c.b16 %v1240, %v1238
      %v1331 = vpack.c.b16 %v1241, %v1239
      %v1332 = vpack.c.b16 %v1244, %v1242
      %v1333 = vpack.c.b16 %v1245, %v1243
      %v1334 = vpack.c.b16 %v1248, %v1246
      %v1335 = vpack.c.b16 %v1249, %v1247
      %v1336 = vpack.c.b16 %v1252, %v1250
      %v1337 = vpack.c.b16 %v1253, %v1251
      %v1338 = vpack.c.b16 %v1256, %v1254
      %v1339 = vpack.c.b16 %v1257, %v1255
      %v1340 = vpack.c.b16 %v1260, %v1258
      %v1341 = vpack.c.b16 %v1261, %v1259
      %v1342 = vpack.c.b16 %v1264, %v1262
      %v1343 = vpack.c.b16 %v1265, %v1263
      %v1344 = vpack.c.b16 %v1268, %v1266
      %v1345 = vpack.c.b16 %v1269, %v1267
      %v1346 = vpack.c.b16 %v1272, %v1270
      %v1347 = vpack.c.b16 %v1273, %v1271
      %v1348 = vpack.c.b16 %v1276, %v1274
      %v1349 = vpack.c.b16 %v1277, %v1275
      %v1350 = vpack.c.b16 %v1280, %v1278
      %v1351 = vpack.c.b16 %v1281, %v1279
      %v1352 = vpack.c.b16 %v1284, %v1282
      %v1353 = vpack.c.b16 %v1285, %v1283
      %v1354 = vpack.c.b16 %v1288, %v1286
      %v1355 = vpack.c.b16 %v1289, %v1287
      %v1356 = vpack.c.b16 %v1292, %v1290
      %v1357 = vpack.c.b16 %v1293, %v1291
      %v1358 = vpack.c.b16 %v1296, %v1294
      %v1359 = vpack.c.b16 %v1297, %v1295
      %v1360 = vpack.c.b16 %v1300, %v1298
      %v1361 = vpack.c.b16 %v1301, %v1299
      %v1362 = vpack.c.b16 %v1304, %v1302
      %v1363 = vpack.c.b16 %v1305, %v1303
      %v1364 = vpack.c.b16 %v1308, %v1306
      %v1365 = vpack.c.b16 %v1309, %v1307
      %v1366 = vpack.c.b16 %v1312, %v1310
      %v1367 = vpack.c.b16 %v1313, %v1311
      %v1368 = vpack.c.b16 %v1316, %v1314
      %v1369 = vpack.c.b16 %v1317, %v1315
      %v1370 = vpack.c.b16 %v1320, %v1318
      %v1371 = vpack.c.b16 %v1321, %v1319
      %v1372 = vpack.c.b16 %v1324, %v1322
      %v1373 = vpack.c.b16 %v1325, %v1323
      %1422 = vmatprep.subr.bf16.mxu0 %v1327
      %1423 = vmatpush1.bf16.msra.mxu0 %v1326
      %1424 = vmatprep.subr.bf16.mxu0 %v1329
      %1425 = vmatpush1.bf16.msra.mxu0 %v1328
      %1426 = vmatprep.subr.bf16.mxu0 %v1331
      %1427 = vmatpush1.bf16.msra.mxu0 %v1330
      %1428 = vmatprep.subr.bf16.mxu0 %v1333
      %1429 = vmatpush1.bf16.msra.mxu0 %v1332
      %1430 = vmatprep.subr.bf16.mxu0 %v1335
      %1431 = vmatpush1.bf16.msra.mxu0 %v1334
      %1432 = vmatprep.subr.bf16.mxu0 %v1337
      %1433 = vmatpush1.bf16.msra.mxu0 %v1336
      %1434 = vmatprep.subr.bf16.mxu0 %v1339
      %1435 = vmatpush1.bf16.msra.mxu0 %v1338
      %1436 = vmatprep.subr.bf16.mxu0 %v1341
      %1437 = vmatpush1.bf16.msra.mxu0 %v1340
      %1438 = vmatprep.subr.bf16.mxu0 %v1343
      %1439 = vmatpush1.bf16.msra.mxu0 %v1342
      %1440 = vmatprep.subr.bf16.mxu0 %v1345
      %1441 = vmatpush1.bf16.msra.mxu0 %v1344
      %1442 = vmatprep.subr.bf16.mxu0 %v1347
      %1443 = vmatpush1.bf16.msra.mxu0 %v1346
      %1444 = vmatprep.subr.bf16.mxu0 %v1349
      %1445 = vmatpush1.bf16.msra.mxu0 %v1348
      %1446 = vmatprep.subr.bf16.mxu0 %v1351
      %1447 = vmatpush1.bf16.msra.mxu0 %v1350
      %1448 = vmatprep.subr.bf16.mxu0 %v1353
      %1449 = vmatpush1.bf16.msra.mxu0 %v1352
      %1450 = vmatprep.subr.bf16.mxu0 %v1355
      %1451 = vmatpush1.bf16.msra.mxu0 %v1354
      %1452 = vmatprep.subr.bf16.mxu0 %v1357
      %1453 = vmatpush1.bf16.msra.mxu0 %v1356
      %1454 = vmatprep.mubr.bf16.mxu0 %v1177
      %1455 = vmatmul.mubr.bf16.gmra.mrb[0].mxu0 %v1176
      %v1456 = vpop.f32.mrb[0].mxu0
      %v1457 = vadd.f32 0.0, %v1456
      %v1458 = vpop.f32.mrb[0].mxu0
      %v1459 = vadd.f32 0.0, %v1458
      %v1460 = vpop.f32.mrb[0].mxu0
      %v1461 = vpop.f32.mrb[0].mxu0
      %1462 = vdwg.mxu0
      %1463 = vmatprep.subr.bf16.mxu0 %v1359
      %1464 = vmatpush1.bf16.msra.mxu0 %v1358
      %1465 = vmatprep.subr.bf16.mxu0 %v1361
      %1466 = vmatpush1.bf16.msra.mxu0 %v1360
      %1467 = vmatprep.subr.bf16.mxu0 %v1363
      %1468 = vmatpush1.bf16.msra.mxu0 %v1362
      %1469 = vmatprep.subr.bf16.mxu0 %v1365
      %1470 = vmatpush1.bf16.msra.mxu0 %v1364
      %1471 = vmatprep.subr.bf16.mxu0 %v1367
      %1472 = vmatpush1.bf16.msra.mxu0 %v1366
      %1473 = vmatprep.subr.bf16.mxu0 %v1369
      %1474 = vmatpush1.bf16.msra.mxu0 %v1368
      %1475 = vmatprep.subr.bf16.mxu0 %v1371
      %1476 = vmatpush1.bf16.msra.mxu0 %v1370
      %1477 = vmatprep.subr.bf16.mxu0 %v1373
      %1478 = vmatpush1.bf16.msra.mxu0 %v1372
      %1479 = vmatprep.subr.bf16.mxu0 0
      %1480 = vmatpush1.bf16.msra.mxu0 0
      %1481 = vmatprep.subr.bf16.mxu0 0
      %1482 = vmatpush1.bf16.msra.mxu0 0
      %1483 = vmatprep.subr.bf16.mxu0 0
      %1484 = vmatpush1.bf16.msra.mxu0 0
      %1485 = vmatprep.subr.bf16.mxu0 0
      %1486 = vmatpush1.bf16.msra.mxu0 0
      %1487 = vmatprep.subr.bf16.mxu0 0
      %1488 = vmatpush1.bf16.msra.mxu0 0
      %1489 = vmatprep.subr.bf16.mxu0 0
      %1490 = vmatpush1.bf16.msra.mxu0 0
      %1491 = vmatprep.subr.bf16.mxu0 0
      %1492 = vmatpush1.bf16.msra.mxu0 0
      %1493 = vmatprep.subr.bf16.mxu0 0
      %1494 = vmatpush1.bf16.msra.mxu0 0
      %1495 = vmatprep.mubr.bf16.mxu0 0
      %1496 = vmatmul.mubr.bf16.gmra.mrb[0].mxu0 %v1178
      %v1497 = vpop.f32.mrb[0].mxu0
      %v1498 = vadd.f32 %v1457, %v1497
      %v1499 = vpop.f32.mrb[0].mxu0
      %v1500 = vadd.f32 %v1459, %v1499
      %v1501 = vpop.f32.mrb[0].mxu0
      %v1502 = vpop.f32.mrb[0].mxu0
      %1503 = vdwg.mxu0
      %v1504 = vadd.f32 %v1112, %v1498
      %v1505 = vadd.f32 %v1113, %v1500
      %1506 = vst [vmem:[#allocation2] sm:$0xff] %v1504
      %1507 = vst [vmem:[#allocation2 + $0x8] sm:$0xff] %v1505
      %p1508 = scmp.eq.s32.totalorder %s23, 2
      // Predicated region
      $region37: #{deeplab_cls_forward_test.20} parent=31 // pred_check
        %p1509 = pneg %p1508
      $region38: #{deeplab_cls_forward_test.20} parent=31 // pred_check_branch
        %1511 = sbr.rel (%p1509) target = $region40
      $region39: #{deeplab_cls_forward_test.20} parent=31 // pred_region
        %v1512 = vld [vmem:[#allocation2] sm:$0xff]
        %v1513 = vld [vmem:[#allocation2 + $0x8] sm:$0xff]
        %v1514 = vld [vmem:[%s278] sm:$0x3]
        %v1516 = vlaneseq
        %v1517 = vshrl.u32 %v1516, 7
        %v1518 = vsub.s32 0, %v1517
        %v1519 = vrot.slane %v1514, %v1518
        %v1520 = vlaneseq
        %v1521 = vshrl.u32 %v1520, 7
        %v1522 = vsub.s32 1, %v1521
        %v1523 = vrot.slane %v1514, %v1522
        %v1526 = vadd.f32 %v1512, %v1519
        %v1527 = vadd.f32 %v1513, %v1523
        %vm1528 = vcmp.gt.f32.partialorder %v1526, 0.0
        %vm1529 = vcmp.gt.f32.partialorder %v1527, 0.0
        %v1530 = vmin.f32 %v1526, 0.0
        %v1531 = vmin.f32 %v1527, 0.0
        %v1532 = vmul.f32 %v1530, 1.442695
        %v1533 = vpow.pop %v1532
        %v1534 = vmul.f32 %v1531, 1.442695
        %v1535 = vpow.pop %v1534
        %v1536 = vsub.f32 %v1533, 1.0
        %v1537 = vsub.f32 %v1535, 1.0
        %v1538 = vsel %vm1528, %v1526, %v1536
        %v1539 = vsel %vm1529, %v1527, %v1537
        %v1540 = vpack.c.bf16 %v1538, %v1538
        %v1541 = vpack.c.bf16 %v1539, %v1539
        %v1544 = vunpack.c.l.b16 %v1540
        %v1545 = vunpack.c.l.b16 %v1541
        %v1546 = vpack.c.b16 %v1545, %v1544
        %1548 = vst [vmem:[%s292] sm:$0xff] %v1546
      $region40: #{deeplab_cls_forward_test.20} parent=31 // pred_fallthru
        _
      %s1549 = smul.u32 2, %s22
      %p1550 = scmp.lt.s32.totalorder %s20, 1
      %s1551 = scalar_select %p1550, %s20, 1
      %p1552 = scmp.lt.s32.totalorder %s21, 7
      %s1553 = scalar_select %p1552, %s21, 7
      %p1554 = scmp.lt.s32.totalorder %s1549, 1
      %s1555 = scalar_select %p1554, %s1549, 1
      %s1556 = smul.addr %s1553, 2
      %s1557 = sadd.s32 %s1555, %s1556
      %s1558 = smul.addr %s1551, 16
      %s1559 = sadd.s32 %s1557, %s1558
      %s1560 = smul.addr %s1559, 4
      %s1561 = scalar_lea.vmem %s3, %s1560
      // Predicated region
      $region41: #{deeplab_cls_forward_test.20} parent=31 // pred_check
        %p1562 = pneg %p146
      $region42: #{deeplab_cls_forward_test.20} parent=31 // pred_check_branch
        %1564 = sbr.rel (%p1562) target = $region44
      $region43: #{deeplab_cls_forward_test.20} parent=31 // pred_region
        %s1565 = smul.u32 2, %s22
      $region44: #{deeplab_cls_forward_test.20} parent=31 // pred_fallthru
        _
    $region32: #{deeplab_cls_forward_test.20} parent=5 // pred_fallthru
      _
    %p1566 = scmp.le.s32.totalorder 2, %s9
    // Predicated region
    $region45: #{deeplab_cls_forward_test.20} parent=5 // pred_check
      %p1567 = pneg %p1566
    $region46: #{deeplab_cls_forward_test.20} parent=5 // pred_check_branch
      %1569 = sbr.rel (%p1567) target = $region48
    $region47: #{deeplab_cls_forward_test.20} parent=5 // pred_region
      %s1570 = ssub.s32 %s9, 2
      // Predicated region
      $region49: #{deeplab_cls_forward_test.20} parent=47 // pred_check
        %p1571 = pneg %p152
      $region50: #{deeplab_cls_forward_test.20} parent=47 // pred_check_branch
        %1573 = sbr.rel (%p1571) target = $region52
      $region51: #{deeplab_cls_forward_test.20} parent=47 // pred_region
        %s1574 = smul.u32 2, %s26
        %p1575 = scmp.lt.s32.totalorder %s24, 1
        %s1576 = scalar_select %p1575, %s24, 1
        %p1577 = scmp.lt.s32.totalorder %s25, 7
        %s1578 = scalar_select %p1577, %s25, 7
        %p1579 = scmp.lt.s32.totalorder %s1574, 1
        %s1580 = scalar_select %p1579, %s1574, 1
        %s1581 = smul.addr %s1578, 2
        %s1582 = sadd.s32 %s1580, %s1581
        %s1583 = smul.addr %s1576, 16
        %s1584 = sadd.s32 %s1582, %s1583
        %s1585 = smul.addr %s1584, 4
        %s1586 = scalar_lea.vmem %s3, %s1585
      $region52: #{deeplab_cls_forward_test.20} parent=47 // pred_fallthru
        _
    $region48: #{deeplab_cls_forward_test.20} parent=5 // pred_fallthru
      _
  $region6: #{deeplab_cls_forward_test.20} parent=0 // loop_footer
    %s13 = sadd.s32 1, %s9
  $region7: #{deeplab_cls_forward_test.20} parent=0 // loop_footer_branch
    %8 = sbr.rel target = $region3
  $region8: #{deeplab_cls_forward_test.20} parent=0 // loop_exit
    _

// kernel: deeplab_cls_forward_test.21
$region0: #{deeplab_cls_forward_test.21}
  #allocation0 [shape = 'u32[]', space=smem, size = 0x4, offset = 0x4, fixed_abs, tag = 'smem constant byte address 0x4 - core index']
  #allocation1 [shape = 'u32[144,128]{1,0:T(1,128)}', space=vmem, size = 0x12000, scoped, tag = 'internal scratch']
  #allocation2 [shape = 'f32[8,256]{1,0:T(8,128)}', space=vmem, size = 0x2000, scoped, tag = 'scratch operand']
  %s0 = inlined_call_operand.vmem [shape: bf16[2,10,10,256], index: 0, kind: input, shape index: {}]
  %s1 = inlined_call_operand.vmem [shape: bf16[3,3,256,256], index: 1, kind: input, shape index: {}]
  %s2 = inlined_call_operand.vmem [shape: f32[1,256], index: 2, kind: input, shape index: {}]
  %s3 = inlined_call_operand.vmem [shape: bf16[2,8,8,256], index: 3, kind: output, shape index: {}]
  %s4 = sld [smem:[#allocation0]]
  $region53: #{deeplab_cls_forward_test.21} parent=0
    _
  %s6 = ssub.s32 1, %s4
  %s7 = scalar_select 0, %s6, %s4
  loop: start=0, step=1, limit=50
  $region2: #{deeplab_cls_forward_test.21} parent=0 // loop_pre_header
    _
  $region3: #{deeplab_cls_forward_test.21} parent=0 // loop_header
    %s9 = sphi 0, %s13
    %p10 = scmp.ge.s32.totalorder %s9, 50
    %s16 = sphi 0, %s42
    %s17 = sphi 0, %s38
    %s18 = sphi 0, %s34
    %s19 = sphi 0, %s30
    %s20 = sphi 0, %s16
    %s21 = sphi 0, %s17
    %s22 = sphi 0, %s18
    %s23 = sphi 0, %s19
    %s24 = sphi 0, %s20
    %s25 = sphi 0, %s21
    %s26 = sphi 0, %s22
    %s27 = sphi 0, %s23
    %s49 = sphi 0, %s51
    %s52 = sphi 0, %s49
    %s53 = sphi 0, %s52
    %s69 = sphi 0, %s53
    %s77 = sphi 0, %s79
    %s80 = sphi 0, %s77
    %s81 = sphi 0, %s80
    %s97 = sphi 0, %s81
    %s103 = sphi 0, %s105
    %s106 = sphi 0, %s103
    %s107 = sphi 0, %s106
    %s123 = sphi 0, %s107
    %s133 = sphi 0, %s135
    %s136 = sphi 0, %s133
    %s137 = sphi 0, %s136
    %s153 = sphi 0, %s137
  $region4: #{deeplab_cls_forward_test.21} parent=0 // loop_header_branch
    %12 = sbr.rel (%p10) target = $region8
  $region5: #{deeplab_cls_forward_test.21} parent=0 // loop_body
    %s14 = ssub.s32 %s9, 1
    %s15 = ssub.s32 %s9, 2
    %s28 = sadd.s32 1, %s19
    %p29 = scmp.ge.s32.totalorder %s28, 3
    %s30 = scalar_select %p29, 0, %s28
    %s31 = sadd.s32 1, %s18
    %s32 = scalar_select %p29, %s31, %s18
    %p33 = scmp.ge.s32.totalorder %s32, 1
    %s34 = scalar_select %p33, 0, %s32
    %s35 = sadd.s32 1, %s17
    %s36 = scalar_select %p33, %s35, %s17
    %p37 = scmp.ge.s32.totalorder %s36, 8
    %s38 = scalar_select %p37, 0, %s36
    %s39 = sadd.s32 1, %s16
    %s40 = scalar_select %p37, %s39, %s16
    %p41 = scmp.ge.s32.totalorder %s40, 2
    %s42 = scalar_select %p41, 0, %s40
    %s43 = sadd.s32 %s17, %s19
    %s44 = sadd.s32 %s38, %s30
    %s45 = ssub.s32 %s16, %s42
    %s46 = ssub.s32 %s43, %s44
    %s47 = sor.u32 %s45, %s46
    %p48 = scmp.eq.s32.totalorder %s47, 0
    %s50 = sadd.s32 %s49, 1
    %s51 = scalar_select %p48, %s49, %s50
    %p54 = pneg %p48
    %p55 = scmp.eq.s32.totalorder %s9, 47
    %p56 = por %p54, %p55
    %p57 = scmp.ne.s32.totalorder %s49, %s52
    %p58 = scmp.eq.s32.totalorder %s9, 0
    %p59 = por %p57, %p58
    %p60 = scmp.ne.s32.totalorder %s49, %s52
    %p61 = scmp.eq.s32.totalorder %s14, 47
    %p62 = por %p60, %p61
    %p63 = scmp.ne.s32.totalorder %s52, %s53
    %p64 = scmp.eq.s32.totalorder %s14, 0
    %p65 = por %p63, %p64
    %p66 = scmp.ne.s32.totalorder %s52, %s53
    %p67 = scmp.eq.s32.totalorder %s15, 47
    %p68 = por %p66, %p67
    %p70 = scmp.ne.s32.totalorder %s53, %s69
    %p71 = scmp.eq.s32.totalorder %s15, 0
    %p72 = por %p70, %p71
    %s73 = ssub.s32 %s19, %s30
    %s74 = ssub.s32 %s18, %s34
    %s75 = sor.u32 %s73, %s74
    %p76 = scmp.eq.s32.totalorder %s75, 0
    %s78 = sadd.s32 %s77, 1
    %s79 = scalar_select %p76, %s77, %s78
    %p82 = pneg %p76
    %p83 = scmp.eq.s32.totalorder %s9, 47
    %p84 = por %p82, %p83
    %p85 = scmp.ne.s32.totalorder %s77, %s80
    %p86 = scmp.eq.s32.totalorder %s9, 0
    %p87 = por %p85, %p86
    %p88 = scmp.ne.s32.totalorder %s77, %s80
    %p89 = scmp.eq.s32.totalorder %s14, 47
    %p90 = por %p88, %p89
    %p91 = scmp.ne.s32.totalorder %s80, %s81
    %p92 = scmp.eq.s32.totalorder %s14, 0
    %p93 = por %p91, %p92
    %p94 = scmp.ne.s32.totalorder %s80, %s81
    %p95 = scmp.eq.s32.totalorder %s15, 47
    %p96 = por %p94, %p95
    %p98 = scmp.ne.s32.totalorder %s81, %s97
    %p99 = scmp.eq.s32.totalorder %s15, 0
    %p100 = por %p98, %p99
    %s101 = ssub.s32 %s18, %s34
    %p102 = scmp.eq.s32.totalorder %s101, 0
    %s104 = sadd.s32 %s103, 1
    %s105 = scalar_select %p102, %s103, %s104
    %p108 = pneg %p102
    %p109 = scmp.eq.s32.totalorder %s9, 47
    %p110 = por %p108, %p109
    %p111 = scmp.ne.s32.totalorder %s103, %s106
    %p112 = scmp.eq.s32.totalorder %s9, 0
    %p113 = por %p111, %p112
    %p114 = scmp.ne.s32.totalorder %s103, %s106
    %p115 = scmp.eq.s32.totalorder %s14, 47
    %p116 = por %p114, %p115
    %p117 = scmp.ne.s32.totalorder %s106, %s107
    %p118 = scmp.eq.s32.totalorder %s14, 0
    %p119 = por %p117, %p118
    %p120 = scmp.ne.s32.totalorder %s106, %s107
    %p121 = scmp.eq.s32.totalorder %s15, 47
    %p122 = por %p120, %p121
    %p124 = scmp.ne.s32.totalorder %s107, %s123
    %p125 = scmp.eq.s32.totalorder %s15, 0
    %p126 = por %p124, %p125
    %s127 = ssub.s32 %s16, %s42
    %s128 = ssub.s32 %s17, %s38
    %s129 = sor.u32 %s127, %s128
    %s130 = ssub.s32 %s18, %s34
    %s131 = sor.u32 %s129, %s130
    %p132 = scmp.eq.s32.totalorder %s131, 0
    %s134 = sadd.s32 %s133, 1
    %s135 = scalar_select %p132, %s133, %s134
    %p138 = pneg %p132
    %p139 = scmp.eq.s32.totalorder %s9, 47
    %p140 = por %p138, %p139
    %p141 = scmp.ne.s32.totalorder %s133, %s136
    %p142 = scmp.eq.s32.totalorder %s9, 0
    %p143 = por %p141, %p142
    %p144 = scmp.ne.s32.totalorder %s133, %s136
    %p145 = scmp.eq.s32.totalorder %s14, 47
    %p146 = por %p144, %p145
    %p147 = scmp.ne.s32.totalorder %s136, %s137
    %p148 = scmp.eq.s32.totalorder %s14, 0
    %p149 = por %p147, %p148
    %p150 = scmp.ne.s32.totalorder %s136, %s137
    %p151 = scmp.eq.s32.totalorder %s15, 47
    %p152 = por %p150, %p151
    %p154 = scmp.ne.s32.totalorder %s137, %s153
    %p155 = scmp.eq.s32.totalorder %s15, 0
    %p156 = por %p154, %p155
    %p157 = scmp.le.s32.totalorder 1, %s9
    %p158 = scmp.lt.s32.totalorder %s9, 49
    %p159 = pnand %p157, %p158
    %p160 = pneg %p159
    // Predicated region
    $region9: #{deeplab_cls_forward_test.21} parent=5 // pred_check
      _
    $region10: #{deeplab_cls_forward_test.21} parent=5 // pred_check_branch
      %162 = sbr.rel (%p159) target = $region12
    $region11: #{deeplab_cls_forward_test.21} parent=5 // pred_region
      %s163 = ssub.s32 %s9, 1
      // Predicated region
      $region13: #{deeplab_cls_forward_test.21} parent=11 // pred_check
        %p164 = pneg %p119
      $region14: #{deeplab_cls_forward_test.21} parent=11 // pred_check_branch
        %166 = sbr.rel (%p164) target = $region16
      $region15: #{deeplab_cls_forward_test.21} parent=11 // pred_region
        %s167 = smul.u32 2, %s22
        %p168 = scmp.lt.s32.totalorder %s167, 1
        %s169 = scalar_select %p168, %s167, 1
        %s170 = scalar_lea.vmem %s2, %s169
        %s171 = smul.u32 2, %s22
      $region16: #{deeplab_cls_forward_test.21} parent=11 // pred_fallthru
        _
    $region12: #{deeplab_cls_forward_test.21} parent=5 // pred_fallthru
      _
    %p172 = scmp.lt.s32.totalorder %s9, 48
    // Predicated region
    $region17: #{deeplab_cls_forward_test.21} parent=5 // pred_check
      %p173 = pneg %p172
    $region18: #{deeplab_cls_forward_test.21} parent=5 // pred_check_branch
      %175 = sbr.rel (%p173) target = $region20
    $region19: #{deeplab_cls_forward_test.21} parent=5 // pred_region
      // Predicated region
      $region21: #{deeplab_cls_forward_test.21} parent=19 // pred_check
        %p176 = pneg %p59
      $region22: #{deeplab_cls_forward_test.21} parent=19 // pred_check_branch
        %178 = sbr.rel (%p176) target = $region24
      $region23: #{deeplab_cls_forward_test.21} parent=19 // pred_region
        %s179 = sadd.s32 %s17, %s19
        %p180 = scmp.lt.s32.totalorder %s16, 1
        %s181 = scalar_select %p180, %s16, 1
        %p182 = scmp.lt.s32.totalorder %s179, 9
        %s183 = scalar_select %p182, %s179, 9
        %s184 = smul.addr %s183, 4
        %s185 = smul.addr %s181, 40
        %s186 = sadd.s32 %s184, %s185
        %s187 = smul.addr %s186, 4
        %s188 = scalar_lea.vmem %s0, %s187
        %s189 = sadd.s32 %s17, %s19
      $region24: #{deeplab_cls_forward_test.21} parent=19 // pred_fallthru
        _
      // Predicated region
      $region25: #{deeplab_cls_forward_test.21} parent=19 // pred_check
        %p190 = pneg %p87
      $region26: #{deeplab_cls_forward_test.21} parent=19 // pred_check_branch
        %192 = sbr.rel (%p190) target = $region28
      $region27: #{deeplab_cls_forward_test.21} parent=19 // pred_region
        %s193 = smul.u32 2, %s18
        %p194 = scmp.lt.s32.totalorder %s19, 2
        %s195 = scalar_select %p194, %s19, 2
        %p196 = scmp.lt.s32.totalorder %s193, 1
        %s197 = scalar_select %p196, %s193, 1
        %s198 = smul.addr %s195, 192
        %s199 = sadd.s32 %s197, %s198
        %s200 = smul.addr %s199, 4
        %s201 = scalar_lea.vmem %s1, %s200
        %s202 = smul.u32 2, %s18
      $region28: #{deeplab_cls_forward_test.21} parent=19 // pred_fallthru
        _
    $region20: #{deeplab_cls_forward_test.21} parent=5 // pred_fallthru
      _
    %p203 = scmp.le.s32.totalorder 1, %s9
    %p204 = scmp.lt.s32.totalorder %s9, 49
    %p205 = pnand %p203, %p204
    %p206 = pneg %p205
    // Predicated region
    $region29: #{deeplab_cls_forward_test.21} parent=5 // pred_check
      _
    $region30: #{deeplab_cls_forward_test.21} parent=5 // pred_check_branch
      %208 = sbr.rel (%p205) target = $region32
    $region31: #{deeplab_cls_forward_test.21} parent=5 // pred_region
      %s209 = ssub.s32 %s9, 1
      %s210 = sadd.s32 %s21, %s23
      %p211 = scmp.lt.s32.totalorder %s20, 1
      %s212 = scalar_select %p211, %s20, 1
      %p213 = scmp.lt.s32.totalorder %s210, 9
      %s214 = scalar_select %p213, %s210, 9
      %s215 = smul.addr %s214, 4
      %s216 = smul.addr %s212, 40
      %s217 = sadd.s32 %s215, %s216
      %s218 = smul.addr %s217, 4
      %s219 = scalar_lea.vmem %s0, %s218
      %p220 = pneg %p65
      %p221 = pneg %p62
      %s222 = smul.u32 2, %s22
      %p223 = scmp.lt.s32.totalorder %s23, 2
      %s224 = scalar_select %p223, %s23, 2
      %p225 = scmp.lt.s32.totalorder %s222, 1
      %s226 = scalar_select %p225, %s222, 1
      %s227 = smul.addr %s224, 192
      %s228 = sadd.s32 %s226, %s227
      %s229 = smul.addr %s228, 4
      %s230 = scalar_lea.vmem %s1, %s229
      %p231 = pneg %p93
      %p232 = pneg %p90
      %s233 = smul.u32 2, %s22
      %p234 = scmp.lt.s32.totalorder %s233, 1
      %s235 = scalar_select %p234, %s233, 1
      %s236 = scalar_lea.vmem %s2, %s235
      %p237 = pneg %p119
      %p238 = pneg %p116
      %p239 = pneg %p149
      %p240 = pneg %p146
      %s241 = smul.u32 2, %s22
      %p242 = scmp.lt.s32.totalorder %s20, 1
      %s243 = scalar_select %p242, %s20, 1
      %p244 = scmp.lt.s32.totalorder %s21, 7
      %s245 = scalar_select %p244, %s21, 7
      %p246 = scmp.lt.s32.totalorder %s241, 1
      %s247 = scalar_select %p246, %s241, 1
      %s248 = smul.addr %s245, 2
      %s249 = sadd.s32 %s247, %s248
      %s250 = smul.addr %s243, 16
      %s251 = sadd.s32 %s249, %s250
      %s252 = smul.addr %s251, 4
      %s253 = scalar_lea.vmem %s3, %s252
      %s254 = sadd.s32 %s21, %s23
      %p255 = scmp.lt.s32.totalorder %s20, 1
      %s256 = scalar_select %p255, %s20, 1
      %p257 = scmp.lt.s32.totalorder %s254, 9
      %s258 = scalar_select %p257, %s254, 9
      %s259 = smul.addr %s258, 4
      %s260 = smul.addr %s256, 40
      %s261 = sadd.s32 %s259, %s260
      %s262 = smul.addr %s261, 4
      %s263 = scalar_lea.vmem %s0, %s262
      %s264 = sadd.s32 %s21, %s23
      %s265 = smul.u32 2, %s22
      %p266 = scmp.lt.s32.totalorder %s23, 2
      %s267 = scalar_select %p266, %s23, 2
      %p268 = scmp.lt.s32.totalorder %s265, 1
      %s269 = scalar_select %p268, %s265, 1
      %s270 = smul.addr %s267, 192
      %s271 = sadd.s32 %s269, %s270
      %s272 = smul.addr %s271, 4
      %s273 = scalar_lea.vmem %s1, %s272
      %s274 = smul.u32 2, %s22
      %s275 = smul.u32 2, %s22
      %p276 = scmp.lt.s32.totalorder %s275, 1
      %s277 = scalar_select %p276, %s275, 1
      %s278 = scalar_lea.vmem %s2, %s277
      %s279 = smul.u32 2, %s22
      %s280 = smul.u32 2, %s22
      %p281 = scmp.lt.s32.totalorder %s20, 1
      %s282 = scalar_select %p281, %s20, 1
      %p283 = scmp.lt.s32.totalorder %s21, 7
      %s284 = scalar_select %p283, %s21, 7
      %p285 = scmp.lt.s32.totalorder %s280, 1
      %s286 = scalar_select %p285, %s280, 1
      %s287 = smul.addr %s284, 2
      %s288 = sadd.s32 %s286, %s287
      %s289 = smul.addr %s282, 16
      %s290 = sadd.s32 %s288, %s289
      %s291 = smul.addr %s290, 4
      %s292 = scalar_lea.vmem %s3, %s291
      %s293 = smul.u32 2, %s22
      %p294 = scmp.eq.s32.totalorder %s23, 0
      // Predicated region
      $region33: #{deeplab_cls_forward_test.21} parent=31 // pred_check
        %p295 = pneg %p294
      $region34: #{deeplab_cls_forward_test.21} parent=31 // pred_check_branch
        %297 = sbr.rel (%p295) target = $region36
      $region35: #{deeplab_cls_forward_test.21} parent=31 // pred_region
        %298 = vst [vmem:[#allocation2] sm:$0xff] 0.0
        %299 = vst [vmem:[#allocation2 + $0x8] sm:$0xff] 0.0
      $region36: #{deeplab_cls_forward_test.21} parent=31 // pred_fallthru
        _
      %v300 = vld [vmem:[%s263] sm:$0xff]
      %v301 = vld [vmem:[#allocation2] sm:$0xff]
      %v302 = vld [vmem:[#allocation2 + $0x8] sm:$0xff]
      %v303 = vld [vmem:[%s273] sm:$0xff]
      %v304 = vld [vmem:[%s273 + $0x8] sm:$0xff]
      %v305 = vld [vmem:[%s273 + $0x10] sm:$0xff]
      %v306 = vld [vmem:[%s273 + $0x18] sm:$0xff]
      %v307 = vld [vmem:[%s273 + $0x20] sm:$0xff]
      %v308 = vld [vmem:[%s273 + $0x28] sm:$0xff]
      %v309 = vld [vmem:[%s273 + $0x30] sm:$0xff]
      %v310 = vld [vmem:[%s273 + $0x38] sm:$0xff]
      %v311 = vld [vmem:[%s273 + $0x40] sm:$0xff]
      %v312 = vld [vmem:[%s273 + $0x48] sm:$0xff]
      %v313 = vld [vmem:[%s273 + $0x50] sm:$0xff]
      %v314 = vld [vmem:[%s273 + $0x58] sm:$0xff]
      %v315 = vld [vmem:[%s273 + $0x60] sm:$0xff]
      %v316 = vld [vmem:[%s273 + $0x68] sm:$0xff]
      %v317 = vld [vmem:[%s273 + $0x70] sm:$0xff]
      %v318 = vld [vmem:[%s273 + $0x78] sm:$0xff]
      %v319 = vld [vmem:[%s273 + $0x80] sm:$0xff]
      %v320 = vld [vmem:[%s273 + $0x88] sm:$0xff]
      %v321 = vld [vmem:[%s273 + $0x90] sm:$0xff]
      %v322 = vld [vmem:[%s273 + $0x98] sm:$0xff]
      %v323 = vld [vmem:[%s273 + $0xa0] sm:$0xff]
      %v324 = vld [vmem:[%s273 + $0xa8] sm:$0xff]
      %v325 = vld [vmem:[%s273 + $0xb0] sm:$0xff]
      %v326 = vld [vmem:[%s273 + $0xb8] sm:$0xff]
      %v327 = vld [vmem:[%s273 + $0xc0] sm:$0xff]
      %v328 = vld [vmem:[%s273 + $0xc8] sm:$0xff]
      %v329 = vld [vmem:[%s273 + $0xd0] sm:$0xff]
      %v330 = vld [vmem:[%s273 + $0xd8] sm:$0xff]
      %v331 = vld [vmem:[%s273 + $0xe0] sm:$0xff]
      %v332 = vld [vmem:[%s273 + $0xe8] sm:$0xff]
      %v333 = vld [vmem:[%s273 + $0xf0] sm:$0xff]
      %v334 = vld [vmem:[%s273 + $0xf8] sm:$0xff]
      %v336 = vunpack.c.l.b16 %v300
      %v337 = vunpack.c.h.b16 %v300
      %v338 = vpack.c.b16 %v336, %v336
      %v339 = vpack.c.b16 %v337, %v337
      %v374 = vunpack.c.l.b16 %v303
      %v375 = vunpack.c.h.b16 %v303
      %v376 = vunpack.c.l.b16 %v304
      %v377 = vunpack.c.h.b16 %v304
      %v378 = vunpack.c.l.b16 %v305
      %v379 = vunpack.c.h.b16 %v305
      %v380 = vunpack.c.l.b16 %v306
      %v381 = vunpack.c.h.b16 %v306
      %v382 = vunpack.c.l.b16 %v307
      %v383 = vunpack.c.h.b16 %v307
      %v384 = vunpack.c.l.b16 %v308
      %v385 = vunpack.c.h.b16 %v308
      %v386 = vunpack.c.l.b16 %v309
      %v387 = vunpack.c.h.b16 %v309
      %v388 = vunpack.c.l.b16 %v310
      %v389 = vunpack.c.h.b16 %v310
      %v390 = vunpack.c.l.b16 %v311
      %v391 = vunpack.c.h.b16 %v311
      %v392 = vunpack.c.l.b16 %v312
      %v393 = vunpack.c.h.b16 %v312
      %v394 = vunpack.c.l.b16 %v313
      %v395 = vunpack.c.h.b16 %v313
      %v396 = vunpack.c.l.b16 %v314
      %v397 = vunpack.c.h.b16 %v314
      %v398 = vunpack.c.l.b16 %v315
      %v399 = vunpack.c.h.b16 %v315
      %v400 = vunpack.c.l.b16 %v316
      %v401 = vunpack.c.h.b16 %v316
      %v402 = vunpack.c.l.b16 %v317
      %v403 = vunpack.c.h.b16 %v317
      %v404 = vunpack.c.l.b16 %v318
      %v405 = vunpack.c.h.b16 %v318
      %v406 = vunpack.c.l.b16 %v319
      %v407 = vunpack.c.h.b16 %v319
      %v408 = vunpack.c.l.b16 %v320
      %v409 = vunpack.c.h.b16 %v320
      %v410 = vunpack.c.l.b16 %v321
      %v411 = vunpack.c.h.b16 %v321
      %v412 = vunpack.c.l.b16 %v322
      %v413 = vunpack.c.h.b16 %v322
      %v414 = vunpack.c.l.b16 %v323
      %v415 = vunpack.c.h.b16 %v323
      %v416 = vunpack.c.l.b16 %v324
      %v417 = vunpack.c.h.b16 %v324
      %v418 = vunpack.c.l.b16 %v325
      %v419 = vunpack.c.h.b16 %v325
      %v420 = vunpack.c.l.b16 %v326
      %v421 = vunpack.c.h.b16 %v326
      %v422 = vunpack.c.l.b16 %v327
      %v423 = vunpack.c.h.b16 %v327
      %v424 = vunpack.c.l.b16 %v328
      %v425 = vunpack.c.h.b16 %v328
      %v426 = vunpack.c.l.b16 %v329
      %v427 = vunpack.c.h.b16 %v329
      %v428 = vunpack.c.l.b16 %v330
      %v429 = vunpack.c.h.b16 %v330
      %v430 = vunpack.c.l.b16 %v331
      %v431 = vunpack.c.h.b16 %v331
      %v432 = vunpack.c.l.b16 %v332
      %v433 = vunpack.c.h.b16 %v332
      %v434 = vunpack.c.l.b16 %v333
      %v435 = vunpack.c.h.b16 %v333
      %v436 = vunpack.c.l.b16 %v334
      %v437 = vunpack.c.h.b16 %v334
      %v438 = vpack.c.b16 %v376, %v374
      %v439 = vpack.c.b16 %v377, %v375
      %v440 = vpack.c.b16 %v380, %v378
      %v441 = vpack.c.b16 %v381, %v379
      %v442 = vpack.c.b16 %v384, %v382
      %v443 = vpack.c.b16 %v385, %v383
      %v444 = vpack.c.b16 %v388, %v386
      %v445 = vpack.c.b16 %v389, %v387
      %v446 = vpack.c.b16 %v392, %v390
      %v447 = vpack.c.b16 %v393, %v391
      %v448 = vpack.c.b16 %v396, %v394
      %v449 = vpack.c.b16 %v397, %v395
      %v450 = vpack.c.b16 %v400, %v398
      %v451 = vpack.c.b16 %v401, %v399
      %v452 = vpack.c.b16 %v404, %v402
      %v453 = vpack.c.b16 %v405, %v403
      %v454 = vpack.c.b16 %v408, %v406
      %v455 = vpack.c.b16 %v409, %v407
      %v456 = vpack.c.b16 %v412, %v410
      %v457 = vpack.c.b16 %v413, %v411
      %v458 = vpack.c.b16 %v416, %v414
      %v459 = vpack.c.b16 %v417, %v415
      %v460 = vpack.c.b16 %v420, %v418
      %v461 = vpack.c.b16 %v421, %v419
      %v462 = vpack.c.b16 %v424, %v422
      %v463 = vpack.c.b16 %v425, %v423
      %v464 = vpack.c.b16 %v428, %v426
      %v465 = vpack.c.b16 %v429, %v427
      %v466 = vpack.c.b16 %v432, %v430
      %v467 = vpack.c.b16 %v433, %v431
      %v468 = vpack.c.b16 %v436, %v434
      %v469 = vpack.c.b16 %v437, %v435
      %502 = vmatprep.subr.bf16.mxu0 %v439
      %503 = vmatpush1.bf16.msra.mxu0 %v438
      %504 = vmatprep.subr.bf16.mxu0 %v441
      %505 = vmatpush1.bf16.msra.mxu0 %v440
      %506 = vmatprep.subr.bf16.mxu0 %v443
      %507 = vmatpush1.bf16.msra.mxu0 %v442
      %508 = vmatprep.subr.bf16.mxu0 %v445
      %509 = vmatpush1.bf16.msra.mxu0 %v444
      %510 = vmatprep.subr.bf16.mxu0 %v447
      %511 = vmatpush1.bf16.msra.mxu0 %v446
      %512 = vmatprep.subr.bf16.mxu0 %v449
      %513 = vmatpush1.bf16.msra.mxu0 %v448
      %514 = vmatprep.subr.bf16.mxu0 %v451
      %515 = vmatpush1.bf16.msra.mxu0 %v450
      %516 = vmatprep.subr.bf16.mxu0 %v453
      %517 = vmatpush1.bf16.msra.mxu0 %v452
      %518 = vmatprep.subr.bf16.mxu0 %v455
      %519 = vmatpush1.bf16.msra.mxu0 %v454
      %520 = vmatprep.subr.bf16.mxu0 %v457
      %521 = vmatpush1.bf16.msra.mxu0 %v456
      %522 = vmatprep.subr.bf16.mxu0 %v459
      %523 = vmatpush1.bf16.msra.mxu0 %v458
      %524 = vmatprep.subr.bf16.mxu0 %v461
      %525 = vmatpush1.bf16.msra.mxu0 %v460
      %526 = vmatprep.subr.bf16.mxu0 %v463
      %527 = vmatpush1.bf16.msra.mxu0 %v462
      %528 = vmatprep.subr.bf16.mxu0 %v465
      %529 = vmatpush1.bf16.msra.mxu0 %v464
      %530 = vmatprep.subr.bf16.mxu0 %v467
      %531 = vmatpush1.bf16.msra.mxu0 %v466
      %532 = vmatprep.subr.bf16.mxu0 %v469
      %533 = vmatpush1.bf16.msra.mxu0 %v468
      %534 = vmatprep.mubr.bf16.mxu0 %v339
      %535 = vmatmul.mubr.bf16.gmra.mrb[0].mxu0 %v338
      %v536 = vpop.f32.mrb[0].mxu0
      %v537 = vadd.f32 0.0, %v536
      %v538 = vpop.f32.mrb[0].mxu0
      %v539 = vadd.f32 0.0, %v538
      %v540 = vpop.f32.mrb[0].mxu0
      %v541 = vpop.f32.mrb[0].mxu0
      %542 = vdwg.mxu0
      %v543 = vadd.f32 %v301, %v537
      %v544 = vadd.f32 %v302, %v539
      %545 = vst [vmem:[#allocation2] sm:$0xff] %v543
      %546 = vst [vmem:[#allocation2 + $0x8] sm:$0xff] %v544
      %v547 = vld [vmem:[%s263] sm:$0xff]
      %v548 = vld [vmem:[%s263 + $0x8] sm:$0x11]
      %v549 = vld [vmem:[#allocation2] sm:$0xff]
      %v550 = vld [vmem:[#allocation2 + $0x8] sm:$0xff]
      %s551 = scalar_lea.vmem %s273, 256
      %v552 = vld [vmem:[%s551] sm:$0xff]
      %v553 = vld [vmem:[%s551 + $0x8] sm:$0xff]
      %v554 = vld [vmem:[%s551 + $0x10] sm:$0xff]
      %v555 = vld [vmem:[%s551 + $0x18] sm:$0xff]
      %v556 = vld [vmem:[%s551 + $0x20] sm:$0xff]
      %v557 = vld [vmem:[%s551 + $0x28] sm:$0xff]
      %v558 = vld [vmem:[%s551 + $0x30] sm:$0xff]
      %v559 = vld [vmem:[%s551 + $0x38] sm:$0xff]
      %v560 = vld [vmem:[%s551 + $0x40] sm:$0xff]
      %v561 = vld [vmem:[%s551 + $0x48] sm:$0xff]
      %v562 = vld [vmem:[%s551 + $0x50] sm:$0xff]
      %v563 = vld [vmem:[%s551 + $0x58] sm:$0xff]
      %v564 = vld [vmem:[%s551 + $0x60] sm:$0xff]
      %v565 = vld [vmem:[%s551 + $0x68] sm:$0xff]
      %v566 = vld [vmem:[%s551 + $0x70] sm:$0xff]
      %v567 = vld [vmem:[%s551 + $0x78] sm:$0xff]
      %v568 = vld [vmem:[%s551 + $0x80] sm:$0xff]
      %v569 = vld [vmem:[%s551 + $0x88] sm:$0xff]
      %v570 = vld [vmem:[%s551 + $0x90] sm:$0xff]
      %v571 = vld [vmem:[%s551 + $0x98] sm:$0xff]
      %v572 = vld [vmem:[%s551 + $0xa0] sm:$0xff]
      %v573 = vld [vmem:[%s551 + $0xa8] sm:$0xff]
      %v574 = vld [vmem:[%s551 + $0xb0] sm:$0xff]
      %v575 = vld [vmem:[%s551 + $0xb8] sm:$0xff]
      %v576 = vld [vmem:[%s551 + $0xc0] sm:$0xff]
      %v577 = vld [vmem:[%s551 + $0xc8] sm:$0xff]
      %v578 = vld [vmem:[%s551 + $0xd0] sm:$0xff]
      %v579 = vld [vmem:[%s551 + $0xd8] sm:$0xff]
      %v580 = vld [vmem:[%s551 + $0xe0] sm:$0xff]
      %v581 = vld [vmem:[%s551 + $0xe8] sm:$0xff]
      %v582 = vld [vmem:[%s551 + $0xf0] sm:$0xff]
      %v583 = vld [vmem:[%s551 + $0xf8] sm:$0xff]
      %v586 = vunpack.c.l.b16 %v547
      %v587 = vunpack.c.h.b16 %v547
      %v588 = vunpack.c.l.b16 %v548
      %v589 = vunpack.c.h.b16 %v548
      %v590 = vpack.c.b16 %v588, %v586
      %v591 = vpack.c.b16 %v589, %v587
      %v593 = vshrl.u32 %v590, 16
      %v595 = vshll.u32 %v590, 16
      %v597 = vrot.slane %v595, 1
      %v598 = vor.u32 %v593, %v597
      %v600 = vshrl.u32 %v591, 16
      %v602 = vshll.u32 %v591, 16
      %v604 = vrot.slane %v602, 1
      %v605 = vor.u32 %v600, %v604
      %v640 = vunpack.c.l.b16 %v552
      %v641 = vunpack.c.h.b16 %v552
      %v642 = vunpack.c.l.b16 %v553
      %v643 = vunpack.c.h.b16 %v553
      %v644 = vunpack.c.l.b16 %v554
      %v645 = vunpack.c.h.b16 %v554
      %v646 = vunpack.c.l.b16 %v555
      %v647 = vunpack.c.h.b16 %v555
      %v648 = vunpack.c.l.b16 %v556
      %v649 = vunpack.c.h.b16 %v556
      %v650 = vunpack.c.l.b16 %v557
      %v651 = vunpack.c.h.b16 %v557
      %v652 = vunpack.c.l.b16 %v558
      %v653 = vunpack.c.h.b16 %v558
      %v654 = vunpack.c.l.b16 %v559
      %v655 = vunpack.c.h.b16 %v559
      %v656 = vunpack.c.l.b16 %v560
      %v657 = vunpack.c.h.b16 %v560
      %v658 = vunpack.c.l.b16 %v561
      %v659 = vunpack.c.h.b16 %v561
      %v660 = vunpack.c.l.b16 %v562
      %v661 = vunpack.c.h.b16 %v562
      %v662 = vunpack.c.l.b16 %v563
      %v663 = vunpack.c.h.b16 %v563
      %v664 = vunpack.c.l.b16 %v564
      %v665 = vunpack.c.h.b16 %v564
      %v666 = vunpack.c.l.b16 %v565
      %v667 = vunpack.c.h.b16 %v565
      %v668 = vunpack.c.l.b16 %v566
      %v669 = vunpack.c.h.b16 %v566
      %v670 = vunpack.c.l.b16 %v567
      %v671 = vunpack.c.h.b16 %v567
      %v672 = vunpack.c.l.b16 %v568
      %v673 = vunpack.c.h.b16 %v568
      %v674 = vunpack.c.l.b16 %v569
      %v675 = vunpack.c.h.b16 %v569
      %v676 = vunpack.c.l.b16 %v570
      %v677 = vunpack.c.h.b16 %v570
      %v678 = vunpack.c.l.b16 %v571
      %v679 = vunpack.c.h.b16 %v571
      %v680 = vunpack.c.l.b16 %v572
      %v681 = vunpack.c.h.b16 %v572
      %v682 = vunpack.c.l.b16 %v573
      %v683 = vunpack.c.h.b16 %v573
      %v684 = vunpack.c.l.b16 %v574
      %v685 = vunpack.c.h.b16 %v574
      %v686 = vunpack.c.l.b16 %v575
      %v687 = vunpack.c.h.b16 %v575
      %v688 = vunpack.c.l.b16 %v576
      %v689 = vunpack.c.h.b16 %v576
      %v690 = vunpack.c.l.b16 %v577
      %v691 = vunpack.c.h.b16 %v577
      %v692 = vunpack.c.l.b16 %v578
      %v693 = vunpack.c.h.b16 %v578
      %v694 = vunpack.c.l.b16 %v579
      %v695 = vunpack.c.h.b16 %v579
      %v696 = vunpack.c.l.b16 %v580
      %v697 = vunpack.c.h.b16 %v580
      %v698 = vunpack.c.l.b16 %v581
      %v699 = vunpack.c.h.b16 %v581
      %v700 = vunpack.c.l.b16 %v582
      %v701 = vunpack.c.h.b16 %v582
      %v702 = vunpack.c.l.b16 %v583
      %v703 = vunpack.c.h.b16 %v583
      %v704 = vpack.c.b16 %v642, %v640
      %v705 = vpack.c.b16 %v643, %v641
      %v706 = vpack.c.b16 %v646, %v644
      %v707 = vpack.c.b16 %v647, %v645
      %v708 = vpack.c.b16 %v650, %v648
      %v709 = vpack.c.b16 %v651, %v649
      %v710 = vpack.c.b16 %v654, %v652
      %v711 = vpack.c.b16 %v655, %v653
      %v712 = vpack.c.b16 %v658, %v656
      %v713 = vpack.c.b16 %v659, %v657
      %v714 = vpack.c.b16 %v662, %v660
      %v715 = vpack.c.b16 %v663, %v661
      %v716 = vpack.c.b16 %v666, %v664
      %v717 = vpack.c.b16 %v667, %v665
      %v718 = vpack.c.b16 %v670, %v668
      %v719 = vpack.c.b16 %v671, %v669
      %v720 = vpack.c.b16 %v674, %v672
      %v721 = vpack.c.b16 %v675, %v673
      %v722 = vpack.c.b16 %v678, %v676
      %v723 = vpack.c.b16 %v679, %v677
      %v724 = vpack.c.b16 %v682, %v680
      %v725 = vpack.c.b16 %v683, %v681
      %v726 = vpack.c.b16 %v686, %v684
      %v727 = vpack.c.b16 %v687, %v685
      %v728 = vpack.c.b16 %v690, %v688
      %v729 = vpack.c.b16 %v691, %v689
      %v730 = vpack.c.b16 %v694, %v692
      %v731 = vpack.c.b16 %v695, %v693
      %v732 = vpack.c.b16 %v698, %v696
      %v733 = vpack.c.b16 %v699, %v697
      %v734 = vpack.c.b16 %v702, %v700
      %v735 = vpack.c.b16 %v703, %v701
      %768 = vmatprep.subr.bf16.mxu0 %v705
      %769 = vmatpush1.bf16.msra.mxu0 %v704
      %770 = vmatprep.subr.bf16.mxu0 %v707
      %771 = vmatpush1.bf16.msra.mxu0 %v706
      %772 = vmatprep.subr.bf16.mxu0 %v709
      %773 = vmatpush1.bf16.msra.mxu0 %v708
      %774 = vmatprep.subr.bf16.mxu0 %v711
      %775 = vmatpush1.bf16.msra.mxu0 %v710
      %776 = vmatprep.subr.bf16.mxu0 %v713
      %777 = vmatpush1.bf16.msra.mxu0 %v712
      %778 = vmatprep.subr.bf16.mxu0 %v715
      %779 = vmatpush1.bf16.msra.mxu0 %v714
      %780 = vmatprep.subr.bf16.mxu0 %v717
      %781 = vmatpush1.bf16.msra.mxu0 %v716
      %782 = vmatprep.subr.bf16.mxu0 %v719
      %783 = vmatpush1.bf16.msra.mxu0 %v718
      %784 = vmatprep.subr.bf16.mxu0 %v721
      %785 = vmatpush1.bf16.msra.mxu0 %v720
      %786 = vmatprep.subr.bf16.mxu0 %v723
      %787 = vmatpush1.bf16.msra.mxu0 %v722
      %788 = vmatprep.subr.bf16.mxu0 %v725
      %789 = vmatpush1.bf16.msra.mxu0 %v724
      %790 = vmatprep.subr.bf16.mxu0 %v727
      %791 = vmatpush1.bf16.msra.mxu0 %v726
      %792 = vmatprep.subr.bf16.mxu0 %v729
      %793 = vmatpush1.bf16.msra.mxu0 %v728
      %794 = vmatprep.subr.bf16.mxu0 %v731
      %795 = vmatpush1.bf16.msra.mxu0 %v730
      %796 = vmatprep.subr.bf16.mxu0 %v733
      %797 = vmatpush1.bf16.msra.mxu0 %v732
      %798 = vmatprep.subr.bf16.mxu0 %v735
      %799 = vmatpush1.bf16.msra.mxu0 %v734
      %800 = vmatprep.mubr.bf16.mxu0 %v605
      %801 = vmatmul.mubr.bf16.gmra.mrb[0].mxu0 %v598
      %v802 = vpop.f32.mrb[0].mxu0
      %v803 = vadd.f32 0.0, %v802
      %v804 = vpop.f32.mrb[0].mxu0
      %v805 = vadd.f32 0.0, %v804
      %v806 = vpop.f32.mrb[0].mxu0
      %v807 = vpop.f32.mrb[0].mxu0
      %808 = vdwg.mxu0
      %v809 = vadd.f32 %v549, %v803
      %v810 = vadd.f32 %v550, %v805
      %811 = vst [vmem:[#allocation2] sm:$0xff] %v809
      %812 = vst [vmem:[#allocation2 + $0x8] sm:$0xff] %v810
      %v813 = vld [vmem:[%s263] sm:$0xee]
      %v814 = vld [vmem:[%s263 + $0x8] sm:$0x11]
      %v815 = vld [vmem:[#allocation2] sm:$0xff]
      %v816 = vld [vmem:[#allocation2 + $0x8] sm:$0xff]
      %s817 = scalar_lea.vmem %s273, 512
      %v818 = vld [vmem:[%s817] sm:$0xff]
      %v819 = vld [vmem:[%s817 + $0x8] sm:$0xff]
      %v820 = vld [vmem:[%s817 + $0x10] sm:$0xff]
      %v821 = vld [vmem:[%s817 + $0x18] sm:$0xff]
      %v822 = vld [vmem:[%s817 + $0x20] sm:$0xff]
      %v823 = vld [vmem:[%s817 + $0x28] sm:$0xff]
      %v824 = vld [vmem:[%s817 + $0x30] sm:$0xff]
      %v825 = vld [vmem:[%s817 + $0x38] sm:$0xff]
      %v826 = vld [vmem:[%s817 + $0x40] sm:$0xff]
      %v827 = vld [vmem:[%s817 + $0x48] sm:$0xff]
      %v828 = vld [vmem:[%s817 + $0x50] sm:$0xff]
      %v829 = vld [vmem:[%s817 + $0x58] sm:$0xff]
      %v830 = vld [vmem:[%s817 + $0x60] sm:$0xff]
      %v831 = vld [vmem:[%s817 + $0x68] sm:$0xff]
      %v832 = vld [vmem:[%s817 + $0x70] sm:$0xff]
      %v833 = vld [vmem:[%s817 + $0x78] sm:$0xff]
      %v834 = vld [vmem:[%s817 + $0x80] sm:$0xff]
      %v835 = vld [vmem:[%s817 + $0x88] sm:$0xff]
      %v836 = vld [vmem:[%s817 + $0x90] sm:$0xff]
      %v837 = vld [vmem:[%s817 + $0x98] sm:$0xff]
      %v838 = vld [vmem:[%s817 + $0xa0] sm:$0xff]
      %v839 = vld [vmem:[%s817 + $0xa8] sm:$0xff]
      %v840 = vld [vmem:[%s817 + $0xb0] sm:$0xff]
      %v841 = vld [vmem:[%s817 + $0xb8] sm:$0xff]
      %v842 = vld [vmem:[%s817 + $0xc0] sm:$0xff]
      %v843 = vld [vmem:[%s817 + $0xc8] sm:$0xff]
      %v844 = vld [vmem:[%s817 + $0xd0] sm:$0xff]
      %v845 = vld [vmem:[%s817 + $0xd8] sm:$0xff]
      %v846 = vld [vmem:[%s817 + $0xe0] sm:$0xff]
      %v847 = vld [vmem:[%s817 + $0xe8] sm:$0xff]
      %v848 = vld [vmem:[%s817 + $0xf0] sm:$0xff]
      %v849 = vld [vmem:[%s817 + $0xf8] sm:$0xff]
      %v852 = vunpack.c.l.b16 %v813
      %v853 = vunpack.c.h.b16 %v813
      %v854 = vunpack.c.l.b16 %v814
      %v855 = vunpack.c.h.b16 %v814
      %v856 = vpack.c.b16 %v854, %v852
      %v857 = vpack.c.b16 %v855, %v853
      %v858 = vrot.slane %v856, 1
      %v859 = vrot.slane %v857, 1
      %v894 = vunpack.c.l.b16 %v818
      %v895 = vunpack.c.h.b16 %v818
      %v896 = vunpack.c.l.b16 %v819
      %v897 = vunpack.c.h.b16 %v819
      %v898 = vunpack.c.l.b16 %v820
      %v899 = vunpack.c.h.b16 %v820
      %v900 = vunpack.c.l.b16 %v821
      %v901 = vunpack.c.h.b16 %v821
      %v902 = vunpack.c.l.b16 %v822
      %v903 = vunpack.c.h.b16 %v822
      %v904 = vunpack.c.l.b16 %v823
      %v905 = vunpack.c.h.b16 %v823
      %v906 = vunpack.c.l.b16 %v824
      %v907 = vunpack.c.h.b16 %v824
      %v908 = vunpack.c.l.b16 %v825
      %v909 = vunpack.c.h.b16 %v825
      %v910 = vunpack.c.l.b16 %v826
      %v911 = vunpack.c.h.b16 %v826
      %v912 = vunpack.c.l.b16 %v827
      %v913 = vunpack.c.h.b16 %v827
      %v914 = vunpack.c.l.b16 %v828
      %v915 = vunpack.c.h.b16 %v828
      %v916 = vunpack.c.l.b16 %v829
      %v917 = vunpack.c.h.b16 %v829
      %v918 = vunpack.c.l.b16 %v830
      %v919 = vunpack.c.h.b16 %v830
      %v920 = vunpack.c.l.b16 %v831
      %v921 = vunpack.c.h.b16 %v831
      %v922 = vunpack.c.l.b16 %v832
      %v923 = vunpack.c.h.b16 %v832
      %v924 = vunpack.c.l.b16 %v833
      %v925 = vunpack.c.h.b16 %v833
      %v926 = vunpack.c.l.b16 %v834
      %v927 = vunpack.c.h.b16 %v834
      %v928 = vunpack.c.l.b16 %v835
      %v929 = vunpack.c.h.b16 %v835
      %v930 = vunpack.c.l.b16 %v836
      %v931 = vunpack.c.h.b16 %v836
      %v932 = vunpack.c.l.b16 %v837
      %v933 = vunpack.c.h.b16 %v837
      %v934 = vunpack.c.l.b16 %v838
      %v935 = vunpack.c.h.b16 %v838
      %v936 = vunpack.c.l.b16 %v839
      %v937 = vunpack.c.h.b16 %v839
      %v938 = vunpack.c.l.b16 %v840
      %v939 = vunpack.c.h.b16 %v840
      %v940 = vunpack.c.l.b16 %v841
      %v941 = vunpack.c.h.b16 %v841
      %v942 = vunpack.c.l.b16 %v842
      %v943 = vunpack.c.h.b16 %v842
      %v944 = vunpack.c.l.b16 %v843
      %v945 = vunpack.c.h.b16 %v843
      %v946 = vunpack.c.l.b16 %v844
      %v947 = vunpack.c.h.b16 %v844
      %v948 = vunpack.c.l.b16 %v845
      %v949 = vunpack.c.h.b16 %v845
      %v950 = vunpack.c.l.b16 %v846
      %v951 = vunpack.c.h.b16 %v846
      %v952 = vunpack.c.l.b16 %v847
      %v953 = vunpack.c.h.b16 %v847
      %v954 = vunpack.c.l.b16 %v848
      %v955 = vunpack.c.h.b16 %v848
      %v956 = vunpack.c.l.b16 %v849
      %v957 = vunpack.c.h.b16 %v849
      %v958 = vpack.c.b16 %v896, %v894
      %v959 = vpack.c.b16 %v897, %v895
      %v960 = vpack.c.b16 %v900, %v898
      %v961 = vpack.c.b16 %v901, %v899
      %v962 = vpack.c.b16 %v904, %v902
      %v963 = vpack.c.b16 %v905, %v903
      %v964 = vpack.c.b16 %v908, %v906
      %v965 = vpack.c.b16 %v909, %v907
      %v966 = vpack.c.b16 %v912, %v910
      %v967 = vpack.c.b16 %v913, %v911
      %v968 = vpack.c.b16 %v916, %v914
      %v969 = vpack.c.b16 %v917, %v915
      %v970 = vpack.c.b16 %v920, %v918
      %v971 = vpack.c.b16 %v921, %v919
      %v972 = vpack.c.b16 %v924, %v922
      %v973 = vpack.c.b16 %v925, %v923
      %v974 = vpack.c.b16 %v928, %v926
      %v975 = vpack.c.b16 %v929, %v927
      %v976 = vpack.c.b16 %v932, %v930
      %v977 = vpack.c.b16 %v933, %v931
      %v978 = vpack.c.b16 %v936, %v934
      %v979 = vpack.c.b16 %v937, %v935
      %v980 = vpack.c.b16 %v940, %v938
      %v981 = vpack.c.b16 %v941, %v939
      %v982 = vpack.c.b16 %v944, %v942
      %v983 = vpack.c.b16 %v945, %v943
      %v984 = vpack.c.b16 %v948, %v946
      %v985 = vpack.c.b16 %v949, %v947
      %v986 = vpack.c.b16 %v952, %v950
      %v987 = vpack.c.b16 %v953, %v951
      %v988 = vpack.c.b16 %v956, %v954
      %v989 = vpack.c.b16 %v957, %v955
      %1022 = vmatprep.subr.bf16.mxu0 %v959
      %1023 = vmatpush1.bf16.msra.mxu0 %v958
      %1024 = vmatprep.subr.bf16.mxu0 %v961
      %1025 = vmatpush1.bf16.msra.mxu0 %v960
      %1026 = vmatprep.subr.bf16.mxu0 %v963
      %1027 = vmatpush1.bf16.msra.mxu0 %v962
      %1028 = vmatprep.subr.bf16.mxu0 %v965
      %1029 = vmatpush1.bf16.msra.mxu0 %v964
      %1030 = vmatprep.subr.bf16.mxu0 %v967
      %1031 = vmatpush1.bf16.msra.mxu0 %v966
      %1032 = vmatprep.subr.bf16.mxu0 %v969
      %1033 = vmatpush1.bf16.msra.mxu0 %v968
      %1034 = vmatprep.subr.bf16.mxu0 %v971
      %1035 = vmatpush1.bf16.msra.mxu0 %v970
      %1036 = vmatprep.subr.bf16.mxu0 %v973
      %1037 = vmatpush1.bf16.msra.mxu0 %v972
      %1038 = vmatprep.subr.bf16.mxu0 %v975
      %1039 = vmatpush1.bf16.msra.mxu0 %v974
      %1040 = vmatprep.subr.bf16.mxu0 %v977
      %1041 = vmatpush1.bf16.msra.mxu0 %v976
      %1042 = vmatprep.subr.bf16.mxu0 %v979
      %1043 = vmatpush1.bf16.msra.mxu0 %v978
      %1044 = vmatprep.subr.bf16.mxu0 %v981
      %1045 = vmatpush1.bf16.msra.mxu0 %v980
      %1046 = vmatprep.subr.bf16.mxu0 %v983
      %1047 = vmatpush1.bf16.msra.mxu0 %v982
      %1048 = vmatprep.subr.bf16.mxu0 %v985
      %1049 = vmatpush1.bf16.msra.mxu0 %v984
      %1050 = vmatprep.subr.bf16.mxu0 %v987
      %1051 = vmatpush1.bf16.msra.mxu0 %v986
      %1052 = vmatprep.subr.bf16.mxu0 %v989
      %1053 = vmatpush1.bf16.msra.mxu0 %v988
      %1054 = vmatprep.mubr.bf16.mxu0 %v859
      %1055 = vmatmul.mubr.bf16.gmra.mrb[0].mxu0 %v858
      %v1056 = vpop.f32.mrb[0].mxu0
      %v1057 = vadd.f32 0.0, %v1056
      %v1058 = vpop.f32.mrb[0].mxu0
      %v1059 = vadd.f32 0.0, %v1058
      %v1060 = vpop.f32.mrb[0].mxu0
      %v1061 = vpop.f32.mrb[0].mxu0
      %1062 = vdwg.mxu0
      %v1063 = vadd.f32 %v815, %v1057
      %v1064 = vadd.f32 %v816, %v1059
      %1065 = vst [vmem:[#allocation2] sm:$0xff] %v1063
      %1066 = vst [vmem:[#allocation2 + $0x8] sm:$0xff] %v1064
      %p1067 = scmp.eq.s32.totalorder %s23, 2
      // Predicated region
      $region37: #{deeplab_cls_forward_test.21} parent=31 // pred_check
        %p1068 = pneg %p1067
      $region38: #{deeplab_cls_forward_test.21} parent=31 // pred_check_branch
        %1070 = sbr.rel (%p1068) target = $region40
      $region39: #{deeplab_cls_forward_test.21} parent=31 // pred_region
        %v1071 = vld [vmem:[#allocation2] sm:$0xff]
        %v1072 = vld [vmem:[#allocation2 + $0x8] sm:$0xff]
        %v1073 = vld [vmem:[%s278] sm:$0x3]
        %v1075 = vlaneseq
        %v1076 = vshrl.u32 %v1075, 7
        %v1077 = vsub.s32 0, %v1076
        %v1078 = vrot.slane %v1073, %v1077
        %v1079 = vlaneseq
        %v1080 = vshrl.u32 %v1079, 7
        %v1081 = vsub.s32 1, %v1080
        %v1082 = vrot.slane %v1073, %v1081
        %v1085 = vadd.f32 %v1071, %v1078
        %v1086 = vadd.f32 %v1072, %v1082
        %vm1087 = vcmp.gt.f32.partialorder %v1085, 0.0
        %vm1088 = vcmp.gt.f32.partialorder %v1086, 0.0
        %v1089 = vmin.f32 %v1085, 0.0
        %v1090 = vmin.f32 %v1086, 0.0
        %v1091 = vmul.f32 %v1089, 1.442695
        %v1092 = vpow.pop %v1091
        %v1093 = vmul.f32 %v1090, 1.442695
        %v1094 = vpow.pop %v1093
        %v1095 = vsub.f32 %v1092, 1.0
        %v1096 = vsub.f32 %v1094, 1.0
        %v1097 = vsel %vm1087, %v1085, %v1095
        %v1098 = vsel %vm1088, %v1086, %v1096
        %v1099 = vpack.c.bf16 %v1097, %v1097
        %v1100 = vpack.c.bf16 %v1098, %v1098
        %v1103 = vunpack.c.l.b16 %v1099
        %v1104 = vunpack.c.l.b16 %v1100
        %v1105 = vpack.c.b16 %v1104, %v1103
        %1107 = vst [vmem:[%s292] sm:$0xff] %v1105
      $region40: #{deeplab_cls_forward_test.21} parent=31 // pred_fallthru
        _
      %s1108 = smul.u32 2, %s22
      %p1109 = scmp.lt.s32.totalorder %s20, 1
      %s1110 = scalar_select %p1109, %s20, 1
      %p1111 = scmp.lt.s32.totalorder %s21, 7
      %s1112 = scalar_select %p1111, %s21, 7
      %p1113 = scmp.lt.s32.totalorder %s1108, 1
      %s1114 = scalar_select %p1113, %s1108, 1
      %s1115 = smul.addr %s1112, 2
      %s1116 = sadd.s32 %s1114, %s1115
      %s1117 = smul.addr %s1110, 16
      %s1118 = sadd.s32 %s1116, %s1117
      %s1119 = smul.addr %s1118, 4
      %s1120 = scalar_lea.vmem %s3, %s1119
      // Predicated region
      $region41: #{deeplab_cls_forward_test.21} parent=31 // pred_check
        %p1121 = pneg %p146
      $region42: #{deeplab_cls_forward_test.21} parent=31 // pred_check_branch
        %1123 = sbr.rel (%p1121) target = $region44
      $region43: #{deeplab_cls_forward_test.21} parent=31 // pred_region
        %s1124 = smul.u32 2, %s22
      $region44: #{deeplab_cls_forward_test.21} parent=31 // pred_fallthru
        _
    $region32: #{deeplab_cls_forward_test.21} parent=5 // pred_fallthru
      _
    %p1125 = scmp.le.s32.totalorder 2, %s9
    // Predicated region
    $region45: #{deeplab_cls_forward_test.21} parent=5 // pred_check
      %p1126 = pneg %p1125
    $region46: #{deeplab_cls_forward_test.21} parent=5 // pred_check_branch
      %1128 = sbr.rel (%p1126) target = $region48
    $region47: #{deeplab_cls_forward_test.21} parent=5 // pred_region
      %s1129 = ssub.s32 %s9, 2
      // Predicated region
      $region49: #{deeplab_cls_forward_test.21} parent=47 // pred_check
        %p1130 = pneg %p152
      $region50: #{deeplab_cls_forward_test.21} parent=47 // pred_check_branch
        %1132 = sbr.rel (%p1130) target = $region52
      $region51: #{deeplab_cls_forward_test.21} parent=47 // pred_region
        %s1133 = smul.u32 2, %s26
        %p1134 = scmp.lt.s32.totalorder %s24, 1
        %s1135 = scalar_select %p1134, %s24, 1
        %p1136 = scmp.lt.s32.totalorder %s25, 7
        %s1137 = scalar_select %p1136, %s25, 7
        %p1138 = scmp.lt.s32.totalorder %s1133, 1
        %s1139 = scalar_select %p1138, %s1133, 1
        %s1140 = smul.addr %s1137, 2
        %s1141 = sadd.s32 %s1139, %s1140
        %s1142 = smul.addr %s1135, 16
        %s1143 = sadd.s32 %s1141, %s1142
        %s1144 = smul.addr %s1143, 4
        %s1145 = scalar_lea.vmem %s3, %s1144
      $region52: #{deeplab_cls_forward_test.21} parent=47 // pred_fallthru
        _
    $region48: #{deeplab_cls_forward_test.21} parent=5 // pred_fallthru
      _
  $region6: #{deeplab_cls_forward_test.21} parent=0 // loop_footer
    %s13 = sadd.s32 1, %s9
  $region7: #{deeplab_cls_forward_test.21} parent=0 // loop_footer_branch
    %8 = sbr.rel target = $region3
  $region8: #{deeplab_cls_forward_test.21} parent=0 // loop_exit
    _

// kernel: deeplab_cls_forward_test.22
$region0: #{deeplab_cls_forward_test.22}
  #allocation0 [shape = 'u32[]', space=smem, size = 0x4, offset = 0x4, fixed_abs, tag = 'smem constant byte address 0x4 - core index']
  #allocation1 [shape = 'u32[144,128]{1,0:T(1,128)}', space=vmem, size = 0x12000, scoped, tag = 'internal scratch']
  #allocation2 [shape = 'f32[1,1]{1,0:T(1,128)S(1)}', space=vmem, size = 0x200, scoped, tag = 'scoped memory for deeplab_cls_forward_test.22']
  %s0 = inlined_call_operand.vmem [shape: bf16[1,128,256], index: 0, kind: input, shape index: {}]
  %s1 = inlined_call_operand.vmem [shape: f32[1,1,256], index: 1, kind: input, shape index: {}]
  %s2 = inlined_call_operand.<no memory space> [shape: f32[1,1], index: 2, kind: input, shape index: {}]
  %s3 = inlined_call_operand.vmem [shape: f32[1,128], index: 3, kind: output, shape index: {}]
  %s4 = sld [smem:[#allocation0]]
  $region22: #{deeplab_cls_forward_test.22} parent=0
    _
  %s6 = ssub.s32 1, %s4
  %s7 = scalar_select 0, %s6, %s4
  %v8 = vstv %s2
  %9 = vst [vmem:[#allocation2] sm:$0x1] %v8
  // Predicated region
  $region2: #{deeplab_cls_forward_test.22} parent=0 // pred_check
    _
  $region3: #{deeplab_cls_forward_test.22} parent=0 // pred_check_branch
    %11 = sbr.rel (0) target = $region5
  $region4: #{deeplab_cls_forward_test.22} parent=0 // pred_region
    _
  $region5: #{deeplab_cls_forward_test.22} parent=0 // pred_fallthru
    _
  // Predicated region
  $region6: #{deeplab_cls_forward_test.22} parent=0 // pred_check
    _
  $region7: #{deeplab_cls_forward_test.22} parent=0 // pred_check_branch
    %13 = sbr.rel (0) target = $region9
  $region8: #{deeplab_cls_forward_test.22} parent=0 // pred_region
    _
  $region9: #{deeplab_cls_forward_test.22} parent=0 // pred_fallthru
    _
  // Predicated region
  $region10: #{deeplab_cls_forward_test.22} parent=0 // pred_check
    _
  $region11: #{deeplab_cls_forward_test.22} parent=0 // pred_check_branch
    %15 = sbr.rel (0) target = $region13
  $region12: #{deeplab_cls_forward_test.22} parent=0 // pred_region
    _
  $region13: #{deeplab_cls_forward_test.22} parent=0 // pred_fallthru
    _
  %v16 = vld [vmem:[%s0] sm:$0xff]
  %v17 = vld [vmem:[%s0 + $0x8] sm:$0xff]
  %v18 = vld [vmem:[%s0 + $0x10] sm:$0xff]
  %v19 = vld [vmem:[%s0 + $0x18] sm:$0xff]
  %v20 = vld [vmem:[%s0 + $0x20] sm:$0xff]
  %v21 = vld [vmem:[%s0 + $0x28] sm:$0xff]
  %v22 = vld [vmem:[%s0 + $0x30] sm:$0xff]
  %v23 = vld [vmem:[%s0 + $0x38] sm:$0xff]
  %v24 = vld [vmem:[%s0 + $0x40] sm:$0xff]
  %v25 = vld [vmem:[%s0 + $0x48] sm:$0xff]
  %v26 = vld [vmem:[%s0 + $0x50] sm:$0xff]
  %v27 = vld [vmem:[%s0 + $0x58] sm:$0xff]
  %v28 = vld [vmem:[%s0 + $0x60] sm:$0xff]
  %v29 = vld [vmem:[%s0 + $0x68] sm:$0xff]
  %v30 = vld [vmem:[%s0 + $0x70] sm:$0xff]
  %v31 = vld [vmem:[%s0 + $0x78] sm:$0xff]
  %v32 = vunpack.c.l.bf16 %v16
  %v33 = vunpack.c.h.bf16 %v16
  %v34 = vunpack.c.l.bf16 %v17
  %v35 = vunpack.c.h.bf16 %v17
  %v36 = vunpack.c.l.bf16 %v18
  %v37 = vunpack.c.h.bf16 %v18
  %v38 = vunpack.c.l.bf16 %v19
  %v39 = vunpack.c.h.bf16 %v19
  %v40 = vunpack.c.l.bf16 %v20
  %v41 = vunpack.c.h.bf16 %v20
  %v42 = vunpack.c.l.bf16 %v21
  %v43 = vunpack.c.h.bf16 %v21
  %v44 = vunpack.c.l.bf16 %v22
  %v45 = vunpack.c.h.bf16 %v22
  %v46 = vunpack.c.l.bf16 %v23
  %v47 = vunpack.c.h.bf16 %v23
  %v48 = vunpack.c.l.bf16 %v24
  %v49 = vunpack.c.h.bf16 %v24
  %v50 = vunpack.c.l.bf16 %v25
  %v51 = vunpack.c.h.bf16 %v25
  %v52 = vunpack.c.l.bf16 %v26
  %v53 = vunpack.c.h.bf16 %v26
  %v54 = vunpack.c.l.bf16 %v27
  %v55 = vunpack.c.h.bf16 %v27
  %v56 = vunpack.c.l.bf16 %v28
  %v57 = vunpack.c.h.bf16 %v28
  %v58 = vunpack.c.l.bf16 %v29
  %v59 = vunpack.c.h.bf16 %v29
  %v60 = vunpack.c.l.bf16 %v30
  %v61 = vunpack.c.h.bf16 %v30
  %v62 = vunpack.c.l.bf16 %v31
  %v63 = vunpack.c.h.bf16 %v31
  %v64 = vld [vmem:[%s1] sm:$0x3]
  %v66 = vlaneseq
  %v67 = vshrl.u32 %v66, 7
  %v68 = vsub.s32 0, %v67
  %v69 = vrot.slane %v64, %v68
  %v70 = vlaneseq
  %v71 = vshrl.u32 %v70, 7
  %v72 = vsub.s32 1, %v71
  %v73 = vrot.slane %v64, %v72
  %v76 = vmul.f32 %v32, %v69
  %v77 = vmul.f32 %v33, %v73
  %v78 = vmul.f32 %v34, %v69
  %v79 = vmul.f32 %v35, %v73
  %v80 = vmul.f32 %v36, %v69
  %v81 = vmul.f32 %v37, %v73
  %v82 = vmul.f32 %v38, %v69
  %v83 = vmul.f32 %v39, %v73
  %v84 = vmul.f32 %v40, %v69
  %v85 = vmul.f32 %v41, %v73
  %v86 = vmul.f32 %v42, %v69
  %v87 = vmul.f32 %v43, %v73
  %v88 = vmul.f32 %v44, %v69
  %v89 = vmul.f32 %v45, %v73
  %v90 = vmul.f32 %v46, %v69
  %v91 = vmul.f32 %v47, %v73
  %v92 = vmul.f32 %v48, %v69
  %v93 = vmul.f32 %v49, %v73
  %v94 = vmul.f32 %v50, %v69
  %v95 = vmul.f32 %v51, %v73
  %v96 = vmul.f32 %v52, %v69
  %v97 = vmul.f32 %v53, %v73
  %v98 = vmul.f32 %v54, %v69
  %v99 = vmul.f32 %v55, %v73
  %v100 = vmul.f32 %v56, %v69
  %v101 = vmul.f32 %v57, %v73
  %v102 = vmul.f32 %v58, %v69
  %v103 = vmul.f32 %v59, %v73
  %v104 = vmul.f32 %v60, %v69
  %v105 = vmul.f32 %v61, %v73
  %v106 = vmul.f32 %v62, %v69
  %v107 = vmul.f32 %v63, %v73
  %v108 = vadd.f32 %v76, %v77
  %109 = vadd.xlane.f32.xlu0 %v108
  %v110 = vpop.xlane.xlu0 %109
  %v111 = vadd.f32 %v78, %v79
  %112 = vadd.xlane.f32.xlu0 %v111
  %v113 = vpop.xlane.xlu0 %112
  %v114 = vadd.f32 %v80, %v81
  %115 = vadd.xlane.f32.xlu0 %v114
  %v116 = vpop.xlane.xlu0 %115
  %v117 = vadd.f32 %v82, %v83
  %118 = vadd.xlane.f32.xlu0 %v117
  %v119 = vpop.xlane.xlu0 %118
  %v120 = vadd.f32 %v84, %v85
  %121 = vadd.xlane.f32.xlu0 %v120
  %v122 = vpop.xlane.xlu0 %121
  %v123 = vadd.f32 %v86, %v87
  %124 = vadd.xlane.f32.xlu0 %v123
  %v125 = vpop.xlane.xlu0 %124
  %v126 = vadd.f32 %v88, %v89
  %127 = vadd.xlane.f32.xlu0 %v126
  %v128 = vpop.xlane.xlu0 %127
  %v129 = vadd.f32 %v90, %v91
  %130 = vadd.xlane.f32.xlu0 %v129
  %v131 = vpop.xlane.xlu0 %130
  %v132 = vadd.f32 %v92, %v93
  %133 = vadd.xlane.f32.xlu0 %v132
  %v134 = vpop.xlane.xlu0 %133
  %v135 = vadd.f32 %v94, %v95
  %136 = vadd.xlane.f32.xlu0 %v135
  %v137 = vpop.xlane.xlu0 %136
  %v138 = vadd.f32 %v96, %v97
  %139 = vadd.xlane.f32.xlu0 %v138
  %v140 = vpop.xlane.xlu0 %139
  %v141 = vadd.f32 %v98, %v99
  %142 = vadd.xlane.f32.xlu0 %v141
  %v143 = vpop.xlane.xlu0 %142
  %v144 = vadd.f32 %v100, %v101
  %145 = vadd.xlane.f32.xlu0 %v144
  %v146 = vpop.xlane.xlu0 %145
  %v147 = vadd.f32 %v102, %v103
  %148 = vadd.xlane.f32.xlu0 %v147
  %v149 = vpop.xlane.xlu0 %148
  %v150 = vadd.f32 %v104, %v105
  %151 = vadd.xlane.f32.xlu0 %v150
  %v152 = vpop.xlane.xlu0 %151
  %v153 = vadd.f32 %v106, %v107
  %154 = vadd.xlane.f32.xlu0 %v153
  %v155 = vpop.xlane.xlu0 %154
  %v156 = vld [vmem:[#allocation2] sm:$0x1]
  %158 = vset.pattern.permute.xlu0 0
  %159 = vperm.xlu0 %158, %v156
  %v160 = vpop.permute.xlu0 %159
  %v162 = vlaneseq
  %v163 = vshrl.u32 %v162, 7
  %v164 = vsub.s32 0, %v163
  %v165 = vrot.slane %v160, %v164
  %v166 = vadd.f32 %v110, %v165
  %v167 = vadd.f32 %v113, %v165
  %v168 = vadd.f32 %v116, %v165
  %v169 = vadd.f32 %v119, %v165
  %v170 = vadd.f32 %v122, %v165
  %v171 = vadd.f32 %v125, %v165
  %v172 = vadd.f32 %v128, %v165
  %v173 = vadd.f32 %v131, %v165
  %v174 = vadd.f32 %v134, %v165
  %v175 = vadd.f32 %v137, %v165
  %v176 = vadd.f32 %v140, %v165
  %v177 = vadd.f32 %v143, %v165
  %v178 = vadd.f32 %v146, %v165
  %v179 = vadd.f32 %v149, %v165
  %v180 = vadd.f32 %v152, %v165
  %v181 = vadd.f32 %v155, %v165
  %v198 = vlaneseq
  %v199 = vand.u32 %v198, 127
  %v200 = vlaneseq
  %v201 = vshrl.u32 %v200, 7
  %v202 = vsub.s32 %v199, %v201
  %v203 = vrot.slane %v166, %v202
  %v204 = vadd.s32 %v199, 4294967288
  %v205 = vlaneseq
  %v206 = vshrl.u32 %v205, 7
  %v207 = vsub.s32 %v204, %v206
  %v208 = vrot.slane %v167, %v207
  %vm209 = vcmask 130112
  %v210 = vsel %vm209, %v208, %v203
  %v211 = vadd.s32 %v199, 4294967280
  %v212 = vlaneseq
  %v213 = vshrl.u32 %v212, 7
  %v214 = vsub.s32 %v211, %v213
  %v215 = vrot.slane %v168, %v214
  %vm216 = vcmask 195712
  %v217 = vsel %vm216, %v215, %v210
  %v218 = vadd.s32 %v199, 4294967272
  %v219 = vlaneseq
  %v220 = vshrl.u32 %v219, 7
  %v221 = vsub.s32 %v218, %v220
  %v222 = vrot.slane %v169, %v221
  %vm223 = vcmask 261312
  %v224 = vsel %vm223, %v222, %v217
  %v225 = vadd.s32 %v199, 4294967264
  %v226 = vlaneseq
  %v227 = vshrl.u32 %v226, 7
  %v228 = vsub.s32 %v225, %v227
  %v229 = vrot.slane %v170, %v228
  %vm230 = vcmask 326912
  %v231 = vsel %vm230, %v229, %v224
  %v232 = vadd.s32 %v199, 4294967256
  %v233 = vlaneseq
  %v234 = vshrl.u32 %v233, 7
  %v235 = vsub.s32 %v232, %v234
  %v236 = vrot.slane %v171, %v235
  %vm237 = vcmask 392512
  %v238 = vsel %vm237, %v236, %v231
  %v239 = vadd.s32 %v199, 4294967248
  %v240 = vlaneseq
  %v241 = vshrl.u32 %v240, 7
  %v242 = vsub.s32 %v239, %v241
  %v243 = vrot.slane %v172, %v242
  %vm244 = vcmask 458112
  %v245 = vsel %vm244, %v243, %v238
  %v246 = vadd.s32 %v199, 4294967240
  %v247 = vlaneseq
  %v248 = vshrl.u32 %v247, 7
  %v249 = vsub.s32 %v246, %v248
  %v250 = vrot.slane %v173, %v249
  %vm251 = vcmask 523712
  %v252 = vsel %vm251, %v250, %v245
  %v253 = vadd.s32 %v199, 4294967232
  %v254 = vlaneseq
  %v255 = vshrl.u32 %v254, 7
  %v256 = vsub.s32 %v253, %v255
  %v257 = vrot.slane %v174, %v256
  %vm258 = vcmask 589312
  %v259 = vsel %vm258, %v257, %v252
  %v260 = vadd.s32 %v199, 4294967224
  %v261 = vlaneseq
  %v262 = vshrl.u32 %v261, 7
  %v263 = vsub.s32 %v260, %v262
  %v264 = vrot.slane %v175, %v263
  %vm265 = vcmask 654912
  %v266 = vsel %vm265, %v264, %v259
  %v267 = vadd.s32 %v199, 4294967216
  %v268 = vlaneseq
  %v269 = vshrl.u32 %v268, 7
  %v270 = vsub.s32 %v267, %v269
  %v271 = vrot.slane %v176, %v270
  %vm272 = vcmask 720512
  %v273 = vsel %vm272, %v271, %v266
  %v274 = vadd.s32 %v199, 4294967208
  %v275 = vlaneseq
  %v276 = vshrl.u32 %v275, 7
  %v277 = vsub.s32 %v274, %v276
  %v278 = vrot.slane %v177, %v277
  %vm279 = vcmask 786112
  %v280 = vsel %vm279, %v278, %v273
  %v281 = vadd.s32 %v199, 4294967200
  %v282 = vlaneseq
  %v283 = vshrl.u32 %v282, 7
  %v284 = vsub.s32 %v281, %v283
  %v285 = vrot.slane %v178, %v284
  %vm286 = vcmask 851712
  %v287 = vsel %vm286, %v285, %v280
  %v288 = vadd.s32 %v199, 4294967192
  %v289 = vlaneseq
  %v290 = vshrl.u32 %v289, 7
  %v291 = vsub.s32 %v288, %v290
  %v292 = vrot.slane %v179, %v291
  %vm293 = vcmask 917312
  %v294 = vsel %vm293, %v292, %v287
  %v295 = vadd.s32 %v199, 4294967184
  %v296 = vlaneseq
  %v297 = vshrl.u32 %v296, 7
  %v298 = vsub.s32 %v295, %v297
  %v299 = vrot.slane %v180, %v298
  %vm300 = vcmask 982912
  %v301 = vsel %vm300, %v299, %v294
  %v302 = vadd.s32 %v199, 4294967176
  %v303 = vlaneseq
  %v304 = vshrl.u32 %v303, 7
  %v305 = vsub.s32 %v302, %v304
  %v306 = vrot.slane %v181, %v305
  %vm307 = vcmask 1048512
  %v308 = vsel %vm307, %v306, %v301
  %310 = vst [vmem:[%s3] sm:$0x1] %v308
  // Predicated region
  $region14: #{deeplab_cls_forward_test.22} parent=0 // pred_check
    _
  $region15: #{deeplab_cls_forward_test.22} parent=0 // pred_check_branch
    %312 = sbr.rel (0) target = $region17
  $region16: #{deeplab_cls_forward_test.22} parent=0 // pred_region
    _
  $region17: #{deeplab_cls_forward_test.22} parent=0 // pred_fallthru
    _
  // Predicated region
  $region18: #{deeplab_cls_forward_test.22} parent=0 // pred_check
    _
  $region19: #{deeplab_cls_forward_test.22} parent=0 // pred_check_branch
    %314 = sbr.rel (0) target = $region21
  $region20: #{deeplab_cls_forward_test.22} parent=0 // pred_region
    _
  $region21: #{deeplab_cls_forward_test.22} parent=0 // pred_fallthru
    _

</llo_original>
